<compile_context>
chip_gen: v6e
topology: v6e:2x2x1
jax: 0.10.0
libtpu: 0.0.40
codegen_flags: <defaults>
</compile_context>

<pallas_src>
import functools
import numpy as np
import jax
import jax.numpy as jnp
from jax.experimental import pallas as pl
from jax.experimental.pallas import tpu as pltpu


# --------------------------------- kernel ---------------------------------
def _attn_model_kernel(q_ref, k_ref, pad_ref, fold_ref, src_ref,
                       wq_ref, wkv_ref,
                       fcw_ref, fcb_ref, lnw_ref, lnb_ref,
                       fc1a_ref, fc1b_ref, fc1bias_ref, fc2w_ref, fc2b_ref,
                       z_ref, attn_ref):
    f32, bf16 = jnp.float32, jnp.bfloat16

    R, D = q_ref.shape              # rows = TILE_B * N_src, model_dim
    C = k_ref.shape[0]              # cols = TILE_B * N_ngh
    H = pad_ref.shape[0]            # n_head
    dk = D // H
    nn = C // R                     # neighbours per source node
    ATT = attn_ref.shape[1]         # lane-dense attention output width (128-padded)

    q_f32 = q_ref[...]                                                        # residual (f32)

    # --- fused projections (bf16 operands, f32 accumulation, MXU) ---
    qp = jnp.dot(q_f32.astype(bf16), wq_ref[...],
                 preferred_element_type=f32)                                  # [R, D]
    kvp = jnp.dot(k_ref[...], wkv_ref[...],
                  preferred_element_type=f32)                                 # [C, 2D]
    kp = kvp[:, :D]                                                           # 128-lane aligned
    vp = kvp[:, D:]

    scale = 1.0 / float(dk) ** 0.5
    pad_bias = pad_ref[...]                                                   # [H, C] in {0, -1e10}

    # Block-diagonal neighbour exclusion built in-kernel (no dense HBM bias):
    # row r only attends to columns [r*nn, (r+1)*nn).  Head-independent -> hoisted.
    row_ids = jax.lax.broadcasted_iota(jnp.int32, (R, C), 0)
    col_ids = jax.lax.broadcasted_iota(jnp.int32, (R, C), 1)
    on_block = (col_ids >= row_ids * nn) & (col_ids < (row_ids + 1) * nn)     # [R, C] bool

    # output projection accumulated per head: fc(concat_h o_h) == sum_h o_h @ fc_w[h rows]
    out = q_f32 + fcb_ref[...]                                                # residual + fc bias
    attn_acc = jnp.zeros((R, ATT), f32)

    for h in range(H):                                                        # n_head static -> unrolled
        qh = qp[:, h * dk:(h + 1) * dk].astype(bf16)                          # [R, dk]
        kh = kp[:, h * dk:(h + 1) * dk].astype(bf16)                          # [C, dk]
        vh = vp[:, h * dk:(h + 1) * dk].astype(bf16)                          # [C, dk]

        # bf16 MXU score matmul, f32 bias/softmax math.  Sentinels: -1e10 padding
        # (fully-masked rows stay uniform), -2e10 neighbour exclusion (exp -> exact 0).
        s = jnp.dot(qh, kh.T, preferred_element_type=f32) * scale             # [R, C] f32
        s = jnp.where(on_block, s, -2e10) + pad_bias[h:h + 1, :]              # f32 bias add
        m = jnp.max(s, axis=-1, keepdims=True)
        p = jnp.exp(s - m)                                                    # excluded cols -> exactly 0
        l = jnp.sum(p, axis=-1, keepdims=True)
        a = p * (1.0 / l)                                                     # exact recip ([R,1]: negligible)

        a_bf = a.astype(bf16)
        # attention map packed lane-dense: head h's nn probabilities land in lanes [h*nn, (h+1)*nn)
        attn_acc = attn_acc + jnp.dot(a_bf, fold_ref[h],
                                      preferred_element_type=f32)             # [R, ATT]

        o_h = jnp.dot(a_bf, vh, preferred_element_type=f32)                   # [R, dk]
        out = out + jnp.dot(o_h.astype(bf16), fcw_ref[h * dk:(h + 1) * dk, :],
                            preferred_element_type=f32)

    attn_ref[...] = attn_acc                                                  # lane-dense store

    # --- LayerNorm over model_dim (torch default eps = 1e-5) ---
    mu = jnp.mean(out, axis=-1, keepdims=True)
    var = jnp.mean((out - mu) ** 2, axis=-1, keepdims=True)
    out = (out - mu) * jax.lax.rsqrt(var + 1e-5) * lnw_ref[...] + lnb_ref[...]

    # --- MergeLayer, fc1 split into [D,*] and [feat,*] blocks (no 160-lane concat) ---
    hdn = (jnp.dot(out.astype(bf16), fc1a_ref[...], preferred_element_type=f32)
           + jnp.dot(src_ref[...], fc1b_ref[...], preferred_element_type=f32)
           + fc1bias_ref[...])
    hdn = jnp.maximum(hdn, 0.0)
    # fc2 weights are zero-padded to 128 output lanes -> lane-dense z store
    z_ref[...] = jnp.dot(hdn.astype(bf16), fc2w_ref[...],
                         preferred_element_type=f32) + fc2b_ref[...]


# --------------------------------- wrapper ---------------------------------
def _pick_tile_b(B, Ns, max_rows=256):
    """Largest TILE_B dividing B with R_t = TILE_B*Ns a multiple of 8, <= max_rows,
    preferring a grid of >= 2 steps; falls back to the whole batch (full-array blocks)."""
    best = None
    for tb in range(1, B + 1):
        if B % tb:
            continue
        r = tb * Ns
        if r % 8 == 0 and r <= max_rows and B // tb >= 2:
            best = tb
    if best is None:
        for tb in range(1, B + 1):
            if B % tb == 0 and (tb * Ns) % 8 == 0 and tb * Ns <= max_rows:
                best = tb
    return best if best is not None else B


def attn_model_forward(src, src_t, src_p, seq, seq_t, seq_e, seq_p, mask,
                       Wq, Wk, Wv, fc_w, fc_b, ln_w, ln_b,
                       fc1_w, fc1_b, fc2_w, fc2_b, *, n_head, edge_dim):
    f32, bf16 = jnp.float32, jnp.bfloat16
    B, Ns, feat = src.shape
    Nngh = seq.shape[1]
    nn = Nngh // Ns
    H = n_head

    # glue identical to AttnModel.forward (plain JAX)
    src_e = jnp.zeros((B, Ns, edge_dim), f32)
    q = jnp.concatenate([src, src_e, src_t, src_p], axis=2)        # [B, Ns, D]
    k = jnp.concatenate([seq, seq_e, seq_t, seq_p], axis=2)        # [B, Nngh, D]
    D = q.shape[-1]
    dk = D // H

    # flatten batch into rows; bf16 for matmul-only HBM operands, f32 residual
    q2d = q.reshape(B * Ns, D)                                     # f32 (also the residual)
    k2d = k.reshape(B * Nngh, D).astype(bf16)
    src2d = src.reshape(B * Ns, feat).astype(bf16)

    # batch tiling: T >= 2 grid steps so the pipeliner overlaps DMA/compute and v7x
    # megacore can shard the grid; R_t kept around 128 rows (multiple of 8).
    TILE_B = _pick_tile_b(B, Ns)
    T = B // TILE_B
    R_t, C_t = TILE_B * Ns, TILE_B * Nngh

    # per-head per-COLUMN padding bias [T, H, C_t] (0 / -1e10), replicating torch's
    # head-major mask tiling (mask.view(B*Ns,1,nn).repeat(n_head,1,1)).  Column
    # c_local = r_local*nn + slot belongs to source row r_local, so the column-wise
    # bias is exact on the diagonal neighbour block; off-block entries get the in-kernel
    # -2e10 exclusion anyway.  HBM traffic is linear in batch (no dense bias tensor).
    mask_flat = mask.reshape(B * Ns, nn)
    mask_rep = jnp.tile(mask_flat, (H, 1))                         # torch .repeat(n_head,1,1)
    mask_eff = mask_rep.reshape(B, Ns, H, nn)
    pad = jnp.transpose(mask_eff, (2, 0, 1, 3)).reshape(H, B * Ns, nn)        # [H, B*Ns, nn]
    pad_t = pad.reshape(H, T, R_t, nn).transpose(1, 0, 2, 3)                  # [T, H, R_t, nn]
    pad_col = jnp.where(pad_t.reshape(T, H, C_t), -1e10, 0.0).astype(f32)     # [T, H, C_t]

    # lane-dense padded output widths
    Z_OUT = fc2_w.shape[0]
    Z_PAD = max(128, -(-Z_OUT // 128) * 128)
    ATT_PAD = max(128, -(-(H * nn) // 128) * 128)

    # per-head fold: scatter column c's probability into lane h*nn + (c % nn); identical
    # for every tile (depends only on the local column index), bf16, 128-lane padded.
    lane = np.arange(ATT_PAD)
    slot = np.arange(C_t) % nn
    fold = jnp.asarray(
        lane[None, None, :] == (np.arange(H)[:, None, None] * nn + slot[None, :, None]),
        bf16)                                                                 # [H, C_t, ATT_PAD]

    # weight packing: pre-transposed to [in, out], K/V fused, fc1 split, fc2 lane-padded
    wq_t = Wq.T.astype(bf16)                                       # [D, D]
    wkv_t = jnp.concatenate([Wk.T, Wv.T], axis=1).astype(bf16)     # [D, 2D]
    fc_wt = fc_w.T.astype(bf16)                                    # [D, D]
    fc1_t = fc1_w.T                                                # [D+feat, hidden]
    fc1a = fc1_t[:D].astype(bf16)                                  # [D, hidden]
    fc1b = fc1_t[D:].astype(bf16)                                  # [feat, hidden]
    hid = fc1_t.shape[1]
    fc2_t = jnp.zeros((hid, Z_PAD), f32).at[:, :Z_OUT].set(fc2_w.T).astype(bf16)
    row = lambda v: v.reshape(1, -1).astype(f32)
    fc_b2, ln_w2, ln_b2, fc1_b2 = row(fc_b), row(ln_w), row(ln_b), row(fc1_b)
    fc2_b2 = jnp.zeros((1, Z_PAD), f32).at[:, :Z_OUT].set(fc2_b.reshape(1, -1))

    def full_spec(arr):
        nd = arr.ndim
        return pl.BlockSpec(arr.shape, lambda t, nd=nd: (0,) * nd)

    grid_spec = pltpu.PrefetchScalarGridSpec(
        num_scalar_prefetch=0,
        grid=(T,),
        in_specs=[
            pl.BlockSpec((R_t, D), lambda t: (t, 0)),                           # q2d
            pl.BlockSpec((C_t, D), lambda t: (t, 0)),                           # k2d
            pl.BlockSpec((pl.Squeezed(), H, C_t), lambda t: (t, 0, 0)),         # pad_col
            full_spec(fold),                                                    # fold
            pl.BlockSpec((R_t, feat), lambda t: (t, 0)),                        # src2d
            full_spec(wq_t), full_spec(wkv_t),
            full_spec(fc_wt), full_spec(fc_b2), full_spec(ln_w2), full_spec(ln_b2),
            full_spec(fc1a), full_spec(fc1b), full_spec(fc1_b2),
            full_spec(fc2_t), full_spec(fc2_b2),
        ],
        out_specs=[
            pl.BlockSpec((R_t, Z_PAD), lambda t: (t, 0)),                       # z (128-lane padded)
            pl.BlockSpec((R_t, ATT_PAD), lambda t: (t, 0)),                     # attn (128-lane padded)
        ],
    )

    out_shape = (
        jax.ShapeDtypeStruct((B * Ns, Z_PAD), f32),
        jax.ShapeDtypeStruct((B * Ns, ATT_PAD), f32),
    )

    # advisory cost estimate so XLA schedules neighbouring ops around the custom call
    flops = 2 * T * (
        R_t * D * D + C_t * D * 2 * D
        + H * (2 * R_t * C_t * dk + R_t * C_t * ATT_PAD + R_t * dk * D)
        + R_t * (D * hid + feat * hid + hid * Z_PAD))
    bytes_accessed = int(
        4 * (q2d.size + pad_col.size + B * Ns * (Z_PAD + ATT_PAD)
             + fc_b2.size + ln_w2.size + ln_b2.size + fc1_b2.size + fc2_b2.size)
        + 2 * (k2d.size + src2d.size + fold.size + wq_t.size + wkv_t.size
               + fc_wt.size + fc1a.size + fc1b.size + fc2_t.size))
    cost = pl.CostEstimate(flops=int(flops),
                           transcendentals=int(T * H * R_t * C_t),
                           bytes_accessed=bytes_accessed)

    z_pad, attn_pad = pl.pallas_call(
        _attn_model_kernel,
        out_shape=out_shape,
        grid_spec=grid_spec,
        compiler_params=pltpu.CompilerParams(dimension_semantics=("parallel",)),
        cost_estimate=cost,
    )(q2d, k2d, pad_col, fold, src2d,
      wq_t, wkv_t, fc_wt, fc_b2, ln_w2, ln_b2,
      fc1a, fc1b, fc1_b2, fc2_t, fc2_b2)

    z = z_pad[:, :Z_OUT].reshape(B, Ns, Z_OUT)
    attn = attn_pad[:, :H * nn].reshape(B, Ns, H, nn)
    return z, attn


# ------------------- pure-numpy reference (mirrors PyTorch) -------------------
def _softmax_np(x, axis):
    m = np.max(x, axis=axis, keepdims=True)
    e = np.exp(x - m)
    return e / np.sum(e, axis=axis, keepdims=True)


def ref_forward(src, src_t, src_p, seq, seq_t, seq_e, seq_p, mask,
                Wq, Wk, Wv, fc_w, fc_b, ln_w, ln_b, fc1_w, fc1_b, fc2_w, fc2_b,
                n_head, edge_dim):
    B, Ns, feat = src.shape
    Nngh = seq.shape[1]
    src_e = np.zeros((B, Ns, edge_dim), np.float32)
    q = np.concatenate([src, src_e, src_t, src_p], axis=2)
    k = np.concatenate([seq, seq_e, seq_t, seq_p], axis=2)
    B, Ns, D = q.shape
    nn = Nngh // Ns
    H = n_head
    dk = D // H
    residual = q

    qp = (q.reshape(-1, D) @ Wq.T).reshape(B, Ns, 1, H, dk)
    kp = (k.reshape(-1, D) @ Wk.T).reshape(B, Ns, nn, H, dk)
    vp = (k.reshape(-1, D) @ Wv.T).reshape(B, Ns, nn, H, dk)
    qf = np.transpose(qp, (0, 1, 3, 2, 4)).reshape(B * Ns * H, 1, dk)
    kf = np.transpose(kp, (0, 1, 3, 2, 4)).reshape(B * Ns * H, nn, dk)
    vf = np.transpose(vp, (0, 1, 3, 2, 4)).reshape(B * Ns * H, nn, dk)

    # PyTorch: mask.view(B*N_src, 1, nn).repeat(n_head, 1, 1) -> head-major tiling
    mask_r = np.tile(mask.reshape(B * Ns, 1, nn), (H, 1, 1))

    attn = np.matmul(qf, np.transpose(kf, (0, 2, 1))) / np.sqrt(dk).astype(np.float32)
    attn = np.where(mask_r, np.float32(-1e10), attn)
    attn = _softmax_np(attn, axis=2)
    out = np.matmul(attn, vf)                                   # [B*Ns*H, 1, dk]
    out = out.reshape(B, Ns, H * dk)
    out = out @ fc_w.T + fc_b
    out = out + residual
    mu = out.mean(-1, keepdims=True)
    var = ((out - mu) ** 2).mean(-1, keepdims=True)
    out = (out - mu) / np.sqrt(var + 1e-5) * ln_w + ln_b
    x = np.concatenate([out, src], axis=-1)
    h = np.maximum(x @ fc1_w.T + fc1_b, 0.0)
    z = h @ fc2_w.T + fc2_b
    attn_map = attn.reshape(B, Ns, H, nn)
    return z.astype(np.float32), attn_map.astype(np.float32)


if __name__ == "__main__":
    # small shapes consistent with AttnModel; B chosen so the grid has T=2 tiles
    # (TILE_B=64 -> R_t=128 rows/tile, C_t=512 cols/tile).
    B, Ns, Nngh = 128, 2, 8
    feat_dim = edge_dim = time_dim = pos_dim = 32
    model_dim = feat_dim + edge_dim + time_dim + pos_dim       # 128
    n_head = 2
    d_k = d_v = model_dim // n_head                            # 64
    nn_per_src = Nngh // Ns                                    # 4

    key = jax.random.PRNGKey(0)
    ks = jax.random.split(key, 20)

    # ----- inputs -----
    src = jax.random.normal(ks[0], (B, Ns, feat_dim), jnp.float32)
    src_t = jax.random.normal(ks[1], (B, Ns, time_dim), jnp.float32)
    src_p = jax.random.normal(ks[2], (B, Ns, pos_dim), jnp.float32)
    seq = jax.random.normal(ks[3], (B, Nngh, feat_dim), jnp.float32)
    seq_t = jax.random.normal(ks[4], (B, Nngh, time_dim), jnp.float32)
    seq_e = jax.random.normal(ks[5], (B, Nngh, edge_dim), jnp.float32)
    seq_p = jax.random.normal(ks[6], (B, Nngh, pos_dim), jnp.float32)
    mask = jax.random.bernoulli(ks[7], 0.3, (B, Nngh))

    # ----- parameters (deterministic, matching __init__ shapes; torch-style [out, in]) -----
    std_qk = np.sqrt(2.0 / (model_dim + d_k)).astype(np.float32)
    Wq = std_qk * jax.random.normal(ks[8], (n_head * d_k, model_dim), jnp.float32)
    Wk = std_qk * jax.random.normal(ks[9], (n_head * d_k, model_dim), jnp.float32)
    Wv = std_qk * jax.random.normal(ks[10], (n_head * d_v, model_dim), jnp.float32)
    std_fc = np.sqrt(2.0 / (n_head * d_v + model_dim)).astype(np.float32)
    fc_w = std_fc * jax.random.normal(ks[11], (model_dim, n_head * d_v), jnp.float32)
    fc_b = 0.01 * jax.random.normal(ks[12], (model_dim,), jnp.float32)
    ln_w = jnp.ones((model_dim,), jnp.float32)
    ln_b = jnp.zeros((model_dim,), jnp.float32)
    std1 = np.sqrt(2.0 / (model_dim + feat_dim + feat_dim)).astype(np.float32)
    fc1_w = std1 * jax.random.normal(ks[13], (feat_dim, model_dim + feat_dim), jnp.float32)
    fc1_b = 0.01 * jax.random.normal(ks[14], (feat_dim,), jnp.float32)
    std2 = np.sqrt(2.0 / (feat_dim + feat_dim)).astype(np.float32)
    fc2_w = std2 * jax.random.normal(ks[15], (feat_dim, feat_dim), jnp.float32)
    fc2_b = 0.01 * jax.random.normal(ks[16], (feat_dim,), jnp.float32)

    fwd = jax.jit(functools.partial(attn_model_forward, n_head=n_head, edge_dim=edge_dim))
    z, attn = fwd(src, src_t, src_p, seq, seq_t, seq_e, seq_p, mask,
                  Wq, Wk, Wv, fc_w, fc_b, ln_w, ln_b, fc1_w, fc1_b, fc2_w, fc2_b)
    z = jax.block_until_ready(z)
    attn = jax.block_until_ready(attn)

    # ----- numerical check -----
    # The kernel uses bf16 weights AND bf16 operands on the attention matmuls
    # (intentional, per the perf review); the reference uses the same bf16-rounded
    # weights so the check isolates implementation error from parameter quantisation.
    # Remaining differences come from bf16 activation rounding (now including the
    # score / PV matmul operands) and accumulation order, hence the 4e-2 tolerance
    # on z; the attention probabilities stay within 3e-2.
    def r16(x):
        return np.asarray(jnp.asarray(x, jnp.float32).astype(jnp.bfloat16).astype(jnp.float32))

    z_np, attn_np = ref_forward(
        np.asarray(src), np.asarray(src_t), np.asarray(src_p),
        np.asarray(seq), np.asarray(seq_t), np.asarray(seq_e), np.asarray(seq_p),
        np.asarray(mask),
        r16(Wq), r16(Wk), r16(Wv),
        r16(fc_w), np.asarray(fc_b), np.asarray(ln_w), np.asarray(ln_b),
        r16(fc1_w), np.asarray(fc1_b), r16(fc2_w), np.asarray(fc2_b),
        n_head, edge_dim)

    assert z.shape == (B, Ns, feat_dim)
    assert attn.shape == (B, Ns, n_head, nn_per_src)
    np.testing.assert_allclose(np.asarray(z), z_np, rtol=4e-2, atol=4e-2)
    np.testing.assert_allclose(np.asarray(attn), attn_np, rtol=3e-2, atol=3e-2)

    print("KERNEL_OK")
</pallas_src>

<mosaic_0001>
module attributes {stable_mosaic.version = 11 : i64} {
  func.func @_attn_model_kernel(%arg0: i32, %arg1: memref<128x128xf32, #tpu.memory_space<vmem>>, %arg2: memref<512x128xbf16, #tpu.memory_space<vmem>>, %arg3: memref<1x2x512xf32, #tpu.memory_space<vmem>>, %arg4: memref<2x512x128xbf16, #tpu.memory_space<vmem>>, %arg5: memref<128x32xbf16, #tpu.memory_space<vmem>>, %arg6: memref<128x128xbf16, #tpu.memory_space<vmem>>, %arg7: memref<128x256xbf16, #tpu.memory_space<vmem>>, %arg8: memref<128x128xbf16, #tpu.memory_space<vmem>>, %arg9: memref<1x128xf32, #tpu.memory_space<vmem>>, %arg10: memref<1x128xf32, #tpu.memory_space<vmem>>, %arg11: memref<1x128xf32, #tpu.memory_space<vmem>>, %arg12: memref<128x32xbf16, #tpu.memory_space<vmem>>, %arg13: memref<32x32xbf16, #tpu.memory_space<vmem>>, %arg14: memref<1x32xf32, #tpu.memory_space<vmem>>, %arg15: memref<32x128xbf16, #tpu.memory_space<vmem>>, %arg16: memref<1x128xf32, #tpu.memory_space<vmem>>, %arg17: memref<128x128xf32, #tpu.memory_space<vmem>>, %arg18: memref<128x128xf32, #tpu.memory_space<vmem>>) attributes {dimension_semantics = [#tpu.dimension_semantics<parallel>], iteration_bounds = array<i64: 2>, scalar_prefetch = 0 : i64, scratch_operands = 0 : i64, tpu.core_type = #tpu.core_type<tc>, window_params = [{transform_indices = @transform_0, window_bounds = array<i64: 128, 128>}, {transform_indices = @transform_1, window_bounds = array<i64: 512, 128>}, {transform_indices = @transform_2, window_bounds = array<i64: 1, 2, 512>}, {pipeline_mode = #tpu.pipeline_mode<synchronous>, transform_indices = @transform_3, window_bounds = array<i64: 2, 512, 128>}, {transform_indices = @transform_4, window_bounds = array<i64: 128, 32>}, {pipeline_mode = #tpu.pipeline_mode<synchronous>, transform_indices = @transform_5, window_bounds = array<i64: 128, 128>}, {pipeline_mode = #tpu.pipeline_mode<synchronous>, transform_indices = @transform_6, window_bounds = array<i64: 128, 256>}, {pipeline_mode = #tpu.pipeline_mode<synchronous>, transform_indices = @transform_7, window_bounds = array<i64: 128, 128>}, {pipeline_mode = #tpu.pipeline_mode<synchronous>, transform_indices = @transform_8, window_bounds = array<i64: 1, 128>}, {pipeline_mode = #tpu.pipeline_mode<synchronous>, transform_indices = @transform_9, window_bounds = array<i64: 1, 128>}, {pipeline_mode = #tpu.pipeline_mode<synchronous>, transform_indices = @transform_10, window_bounds = array<i64: 1, 128>}, {pipeline_mode = #tpu.pipeline_mode<synchronous>, transform_indices = @transform_11, window_bounds = array<i64: 128, 32>}, {pipeline_mode = #tpu.pipeline_mode<synchronous>, transform_indices = @transform_12, window_bounds = array<i64: 32, 32>}, {pipeline_mode = #tpu.pipeline_mode<synchronous>, transform_indices = @transform_13, window_bounds = array<i64: 1, 32>}, {pipeline_mode = #tpu.pipeline_mode<synchronous>, transform_indices = @transform_14, window_bounds = array<i64: 32, 128>}, {pipeline_mode = #tpu.pipeline_mode<synchronous>, transform_indices = @transform_15, window_bounds = array<i64: 1, 128>}, {transform_indices = @transform_16, window_bounds = array<i64: 128, 128>}, {transform_indices = @transform_17, window_bounds = array<i64: 128, 128>}]} {
    %c0 = arith.constant 0 : index
    %c0_0 = arith.constant 0 : index
    %0 = vector.load %arg1[%c0, %c0_0] : memref<128x128xf32, #tpu.memory_space<vmem>>, vector<128x128xf32>
    %1 = arith.truncf %0 : vector<128x128xf32> to vector<128x128xbf16>
    %c0_1 = arith.constant 0 : index
    %c0_2 = arith.constant 0 : index
    %2 = vector.load %arg6[%c0_1, %c0_2] : memref<128x128xbf16, #tpu.memory_space<vmem>>, vector<128x128xbf16>
    %cst = arith.constant dense<0.000000e+00> : vector<128x128xf32>
    %3 = tpu.matmul %1, %2, %cst {dimension_numbers = #tpu.dot_dimension_numbers<[1], [0], [0], [1], [0, 0, 1, 1], [], []>} : vector<128x128xbf16>, vector<128x128xbf16>, vector<128x128xf32> -> vector<128x128xf32>
    %c0_3 = arith.constant 0 : index
    %c0_4 = arith.constant 0 : index
    %4 = vector.load %arg2[%c0_3, %c0_4] : memref<512x128xbf16, #tpu.memory_space<vmem>>, vector<512x128xbf16>
    %c0_5 = arith.constant 0 : index
    %c0_6 = arith.constant 0 : index
    %5 = vector.load %arg7[%c0_5, %c0_6] : memref<128x256xbf16, #tpu.memory_space<vmem>>, vector<128x256xbf16>
    %cst_7 = arith.constant dense<0.000000e+00> : vector<512x256xf32>
    %6 = tpu.matmul %4, %5, %cst_7 {dimension_numbers = #tpu.dot_dimension_numbers<[1], [0], [0], [1], [0, 0, 1, 1], [], []>} : vector<512x128xbf16>, vector<128x256xbf16>, vector<512x256xf32> -> vector<512x256xf32>
    %7 = vector.extract_strided_slice %6 {offsets = [0, 0], sizes = [512, 128], strides = [1, 1]} : vector<512x256xf32> to vector<512x128xf32>
    %8 = vector.extract_strided_slice %6 {offsets = [0, 128], sizes = [512, 128], strides = [1, 1]} : vector<512x256xf32> to vector<512x128xf32>
    %c0_8 = arith.constant 0 : index
    %c0_9 = arith.constant 0 : index
    %c0_10 = arith.constant 0 : index
    %9 = vector.load %arg3[%c0_8, %c0_9, %c0_10] : memref<1x2x512xf32, #tpu.memory_space<vmem>>, vector<1x2x512xf32>
    %10 = vector.shape_cast %9 : vector<1x2x512xf32> to vector<2x512xf32>
    %11 = tpu.iota {dimensions = array<i32: 0>} : vector<128x512xi32>
    %12 = tpu.iota {dimensions = array<i32: 1>} : vector<128x512xi32>
    %c4_i32 = arith.constant 4 : i32
    %13 = vector.broadcast %c4_i32 : i32 to vector<128x512xi32>
    %14 = arith.muli %11, %13 : vector<128x512xi32>
    %15 = arith.cmpi sge, %12, %14 : vector<128x512xi32>
    %c1_i32 = arith.constant 1 : i32
    %16 = vector.broadcast %c1_i32 : i32 to vector<128x512xi32>
    %17 = arith.addi %11, %16 : vector<128x512xi32>
    %c4_i32_11 = arith.constant 4 : i32
    %18 = vector.broadcast %c4_i32_11 : i32 to vector<128x512xi32>
    %19 = arith.muli %17, %18 : vector<128x512xi32>
    %20 = arith.cmpi slt, %12, %19 : vector<128x512xi32>
    %21 = arith.andi %15, %20 : vector<128x512xi1>
    %c0_12 = arith.constant 0 : index
    %c0_13 = arith.constant 0 : index
    %22 = vector.load %arg9[%c0_12, %c0_13] : memref<1x128xf32, #tpu.memory_space<vmem>>, vector<1x128xf32>
    %23 = vector.broadcast %22 : vector<1x128xf32> to vector<128x128xf32>
    %24 = arith.addf %0, %23 : vector<128x128xf32>
    %cst_14 = arith.constant 0.000000e+00 : f32
    %25 = vector.broadcast %cst_14 : f32 to vector<128x128xf32>
    %26 = vector.extract_strided_slice %3 {offsets = [0, 0], sizes = [128, 64], strides = [1, 1]} : vector<128x128xf32> to vector<128x64xf32>
    %27 = arith.truncf %26 : vector<128x64xf32> to vector<128x64xbf16>
    %28 = vector.extract_strided_slice %7 {offsets = [0, 0], sizes = [512, 64], strides = [1, 1]} : vector<512x128xf32> to vector<512x64xf32>
    %29 = arith.truncf %28 : vector<512x64xf32> to vector<512x64xbf16>
    %30 = vector.extract_strided_slice %8 {offsets = [0, 0], sizes = [512, 64], strides = [1, 1]} : vector<512x128xf32> to vector<512x64xf32>
    %31 = arith.truncf %30 : vector<512x64xf32> to vector<512x64xbf16>
    %32 = tpu.transpose %29, [1, 0] : vector<512x64xbf16> -> vector<64x512xbf16>
    %cst_15 = arith.constant dense<0.000000e+00> : vector<128x512xf32>
    %33 = tpu.matmul %27, %32, %cst_15 {dimension_numbers = #tpu.dot_dimension_numbers<[1], [0], [0], [1], [0, 0, 1, 1], [], []>} : vector<128x64xbf16>, vector<64x512xbf16>, vector<128x512xf32> -> vector<128x512xf32>
    %cst_16 = arith.constant 1.250000e-01 : f32
    %34 = vector.broadcast %cst_16 : f32 to vector<128x512xf32>
    %35 = arith.mulf %33, %34 : vector<128x512xf32>
    %cst_17 = arith.constant -2.000000e+10 : f32
    %36 = vector.broadcast %cst_17 : f32 to vector<128x512xf32>
    %37 = arith.select %21, %35, %36 : vector<128x512xi1>, vector<128x512xf32>
    %38 = vector.extract_strided_slice %10 {offsets = [0, 0], sizes = [1, 512], strides = [1, 1]} : vector<2x512xf32> to vector<1x512xf32>
    %39 = vector.broadcast %38 : vector<1x512xf32> to vector<128x512xf32>
    %40 = arith.addf %37, %39 : vector<128x512xf32>
    %cst_18 = arith.constant dense<0xFF800000> : vector<128xf32>
    %41 = vector.multi_reduction <maximumf>, %40, %cst_18 [1] : vector<128x512xf32> to vector<128xf32>
    %42 = vector.shape_cast %41 : vector<128xf32> to vector<128x1xf32>
    %43 = vector.broadcast %42 : vector<128x1xf32> to vector<128x512xf32>
    %44 = arith.subf %40, %43 : vector<128x512xf32>
    %45 = math.exp %44 : vector<128x512xf32>
    %cst_19 = arith.constant dense<0.000000e+00> : vector<128xf32>
    %46 = vector.multi_reduction <add>, %45, %cst_19 [1] : vector<128x512xf32> to vector<128xf32>
    %47 = vector.shape_cast %46 : vector<128xf32> to vector<128x1xf32>
    %cst_20 = arith.constant 1.000000e+00 : f32
    %48 = vector.broadcast %cst_20 : f32 to vector<128x1xf32>
    %49 = arith.divf %48, %47 : vector<128x1xf32>
    %50 = vector.broadcast %49 : vector<128x1xf32> to vector<128x512xf32>
    %51 = arith.mulf %45, %50 : vector<128x512xf32>
    %52 = arith.truncf %51 : vector<128x512xf32> to vector<128x512xbf16>
    %c0_21 = arith.constant 0 : index
    %c0_22 = arith.constant 0 : index
    %c0_23 = arith.constant 0 : index
    %53 = vector.load %arg4[%c0_21, %c0_22, %c0_23] : memref<2x512x128xbf16, #tpu.memory_space<vmem>>, vector<1x512x128xbf16>
    %54 = vector.shape_cast %53 : vector<1x512x128xbf16> to vector<512x128xbf16>
    %cst_24 = arith.constant dense<0.000000e+00> : vector<128x128xf32>
    %55 = tpu.matmul %52, %54, %cst_24 {dimension_numbers = #tpu.dot_dimension_numbers<[1], [0], [0], [1], [0, 0, 1, 1], [], []>} : vector<128x512xbf16>, vector<512x128xbf16>, vector<128x128xf32> -> vector<128x128xf32>
    %56 = arith.addf %25, %55 : vector<128x128xf32>
    %cst_25 = arith.constant dense<0.000000e+00> : vector<128x64xf32>
    %57 = tpu.matmul %52, %31, %cst_25 {dimension_numbers = #tpu.dot_dimension_numbers<[1], [0], [0], [1], [0, 0, 1, 1], [], []>} : vector<128x512xbf16>, vector<512x64xbf16>, vector<128x64xf32> -> vector<128x64xf32>
    %58 = arith.truncf %57 : vector<128x64xf32> to vector<128x64xbf16>
    %c0_26 = arith.constant 0 : index
    %c0_27 = arith.constant 0 : index
    %59 = vector.load %arg8[%c0_26, %c0_27] : memref<128x128xbf16, #tpu.memory_space<vmem>>, vector<64x128xbf16>
    %cst_28 = arith.constant dense<0.000000e+00> : vector<128x128xf32>
    %60 = tpu.matmul %58, %59, %cst_28 {dimension_numbers = #tpu.dot_dimension_numbers<[1], [0], [0], [1], [0, 0, 1, 1], [], []>} : vector<128x64xbf16>, vector<64x128xbf16>, vector<128x128xf32> -> vector<128x128xf32>
    %61 = arith.addf %24, %60 : vector<128x128xf32>
    %62 = vector.extract_strided_slice %3 {offsets = [0, 64], sizes = [128, 64], strides = [1, 1]} : vector<128x128xf32> to vector<128x64xf32>
    %63 = arith.truncf %62 : vector<128x64xf32> to vector<128x64xbf16>
    %64 = vector.extract_strided_slice %7 {offsets = [0, 64], sizes = [512, 64], strides = [1, 1]} : vector<512x128xf32> to vector<512x64xf32>
    %65 = arith.truncf %64 : vector<512x64xf32> to vector<512x64xbf16>
    %66 = vector.extract_strided_slice %8 {offsets = [0, 64], sizes = [512, 64], strides = [1, 1]} : vector<512x128xf32> to vector<512x64xf32>
    %67 = arith.truncf %66 : vector<512x64xf32> to vector<512x64xbf16>
    %68 = tpu.transpose %65, [1, 0] : vector<512x64xbf16> -> vector<64x512xbf16>
    %cst_29 = arith.constant dense<0.000000e+00> : vector<128x512xf32>
    %69 = tpu.matmul %63, %68, %cst_29 {dimension_numbers = #tpu.dot_dimension_numbers<[1], [0], [0], [1], [0, 0, 1, 1], [], []>} : vector<128x64xbf16>, vector<64x512xbf16>, vector<128x512xf32> -> vector<128x512xf32>
    %cst_30 = arith.constant 1.250000e-01 : f32
    %70 = vector.broadcast %cst_30 : f32 to vector<128x512xf32>
    %71 = arith.mulf %69, %70 : vector<128x512xf32>
    %cst_31 = arith.constant -2.000000e+10 : f32
    %72 = vector.broadcast %cst_31 : f32 to vector<128x512xf32>
    %73 = arith.select %21, %71, %72 : vector<128x512xi1>, vector<128x512xf32>
    %74 = vector.extract_strided_slice %10 {offsets = [1, 0], sizes = [1, 512], strides = [1, 1]} : vector<2x512xf32> to vector<1x512xf32>
    %75 = vector.broadcast %74 : vector<1x512xf32> to vector<128x512xf32>
    %76 = arith.addf %73, %75 : vector<128x512xf32>
    %cst_32 = arith.constant dense<0xFF800000> : vector<128xf32>
    %77 = vector.multi_reduction <maximumf>, %76, %cst_32 [1] : vector<128x512xf32> to vector<128xf32>
    %78 = vector.shape_cast %77 : vector<128xf32> to vector<128x1xf32>
    %79 = vector.broadcast %78 : vector<128x1xf32> to vector<128x512xf32>
    %80 = arith.subf %76, %79 : vector<128x512xf32>
    %81 = math.exp %80 : vector<128x512xf32>
    %cst_33 = arith.constant dense<0.000000e+00> : vector<128xf32>
    %82 = vector.multi_reduction <add>, %81, %cst_33 [1] : vector<128x512xf32> to vector<128xf32>
    %83 = vector.shape_cast %82 : vector<128xf32> to vector<128x1xf32>
    %cst_34 = arith.constant 1.000000e+00 : f32
    %84 = vector.broadcast %cst_34 : f32 to vector<128x1xf32>
    %85 = arith.divf %84, %83 : vector<128x1xf32>
    %86 = vector.broadcast %85 : vector<128x1xf32> to vector<128x512xf32>
    %87 = arith.mulf %81, %86 : vector<128x512xf32>
    %88 = arith.truncf %87 : vector<128x512xf32> to vector<128x512xbf16>
    %c1 = arith.constant 1 : index
    %c0_35 = arith.constant 0 : index
    %c0_36 = arith.constant 0 : index
    %89 = vector.load %arg4[%c1, %c0_35, %c0_36] : memref<2x512x128xbf16, #tpu.memory_space<vmem>>, vector<1x512x128xbf16>
    %90 = vector.shape_cast %89 : vector<1x512x128xbf16> to vector<512x128xbf16>
    %cst_37 = arith.constant dense<0.000000e+00> : vector<128x128xf32>
    %91 = tpu.matmul %88, %90, %cst_37 {dimension_numbers = #tpu.dot_dimension_numbers<[1], [0], [0], [1], [0, 0, 1, 1], [], []>} : vector<128x512xbf16>, vector<512x128xbf16>, vector<128x128xf32> -> vector<128x128xf32>
    %92 = arith.addf %56, %91 : vector<128x128xf32>
    %cst_38 = arith.constant dense<0.000000e+00> : vector<128x64xf32>
    %93 = tpu.matmul %88, %67, %cst_38 {dimension_numbers = #tpu.dot_dimension_numbers<[1], [0], [0], [1], [0, 0, 1, 1], [], []>} : vector<128x512xbf16>, vector<512x64xbf16>, vector<128x64xf32> -> vector<128x64xf32>
    %94 = arith.truncf %93 : vector<128x64xf32> to vector<128x64xbf16>
    %c64 = arith.constant 64 : index
    %c0_39 = arith.constant 0 : index
    %95 = vector.load %arg8[%c64, %c0_39] : memref<128x128xbf16, #tpu.memory_space<vmem>>, vector<64x128xbf16>
    %cst_40 = arith.constant dense<0.000000e+00> : vector<128x128xf32>
    %96 = tpu.matmul %94, %95, %cst_40 {dimension_numbers = #tpu.dot_dimension_numbers<[1], [0], [0], [1], [0, 0, 1, 1], [], []>} : vector<128x64xbf16>, vector<64x128xbf16>, vector<128x128xf32> -> vector<128x128xf32>
    %97 = arith.addf %61, %96 : vector<128x128xf32>
    %c0_41 = arith.constant 0 : index
    %c0_42 = arith.constant 0 : index
    %98 = vector.load %arg18[%c0_41, %c0_42] : memref<128x128xf32, #tpu.memory_space<vmem>>, vector<128x128xf32>
    tpu.vector_store %arg18[%c0_41, %c0_42], %92 {strides = array<i32>} : memref<128x128xf32, #tpu.memory_space<vmem>>, vector<128x128xf32>,
    %cst_43 = arith.constant dense<0.000000e+00> : vector<128xf32>
    %99 = vector.multi_reduction <add>, %97, %cst_43 [1] : vector<128x128xf32> to vector<128xf32>
    %100 = vector.shape_cast %99 : vector<128xf32> to vector<128x1xf32>
    %cst_44 = arith.constant 1.280000e+02 : f32
    %101 = vector.broadcast %cst_44 : f32 to vector<128x1xf32>
    %102 = arith.divf %100, %101 : vector<128x1xf32>
    %103 = vector.broadcast %102 : vector<128x1xf32> to vector<128x128xf32>
    %104 = arith.subf %97, %103 : vector<128x128xf32>
    %105 = arith.mulf %104, %104 : vector<128x128xf32>
    %cst_45 = arith.constant dense<0.000000e+00> : vector<128xf32>
    %106 = vector.multi_reduction <add>, %105, %cst_45 [1] : vector<128x128xf32> to vector<128xf32>
    %107 = vector.shape_cast %106 : vector<128xf32> to vector<128x1xf32>
    %cst_46 = arith.constant 1.280000e+02 : f32
    %108 = vector.broadcast %cst_46 : f32 to vector<128x1xf32>
    %109 = arith.divf %107, %108 : vector<128x1xf32>
    %110 = vector.broadcast %102 : vector<128x1xf32> to vector<128x128xf32>
    %111 = arith.subf %97, %110 : vector<128x128xf32>
    %cst_47 = arith.constant 9.99999974E-6 : f32
    %112 = vector.broadcast %cst_47 : f32 to vector<128x1xf32>
    %113 = arith.addf %109, %112 : vector<128x1xf32>
    %114 = math.rsqrt %113 : vector<128x1xf32>
    %115 = vector.broadcast %114 : vector<128x1xf32> to vector<128x128xf32>
    %116 = arith.mulf %111, %115 : vector<128x128xf32>
    %c0_48 = arith.constant 0 : index
    %c0_49 = arith.constant 0 : index
    %117 = vector.load %arg10[%c0_48, %c0_49] : memref<1x128xf32, #tpu.memory_space<vmem>>, vector<1x128xf32>
    %118 = vector.broadcast %117 : vector<1x128xf32> to vector<128x128xf32>
    %119 = arith.mulf %116, %118 : vector<128x128xf32>
    %c0_50 = arith.constant 0 : index
    %c0_51 = arith.constant 0 : index
    %120 = vector.load %arg11[%c0_50, %c0_51] : memref<1x128xf32, #tpu.memory_space<vmem>>, vector<1x128xf32>
    %121 = vector.broadcast %120 : vector<1x128xf32> to vector<128x128xf32>
    %122 = arith.addf %119, %121 : vector<128x128xf32>
    %123 = arith.truncf %122 : vector<128x128xf32> to vector<128x128xbf16>
    %c0_52 = arith.constant 0 : index
    %c0_53 = arith.constant 0 : index
    %124 = vector.load %arg12[%c0_52, %c0_53] : memref<128x32xbf16, #tpu.memory_space<vmem>>, vector<128x32xbf16>
    %cst_54 = arith.constant dense<0.000000e+00> : vector<128x32xf32>
    %125 = tpu.matmul %123, %124, %cst_54 {dimension_numbers = #tpu.dot_dimension_numbers<[1], [0], [0], [1], [0, 0, 1, 1], [], []>} : vector<128x128xbf16>, vector<128x32xbf16>, vector<128x32xf32> -> vector<128x32xf32>
    %c0_55 = arith.constant 0 : index
    %c0_56 = arith.constant 0 : index
    %126 = vector.load %arg5[%c0_55, %c0_56] : memref<128x32xbf16, #tpu.memory_space<vmem>>, vector<128x32xbf16>
    %c0_57 = arith.constant 0 : index
    %c0_58 = arith.constant 0 : index
    %127 = vector.load %arg13[%c0_57, %c0_58] : memref<32x32xbf16, #tpu.memory_space<vmem>>, vector<32x32xbf16>
    %cst_59 = arith.constant dense<0.000000e+00> : vector<128x32xf32>
    %128 = tpu.matmul %126, %127, %cst_59 {dimension_numbers = #tpu.dot_dimension_numbers<[1], [0], [0], [1], [0, 0, 1, 1], [], []>} : vector<128x32xbf16>, vector<32x32xbf16>, vector<128x32xf32> -> vector<128x32xf32>
    %129 = arith.addf %125, %128 : vector<128x32xf32>
    %c0_60 = arith.constant 0 : index
    %c0_61 = arith.constant 0 : index
    %130 = vector.load %arg14[%c0_60, %c0_61] : memref<1x32xf32, #tpu.memory_space<vmem>>, vector<1x32xf32>
    %131 = vector.broadcast %130 : vector<1x32xf32> to vector<128x32xf32>
    %132 = arith.addf %129, %131 : vector<128x32xf32>
    %cst_62 = arith.constant 0.000000e+00 : f32
    %133 = vector.broadcast %cst_62 : f32 to vector<128x32xf32>
    %134 = arith.maximumf %132, %133 : vector<128x32xf32>
    %135 = arith.truncf %134 : vector<128x32xf32> to vector<128x32xbf16>
    %c0_63 = arith.constant 0 : index
    %c0_64 = arith.constant 0 : index
    %136 = vector.load %arg15[%c0_63, %c0_64] : memref<32x128xbf16, #tpu.memory_space<vmem>>, vector<32x128xbf16>
    %cst_65 = arith.constant dense<0.000000e+00> : vector<128x128xf32>
    %137 = tpu.matmul %135, %136, %cst_65 {dimension_numbers = #tpu.dot_dimension_numbers<[1], [0], [0], [1], [0, 0, 1, 1], [], []>} : vector<128x32xbf16>, vector<32x128xbf16>, vector<128x128xf32> -> vector<128x128xf32>
    %c0_66 = arith.constant 0 : index
    %c0_67 = arith.constant 0 : index
    %138 = vector.load %arg16[%c0_66, %c0_67] : memref<1x128xf32, #tpu.memory_space<vmem>>, vector<1x128xf32>
    %139 = vector.broadcast %138 : vector<1x128xf32> to vector<128x128xf32>
    %140 = arith.addf %137, %139 : vector<128x128xf32>
    %c0_68 = arith.constant 0 : index
    %c0_69 = arith.constant 0 : index
    %141 = vector.load %arg17[%c0_68, %c0_69] : memref<128x128xf32, #tpu.memory_space<vmem>>, vector<128x128xf32>
    tpu.vector_store %arg17[%c0_68, %c0_69], %140 {strides = array<i32>} : memref<128x128xf32, #tpu.memory_space<vmem>>, vector<128x128xf32>,
    return
  }
  func.func @transform_0(%arg0: i32) -> (i32, i32) {
    %c0_i32 = arith.constant 0 : i32
    %c0_i32_0 = arith.constant 0 : i32
    return %arg0, %c0_i32 : i32, i32
  }
  func.func @transform_1(%arg0: i32) -> (i32, i32) {
    %c0_i32 = arith.constant 0 : i32
    %c0_i32_0 = arith.constant 0 : i32
    return %arg0, %c0_i32 : i32, i32
  }
  func.func @transform_2(%arg0: i32) -> (i32, i32, i32) {
    %c0_i32 = arith.constant 0 : i32
    %c0_i32_0 = arith.constant 0 : i32
    %c0_i32_1 = arith.constant 0 : i32
    return %arg0, %c0_i32, %c0_i32_0 : i32, i32, i32
  }
  func.func @transform_3(%arg0: i32) -> (i32, i32, i32) {
    %c0_i32 = arith.constant 0 : i32
    %c0_i32_0 = arith.constant 0 : i32
    %c0_i32_1 = arith.constant 0 : i32
    %c0_i32_2 = arith.constant 0 : i32
    return %c0_i32, %c0_i32_0, %c0_i32_1 : i32, i32, i32
  }
  func.func @transform_4(%arg0: i32) -> (i32, i32) {
    %c0_i32 = arith.constant 0 : i32
    %c0_i32_0 = arith.constant 0 : i32
    return %arg0, %c0_i32 : i32, i32
  }
  func.func @transform_5(%arg0: i32) -> (i32, i32) {
    %c0_i32 = arith.constant 0 : i32
    %c0_i32_0 = arith.constant 0 : i32
    %c0_i32_1 = arith.constant 0 : i32
    return %c0_i32, %c0_i32_0 : i32, i32
  }
  func.func @transform_6(%arg0: i32) -> (i32, i32) {
    %c0_i32 = arith.constant 0 : i32
    %c0_i32_0 = arith.constant 0 : i32
    %c0_i32_1 = arith.constant 0 : i32
    return %c0_i32, %c0_i32_0 : i32, i32
  }
  func.func @transform_7(%arg0: i32) -> (i32, i32) {
    %c0_i32 = arith.constant 0 : i32
    %c0_i32_0 = arith.constant 0 : i32
    %c0_i32_1 = arith.constant 0 : i32
    return %c0_i32, %c0_i32_0 : i32, i32
  }
  func.func @transform_8(%arg0: i32) -> (i32, i32) {
    %c0_i32 = arith.constant 0 : i32
    %c0_i32_0 = arith.constant 0 : i32
    %c0_i32_1 = arith.constant 0 : i32
    return %c0_i32, %c0_i32_0 : i32, i32
  }
  func.func @transform_9(%arg0: i32) -> (i32, i32) {
    %c0_i32 = arith.constant 0 : i32
    %c0_i32_0 = arith.constant 0 : i32
    %c0_i32_1 = arith.constant 0 : i32
    return %c0_i32, %c0_i32_0 : i32, i32
  }
  func.func @transform_10(%arg0: i32) -> (i32, i32) {
    %c0_i32 = arith.constant 0 : i32
    %c0_i32_0 = arith.constant 0 : i32
    %c0_i32_1 = arith.constant 0 : i32
    return %c0_i32, %c0_i32_0 : i32, i32
  }
  func.func @transform_11(%arg0: i32) -> (i32, i32) {
    %c0_i32 = arith.constant 0 : i32
    %c0_i32_0 = arith.constant 0 : i32
    %c0_i32_1 = arith.constant 0 : i32
    return %c0_i32, %c0_i32_0 : i32, i32
  }
  func.func @transform_12(%arg0: i32) -> (i32, i32) {
    %c0_i32 = arith.constant 0 : i32
    %c0_i32_0 = arith.constant 0 : i32
    %c0_i32_1 = arith.constant 0 : i32
    return %c0_i32, %c0_i32_0 : i32, i32
  }
  func.func @transform_13(%arg0: i32) -> (i32, i32) {
    %c0_i32 = arith.constant 0 : i32
    %c0_i32_0 = arith.constant 0 : i32
    %c0_i32_1 = arith.constant 0 : i32
    return %c0_i32, %c0_i32_0 : i32, i32
  }
  func.func @transform_14(%arg0: i32) -> (i32, i32) {
    %c0_i32 = arith.constant 0 : i32
    %c0_i32_0 = arith.constant 0 : i32
    %c0_i32_1 = arith.constant 0 : i32
    return %c0_i32, %c0_i32_0 : i32, i32
  }
  func.func @transform_15(%arg0: i32) -> (i32, i32) {
    %c0_i32 = arith.constant 0 : i32
    %c0_i32_0 = arith.constant 0 : i32
    %c0_i32_1 = arith.constant 0 : i32
    return %c0_i32, %c0_i32_0 : i32, i32
  }
  func.func @transform_16(%arg0: i32) -> (i32, i32) {
    %c0_i32 = arith.constant 0 : i32
    %c0_i32_0 = arith.constant 0 : i32
    return %arg0, %c0_i32 : i32, i32
  }
  func.func @transform_17(%arg0: i32) -> (i32, i32) {
    %c0_i32 = arith.constant 0 : i32
    %c0_i32_0 = arith.constant 0 : i32
    return %arg0, %c0_i32 : i32, i32
  }
}

</mosaic_0001>

<llo_original>
// kernel: attn_model_forward.1
$region0: #{attn_model_forward.1}
  #allocation0 [shape = 'u32[]', space=smem, size = 0x4, offset = 0x4, fixed_abs, tag = 'smem constant byte address 0x4 - core index']
  #allocation1 [shape = 'u32[144,128]{1,0:T(1,128)}', space=vmem, size = 0x12000, scoped, tag = 'internal scratch']
  %s0 = inlined_call_operand.vmem [shape: f32[256,128], index: 0, kind: input, shape index: {}]
  %s1 = inlined_call_operand.vmem [shape: bf16[1024,128], index: 1, kind: input, shape index: {}]
  %s2 = inlined_call_operand.vmem [shape: f32[2,2,512], index: 2, kind: input, shape index: {}]
  %s3 = inlined_call_operand.vmem [shape: bf16[2,512,128], index: 3, kind: input, shape index: {}]
  %s4 = inlined_call_operand.vmem [shape: bf16[256,32], index: 4, kind: input, shape index: {}]
  %s5 = inlined_call_operand.vmem [shape: bf16[128,128], index: 5, kind: input, shape index: {}]
  %s6 = inlined_call_operand.vmem [shape: bf16[128,256], index: 6, kind: input, shape index: {}]
  %s7 = inlined_call_operand.vmem [shape: bf16[128,128], index: 7, kind: input, shape index: {}]
  %s8 = inlined_call_operand.vmem [shape: f32[1,128], index: 8, kind: input, shape index: {}]
  %s9 = inlined_call_operand.vmem [shape: f32[1,128], index: 9, kind: input, shape index: {}]
  %s10 = inlined_call_operand.vmem [shape: f32[1,128], index: 10, kind: input, shape index: {}]
  %s11 = inlined_call_operand.vmem [shape: bf16[128,32], index: 11, kind: input, shape index: {}]
  %s12 = inlined_call_operand.vmem [shape: bf16[32,32], index: 12, kind: input, shape index: {}]
  %s13 = inlined_call_operand.vmem [shape: f32[1,32], index: 13, kind: input, shape index: {}]
  %s14 = inlined_call_operand.vmem [shape: bf16[32,128], index: 14, kind: input, shape index: {}]
  %s15 = inlined_call_operand.vmem [shape: f32[1,128], index: 15, kind: input, shape index: {}]
  %s16 = inlined_call_operand.vmem [shape: f32[256,128], index: 16, kind: output, shape index: {0}]
  %s17 = inlined_call_operand.vmem [shape: f32[256,128], index: 17, kind: output, shape index: {1}]
  %18 = xla_tuple %s16, %s17
  %s19 = sld [smem:[#allocation0]]
  $region105: #{attn_model_forward.1} parent=0
    _
  %s21 = ssub.s32 1, %s19
  %s22 = scalar_select 0, %s21, %s19
  loop: start=0, step=1, limit=4
  $region2: #{attn_model_forward.1} parent=0 // loop_pre_header
    _
  $region3: #{attn_model_forward.1} parent=0 // loop_header
    %s24 = sphi 0, %s28
    %p25 = scmp.ge.s32.totalorder %s24, 4
    %s34 = sphi 0, %s36
    %s37 = sphi 0, %s34
    %s38 = sphi 0, %s37
    %s54 = sphi 0, %s38
    %s60 = sphi 0, %s62
    %s63 = sphi 0, %s60
    %s64 = sphi 0, %s63
    %s80 = sphi 0, %s64
    %s86 = sphi 0, %s88
    %s89 = sphi 0, %s86
    %s90 = sphi 0, %s89
    %s106 = sphi 0, %s90
    %s110 = sphi 0, %s110
    %s112 = sphi 0, %s110
    %s113 = sphi 0, %s112
    %s127 = sphi 0, %s113
    %s133 = sphi 0, %s135
    %s136 = sphi 0, %s133
    %s137 = sphi 0, %s136
    %s153 = sphi 0, %s137
    %s157 = sphi 0, %s157
    %s159 = sphi 0, %s157
    %s160 = sphi 0, %s159
    %s174 = sphi 0, %s160
    %s178 = sphi 0, %s178
    %s180 = sphi 0, %s178
    %s181 = sphi 0, %s180
    %s195 = sphi 0, %s181
    %s199 = sphi 0, %s199
    %s201 = sphi 0, %s199
    %s202 = sphi 0, %s201
    %s216 = sphi 0, %s202
    %s220 = sphi 0, %s220
    %s222 = sphi 0, %s220
    %s223 = sphi 0, %s222
    %s237 = sphi 0, %s223
    %s241 = sphi 0, %s241
    %s243 = sphi 0, %s241
    %s244 = sphi 0, %s243
    %s258 = sphi 0, %s244
    %s262 = sphi 0, %s262
    %s264 = sphi 0, %s262
    %s265 = sphi 0, %s264
    %s279 = sphi 0, %s265
    %s283 = sphi 0, %s283
    %s285 = sphi 0, %s283
    %s286 = sphi 0, %s285
    %s300 = sphi 0, %s286
    %s304 = sphi 0, %s304
    %s306 = sphi 0, %s304
    %s307 = sphi 0, %s306
    %s321 = sphi 0, %s307
    %s325 = sphi 0, %s325
    %s327 = sphi 0, %s325
    %s328 = sphi 0, %s327
    %s342 = sphi 0, %s328
    %s346 = sphi 0, %s346
    %s348 = sphi 0, %s346
    %s349 = sphi 0, %s348
    %s363 = sphi 0, %s349
    %s367 = sphi 0, %s367
    %s369 = sphi 0, %s367
    %s370 = sphi 0, %s369
    %s384 = sphi 0, %s370
    %s390 = sphi 0, %s392
    %s393 = sphi 0, %s390
    %s394 = sphi 0, %s393
    %s410 = sphi 0, %s394
    %s416 = sphi 0, %s418
    %s419 = sphi 0, %s416
    %s420 = sphi 0, %s419
    %s436 = sphi 0, %s420
  $region4: #{attn_model_forward.1} parent=0 // loop_header_branch
    %27 = sbr.rel (%p25) target = $region8
  $region5: #{attn_model_forward.1} parent=0 // loop_body
    %s29 = ssub.s32 %s24, 1
    %s30 = ssub.s32 %s24, 2
    %s31 = sadd.s32 %s24, 1
    %s32 = ssub.s32 %s24, %s31
    %p33 = scmp.eq.s32.totalorder %s32, 0
    %s35 = sadd.s32 %s34, 1
    %s36 = scalar_select %p33, %s34, %s35
    %p39 = pneg %p33
    %p40 = scmp.eq.s32.totalorder %s24, 1
    %p41 = por %p39, %p40
    %p42 = scmp.ne.s32.totalorder %s34, %s37
    %p43 = scmp.eq.s32.totalorder %s24, 0
    %p44 = por %p42, %p43
    %p45 = scmp.ne.s32.totalorder %s34, %s37
    %p46 = scmp.eq.s32.totalorder %s29, 1
    %p47 = por %p45, %p46
    %p48 = scmp.ne.s32.totalorder %s37, %s38
    %p49 = scmp.eq.s32.totalorder %s29, 0
    %p50 = por %p48, %p49
    %p51 = scmp.ne.s32.totalorder %s37, %s38
    %p52 = scmp.eq.s32.totalorder %s30, 1
    %p53 = por %p51, %p52
    %p55 = scmp.ne.s32.totalorder %s38, %s54
    %p56 = scmp.eq.s32.totalorder %s30, 0
    %p57 = por %p55, %p56
    %s58 = ssub.s32 %s24, %s31
    %p59 = scmp.eq.s32.totalorder %s58, 0
    %s61 = sadd.s32 %s60, 1
    %s62 = scalar_select %p59, %s60, %s61
    %p65 = pneg %p59
    %p66 = scmp.eq.s32.totalorder %s24, 1
    %p67 = por %p65, %p66
    %p68 = scmp.ne.s32.totalorder %s60, %s63
    %p69 = scmp.eq.s32.totalorder %s24, 0
    %p70 = por %p68, %p69
    %p71 = scmp.ne.s32.totalorder %s60, %s63
    %p72 = scmp.eq.s32.totalorder %s29, 1
    %p73 = por %p71, %p72
    %p74 = scmp.ne.s32.totalorder %s63, %s64
    %p75 = scmp.eq.s32.totalorder %s29, 0
    %p76 = por %p74, %p75
    %p77 = scmp.ne.s32.totalorder %s63, %s64
    %p78 = scmp.eq.s32.totalorder %s30, 1
    %p79 = por %p77, %p78
    %p81 = scmp.ne.s32.totalorder %s64, %s80
    %p82 = scmp.eq.s32.totalorder %s30, 0
    %p83 = por %p81, %p82
    %s84 = ssub.s32 %s24, %s31
    %p85 = scmp.eq.s32.totalorder %s84, 0
    %s87 = sadd.s32 %s86, 1
    %s88 = scalar_select %p85, %s86, %s87
    %p91 = pneg %p85
    %p92 = scmp.eq.s32.totalorder %s24, 1
    %p93 = por %p91, %p92
    %p94 = scmp.ne.s32.totalorder %s86, %s89
    %p95 = scmp.eq.s32.totalorder %s24, 0
    %p96 = por %p94, %p95
    %p97 = scmp.ne.s32.totalorder %s86, %s89
    %p98 = scmp.eq.s32.totalorder %s29, 1
    %p99 = por %p97, %p98
    %p100 = scmp.ne.s32.totalorder %s89, %s90
    %p101 = scmp.eq.s32.totalorder %s29, 0
    %p102 = por %p100, %p101
    %p103 = scmp.ne.s32.totalorder %s89, %s90
    %p104 = scmp.eq.s32.totalorder %s30, 1
    %p105 = por %p103, %p104
    %p107 = scmp.ne.s32.totalorder %s90, %s106
    %p108 = scmp.eq.s32.totalorder %s30, 0
    %p109 = por %p107, %p108
    %s111 = sadd.s32 %s110, 1
    %p114 = scmp.eq.s32.totalorder %s24, 1
    %p115 = scmp.ne.s32.totalorder %s110, %s112
    %p116 = scmp.eq.s32.totalorder %s24, 0
    %p117 = por %p115, %p116
    %p118 = scmp.ne.s32.totalorder %s110, %s112
    %p119 = scmp.eq.s32.totalorder %s29, 1
    %p120 = por %p118, %p119
    %p121 = scmp.ne.s32.totalorder %s112, %s113
    %p122 = scmp.eq.s32.totalorder %s29, 0
    %p123 = por %p121, %p122
    %p124 = scmp.ne.s32.totalorder %s112, %s113
    %p125 = scmp.eq.s32.totalorder %s30, 1
    %p126 = por %p124, %p125
    %p128 = scmp.ne.s32.totalorder %s113, %s127
    %p129 = scmp.eq.s32.totalorder %s30, 0
    %p130 = por %p128, %p129
    %s131 = ssub.s32 %s24, %s31
    %p132 = scmp.eq.s32.totalorder %s131, 0
    %s134 = sadd.s32 %s133, 1
    %s135 = scalar_select %p132, %s133, %s134
    %p138 = pneg %p132
    %p139 = scmp.eq.s32.totalorder %s24, 1
    %p140 = por %p138, %p139
    %p141 = scmp.ne.s32.totalorder %s133, %s136
    %p142 = scmp.eq.s32.totalorder %s24, 0
    %p143 = por %p141, %p142
    %p144 = scmp.ne.s32.totalorder %s133, %s136
    %p145 = scmp.eq.s32.totalorder %s29, 1
    %p146 = por %p144, %p145
    %p147 = scmp.ne.s32.totalorder %s136, %s137
    %p148 = scmp.eq.s32.totalorder %s29, 0
    %p149 = por %p147, %p148
    %p150 = scmp.ne.s32.totalorder %s136, %s137
    %p151 = scmp.eq.s32.totalorder %s30, 1
    %p152 = por %p150, %p151
    %p154 = scmp.ne.s32.totalorder %s137, %s153
    %p155 = scmp.eq.s32.totalorder %s30, 0
    %p156 = por %p154, %p155
    %s158 = sadd.s32 %s157, 1
    %p161 = scmp.eq.s32.totalorder %s24, 1
    %p162 = scmp.ne.s32.totalorder %s157, %s159
    %p163 = scmp.eq.s32.totalorder %s24, 0
    %p164 = por %p162, %p163
    %p165 = scmp.ne.s32.totalorder %s157, %s159
    %p166 = scmp.eq.s32.totalorder %s29, 1
    %p167 = por %p165, %p166
    %p168 = scmp.ne.s32.totalorder %s159, %s160
    %p169 = scmp.eq.s32.totalorder %s29, 0
    %p170 = por %p168, %p169
    %p171 = scmp.ne.s32.totalorder %s159, %s160
    %p172 = scmp.eq.s32.totalorder %s30, 1
    %p173 = por %p171, %p172
    %p175 = scmp.ne.s32.totalorder %s160, %s174
    %p176 = scmp.eq.s32.totalorder %s30, 0
    %p177 = por %p175, %p176
    %s179 = sadd.s32 %s178, 1
    %p182 = scmp.eq.s32.totalorder %s24, 1
    %p183 = scmp.ne.s32.totalorder %s178, %s180
    %p184 = scmp.eq.s32.totalorder %s24, 0
    %p185 = por %p183, %p184
    %p186 = scmp.ne.s32.totalorder %s178, %s180
    %p187 = scmp.eq.s32.totalorder %s29, 1
    %p188 = por %p186, %p187
    %p189 = scmp.ne.s32.totalorder %s180, %s181
    %p190 = scmp.eq.s32.totalorder %s29, 0
    %p191 = por %p189, %p190
    %p192 = scmp.ne.s32.totalorder %s180, %s181
    %p193 = scmp.eq.s32.totalorder %s30, 1
    %p194 = por %p192, %p193
    %p196 = scmp.ne.s32.totalorder %s181, %s195
    %p197 = scmp.eq.s32.totalorder %s30, 0
    %p198 = por %p196, %p197
    %s200 = sadd.s32 %s199, 1
    %p203 = scmp.eq.s32.totalorder %s24, 1
    %p204 = scmp.ne.s32.totalorder %s199, %s201
    %p205 = scmp.eq.s32.totalorder %s24, 0
    %p206 = por %p204, %p205
    %p207 = scmp.ne.s32.totalorder %s199, %s201
    %p208 = scmp.eq.s32.totalorder %s29, 1
    %p209 = por %p207, %p208
    %p210 = scmp.ne.s32.totalorder %s201, %s202
    %p211 = scmp.eq.s32.totalorder %s29, 0
    %p212 = por %p210, %p211
    %p213 = scmp.ne.s32.totalorder %s201, %s202
    %p214 = scmp.eq.s32.totalorder %s30, 1
    %p215 = por %p213, %p214
    %p217 = scmp.ne.s32.totalorder %s202, %s216
    %p218 = scmp.eq.s32.totalorder %s30, 0
    %p219 = por %p217, %p218
    %s221 = sadd.s32 %s220, 1
    %p224 = scmp.eq.s32.totalorder %s24, 1
    %p225 = scmp.ne.s32.totalorder %s220, %s222
    %p226 = scmp.eq.s32.totalorder %s24, 0
    %p227 = por %p225, %p226
    %p228 = scmp.ne.s32.totalorder %s220, %s222
    %p229 = scmp.eq.s32.totalorder %s29, 1
    %p230 = por %p228, %p229
    %p231 = scmp.ne.s32.totalorder %s222, %s223
    %p232 = scmp.eq.s32.totalorder %s29, 0
    %p233 = por %p231, %p232
    %p234 = scmp.ne.s32.totalorder %s222, %s223
    %p235 = scmp.eq.s32.totalorder %s30, 1
    %p236 = por %p234, %p235
    %p238 = scmp.ne.s32.totalorder %s223, %s237
    %p239 = scmp.eq.s32.totalorder %s30, 0
    %p240 = por %p238, %p239
    %s242 = sadd.s32 %s241, 1
    %p245 = scmp.eq.s32.totalorder %s24, 1
    %p246 = scmp.ne.s32.totalorder %s241, %s243
    %p247 = scmp.eq.s32.totalorder %s24, 0
    %p248 = por %p246, %p247
    %p249 = scmp.ne.s32.totalorder %s241, %s243
    %p250 = scmp.eq.s32.totalorder %s29, 1
    %p251 = por %p249, %p250
    %p252 = scmp.ne.s32.totalorder %s243, %s244
    %p253 = scmp.eq.s32.totalorder %s29, 0
    %p254 = por %p252, %p253
    %p255 = scmp.ne.s32.totalorder %s243, %s244
    %p256 = scmp.eq.s32.totalorder %s30, 1
    %p257 = por %p255, %p256
    %p259 = scmp.ne.s32.totalorder %s244, %s258
    %p260 = scmp.eq.s32.totalorder %s30, 0
    %p261 = por %p259, %p260
    %s263 = sadd.s32 %s262, 1
    %p266 = scmp.eq.s32.totalorder %s24, 1
    %p267 = scmp.ne.s32.totalorder %s262, %s264
    %p268 = scmp.eq.s32.totalorder %s24, 0
    %p269 = por %p267, %p268
    %p270 = scmp.ne.s32.totalorder %s262, %s264
    %p271 = scmp.eq.s32.totalorder %s29, 1
    %p272 = por %p270, %p271
    %p273 = scmp.ne.s32.totalorder %s264, %s265
    %p274 = scmp.eq.s32.totalorder %s29, 0
    %p275 = por %p273, %p274
    %p276 = scmp.ne.s32.totalorder %s264, %s265
    %p277 = scmp.eq.s32.totalorder %s30, 1
    %p278 = por %p276, %p277
    %p280 = scmp.ne.s32.totalorder %s265, %s279
    %p281 = scmp.eq.s32.totalorder %s30, 0
    %p282 = por %p280, %p281
    %s284 = sadd.s32 %s283, 1
    %p287 = scmp.eq.s32.totalorder %s24, 1
    %p288 = scmp.ne.s32.totalorder %s283, %s285
    %p289 = scmp.eq.s32.totalorder %s24, 0
    %p290 = por %p288, %p289
    %p291 = scmp.ne.s32.totalorder %s283, %s285
    %p292 = scmp.eq.s32.totalorder %s29, 1
    %p293 = por %p291, %p292
    %p294 = scmp.ne.s32.totalorder %s285, %s286
    %p295 = scmp.eq.s32.totalorder %s29, 0
    %p296 = por %p294, %p295
    %p297 = scmp.ne.s32.totalorder %s285, %s286
    %p298 = scmp.eq.s32.totalorder %s30, 1
    %p299 = por %p297, %p298
    %p301 = scmp.ne.s32.totalorder %s286, %s300
    %p302 = scmp.eq.s32.totalorder %s30, 0
    %p303 = por %p301, %p302
    %s305 = sadd.s32 %s304, 1
    %p308 = scmp.eq.s32.totalorder %s24, 1
    %p309 = scmp.ne.s32.totalorder %s304, %s306
    %p310 = scmp.eq.s32.totalorder %s24, 0
    %p311 = por %p309, %p310
    %p312 = scmp.ne.s32.totalorder %s304, %s306
    %p313 = scmp.eq.s32.totalorder %s29, 1
    %p314 = por %p312, %p313
    %p315 = scmp.ne.s32.totalorder %s306, %s307
    %p316 = scmp.eq.s32.totalorder %s29, 0
    %p317 = por %p315, %p316
    %p318 = scmp.ne.s32.totalorder %s306, %s307
    %p319 = scmp.eq.s32.totalorder %s30, 1
    %p320 = por %p318, %p319
    %p322 = scmp.ne.s32.totalorder %s307, %s321
    %p323 = scmp.eq.s32.totalorder %s30, 0
    %p324 = por %p322, %p323
    %s326 = sadd.s32 %s325, 1
    %p329 = scmp.eq.s32.totalorder %s24, 1
    %p330 = scmp.ne.s32.totalorder %s325, %s327
    %p331 = scmp.eq.s32.totalorder %s24, 0
    %p332 = por %p330, %p331
    %p333 = scmp.ne.s32.totalorder %s325, %s327
    %p334 = scmp.eq.s32.totalorder %s29, 1
    %p335 = por %p333, %p334
    %p336 = scmp.ne.s32.totalorder %s327, %s328
    %p337 = scmp.eq.s32.totalorder %s29, 0
    %p338 = por %p336, %p337
    %p339 = scmp.ne.s32.totalorder %s327, %s328
    %p340 = scmp.eq.s32.totalorder %s30, 1
    %p341 = por %p339, %p340
    %p343 = scmp.ne.s32.totalorder %s328, %s342
    %p344 = scmp.eq.s32.totalorder %s30, 0
    %p345 = por %p343, %p344
    %s347 = sadd.s32 %s346, 1
    %p350 = scmp.eq.s32.totalorder %s24, 1
    %p351 = scmp.ne.s32.totalorder %s346, %s348
    %p352 = scmp.eq.s32.totalorder %s24, 0
    %p353 = por %p351, %p352
    %p354 = scmp.ne.s32.totalorder %s346, %s348
    %p355 = scmp.eq.s32.totalorder %s29, 1
    %p356 = por %p354, %p355
    %p357 = scmp.ne.s32.totalorder %s348, %s349
    %p358 = scmp.eq.s32.totalorder %s29, 0
    %p359 = por %p357, %p358
    %p360 = scmp.ne.s32.totalorder %s348, %s349
    %p361 = scmp.eq.s32.totalorder %s30, 1
    %p362 = por %p360, %p361
    %p364 = scmp.ne.s32.totalorder %s349, %s363
    %p365 = scmp.eq.s32.totalorder %s30, 0
    %p366 = por %p364, %p365
    %s368 = sadd.s32 %s367, 1
    %p371 = scmp.eq.s32.totalorder %s24, 1
    %p372 = scmp.ne.s32.totalorder %s367, %s369
    %p373 = scmp.eq.s32.totalorder %s24, 0
    %p374 = por %p372, %p373
    %p375 = scmp.ne.s32.totalorder %s367, %s369
    %p376 = scmp.eq.s32.totalorder %s29, 1
    %p377 = por %p375, %p376
    %p378 = scmp.ne.s32.totalorder %s369, %s370
    %p379 = scmp.eq.s32.totalorder %s29, 0
    %p380 = por %p378, %p379
    %p381 = scmp.ne.s32.totalorder %s369, %s370
    %p382 = scmp.eq.s32.totalorder %s30, 1
    %p383 = por %p381, %p382
    %p385 = scmp.ne.s32.totalorder %s370, %s384
    %p386 = scmp.eq.s32.totalorder %s30, 0
    %p387 = por %p385, %p386
    %s388 = ssub.s32 %s24, %s31
    %p389 = scmp.eq.s32.totalorder %s388, 0
    %s391 = sadd.s32 %s390, 1
    %s392 = scalar_select %p389, %s390, %s391
    %p395 = pneg %p389
    %p396 = scmp.eq.s32.totalorder %s24, 1
    %p397 = por %p395, %p396
    %p398 = scmp.ne.s32.totalorder %s390, %s393
    %p399 = scmp.eq.s32.totalorder %s24, 0
    %p400 = por %p398, %p399
    %p401 = scmp.ne.s32.totalorder %s390, %s393
    %p402 = scmp.eq.s32.totalorder %s29, 1
    %p403 = por %p401, %p402
    %p404 = scmp.ne.s32.totalorder %s393, %s394
    %p405 = scmp.eq.s32.totalorder %s29, 0
    %p406 = por %p404, %p405
    %p407 = scmp.ne.s32.totalorder %s393, %s394
    %p408 = scmp.eq.s32.totalorder %s30, 1
    %p409 = por %p407, %p408
    %p411 = scmp.ne.s32.totalorder %s394, %s410
    %p412 = scmp.eq.s32.totalorder %s30, 0
    %p413 = por %p411, %p412
    %s414 = ssub.s32 %s24, %s31
    %p415 = scmp.eq.s32.totalorder %s414, 0
    %s417 = sadd.s32 %s416, 1
    %s418 = scalar_select %p415, %s416, %s417
    %p421 = pneg %p415
    %p422 = scmp.eq.s32.totalorder %s24, 1
    %p423 = por %p421, %p422
    %p424 = scmp.ne.s32.totalorder %s416, %s419
    %p425 = scmp.eq.s32.totalorder %s24, 0
    %p426 = por %p424, %p425
    %p427 = scmp.ne.s32.totalorder %s416, %s419
    %p428 = scmp.eq.s32.totalorder %s29, 1
    %p429 = por %p427, %p428
    %p430 = scmp.ne.s32.totalorder %s419, %s420
    %p431 = scmp.eq.s32.totalorder %s29, 0
    %p432 = por %p430, %p431
    %p433 = scmp.ne.s32.totalorder %s419, %s420
    %p434 = scmp.eq.s32.totalorder %s30, 1
    %p435 = por %p433, %p434
    %p437 = scmp.ne.s32.totalorder %s420, %s436
    %p438 = scmp.eq.s32.totalorder %s30, 0
    %p439 = por %p437, %p438
    %p440 = scmp.le.s32.totalorder 1, %s24
    %p441 = scmp.lt.s32.totalorder %s24, 3
    %p442 = pnand %p440, %p441
    %p443 = pneg %p442
    // Predicated region
    $region9: #{attn_model_forward.1} parent=5 // pred_check
      _
    $region10: #{attn_model_forward.1} parent=5 // pred_check_branch
      %445 = sbr.rel (%p442) target = $region12
    $region11: #{attn_model_forward.1} parent=5 // pred_region
      %s446 = ssub.s32 %s24, 1
      // Predicated region
      $region13: #{attn_model_forward.1} parent=11 // pred_check
        %p447 = pneg %p123
      $region14: #{attn_model_forward.1} parent=11 // pred_check_branch
        %449 = sbr.rel (%p447) target = $region16
      $region15: #{attn_model_forward.1} parent=11 // pred_region
        _
      $region16: #{attn_model_forward.1} parent=11 // pred_fallthru
        _
      // Predicated region
      $region17: #{attn_model_forward.1} parent=11 // pred_check
        %p450 = pneg %p170
      $region18: #{attn_model_forward.1} parent=11 // pred_check_branch
        %452 = sbr.rel (%p450) target = $region20
      $region19: #{attn_model_forward.1} parent=11 // pred_region
        _
      $region20: #{attn_model_forward.1} parent=11 // pred_fallthru
        _
      // Predicated region
      $region21: #{attn_model_forward.1} parent=11 // pred_check
        %p453 = pneg %p191
      $region22: #{attn_model_forward.1} parent=11 // pred_check_branch
        %455 = sbr.rel (%p453) target = $region24
      $region23: #{attn_model_forward.1} parent=11 // pred_region
        _
      $region24: #{attn_model_forward.1} parent=11 // pred_fallthru
        _
      // Predicated region
      $region25: #{attn_model_forward.1} parent=11 // pred_check
        %p456 = pneg %p212
      $region26: #{attn_model_forward.1} parent=11 // pred_check_branch
        %458 = sbr.rel (%p456) target = $region28
      $region27: #{attn_model_forward.1} parent=11 // pred_region
        _
      $region28: #{attn_model_forward.1} parent=11 // pred_fallthru
        _
      // Predicated region
      $region29: #{attn_model_forward.1} parent=11 // pred_check
        %p459 = pneg %p233
      $region30: #{attn_model_forward.1} parent=11 // pred_check_branch
        %461 = sbr.rel (%p459) target = $region32
      $region31: #{attn_model_forward.1} parent=11 // pred_region
        _
      $region32: #{attn_model_forward.1} parent=11 // pred_fallthru
        _
      // Predicated region
      $region33: #{attn_model_forward.1} parent=11 // pred_check
        %p462 = pneg %p254
      $region34: #{attn_model_forward.1} parent=11 // pred_check_branch
        %464 = sbr.rel (%p462) target = $region36
      $region35: #{attn_model_forward.1} parent=11 // pred_region
        _
      $region36: #{attn_model_forward.1} parent=11 // pred_fallthru
        _
      // Predicated region
      $region37: #{attn_model_forward.1} parent=11 // pred_check
        %p465 = pneg %p275
      $region38: #{attn_model_forward.1} parent=11 // pred_check_branch
        %467 = sbr.rel (%p465) target = $region40
      $region39: #{attn_model_forward.1} parent=11 // pred_region
        _
      $region40: #{attn_model_forward.1} parent=11 // pred_fallthru
        _
      // Predicated region
      $region41: #{attn_model_forward.1} parent=11 // pred_check
        %p468 = pneg %p296
      $region42: #{attn_model_forward.1} parent=11 // pred_check_branch
        %470 = sbr.rel (%p468) target = $region44
      $region43: #{attn_model_forward.1} parent=11 // pred_region
        _
      $region44: #{attn_model_forward.1} parent=11 // pred_fallthru
        _
      // Predicated region
      $region45: #{attn_model_forward.1} parent=11 // pred_check
        %p471 = pneg %p317
      $region46: #{attn_model_forward.1} parent=11 // pred_check_branch
        %473 = sbr.rel (%p471) target = $region48
      $region47: #{attn_model_forward.1} parent=11 // pred_region
        _
      $region48: #{attn_model_forward.1} parent=11 // pred_fallthru
        _
      // Predicated region
      $region49: #{attn_model_forward.1} parent=11 // pred_check
        %p474 = pneg %p338
      $region50: #{attn_model_forward.1} parent=11 // pred_check_branch
        %476 = sbr.rel (%p474) target = $region52
      $region51: #{attn_model_forward.1} parent=11 // pred_region
        _
      $region52: #{attn_model_forward.1} parent=11 // pred_fallthru
        _
      // Predicated region
      $region53: #{attn_model_forward.1} parent=11 // pred_check
        %p477 = pneg %p359
      $region54: #{attn_model_forward.1} parent=11 // pred_check_branch
        %479 = sbr.rel (%p477) target = $region56
      $region55: #{attn_model_forward.1} parent=11 // pred_region
        _
      $region56: #{attn_model_forward.1} parent=11 // pred_fallthru
        _
      // Predicated region
      $region57: #{attn_model_forward.1} parent=11 // pred_check
        %p480 = pneg %p380
      $region58: #{attn_model_forward.1} parent=11 // pred_check_branch
        %482 = sbr.rel (%p480) target = $region60
      $region59: #{attn_model_forward.1} parent=11 // pred_region
        _
      $region60: #{attn_model_forward.1} parent=11 // pred_fallthru
        _
    $region12: #{attn_model_forward.1} parent=5 // pred_fallthru
      _
    %p483 = scmp.lt.s32.totalorder %s24, 2
    // Predicated region
    $region61: #{attn_model_forward.1} parent=5 // pred_check
      %p484 = pneg %p483
    $region62: #{attn_model_forward.1} parent=5 // pred_check_branch
      %486 = sbr.rel (%p484) target = $region64
    $region63: #{attn_model_forward.1} parent=5 // pred_region
      // Predicated region
      $region65: #{attn_model_forward.1} parent=63 // pred_check
        %p487 = pneg %p44
      $region66: #{attn_model_forward.1} parent=63 // pred_check_branch
        %489 = sbr.rel (%p487) target = $region68
      $region67: #{attn_model_forward.1} parent=63 // pred_region
        %s490 = smul.u32 16, %s24
        %p491 = scmp.lt.s32.totalorder %s490, 31
        %s492 = scalar_select %p491, %s490, 31
        %s493 = smul.addr %s492, 8
        %s494 = scalar_lea.vmem %s0, %s493
        %s495 = smul.u32 16, %s24
      $region68: #{attn_model_forward.1} parent=63 // pred_fallthru
        _
      // Predicated region
      $region69: #{attn_model_forward.1} parent=63 // pred_check
        %p496 = pneg %p70
      $region70: #{attn_model_forward.1} parent=63 // pred_check_branch
        %498 = sbr.rel (%p496) target = $region72
      $region71: #{attn_model_forward.1} parent=63 // pred_region
        %s499 = smul.u32 64, %s24
        %p500 = scmp.lt.s32.totalorder %s499, 127
        %s501 = scalar_select %p500, %s499, 127
        %s502 = smul.addr %s501, 4
        %s503 = scalar_lea.vmem %s1, %s502
        %s504 = smul.u32 64, %s24
      $region72: #{attn_model_forward.1} parent=63 // pred_fallthru
        _
      // Predicated region
      $region73: #{attn_model_forward.1} parent=63 // pred_check
        %p505 = pneg %p96
      $region74: #{attn_model_forward.1} parent=63 // pred_check_branch
        %507 = sbr.rel (%p505) target = $region76
      $region75: #{attn_model_forward.1} parent=63 // pred_region
        %p508 = scmp.lt.s32.totalorder %s24, 1
        %s509 = scalar_select %p508, %s24, 1
        %s510 = smul.addr %s509, 4
        %s511 = smul.addr %s510, 2
        %s512 = scalar_lea.vmem %s2, %s511
      $region76: #{attn_model_forward.1} parent=63 // pred_fallthru
        _
      // Predicated region
      $region77: #{attn_model_forward.1} parent=63 // pred_check
        %p513 = pneg %p143
      $region78: #{attn_model_forward.1} parent=63 // pred_check_branch
        %515 = sbr.rel (%p513) target = $region80
      $region79: #{attn_model_forward.1} parent=63 // pred_region
        %s516 = smul.u32 16, %s24
        %p517 = scmp.lt.s32.totalorder %s516, 31
        %s518 = scalar_select %p517, %s516, 31
        %s519 = smul.addr %s518, 4
        %s520 = scalar_lea.vmem %s4, %s519
        %s521 = smul.u32 16, %s24
      $region80: #{attn_model_forward.1} parent=63 // pred_fallthru
        _
    $region64: #{attn_model_forward.1} parent=5 // pred_fallthru
      _
    %p522 = scmp.le.s32.totalorder 1, %s24
    %p523 = scmp.lt.s32.totalorder %s24, 3
    %p524 = pnand %p522, %p523
    %p525 = pneg %p524
    // Predicated region
    $region81: #{attn_model_forward.1} parent=5 // pred_check
      _
    $region82: #{attn_model_forward.1} parent=5 // pred_check_branch
      %527 = sbr.rel (%p524) target = $region84
    $region83: #{attn_model_forward.1} parent=5 // pred_region
      %s528 = ssub.s32 %s24, 1
      %s529 = smul.u32 16, %s29
      %p530 = scmp.lt.s32.totalorder %s529, 31
      %s531 = scalar_select %p530, %s529, 31
      %s532 = smul.addr %s531, 8
      %s533 = scalar_lea.vmem %s0, %s532
      %p534 = pneg %p50
      %p535 = pneg %p47
      %s536 = smul.u32 64, %s29
      %p537 = scmp.lt.s32.totalorder %s536, 127
      %s538 = scalar_select %p537, %s536, 127
      %s539 = smul.addr %s538, 4
      %s540 = scalar_lea.vmem %s1, %s539
      %p541 = pneg %p76
      %p542 = pneg %p73
      %p543 = scmp.lt.s32.totalorder %s29, 1
      %s544 = scalar_select %p543, %s29, 1
      %s545 = smul.addr %s544, 4
      %s546 = smul.addr %s545, 2
      %s547 = scalar_lea.vmem %s2, %s546
      %p548 = pneg %p102
      %p549 = pneg %p99
      %p550 = pneg %p123
      %p551 = pneg %p120
      %s552 = smul.u32 16, %s29
      %p553 = scmp.lt.s32.totalorder %s552, 31
      %s554 = scalar_select %p553, %s552, 31
      %s555 = smul.addr %s554, 4
      %s556 = scalar_lea.vmem %s4, %s555
      %p557 = pneg %p149
      %p558 = pneg %p146
      %p559 = pneg %p170
      %p560 = pneg %p167
      %p561 = pneg %p191
      %p562 = pneg %p188
      %p563 = pneg %p212
      %p564 = pneg %p209
      %p565 = pneg %p233
      %p566 = pneg %p230
      %p567 = pneg %p254
      %p568 = pneg %p251
      %p569 = pneg %p275
      %p570 = pneg %p272
      %p571 = pneg %p296
      %p572 = pneg %p293
      %p573 = pneg %p317
      %p574 = pneg %p314
      %p575 = pneg %p338
      %p576 = pneg %p335
      %p577 = pneg %p359
      %p578 = pneg %p356
      %p579 = pneg %p380
      %p580 = pneg %p377
      %p581 = pneg %p406
      %p582 = pneg %p403
      %s583 = smul.u32 16, %s29
      %p584 = scmp.lt.s32.totalorder %s583, 31
      %s585 = scalar_select %p584, %s583, 31
      %s586 = smul.addr %s585, 8
      %s587 = scalar_lea.vmem %s16, %s586
      %p588 = pneg %p432
      %p589 = pneg %p429
      %s590 = smul.u32 16, %s29
      %p591 = scmp.lt.s32.totalorder %s590, 31
      %s592 = scalar_select %p591, %s590, 31
      %s593 = smul.addr %s592, 8
      %s594 = scalar_lea.vmem %s17, %s593
      %s595 = smul.u32 16, %s29
      %p596 = scmp.lt.s32.totalorder %s595, 31
      %s597 = scalar_select %p596, %s595, 31
      %s598 = smul.addr %s597, 8
      %s599 = scalar_lea.vmem %s0, %s598
      %s600 = smul.u32 16, %s29
      %s601 = smul.u32 64, %s29
      %p602 = scmp.lt.s32.totalorder %s601, 127
      %s603 = scalar_select %p602, %s601, 127
      %s604 = smul.addr %s603, 4
      %s605 = scalar_lea.vmem %s1, %s604
      %s606 = smul.u32 64, %s29
      %p607 = scmp.lt.s32.totalorder %s29, 1
      %s608 = scalar_select %p607, %s29, 1
      %s609 = smul.addr %s608, 4
      %s610 = smul.addr %s609, 2
      %s611 = scalar_lea.vmem %s2, %s610
      %s612 = smul.u32 16, %s29
      %p613 = scmp.lt.s32.totalorder %s612, 31
      %s614 = scalar_select %p613, %s612, 31
      %s615 = smul.addr %s614, 4
      %s616 = scalar_lea.vmem %s4, %s615
      %s617 = smul.u32 16, %s29
      %s618 = smul.u32 16, %s29
      %p619 = scmp.lt.s32.totalorder %s618, 31
      %s620 = scalar_select %p619, %s618, 31
      %s621 = smul.addr %s620, 8
      %s622 = scalar_lea.vmem %s16, %s621
      %s623 = smul.u32 16, %s29
      %s624 = smul.u32 16, %s29
      %p625 = scmp.lt.s32.totalorder %s624, 31
      %s626 = scalar_select %p625, %s624, 31
      %s627 = smul.addr %s626, 8
      %s628 = scalar_lea.vmem %s17, %s627
      %s629 = smul.u32 16, %s29
      %v631 = vld [vmem:[%s599] sm:$0xff]
      %v632 = vld [vmem:[%s599 + $0x8] sm:$0xff]
      %v633 = vld [vmem:[%s599 + $0x10] sm:$0xff]
      %v634 = vld [vmem:[%s599 + $0x18] sm:$0xff]
      %v635 = vld [vmem:[%s599 + $0x20] sm:$0xff]
      %v636 = vld [vmem:[%s599 + $0x28] sm:$0xff]
      %v637 = vld [vmem:[%s599 + $0x30] sm:$0xff]
      %v638 = vld [vmem:[%s599 + $0x38] sm:$0xff]
      %v639 = vld [vmem:[%s599 + $0x40] sm:$0xff]
      %v640 = vld [vmem:[%s599 + $0x48] sm:$0xff]
      %v641 = vld [vmem:[%s599 + $0x50] sm:$0xff]
      %v642 = vld [vmem:[%s599 + $0x58] sm:$0xff]
      %v643 = vld [vmem:[%s599 + $0x60] sm:$0xff]
      %v644 = vld [vmem:[%s599 + $0x68] sm:$0xff]
      %v645 = vld [vmem:[%s599 + $0x70] sm:$0xff]
      %v646 = vld [vmem:[%s599 + $0x78] sm:$0xff]
      %v647 = vpack.c.bf16 %v632, %v631
      %v648 = vpack.c.bf16 %v634, %v633
      %v649 = vpack.c.bf16 %v636, %v635
      %v650 = vpack.c.bf16 %v638, %v637
      %v651 = vpack.c.bf16 %v640, %v639
      %v652 = vpack.c.bf16 %v642, %v641
      %v653 = vpack.c.bf16 %v644, %v643
      %v654 = vpack.c.bf16 %v646, %v645
      %v655 = vld [vmem:[%s5] sm:$0xf]
      %v656 = vld [vmem:[%s5 + $0x4] sm:$0xf]
      %v657 = vld [vmem:[%s5 + $0x8] sm:$0xf]
      %v658 = vld [vmem:[%s5 + $0xc] sm:$0xf]
      %v659 = vld [vmem:[%s5 + $0x10] sm:$0xf]
      %v660 = vld [vmem:[%s5 + $0x14] sm:$0xf]
      %v661 = vld [vmem:[%s5 + $0x18] sm:$0xf]
      %v662 = vld [vmem:[%s5 + $0x1c] sm:$0xf]
      %v663 = vld [vmem:[%s5 + $0x20] sm:$0xf]
      %v664 = vld [vmem:[%s5 + $0x24] sm:$0xf]
      %v665 = vld [vmem:[%s5 + $0x28] sm:$0xf]
      %v666 = vld [vmem:[%s5 + $0x2c] sm:$0xf]
      %v667 = vld [vmem:[%s5 + $0x30] sm:$0xf]
      %v668 = vld [vmem:[%s5 + $0x34] sm:$0xf]
      %v669 = vld [vmem:[%s5 + $0x38] sm:$0xf]
      %v670 = vld [vmem:[%s5 + $0x3c] sm:$0xf]
      %v687 = vunpack.c.l.b16 %v655
      %v688 = vunpack.c.l.b16 %v656
      %v689 = vunpack.c.l.b16 %v657
      %v690 = vunpack.c.l.b16 %v658
      %v691 = vunpack.c.l.b16 %v659
      %v692 = vunpack.c.l.b16 %v660
      %v693 = vunpack.c.l.b16 %v661
      %v694 = vunpack.c.l.b16 %v662
      %v695 = vunpack.c.l.b16 %v663
      %v696 = vunpack.c.l.b16 %v664
      %v697 = vunpack.c.l.b16 %v665
      %v698 = vunpack.c.l.b16 %v666
      %v699 = vunpack.c.l.b16 %v667
      %v700 = vunpack.c.l.b16 %v668
      %v701 = vunpack.c.l.b16 %v669
      %v702 = vunpack.c.l.b16 %v670
      %v703 = vpack.c.b16 %v688, %v687
      %v704 = vpack.c.b16 %v690, %v689
      %v705 = vpack.c.b16 %v692, %v691
      %v706 = vpack.c.b16 %v694, %v693
      %v707 = vpack.c.b16 %v696, %v695
      %v708 = vpack.c.b16 %v698, %v697
      %v709 = vpack.c.b16 %v700, %v699
      %v710 = vpack.c.b16 %v702, %v701
      %719 = vmatprep.subr.bf16.mxu0 0
      %720 = vmatpush1.bf16.msra.mxu0 %v710
      %721 = vmatprep.subr.bf16.mxu0 0
      %722 = vmatpush1.bf16.msra.mxu0 %v709
      %723 = vmatprep.subr.bf16.mxu0 0
      %724 = vmatpush1.bf16.msra.mxu0 %v708
      %725 = vmatprep.subr.bf16.mxu0 0
      %726 = vmatpush1.bf16.msra.mxu0 %v707
      %727 = vmatprep.subr.bf16.mxu0 0
      %728 = vmatpush1.bf16.msra.mxu0 %v706
      %729 = vmatprep.subr.bf16.mxu0 0
      %730 = vmatpush1.bf16.msra.mxu0 %v705
      %731 = vmatprep.subr.bf16.mxu0 0
      %732 = vmatpush1.bf16.msra.mxu0 %v704
      %733 = vmatprep.subr.bf16.mxu0 0
      %734 = vmatpush1.bf16.msra.mxu0 %v703
      %735 = vmatprep.subr.bf16.mxu0 0
      %736 = vmatpush2.bf16.msra.mxu0 0
      %737 = vmatprep.subr.bf16.mxu0 0
      %738 = vmatpush2.bf16.msra.mxu0 0
      %739 = vmatprep.subr.bf16.mxu0 0
      %740 = vmatpush2.bf16.msra.mxu0 0
      %741 = vmatprep.subr.bf16.mxu0 0
      %742 = vmatpush2.bf16.msra.mxu0 0
      %743 = vmatprep.subr.bf16.mxu0 0
      %744 = vmatpush2.bf16.msra.mxu0 0
      %745 = vmatprep.subr.bf16.mxu0 0
      %746 = vmatpush2.bf16.msra.mxu0 0
      %747 = vmatprep.subr.bf16.mxu0 0
      %748 = vmatpush2.bf16.msra.mxu0 0
      %749 = vmatprep.subr.bf16.mxu0 0
      %750 = vmatpush2.bf16.msra.mxu0 0
      %751 = vmatprep.mubr.bf16.mxu0 0
      %752 = vmatmul.mubr.bf16.gmra.mxu0 %v647
      %v753 = vpop.f32.mrf.mxu0
      %v754 = vadd.f32 0.0, %v753
      %v755 = vpop.f32.mrf.mxu0
      %v756 = vpop.f32.mrf.mxu0
      %v757 = vadd.f32 0.0, %v756
      %v758 = vpop.f32.mrf.mxu0
      %759 = vmatprep.mubr.bf16.mxu0 0
      %760 = vmatmul.mubr.bf16.gmra.mxu0 %v648
      %v761 = vpop.f32.mrf.mxu0
      %v762 = vadd.f32 0.0, %v761
      %v763 = vpop.f32.mrf.mxu0
      %v764 = vpop.f32.mrf.mxu0
      %v765 = vadd.f32 0.0, %v764
      %v766 = vpop.f32.mrf.mxu0
      %767 = vmatprep.mubr.bf16.mxu0 0
      %768 = vmatmul.mubr.bf16.gmra.mxu0 %v649
      %v769 = vpop.f32.mrf.mxu0
      %v770 = vadd.f32 0.0, %v769
      %v771 = vpop.f32.mrf.mxu0
      %v772 = vpop.f32.mrf.mxu0
      %v773 = vadd.f32 0.0, %v772
      %v774 = vpop.f32.mrf.mxu0
      %775 = vmatprep.mubr.bf16.mxu0 0
      %776 = vmatmul.mubr.bf16.gmra.mxu0 %v650
      %v777 = vpop.f32.mrf.mxu0
      %v778 = vadd.f32 0.0, %v777
      %v779 = vpop.f32.mrf.mxu0
      %v780 = vpop.f32.mrf.mxu0
      %v781 = vadd.f32 0.0, %v780
      %v782 = vpop.f32.mrf.mxu0
      %783 = vmatprep.mubr.bf16.mxu0 0
      %784 = vmatmul.mubr.bf16.gmra.mxu0 %v651
      %v785 = vpop.f32.mrf.mxu0
      %v786 = vadd.f32 0.0, %v785
      %v787 = vpop.f32.mrf.mxu0
      %v788 = vpop.f32.mrf.mxu0
      %v789 = vadd.f32 0.0, %v788
      %v790 = vpop.f32.mrf.mxu0
      %791 = vmatprep.mubr.bf16.mxu0 0
      %792 = vmatmul.mubr.bf16.gmra.mxu0 %v652
      %v793 = vpop.f32.mrf.mxu0
      %v794 = vadd.f32 0.0, %v793
      %v795 = vpop.f32.mrf.mxu0
      %v796 = vpop.f32.mrf.mxu0
      %v797 = vadd.f32 0.0, %v796
      %v798 = vpop.f32.mrf.mxu0
      %799 = vmatprep.mubr.bf16.mxu0 0
      %800 = vmatmul.mubr.bf16.gmra.mxu0 %v653
      %v801 = vpop.f32.mrf.mxu0
      %v802 = vadd.f32 0.0, %v801
      %v803 = vpop.f32.mrf.mxu0
      %v804 = vpop.f32.mrf.mxu0
      %v805 = vadd.f32 0.0, %v804
      %v806 = vpop.f32.mrf.mxu0
      %807 = vmatprep.mubr.bf16.mxu0 0
      %808 = vmatmul.mubr.bf16.gmra.mxu0 %v654
      %v809 = vpop.f32.mrf.mxu0
      %v810 = vadd.f32 0.0, %v809
      %v811 = vpop.f32.mrf.mxu0
      %v812 = vpop.f32.mrf.mxu0
      %v813 = vadd.f32 0.0, %v812
      %v814 = vpop.f32.mrf.mxu0
      %815 = vdwg.mxu0
      %v816 = vld [vmem:[%s605] sm:$0xf]
      %v817 = vld [vmem:[%s605 + $0x4] sm:$0xf]
      %v818 = vld [vmem:[%s605 + $0x8] sm:$0xf]
      %v819 = vld [vmem:[%s605 + $0xc] sm:$0xf]
      %v820 = vld [vmem:[%s605 + $0x10] sm:$0xf]
      %v821 = vld [vmem:[%s605 + $0x14] sm:$0xf]
      %v822 = vld [vmem:[%s605 + $0x18] sm:$0xf]
      %v823 = vld [vmem:[%s605 + $0x1c] sm:$0xf]
      %v824 = vld [vmem:[%s605 + $0x20] sm:$0xf]
      %v825 = vld [vmem:[%s605 + $0x24] sm:$0xf]
      %v826 = vld [vmem:[%s605 + $0x28] sm:$0xf]
      %v827 = vld [vmem:[%s605 + $0x2c] sm:$0xf]
      %v828 = vld [vmem:[%s605 + $0x30] sm:$0xf]
      %v829 = vld [vmem:[%s605 + $0x34] sm:$0xf]
      %v830 = vld [vmem:[%s605 + $0x38] sm:$0xf]
      %v831 = vld [vmem:[%s605 + $0x3c] sm:$0xf]
      %v832 = vld [vmem:[%s605 + $0x40] sm:$0xf]
      %v833 = vld [vmem:[%s605 + $0x44] sm:$0xf]
      %v834 = vld [vmem:[%s605 + $0x48] sm:$0xf]
      %v835 = vld [vmem:[%s605 + $0x4c] sm:$0xf]
      %v836 = vld [vmem:[%s605 + $0x50] sm:$0xf]
      %v837 = vld [vmem:[%s605 + $0x54] sm:$0xf]
      %v838 = vld [vmem:[%s605 + $0x58] sm:$0xf]
      %v839 = vld [vmem:[%s605 + $0x5c] sm:$0xf]
      %v840 = vld [vmem:[%s605 + $0x60] sm:$0xf]
      %v841 = vld [vmem:[%s605 + $0x64] sm:$0xf]
      %v842 = vld [vmem:[%s605 + $0x68] sm:$0xf]
      %v843 = vld [vmem:[%s605 + $0x6c] sm:$0xf]
      %v844 = vld [vmem:[%s605 + $0x70] sm:$0xf]
      %v845 = vld [vmem:[%s605 + $0x74] sm:$0xf]
      %v846 = vld [vmem:[%s605 + $0x78] sm:$0xf]
      %v847 = vld [vmem:[%s605 + $0x7c] sm:$0xf]
      %v848 = vld [vmem:[%s605 + $0x80] sm:$0xf]
      %v849 = vld [vmem:[%s605 + $0x84] sm:$0xf]
      %v850 = vld [vmem:[%s605 + $0x88] sm:$0xf]
      %v851 = vld [vmem:[%s605 + $0x8c] sm:$0xf]
      %v852 = vld [vmem:[%s605 + $0x90] sm:$0xf]
      %v853 = vld [vmem:[%s605 + $0x94] sm:$0xf]
      %v854 = vld [vmem:[%s605 + $0x98] sm:$0xf]
      %v855 = vld [vmem:[%s605 + $0x9c] sm:$0xf]
      %v856 = vld [vmem:[%s605 + $0xa0] sm:$0xf]
      %v857 = vld [vmem:[%s605 + $0xa4] sm:$0xf]
      %v858 = vld [vmem:[%s605 + $0xa8] sm:$0xf]
      %v859 = vld [vmem:[%s605 + $0xac] sm:$0xf]
      %v860 = vld [vmem:[%s605 + $0xb0] sm:$0xf]
      %v861 = vld [vmem:[%s605 + $0xb4] sm:$0xf]
      %v862 = vld [vmem:[%s605 + $0xb8] sm:$0xf]
      %v863 = vld [vmem:[%s605 + $0xbc] sm:$0xf]
      %v864 = vld [vmem:[%s605 + $0xc0] sm:$0xf]
      %v865 = vld [vmem:[%s605 + $0xc4] sm:$0xf]
      %v866 = vld [vmem:[%s605 + $0xc8] sm:$0xf]
      %v867 = vld [vmem:[%s605 + $0xcc] sm:$0xf]
      %v868 = vld [vmem:[%s605 + $0xd0] sm:$0xf]
      %v869 = vld [vmem:[%s605 + $0xd4] sm:$0xf]
      %v870 = vld [vmem:[%s605 + $0xd8] sm:$0xf]
      %v871 = vld [vmem:[%s605 + $0xdc] sm:$0xf]
      %v872 = vld [vmem:[%s605 + $0xe0] sm:$0xf]
      %v873 = vld [vmem:[%s605 + $0xe4] sm:$0xf]
      %v874 = vld [vmem:[%s605 + $0xe8] sm:$0xf]
      %v875 = vld [vmem:[%s605 + $0xec] sm:$0xf]
      %v876 = vld [vmem:[%s605 + $0xf0] sm:$0xf]
      %v877 = vld [vmem:[%s605 + $0xf4] sm:$0xf]
      %v878 = vld [vmem:[%s605 + $0xf8] sm:$0xf]
      %v879 = vld [vmem:[%s605 + $0xfc] sm:$0xf]
      %v880 = vld [vmem:[%s6] sm:$0xff]
      %v881 = vld [vmem:[%s6 + $0x8] sm:$0xff]
      %v882 = vld [vmem:[%s6 + $0x10] sm:$0xff]
      %v883 = vld [vmem:[%s6 + $0x18] sm:$0xff]
      %v884 = vld [vmem:[%s6 + $0x20] sm:$0xff]
      %v885 = vld [vmem:[%s6 + $0x28] sm:$0xff]
      %v886 = vld [vmem:[%s6 + $0x30] sm:$0xff]
      %v887 = vld [vmem:[%s6 + $0x38] sm:$0xff]
      %v888 = vld [vmem:[%s6 + $0x40] sm:$0xff]
      %v889 = vld [vmem:[%s6 + $0x48] sm:$0xff]
      %v890 = vld [vmem:[%s6 + $0x50] sm:$0xff]
      %v891 = vld [vmem:[%s6 + $0x58] sm:$0xff]
      %v892 = vld [vmem:[%s6 + $0x60] sm:$0xff]
      %v893 = vld [vmem:[%s6 + $0x68] sm:$0xff]
      %v894 = vld [vmem:[%s6 + $0x70] sm:$0xff]
      %v895 = vld [vmem:[%s6 + $0x78] sm:$0xff]
      %v960 = vunpack.c.l.b16 %v816
      %v961 = vunpack.c.l.b16 %v817
      %v962 = vunpack.c.l.b16 %v818
      %v963 = vunpack.c.l.b16 %v819
      %v964 = vunpack.c.l.b16 %v820
      %v965 = vunpack.c.l.b16 %v821
      %v966 = vunpack.c.l.b16 %v822
      %v967 = vunpack.c.l.b16 %v823
      %v968 = vunpack.c.l.b16 %v824
      %v969 = vunpack.c.l.b16 %v825
      %v970 = vunpack.c.l.b16 %v826
      %v971 = vunpack.c.l.b16 %v827
      %v972 = vunpack.c.l.b16 %v828
      %v973 = vunpack.c.l.b16 %v829
      %v974 = vunpack.c.l.b16 %v830
      %v975 = vunpack.c.l.b16 %v831
      %v976 = vunpack.c.l.b16 %v832
      %v977 = vunpack.c.l.b16 %v833
      %v978 = vunpack.c.l.b16 %v834
      %v979 = vunpack.c.l.b16 %v835
      %v980 = vunpack.c.l.b16 %v836
      %v981 = vunpack.c.l.b16 %v837
      %v982 = vunpack.c.l.b16 %v838
      %v983 = vunpack.c.l.b16 %v839
      %v984 = vunpack.c.l.b16 %v840
      %v985 = vunpack.c.l.b16 %v841
      %v986 = vunpack.c.l.b16 %v842
      %v987 = vunpack.c.l.b16 %v843
      %v988 = vunpack.c.l.b16 %v844
      %v989 = vunpack.c.l.b16 %v845
      %v990 = vunpack.c.l.b16 %v846
      %v991 = vunpack.c.l.b16 %v847
      %v992 = vunpack.c.l.b16 %v848
      %v993 = vunpack.c.l.b16 %v849
      %v994 = vunpack.c.l.b16 %v850
      %v995 = vunpack.c.l.b16 %v851
      %v996 = vunpack.c.l.b16 %v852
      %v997 = vunpack.c.l.b16 %v853
      %v998 = vunpack.c.l.b16 %v854
      %v999 = vunpack.c.l.b16 %v855
      %v1000 = vunpack.c.l.b16 %v856
      %v1001 = vunpack.c.l.b16 %v857
      %v1002 = vunpack.c.l.b16 %v858
      %v1003 = vunpack.c.l.b16 %v859
      %v1004 = vunpack.c.l.b16 %v860
      %v1005 = vunpack.c.l.b16 %v861
      %v1006 = vunpack.c.l.b16 %v862
      %v1007 = vunpack.c.l.b16 %v863
      %v1008 = vunpack.c.l.b16 %v864
      %v1009 = vunpack.c.l.b16 %v865
      %v1010 = vunpack.c.l.b16 %v866
      %v1011 = vunpack.c.l.b16 %v867
      %v1012 = vunpack.c.l.b16 %v868
      %v1013 = vunpack.c.l.b16 %v869
      %v1014 = vunpack.c.l.b16 %v870
      %v1015 = vunpack.c.l.b16 %v871
      %v1016 = vunpack.c.l.b16 %v872
      %v1017 = vunpack.c.l.b16 %v873
      %v1018 = vunpack.c.l.b16 %v874
      %v1019 = vunpack.c.l.b16 %v875
      %v1020 = vunpack.c.l.b16 %v876
      %v1021 = vunpack.c.l.b16 %v877
      %v1022 = vunpack.c.l.b16 %v878
      %v1023 = vunpack.c.l.b16 %v879
      %v1024 = vpack.c.b16 %v961, %v960
      %v1025 = vpack.c.b16 %v963, %v962
      %v1026 = vpack.c.b16 %v965, %v964
      %v1027 = vpack.c.b16 %v967, %v966
      %v1028 = vpack.c.b16 %v969, %v968
      %v1029 = vpack.c.b16 %v971, %v970
      %v1030 = vpack.c.b16 %v973, %v972
      %v1031 = vpack.c.b16 %v975, %v974
      %v1032 = vpack.c.b16 %v977, %v976
      %v1033 = vpack.c.b16 %v979, %v978
      %v1034 = vpack.c.b16 %v981, %v980
      %v1035 = vpack.c.b16 %v983, %v982
      %v1036 = vpack.c.b16 %v985, %v984
      %v1037 = vpack.c.b16 %v987, %v986
      %v1038 = vpack.c.b16 %v989, %v988
      %v1039 = vpack.c.b16 %v991, %v990
      %v1040 = vpack.c.b16 %v993, %v992
      %v1041 = vpack.c.b16 %v995, %v994
      %v1042 = vpack.c.b16 %v997, %v996
      %v1043 = vpack.c.b16 %v999, %v998
      %v1044 = vpack.c.b16 %v1001, %v1000
      %v1045 = vpack.c.b16 %v1003, %v1002
      %v1046 = vpack.c.b16 %v1005, %v1004
      %v1047 = vpack.c.b16 %v1007, %v1006
      %v1048 = vpack.c.b16 %v1009, %v1008
      %v1049 = vpack.c.b16 %v1011, %v1010
      %v1050 = vpack.c.b16 %v1013, %v1012
      %v1051 = vpack.c.b16 %v1015, %v1014
      %v1052 = vpack.c.b16 %v1017, %v1016
      %v1053 = vpack.c.b16 %v1019, %v1018
      %v1054 = vpack.c.b16 %v1021, %v1020
      %v1055 = vpack.c.b16 %v1023, %v1022
      %v1104 = vunpack.c.l.b16 %v880
      %v1105 = vunpack.c.h.b16 %v880
      %v1106 = vunpack.c.l.b16 %v881
      %v1107 = vunpack.c.h.b16 %v881
      %v1108 = vunpack.c.l.b16 %v882
      %v1109 = vunpack.c.h.b16 %v882
      %v1110 = vunpack.c.l.b16 %v883
      %v1111 = vunpack.c.h.b16 %v883
      %v1112 = vunpack.c.l.b16 %v884
      %v1113 = vunpack.c.h.b16 %v884
      %v1114 = vunpack.c.l.b16 %v885
      %v1115 = vunpack.c.h.b16 %v885
      %v1116 = vunpack.c.l.b16 %v886
      %v1117 = vunpack.c.h.b16 %v886
      %v1118 = vunpack.c.l.b16 %v887
      %v1119 = vunpack.c.h.b16 %v887
      %v1120 = vunpack.c.l.b16 %v888
      %v1121 = vunpack.c.h.b16 %v888
      %v1122 = vunpack.c.l.b16 %v889
      %v1123 = vunpack.c.h.b16 %v889
      %v1124 = vunpack.c.l.b16 %v890
      %v1125 = vunpack.c.h.b16 %v890
      %v1126 = vunpack.c.l.b16 %v891
      %v1127 = vunpack.c.h.b16 %v891
      %v1128 = vunpack.c.l.b16 %v892
      %v1129 = vunpack.c.h.b16 %v892
      %v1130 = vunpack.c.l.b16 %v893
      %v1131 = vunpack.c.h.b16 %v893
      %v1132 = vunpack.c.l.b16 %v894
      %v1133 = vunpack.c.h.b16 %v894
      %v1134 = vunpack.c.l.b16 %v895
      %v1135 = vunpack.c.h.b16 %v895
      %v1136 = vpack.c.b16 %v1106, %v1104
      %v1137 = vpack.c.b16 %v1107, %v1105
      %v1138 = vpack.c.b16 %v1110, %v1108
      %v1139 = vpack.c.b16 %v1111, %v1109
      %v1140 = vpack.c.b16 %v1114, %v1112
      %v1141 = vpack.c.b16 %v1115, %v1113
      %v1142 = vpack.c.b16 %v1118, %v1116
      %v1143 = vpack.c.b16 %v1119, %v1117
      %v1144 = vpack.c.b16 %v1122, %v1120
      %v1145 = vpack.c.b16 %v1123, %v1121
      %v1146 = vpack.c.b16 %v1126, %v1124
      %v1147 = vpack.c.b16 %v1127, %v1125
      %v1148 = vpack.c.b16 %v1130, %v1128
      %v1149 = vpack.c.b16 %v1131, %v1129
      %v1150 = vpack.c.b16 %v1134, %v1132
      %v1151 = vpack.c.b16 %v1135, %v1133
      %1168 = vmatprep.subr.bf16.mxu0 %v1151
      %1169 = vmatpush1.bf16.msra.mxu0 %v1150
      %1170 = vmatprep.subr.bf16.mxu0 %v1149
      %1171 = vmatpush1.bf16.msra.mxu0 %v1148
      %1172 = vmatprep.subr.bf16.mxu0 %v1147
      %1173 = vmatpush1.bf16.msra.mxu0 %v1146
      %1174 = vmatprep.subr.bf16.mxu0 %v1145
      %1175 = vmatpush1.bf16.msra.mxu0 %v1144
      %1176 = vmatprep.subr.bf16.mxu0 %v1143
      %1177 = vmatpush1.bf16.msra.mxu0 %v1142
      %1178 = vmatprep.subr.bf16.mxu0 %v1141
      %1179 = vmatpush1.bf16.msra.mxu0 %v1140
      %1180 = vmatprep.subr.bf16.mxu0 %v1139
      %1181 = vmatpush1.bf16.msra.mxu0 %v1138
      %1182 = vmatprep.subr.bf16.mxu0 %v1137
      %1183 = vmatpush1.bf16.msra.mxu0 %v1136
      %1184 = vmatprep.subr.bf16.mxu0 0
      %1185 = vmatpush2.bf16.msra.mxu0 0
      %1186 = vmatprep.subr.bf16.mxu0 0
      %1187 = vmatpush2.bf16.msra.mxu0 0
      %1188 = vmatprep.subr.bf16.mxu0 0
      %1189 = vmatpush2.bf16.msra.mxu0 0
      %1190 = vmatprep.subr.bf16.mxu0 0
      %1191 = vmatpush2.bf16.msra.mxu0 0
      %1192 = vmatprep.subr.bf16.mxu0 0
      %1193 = vmatpush2.bf16.msra.mxu0 0
      %1194 = vmatprep.subr.bf16.mxu0 0
      %1195 = vmatpush2.bf16.msra.mxu0 0
      %1196 = vmatprep.subr.bf16.mxu0 0
      %1197 = vmatpush2.bf16.msra.mxu0 0
      %1198 = vmatprep.subr.bf16.mxu0 0
      %1199 = vmatpush2.bf16.msra.mxu0 0
      %1200 = vmatprep.mubr.bf16.mxu0 0
      %1201 = vmatmul.mubr.bf16.gmra.mxu0 %v1024
      %v1202 = vpop.f32.mrf.mxu0
      %v1203 = vadd.f32 0.0, %v1202
      %v1204 = vpop.f32.mrf.mxu0
      %v1205 = vadd.f32 0.0, %v1204
      %v1206 = vpop.f32.mrf.mxu0
      %v1207 = vadd.f32 0.0, %v1206
      %v1208 = vpop.f32.mrf.mxu0
      %v1209 = vadd.f32 0.0, %v1208
      %1210 = vmatprep.mubr.bf16.mxu0 0
      %1211 = vmatmul.mubr.bf16.gmra.mxu0 %v1025
      %v1212 = vpop.f32.mrf.mxu0
      %v1213 = vadd.f32 0.0, %v1212
      %v1214 = vpop.f32.mrf.mxu0
      %v1215 = vadd.f32 0.0, %v1214
      %v1216 = vpop.f32.mrf.mxu0
      %v1217 = vadd.f32 0.0, %v1216
      %v1218 = vpop.f32.mrf.mxu0
      %v1219 = vadd.f32 0.0, %v1218
      %1220 = vmatprep.mubr.bf16.mxu0 0
      %1221 = vmatmul.mubr.bf16.gmra.mxu0 %v1026
      %v1222 = vpop.f32.mrf.mxu0
      %v1223 = vadd.f32 0.0, %v1222
      %v1224 = vpop.f32.mrf.mxu0
      %v1225 = vadd.f32 0.0, %v1224
      %v1226 = vpop.f32.mrf.mxu0
      %v1227 = vadd.f32 0.0, %v1226
      %v1228 = vpop.f32.mrf.mxu0
      %v1229 = vadd.f32 0.0, %v1228
      %1230 = vmatprep.mubr.bf16.mxu0 0
      %1231 = vmatmul.mubr.bf16.gmra.mxu0 %v1027
      %v1232 = vpop.f32.mrf.mxu0
      %v1233 = vadd.f32 0.0, %v1232
      %v1234 = vpop.f32.mrf.mxu0
      %v1235 = vadd.f32 0.0, %v1234
      %v1236 = vpop.f32.mrf.mxu0
      %v1237 = vadd.f32 0.0, %v1236
      %v1238 = vpop.f32.mrf.mxu0
      %v1239 = vadd.f32 0.0, %v1238
      %1240 = vmatprep.mubr.bf16.mxu0 0
      %1241 = vmatmul.mubr.bf16.gmra.mxu0 %v1028
      %v1242 = vpop.f32.mrf.mxu0
      %v1243 = vadd.f32 0.0, %v1242
      %v1244 = vpop.f32.mrf.mxu0
      %v1245 = vadd.f32 0.0, %v1244
      %v1246 = vpop.f32.mrf.mxu0
      %v1247 = vadd.f32 0.0, %v1246
      %v1248 = vpop.f32.mrf.mxu0
      %v1249 = vadd.f32 0.0, %v1248
      %1250 = vmatprep.mubr.bf16.mxu0 0
      %1251 = vmatmul.mubr.bf16.gmra.mxu0 %v1029
      %v1252 = vpop.f32.mrf.mxu0
      %v1253 = vadd.f32 0.0, %v1252
      %v1254 = vpop.f32.mrf.mxu0
      %v1255 = vadd.f32 0.0, %v1254
      %v1256 = vpop.f32.mrf.mxu0
      %v1257 = vadd.f32 0.0, %v1256
      %v1258 = vpop.f32.mrf.mxu0
      %v1259 = vadd.f32 0.0, %v1258
      %1260 = vmatprep.mubr.bf16.mxu0 0
      %1261 = vmatmul.mubr.bf16.gmra.mxu0 %v1030
      %v1262 = vpop.f32.mrf.mxu0
      %v1263 = vadd.f32 0.0, %v1262
      %v1264 = vpop.f32.mrf.mxu0
      %v1265 = vadd.f32 0.0, %v1264
      %v1266 = vpop.f32.mrf.mxu0
      %v1267 = vadd.f32 0.0, %v1266
      %v1268 = vpop.f32.mrf.mxu0
      %v1269 = vadd.f32 0.0, %v1268
      %1270 = vmatprep.mubr.bf16.mxu0 0
      %1271 = vmatmul.mubr.bf16.gmra.mxu0 %v1031
      %v1272 = vpop.f32.mrf.mxu0
      %v1273 = vadd.f32 0.0, %v1272
      %v1274 = vpop.f32.mrf.mxu0
      %v1275 = vadd.f32 0.0, %v1274
      %v1276 = vpop.f32.mrf.mxu0
      %v1277 = vadd.f32 0.0, %v1276
      %v1278 = vpop.f32.mrf.mxu0
      %v1279 = vadd.f32 0.0, %v1278
      %1280 = vmatprep.mubr.bf16.mxu0 0
      %1281 = vmatmul.mubr.bf16.gmra.mxu0 %v1032
      %v1282 = vpop.f32.mrf.mxu0
      %v1283 = vadd.f32 0.0, %v1282
      %v1284 = vpop.f32.mrf.mxu0
      %v1285 = vadd.f32 0.0, %v1284
      %v1286 = vpop.f32.mrf.mxu0
      %v1287 = vadd.f32 0.0, %v1286
      %v1288 = vpop.f32.mrf.mxu0
      %v1289 = vadd.f32 0.0, %v1288
      %1290 = vmatprep.mubr.bf16.mxu0 0
      %1291 = vmatmul.mubr.bf16.gmra.mxu0 %v1033
      %v1292 = vpop.f32.mrf.mxu0
      %v1293 = vadd.f32 0.0, %v1292
      %v1294 = vpop.f32.mrf.mxu0
      %v1295 = vadd.f32 0.0, %v1294
      %v1296 = vpop.f32.mrf.mxu0
      %v1297 = vadd.f32 0.0, %v1296
      %v1298 = vpop.f32.mrf.mxu0
      %v1299 = vadd.f32 0.0, %v1298
      %1300 = vmatprep.mubr.bf16.mxu0 0
      %1301 = vmatmul.mubr.bf16.gmra.mxu0 %v1034
      %v1302 = vpop.f32.mrf.mxu0
      %v1303 = vadd.f32 0.0, %v1302
      %v1304 = vpop.f32.mrf.mxu0
      %v1305 = vadd.f32 0.0, %v1304
      %v1306 = vpop.f32.mrf.mxu0
      %v1307 = vadd.f32 0.0, %v1306
      %v1308 = vpop.f32.mrf.mxu0
      %v1309 = vadd.f32 0.0, %v1308
      %1310 = vmatprep.mubr.bf16.mxu0 0
      %1311 = vmatmul.mubr.bf16.gmra.mxu0 %v1035
      %v1312 = vpop.f32.mrf.mxu0
      %v1313 = vadd.f32 0.0, %v1312
      %v1314 = vpop.f32.mrf.mxu0
      %v1315 = vadd.f32 0.0, %v1314
      %v1316 = vpop.f32.mrf.mxu0
      %v1317 = vadd.f32 0.0, %v1316
      %v1318 = vpop.f32.mrf.mxu0
      %v1319 = vadd.f32 0.0, %v1318
      %1320 = vmatprep.mubr.bf16.mxu0 0
      %1321 = vmatmul.mubr.bf16.gmra.mxu0 %v1036
      %v1322 = vpop.f32.mrf.mxu0
      %v1323 = vadd.f32 0.0, %v1322
      %v1324 = vpop.f32.mrf.mxu0
      %v1325 = vadd.f32 0.0, %v1324
      %v1326 = vpop.f32.mrf.mxu0
      %v1327 = vadd.f32 0.0, %v1326
      %v1328 = vpop.f32.mrf.mxu0
      %v1329 = vadd.f32 0.0, %v1328
      %1330 = vmatprep.mubr.bf16.mxu0 0
      %1331 = vmatmul.mubr.bf16.gmra.mxu0 %v1037
      %v1332 = vpop.f32.mrf.mxu0
      %v1333 = vadd.f32 0.0, %v1332
      %v1334 = vpop.f32.mrf.mxu0
      %v1335 = vadd.f32 0.0, %v1334
      %v1336 = vpop.f32.mrf.mxu0
      %v1337 = vadd.f32 0.0, %v1336
      %v1338 = vpop.f32.mrf.mxu0
      %v1339 = vadd.f32 0.0, %v1338
      %1340 = vmatprep.mubr.bf16.mxu0 0
      %1341 = vmatmul.mubr.bf16.gmra.mxu0 %v1038
      %v1342 = vpop.f32.mrf.mxu0
      %v1343 = vadd.f32 0.0, %v1342
      %v1344 = vpop.f32.mrf.mxu0
      %v1345 = vadd.f32 0.0, %v1344
      %v1346 = vpop.f32.mrf.mxu0
      %v1347 = vadd.f32 0.0, %v1346
      %v1348 = vpop.f32.mrf.mxu0
      %v1349 = vadd.f32 0.0, %v1348
      %1350 = vmatprep.mubr.bf16.mxu0 0
      %1351 = vmatmul.mubr.bf16.gmra.mxu0 %v1039
      %v1352 = vpop.f32.mrf.mxu0
      %v1353 = vadd.f32 0.0, %v1352
      %v1354 = vpop.f32.mrf.mxu0
      %v1355 = vadd.f32 0.0, %v1354
      %v1356 = vpop.f32.mrf.mxu0
      %v1357 = vadd.f32 0.0, %v1356
      %v1358 = vpop.f32.mrf.mxu0
      %v1359 = vadd.f32 0.0, %v1358
      %1360 = vmatprep.mubr.bf16.mxu0 0
      %1361 = vmatmul.mubr.bf16.gmra.mxu0 %v1040
      %v1362 = vpop.f32.mrf.mxu0
      %v1363 = vadd.f32 0.0, %v1362
      %v1364 = vpop.f32.mrf.mxu0
      %v1365 = vadd.f32 0.0, %v1364
      %v1366 = vpop.f32.mrf.mxu0
      %v1367 = vadd.f32 0.0, %v1366
      %v1368 = vpop.f32.mrf.mxu0
      %v1369 = vadd.f32 0.0, %v1368
      %1370 = vmatprep.mubr.bf16.mxu0 0
      %1371 = vmatmul.mubr.bf16.gmra.mxu0 %v1041
      %v1372 = vpop.f32.mrf.mxu0
      %v1373 = vadd.f32 0.0, %v1372
      %v1374 = vpop.f32.mrf.mxu0
      %v1375 = vadd.f32 0.0, %v1374
      %v1376 = vpop.f32.mrf.mxu0
      %v1377 = vadd.f32 0.0, %v1376
      %v1378 = vpop.f32.mrf.mxu0
      %v1379 = vadd.f32 0.0, %v1378
      %1380 = vmatprep.mubr.bf16.mxu0 0
      %1381 = vmatmul.mubr.bf16.gmra.mxu0 %v1042
      %v1382 = vpop.f32.mrf.mxu0
      %v1383 = vadd.f32 0.0, %v1382
      %v1384 = vpop.f32.mrf.mxu0
      %v1385 = vadd.f32 0.0, %v1384
      %v1386 = vpop.f32.mrf.mxu0
      %v1387 = vadd.f32 0.0, %v1386
      %v1388 = vpop.f32.mrf.mxu0
      %v1389 = vadd.f32 0.0, %v1388
      %1390 = vmatprep.mubr.bf16.mxu0 0
      %1391 = vmatmul.mubr.bf16.gmra.mxu0 %v1043
      %v1392 = vpop.f32.mrf.mxu0
      %v1393 = vadd.f32 0.0, %v1392
      %v1394 = vpop.f32.mrf.mxu0
      %v1395 = vadd.f32 0.0, %v1394
      %v1396 = vpop.f32.mrf.mxu0
      %v1397 = vadd.f32 0.0, %v1396
      %v1398 = vpop.f32.mrf.mxu0
      %v1399 = vadd.f32 0.0, %v1398
      %1400 = vmatprep.mubr.bf16.mxu0 0
      %1401 = vmatmul.mubr.bf16.gmra.mxu0 %v1044
      %v1402 = vpop.f32.mrf.mxu0
      %v1403 = vadd.f32 0.0, %v1402
      %v1404 = vpop.f32.mrf.mxu0
      %v1405 = vadd.f32 0.0, %v1404
      %v1406 = vpop.f32.mrf.mxu0
      %v1407 = vadd.f32 0.0, %v1406
      %v1408 = vpop.f32.mrf.mxu0
      %v1409 = vadd.f32 0.0, %v1408
      %1410 = vmatprep.mubr.bf16.mxu0 0
      %1411 = vmatmul.mubr.bf16.gmra.mxu0 %v1045
      %v1412 = vpop.f32.mrf.mxu0
      %v1413 = vadd.f32 0.0, %v1412
      %v1414 = vpop.f32.mrf.mxu0
      %v1415 = vadd.f32 0.0, %v1414
      %v1416 = vpop.f32.mrf.mxu0
      %v1417 = vadd.f32 0.0, %v1416
      %v1418 = vpop.f32.mrf.mxu0
      %v1419 = vadd.f32 0.0, %v1418
      %1420 = vmatprep.mubr.bf16.mxu0 0
      %1421 = vmatmul.mubr.bf16.gmra.mxu0 %v1046
      %v1422 = vpop.f32.mrf.mxu0
      %v1423 = vadd.f32 0.0, %v1422
      %v1424 = vpop.f32.mrf.mxu0
      %v1425 = vadd.f32 0.0, %v1424
      %v1426 = vpop.f32.mrf.mxu0
      %v1427 = vadd.f32 0.0, %v1426
      %v1428 = vpop.f32.mrf.mxu0
      %v1429 = vadd.f32 0.0, %v1428
      %1430 = vmatprep.mubr.bf16.mxu0 0
      %1431 = vmatmul.mubr.bf16.gmra.mxu0 %v1047
      %v1432 = vpop.f32.mrf.mxu0
      %v1433 = vadd.f32 0.0, %v1432
      %v1434 = vpop.f32.mrf.mxu0
      %v1435 = vadd.f32 0.0, %v1434
      %v1436 = vpop.f32.mrf.mxu0
      %v1437 = vadd.f32 0.0, %v1436
      %v1438 = vpop.f32.mrf.mxu0
      %v1439 = vadd.f32 0.0, %v1438
      %1440 = vmatprep.mubr.bf16.mxu0 0
      %1441 = vmatmul.mubr.bf16.gmra.mxu0 %v1048
      %v1442 = vpop.f32.mrf.mxu0
      %v1443 = vadd.f32 0.0, %v1442
      %v1444 = vpop.f32.mrf.mxu0
      %v1445 = vadd.f32 0.0, %v1444
      %v1446 = vpop.f32.mrf.mxu0
      %v1447 = vadd.f32 0.0, %v1446
      %v1448 = vpop.f32.mrf.mxu0
      %v1449 = vadd.f32 0.0, %v1448
      %1450 = vmatprep.mubr.bf16.mxu0 0
      %1451 = vmatmul.mubr.bf16.gmra.mxu0 %v1049
      %v1452 = vpop.f32.mrf.mxu0
      %v1453 = vadd.f32 0.0, %v1452
      %v1454 = vpop.f32.mrf.mxu0
      %v1455 = vadd.f32 0.0, %v1454
      %v1456 = vpop.f32.mrf.mxu0
      %v1457 = vadd.f32 0.0, %v1456
      %v1458 = vpop.f32.mrf.mxu0
      %v1459 = vadd.f32 0.0, %v1458
      %1460 = vmatprep.mubr.bf16.mxu0 0
      %1461 = vmatmul.mubr.bf16.gmra.mxu0 %v1050
      %v1462 = vpop.f32.mrf.mxu0
      %v1463 = vadd.f32 0.0, %v1462
      %v1464 = vpop.f32.mrf.mxu0
      %v1465 = vadd.f32 0.0, %v1464
      %v1466 = vpop.f32.mrf.mxu0
      %v1467 = vadd.f32 0.0, %v1466
      %v1468 = vpop.f32.mrf.mxu0
      %v1469 = vadd.f32 0.0, %v1468
      %1470 = vmatprep.mubr.bf16.mxu0 0
      %1471 = vmatmul.mubr.bf16.gmra.mxu0 %v1051
      %v1472 = vpop.f32.mrf.mxu0
      %v1473 = vadd.f32 0.0, %v1472
      %v1474 = vpop.f32.mrf.mxu0
      %v1475 = vadd.f32 0.0, %v1474
      %v1476 = vpop.f32.mrf.mxu0
      %v1477 = vadd.f32 0.0, %v1476
      %v1478 = vpop.f32.mrf.mxu0
      %v1479 = vadd.f32 0.0, %v1478
      %1480 = vmatprep.mubr.bf16.mxu0 0
      %1481 = vmatmul.mubr.bf16.gmra.mxu0 %v1052
      %v1482 = vpop.f32.mrf.mxu0
      %v1483 = vadd.f32 0.0, %v1482
      %v1484 = vpop.f32.mrf.mxu0
      %v1485 = vadd.f32 0.0, %v1484
      %v1486 = vpop.f32.mrf.mxu0
      %v1487 = vadd.f32 0.0, %v1486
      %v1488 = vpop.f32.mrf.mxu0
      %v1489 = vadd.f32 0.0, %v1488
      %1490 = vmatprep.mubr.bf16.mxu0 0
      %1491 = vmatmul.mubr.bf16.gmra.mxu0 %v1053
      %v1492 = vpop.f32.mrf.mxu0
      %v1493 = vadd.f32 0.0, %v1492
      %v1494 = vpop.f32.mrf.mxu0
      %v1495 = vadd.f32 0.0, %v1494
      %v1496 = vpop.f32.mrf.mxu0
      %v1497 = vadd.f32 0.0, %v1496
      %v1498 = vpop.f32.mrf.mxu0
      %v1499 = vadd.f32 0.0, %v1498
      %1500 = vmatprep.mubr.bf16.mxu0 0
      %1501 = vmatmul.mubr.bf16.gmra.mxu0 %v1054
      %v1502 = vpop.f32.mrf.mxu0
      %v1503 = vadd.f32 0.0, %v1502
      %v1504 = vpop.f32.mrf.mxu0
      %v1505 = vadd.f32 0.0, %v1504
      %v1506 = vpop.f32.mrf.mxu0
      %v1507 = vadd.f32 0.0, %v1506
      %v1508 = vpop.f32.mrf.mxu0
      %v1509 = vadd.f32 0.0, %v1508
      %1510 = vmatprep.mubr.bf16.mxu0 0
      %1511 = vmatmul.mubr.bf16.gmra.mxu0 %v1055
      %v1512 = vpop.f32.mrf.mxu0
      %v1513 = vadd.f32 0.0, %v1512
      %v1514 = vpop.f32.mrf.mxu0
      %v1515 = vadd.f32 0.0, %v1514
      %v1516 = vpop.f32.mrf.mxu0
      %v1517 = vadd.f32 0.0, %v1516
      %v1518 = vpop.f32.mrf.mxu0
      %v1519 = vadd.f32 0.0, %v1518
      %1520 = vdwg.mxu0
      %v1521 = vld [vmem:[%s611] sm:$0xff]
      %v1522 = vlaneseq
      %v1523 = vshrl.u32 %v1522, 7
      %v1524 = vadd.s32 %v1523, 8
      %v1525 = vadd.s32 %v1523, 16
      %v1526 = vadd.s32 %v1523, 24
      %v1527 = vadd.s32 %v1523, 32
      %v1528 = vadd.s32 %v1523, 40
      %v1529 = vadd.s32 %v1523, 48
      %v1530 = vadd.s32 %v1523, 56
      %v1531 = vadd.s32 %v1523, 64
      %v1532 = vadd.s32 %v1523, 72
      %v1533 = vadd.s32 %v1523, 80
      %v1534 = vadd.s32 %v1523, 88
      %v1535 = vadd.s32 %v1523, 96
      %v1536 = vadd.s32 %v1523, 104
      %v1537 = vadd.s32 %v1523, 112
      %v1538 = vadd.s32 %v1523, 120
      %v1539 = vlaneseq
      %v1540 = vand.u32 %v1539, 127
      %v1541 = vadd.s32 %v1540, 128
      %v1542 = vadd.s32 %v1540, 256
      %v1543 = vadd.s32 %v1540, 384
      %v1544 = vmul.u32 %v1523, 4
      %v1545 = vmul.u32 %v1524, 4
      %v1546 = vmul.u32 %v1525, 4
      %v1547 = vmul.u32 %v1526, 4
      %v1548 = vmul.u32 %v1527, 4
      %v1549 = vmul.u32 %v1528, 4
      %v1550 = vmul.u32 %v1529, 4
      %v1551 = vmul.u32 %v1530, 4
      %v1552 = vmul.u32 %v1531, 4
      %v1553 = vmul.u32 %v1532, 4
      %v1554 = vmul.u32 %v1533, 4
      %v1555 = vmul.u32 %v1534, 4
      %v1556 = vmul.u32 %v1535, 4
      %v1557 = vmul.u32 %v1536, 4
      %v1558 = vmul.u32 %v1537, 4
      %v1559 = vmul.u32 %v1538, 4
      %vm1560 = vcmp.ge.s32.totalorder %v1540, %v1544
      %vm1561 = vcmp.ge.s32.totalorder %v1541, %v1544
      %vm1562 = vcmp.ge.s32.totalorder %v1542, %v1544
      %vm1563 = vcmp.ge.s32.totalorder %v1543, %v1544
      %vm1564 = vcmp.ge.s32.totalorder %v1540, %v1545
      %vm1565 = vcmp.ge.s32.totalorder %v1541, %v1545
      %vm1566 = vcmp.ge.s32.totalorder %v1542, %v1545
      %vm1567 = vcmp.ge.s32.totalorder %v1543, %v1545
      %vm1568 = vcmp.ge.s32.totalorder %v1540, %v1546
      %vm1569 = vcmp.ge.s32.totalorder %v1541, %v1546
      %vm1570 = vcmp.ge.s32.totalorder %v1542, %v1546
      %vm1571 = vcmp.ge.s32.totalorder %v1543, %v1546
      %vm1572 = vcmp.ge.s32.totalorder %v1540, %v1547
      %vm1573 = vcmp.ge.s32.totalorder %v1541, %v1547
      %vm1574 = vcmp.ge.s32.totalorder %v1542, %v1547
      %vm1575 = vcmp.ge.s32.totalorder %v1543, %v1547
      %vm1576 = vcmp.ge.s32.totalorder %v1540, %v1548
      %vm1577 = vcmp.ge.s32.totalorder %v1541, %v1548
      %vm1578 = vcmp.ge.s32.totalorder %v1542, %v1548
      %vm1579 = vcmp.ge.s32.totalorder %v1543, %v1548
      %vm1580 = vcmp.ge.s32.totalorder %v1540, %v1549
      %vm1581 = vcmp.ge.s32.totalorder %v1541, %v1549
      %vm1582 = vcmp.ge.s32.totalorder %v1542, %v1549
      %vm1583 = vcmp.ge.s32.totalorder %v1543, %v1549
      %vm1584 = vcmp.ge.s32.totalorder %v1540, %v1550
      %vm1585 = vcmp.ge.s32.totalorder %v1541, %v1550
      %vm1586 = vcmp.ge.s32.totalorder %v1542, %v1550
      %vm1587 = vcmp.ge.s32.totalorder %v1543, %v1550
      %vm1588 = vcmp.ge.s32.totalorder %v1540, %v1551
      %vm1589 = vcmp.ge.s32.totalorder %v1541, %v1551
      %vm1590 = vcmp.ge.s32.totalorder %v1542, %v1551
      %vm1591 = vcmp.ge.s32.totalorder %v1543, %v1551
      %vm1592 = vcmp.ge.s32.totalorder %v1540, %v1552
      %vm1593 = vcmp.ge.s32.totalorder %v1541, %v1552
      %vm1594 = vcmp.ge.s32.totalorder %v1542, %v1552
      %vm1595 = vcmp.ge.s32.totalorder %v1543, %v1552
      %vm1596 = vcmp.ge.s32.totalorder %v1540, %v1553
      %vm1597 = vcmp.ge.s32.totalorder %v1541, %v1553
      %vm1598 = vcmp.ge.s32.totalorder %v1542, %v1553
      %vm1599 = vcmp.ge.s32.totalorder %v1543, %v1553
      %vm1600 = vcmp.ge.s32.totalorder %v1540, %v1554
      %vm1601 = vcmp.ge.s32.totalorder %v1541, %v1554
      %vm1602 = vcmp.ge.s32.totalorder %v1542, %v1554
      %vm1603 = vcmp.ge.s32.totalorder %v1543, %v1554
      %vm1604 = vcmp.ge.s32.totalorder %v1540, %v1555
      %vm1605 = vcmp.ge.s32.totalorder %v1541, %v1555
      %vm1606 = vcmp.ge.s32.totalorder %v1542, %v1555
      %vm1607 = vcmp.ge.s32.totalorder %v1543, %v1555
      %vm1608 = vcmp.ge.s32.totalorder %v1540, %v1556
      %vm1609 = vcmp.ge.s32.totalorder %v1541, %v1556
      %vm1610 = vcmp.ge.s32.totalorder %v1542, %v1556
      %vm1611 = vcmp.ge.s32.totalorder %v1543, %v1556
      %vm1612 = vcmp.ge.s32.totalorder %v1540, %v1557
      %vm1613 = vcmp.ge.s32.totalorder %v1541, %v1557
      %vm1614 = vcmp.ge.s32.totalorder %v1542, %v1557
      %vm1615 = vcmp.ge.s32.totalorder %v1543, %v1557
      %vm1616 = vcmp.ge.s32.totalorder %v1540, %v1558
      %vm1617 = vcmp.ge.s32.totalorder %v1541, %v1558
      %vm1618 = vcmp.ge.s32.totalorder %v1542, %v1558
      %vm1619 = vcmp.ge.s32.totalorder %v1543, %v1558
      %vm1620 = vcmp.ge.s32.totalorder %v1540, %v1559
      %vm1621 = vcmp.ge.s32.totalorder %v1541, %v1559
      %vm1622 = vcmp.ge.s32.totalorder %v1542, %v1559
      %vm1623 = vcmp.ge.s32.totalorder %v1543, %v1559
      %v1624 = vadd.s32 %v1523, 1
      %v1625 = vadd.s32 %v1524, 1
      %v1626 = vadd.s32 %v1525, 1
      %v1627 = vadd.s32 %v1526, 1
      %v1628 = vadd.s32 %v1527, 1
      %v1629 = vadd.s32 %v1528, 1
      %v1630 = vadd.s32 %v1529, 1
      %v1631 = vadd.s32 %v1530, 1
      %v1632 = vadd.s32 %v1531, 1
      %v1633 = vadd.s32 %v1532, 1
      %v1634 = vadd.s32 %v1533, 1
      %v1635 = vadd.s32 %v1534, 1
      %v1636 = vadd.s32 %v1535, 1
      %v1637 = vadd.s32 %v1536, 1
      %v1638 = vadd.s32 %v1537, 1
      %v1639 = vadd.s32 %v1538, 1
      %v1640 = vmul.u32 %v1624, 4
      %v1641 = vmul.u32 %v1625, 4
      %v1642 = vmul.u32 %v1626, 4
      %v1643 = vmul.u32 %v1627, 4
      %v1644 = vmul.u32 %v1628, 4
      %v1645 = vmul.u32 %v1629, 4
      %v1646 = vmul.u32 %v1630, 4
      %v1647 = vmul.u32 %v1631, 4
      %v1648 = vmul.u32 %v1632, 4
      %v1649 = vmul.u32 %v1633, 4
      %v1650 = vmul.u32 %v1634, 4
      %v1651 = vmul.u32 %v1635, 4
      %v1652 = vmul.u32 %v1636, 4
      %v1653 = vmul.u32 %v1637, 4
      %v1654 = vmul.u32 %v1638, 4
      %v1655 = vmul.u32 %v1639, 4
      %vm1656 = vcmp.lt.s32.totalorder %v1540, %v1640
      %vm1657 = vcmp.lt.s32.totalorder %v1541, %v1640
      %vm1658 = vcmp.lt.s32.totalorder %v1542, %v1640
      %vm1659 = vcmp.lt.s32.totalorder %v1543, %v1640
      %vm1660 = vcmp.lt.s32.totalorder %v1540, %v1641
      %vm1661 = vcmp.lt.s32.totalorder %v1541, %v1641
      %vm1662 = vcmp.lt.s32.totalorder %v1542, %v1641
      %vm1663 = vcmp.lt.s32.totalorder %v1543, %v1641
      %vm1664 = vcmp.lt.s32.totalorder %v1540, %v1642
      %vm1665 = vcmp.lt.s32.totalorder %v1541, %v1642
      %vm1666 = vcmp.lt.s32.totalorder %v1542, %v1642
      %vm1667 = vcmp.lt.s32.totalorder %v1543, %v1642
      %vm1668 = vcmp.lt.s32.totalorder %v1540, %v1643
      %vm1669 = vcmp.lt.s32.totalorder %v1541, %v1643
      %vm1670 = vcmp.lt.s32.totalorder %v1542, %v1643
      %vm1671 = vcmp.lt.s32.totalorder %v1543, %v1643
      %vm1672 = vcmp.lt.s32.totalorder %v1540, %v1644
      %vm1673 = vcmp.lt.s32.totalorder %v1541, %v1644
      %vm1674 = vcmp.lt.s32.totalorder %v1542, %v1644
      %vm1675 = vcmp.lt.s32.totalorder %v1543, %v1644
      %vm1676 = vcmp.lt.s32.totalorder %v1540, %v1645
      %vm1677 = vcmp.lt.s32.totalorder %v1541, %v1645
      %vm1678 = vcmp.lt.s32.totalorder %v1542, %v1645
      %vm1679 = vcmp.lt.s32.totalorder %v1543, %v1645
      %vm1680 = vcmp.lt.s32.totalorder %v1540, %v1646
      %vm1681 = vcmp.lt.s32.totalorder %v1541, %v1646
      %vm1682 = vcmp.lt.s32.totalorder %v1542, %v1646
      %vm1683 = vcmp.lt.s32.totalorder %v1543, %v1646
      %vm1684 = vcmp.lt.s32.totalorder %v1540, %v1647
      %vm1685 = vcmp.lt.s32.totalorder %v1541, %v1647
      %vm1686 = vcmp.lt.s32.totalorder %v1542, %v1647
      %vm1687 = vcmp.lt.s32.totalorder %v1543, %v1647
      %vm1688 = vcmp.lt.s32.totalorder %v1540, %v1648
      %vm1689 = vcmp.lt.s32.totalorder %v1541, %v1648
      %vm1690 = vcmp.lt.s32.totalorder %v1542, %v1648
      %vm1691 = vcmp.lt.s32.totalorder %v1543, %v1648
      %vm1692 = vcmp.lt.s32.totalorder %v1540, %v1649
      %vm1693 = vcmp.lt.s32.totalorder %v1541, %v1649
      %vm1694 = vcmp.lt.s32.totalorder %v1542, %v1649
      %vm1695 = vcmp.lt.s32.totalorder %v1543, %v1649
      %vm1696 = vcmp.lt.s32.totalorder %v1540, %v1650
      %vm1697 = vcmp.lt.s32.totalorder %v1541, %v1650
      %vm1698 = vcmp.lt.s32.totalorder %v1542, %v1650
      %vm1699 = vcmp.lt.s32.totalorder %v1543, %v1650
      %vm1700 = vcmp.lt.s32.totalorder %v1540, %v1651
      %vm1701 = vcmp.lt.s32.totalorder %v1541, %v1651
      %vm1702 = vcmp.lt.s32.totalorder %v1542, %v1651
      %vm1703 = vcmp.lt.s32.totalorder %v1543, %v1651
      %vm1704 = vcmp.lt.s32.totalorder %v1540, %v1652
      %vm1705 = vcmp.lt.s32.totalorder %v1541, %v1652
      %vm1706 = vcmp.lt.s32.totalorder %v1542, %v1652
      %vm1707 = vcmp.lt.s32.totalorder %v1543, %v1652
      %vm1708 = vcmp.lt.s32.totalorder %v1540, %v1653
      %vm1709 = vcmp.lt.s32.totalorder %v1541, %v1653
      %vm1710 = vcmp.lt.s32.totalorder %v1542, %v1653
      %vm1711 = vcmp.lt.s32.totalorder %v1543, %v1653
      %vm1712 = vcmp.lt.s32.totalorder %v1540, %v1654
      %vm1713 = vcmp.lt.s32.totalorder %v1541, %v1654
      %vm1714 = vcmp.lt.s32.totalorder %v1542, %v1654
      %vm1715 = vcmp.lt.s32.totalorder %v1543, %v1654
      %vm1716 = vcmp.lt.s32.totalorder %v1540, %v1655
      %vm1717 = vcmp.lt.s32.totalorder %v1541, %v1655
      %vm1718 = vcmp.lt.s32.totalorder %v1542, %v1655
      %vm1719 = vcmp.lt.s32.totalorder %v1543, %v1655
      %vm1720 = vmand %vm1560, %vm1656
      %vm1721 = vmand %vm1561, %vm1657
      %vm1722 = vmand %vm1562, %vm1658
      %vm1723 = vmand %vm1563, %vm1659
      %vm1724 = vmand %vm1564, %vm1660
      %vm1725 = vmand %vm1565, %vm1661
      %vm1726 = vmand %vm1566, %vm1662
      %vm1727 = vmand %vm1567, %vm1663
      %vm1728 = vmand %vm1568, %vm1664
      %vm1729 = vmand %vm1569, %vm1665
      %vm1730 = vmand %vm1570, %vm1666
      %vm1731 = vmand %vm1571, %vm1667
      %vm1732 = vmand %vm1572, %vm1668
      %vm1733 = vmand %vm1573, %vm1669
      %vm1734 = vmand %vm1574, %vm1670
      %vm1735 = vmand %vm1575, %vm1671
      %vm1736 = vmand %vm1576, %vm1672
      %vm1737 = vmand %vm1577, %vm1673
      %vm1738 = vmand %vm1578, %vm1674
      %vm1739 = vmand %vm1579, %vm1675
      %vm1740 = vmand %vm1580, %vm1676
      %vm1741 = vmand %vm1581, %vm1677
      %vm1742 = vmand %vm1582, %vm1678
      %vm1743 = vmand %vm1583, %vm1679
      %vm1744 = vmand %vm1584, %vm1680
      %vm1745 = vmand %vm1585, %vm1681
      %vm1746 = vmand %vm1586, %vm1682
      %vm1747 = vmand %vm1587, %vm1683
      %vm1748 = vmand %vm1588, %vm1684
      %vm1749 = vmand %vm1589, %vm1685
      %vm1750 = vmand %vm1590, %vm1686
      %vm1751 = vmand %vm1591, %vm1687
      %vm1752 = vmand %vm1592, %vm1688
      %vm1753 = vmand %vm1593, %vm1689
      %vm1754 = vmand %vm1594, %vm1690
      %vm1755 = vmand %vm1595, %vm1691
      %vm1756 = vmand %vm1596, %vm1692
      %vm1757 = vmand %vm1597, %vm1693
      %vm1758 = vmand %vm1598, %vm1694
      %vm1759 = vmand %vm1599, %vm1695
      %vm1760 = vmand %vm1600, %vm1696
      %vm1761 = vmand %vm1601, %vm1697
      %vm1762 = vmand %vm1602, %vm1698
      %vm1763 = vmand %vm1603, %vm1699
      %vm1764 = vmand %vm1604, %vm1700
      %vm1765 = vmand %vm1605, %vm1701
      %vm1766 = vmand %vm1606, %vm1702
      %vm1767 = vmand %vm1607, %vm1703
      %vm1768 = vmand %vm1608, %vm1704
      %vm1769 = vmand %vm1609, %vm1705
      %vm1770 = vmand %vm1610, %vm1706
      %vm1771 = vmand %vm1611, %vm1707
      %vm1772 = vmand %vm1612, %vm1708
      %vm1773 = vmand %vm1613, %vm1709
      %vm1774 = vmand %vm1614, %vm1710
      %vm1775 = vmand %vm1615, %vm1711
      %vm1776 = vmand %vm1616, %vm1712
      %vm1777 = vmand %vm1617, %vm1713
      %vm1778 = vmand %vm1618, %vm1714
      %vm1779 = vmand %vm1619, %vm1715
      %vm1780 = vmand %vm1620, %vm1716
      %vm1781 = vmand %vm1621, %vm1717
      %vm1782 = vmand %vm1622, %vm1718
      %vm1783 = vmand %vm1623, %vm1719
      %v1784 = vld [vmem:[%s8] sm:$0x1]
      %v1786 = vlaneseq
      %v1787 = vshrl.u32 %v1786, 7
      %v1788 = vsub.s32 0, %v1787
      %v1789 = vrot.slane %v1784, %v1788
      %v1791 = vadd.f32 %v631, %v1789
      %v1792 = vadd.f32 %v632, %v1789
      %v1793 = vadd.f32 %v633, %v1789
      %v1794 = vadd.f32 %v634, %v1789
      %v1795 = vadd.f32 %v635, %v1789
      %v1796 = vadd.f32 %v636, %v1789
      %v1797 = vadd.f32 %v637, %v1789
      %v1798 = vadd.f32 %v638, %v1789
      %v1799 = vadd.f32 %v639, %v1789
      %v1800 = vadd.f32 %v640, %v1789
      %v1801 = vadd.f32 %v641, %v1789
      %v1802 = vadd.f32 %v642, %v1789
      %v1803 = vadd.f32 %v643, %v1789
      %v1804 = vadd.f32 %v644, %v1789
      %v1805 = vadd.f32 %v645, %v1789
      %v1806 = vadd.f32 %v646, %v1789
      %v1807 = vpack.c.bf16 %v757, %v754
      %v1808 = vpack.c.bf16 %v765, %v762
      %v1809 = vpack.c.bf16 %v773, %v770
      %v1810 = vpack.c.bf16 %v781, %v778
      %v1811 = vpack.c.bf16 %v789, %v786
      %v1812 = vpack.c.bf16 %v797, %v794
      %v1813 = vpack.c.bf16 %v805, %v802
      %v1814 = vpack.c.bf16 %v813, %v810
      %v1815 = vpack.c.bf16 %v1207, %v1203
      %v1816 = vpack.c.bf16 %v1217, %v1213
      %v1817 = vpack.c.bf16 %v1227, %v1223
      %v1818 = vpack.c.bf16 %v1237, %v1233
      %v1819 = vpack.c.bf16 %v1247, %v1243
      %v1820 = vpack.c.bf16 %v1257, %v1253
      %v1821 = vpack.c.bf16 %v1267, %v1263
      %v1822 = vpack.c.bf16 %v1277, %v1273
      %v1823 = vpack.c.bf16 %v1287, %v1283
      %v1824 = vpack.c.bf16 %v1297, %v1293
      %v1825 = vpack.c.bf16 %v1307, %v1303
      %v1826 = vpack.c.bf16 %v1317, %v1313
      %v1827 = vpack.c.bf16 %v1327, %v1323
      %v1828 = vpack.c.bf16 %v1337, %v1333
      %v1829 = vpack.c.bf16 %v1347, %v1343
      %v1830 = vpack.c.bf16 %v1357, %v1353
      %v1831 = vpack.c.bf16 %v1367, %v1363
      %v1832 = vpack.c.bf16 %v1377, %v1373
      %v1833 = vpack.c.bf16 %v1387, %v1383
      %v1834 = vpack.c.bf16 %v1397, %v1393
      %v1835 = vpack.c.bf16 %v1407, %v1403
      %v1836 = vpack.c.bf16 %v1417, %v1413
      %v1837 = vpack.c.bf16 %v1427, %v1423
      %v1838 = vpack.c.bf16 %v1437, %v1433
      %v1839 = vpack.c.bf16 %v1447, %v1443
      %v1840 = vpack.c.bf16 %v1457, %v1453
      %v1841 = vpack.c.bf16 %v1467, %v1463
      %v1842 = vpack.c.bf16 %v1477, %v1473
      %v1843 = vpack.c.bf16 %v1487, %v1483
      %v1844 = vpack.c.bf16 %v1497, %v1493
      %v1845 = vpack.c.bf16 %v1507, %v1503
      %v1846 = vpack.c.bf16 %v1517, %v1513
      %v1847 = vpack.c.bf16 %v1209, %v1205
      %v1848 = vpack.c.bf16 %v1219, %v1215
      %v1849 = vpack.c.bf16 %v1229, %v1225
      %v1850 = vpack.c.bf16 %v1239, %v1235
      %v1851 = vpack.c.bf16 %v1249, %v1245
      %v1852 = vpack.c.bf16 %v1259, %v1255
      %v1853 = vpack.c.bf16 %v1269, %v1265
      %v1854 = vpack.c.bf16 %v1279, %v1275
      %v1855 = vpack.c.bf16 %v1289, %v1285
      %v1856 = vpack.c.bf16 %v1299, %v1295
      %v1857 = vpack.c.bf16 %v1309, %v1305
      %v1858 = vpack.c.bf16 %v1319, %v1315
      %v1859 = vpack.c.bf16 %v1329, %v1325
      %v1860 = vpack.c.bf16 %v1339, %v1335
      %v1861 = vpack.c.bf16 %v1349, %v1345
      %v1862 = vpack.c.bf16 %v1359, %v1355
      %v1863 = vpack.c.bf16 %v1369, %v1365
      %v1864 = vpack.c.bf16 %v1379, %v1375
      %v1865 = vpack.c.bf16 %v1389, %v1385
      %v1866 = vpack.c.bf16 %v1399, %v1395
      %v1867 = vpack.c.bf16 %v1409, %v1405
      %v1868 = vpack.c.bf16 %v1419, %v1415
      %v1869 = vpack.c.bf16 %v1429, %v1425
      %v1870 = vpack.c.bf16 %v1439, %v1435
      %v1871 = vpack.c.bf16 %v1449, %v1445
      %v1872 = vpack.c.bf16 %v1459, %v1455
      %v1873 = vpack.c.bf16 %v1469, %v1465
      %v1874 = vpack.c.bf16 %v1479, %v1475
      %v1875 = vpack.c.bf16 %v1489, %v1485
      %v1876 = vpack.c.bf16 %v1499, %v1495
      %v1877 = vpack.c.bf16 %v1509, %v1505
      %v1878 = vpack.c.bf16 %v1519, %v1515
      %vm1879 = vcmask 523264
      %v1881 = vsel %vm1879, %v1807, 0
      %v1884 = vsel %vm1879, %v1808, 0
      %v1887 = vsel %vm1879, %v1809, 0
      %v1890 = vsel %vm1879, %v1810, 0
      %v1893 = vsel %vm1879, %v1811, 0
      %v1896 = vsel %vm1879, %v1812, 0
      %v1899 = vsel %vm1879, %v1813, 0
      %v1902 = vsel %vm1879, %v1814, 0
      %v1905 = vsel %vm1879, %v1815, 0
      %v1908 = vsel %vm1879, %v1816, 0
      %v1911 = vsel %vm1879, %v1817, 0
      %v1914 = vsel %vm1879, %v1818, 0
      %v1917 = vsel %vm1879, %v1819, 0
      %v1920 = vsel %vm1879, %v1820, 0
      %v1923 = vsel %vm1879, %v1821, 0
      %v1926 = vsel %vm1879, %v1822, 0
      %v1929 = vsel %vm1879, %v1823, 0
      %v1932 = vsel %vm1879, %v1824, 0
      %v1935 = vsel %vm1879, %v1825, 0
      %v1938 = vsel %vm1879, %v1826, 0
      %v1941 = vsel %vm1879, %v1827, 0
      %v1944 = vsel %vm1879, %v1828, 0
      %v1947 = vsel %vm1879, %v1829, 0
      %v1950 = vsel %vm1879, %v1830, 0
      %v1953 = vsel %vm1879, %v1831, 0
      %v1956 = vsel %vm1879, %v1832, 0
      %v1959 = vsel %vm1879, %v1833, 0
      %v1962 = vsel %vm1879, %v1834, 0
      %v1965 = vsel %vm1879, %v1835, 0
      %v1968 = vsel %vm1879, %v1836, 0
      %v1971 = vsel %vm1879, %v1837, 0
      %v1974 = vsel %vm1879, %v1838, 0
      %v1977 = vsel %vm1879, %v1839, 0
      %v1980 = vsel %vm1879, %v1840, 0
      %v1983 = vsel %vm1879, %v1841, 0
      %v1986 = vsel %vm1879, %v1842, 0
      %v1989 = vsel %vm1879, %v1843, 0
      %v1992 = vsel %vm1879, %v1844, 0
      %v1995 = vsel %vm1879, %v1845, 0
      %v1998 = vsel %vm1879, %v1846, 0
      %2000 = vmatprep.subr.bf16.mxu0 0
      %2001 = vmatpush1.bf16.xpose.msra.mxu0 %v1926
      %2002 = vmatprep.subr.bf16.mxu0 0
      %2003 = vmatpush1.bf16.xpose.msra.mxu0 %v1923
      %2004 = vmatprep.subr.bf16.mxu0 0
      %2005 = vmatpush1.bf16.xpose.msra.mxu0 %v1920
      %2006 = vmatprep.subr.bf16.mxu0 0
      %2007 = vmatpush1.bf16.xpose.msra.mxu0 %v1917
      %2008 = vmatprep.subr.bf16.mxu0 0
      %2009 = vmatpush1.bf16.xpose.msra.mxu0 %v1914
      %2010 = vmatprep.subr.bf16.mxu0 0
      %2011 = vmatpush1.bf16.xpose.msra.mxu0 %v1911
      %2012 = vmatprep.subr.bf16.mxu0 0
      %2013 = vmatpush1.bf16.xpose.msra.mxu0 %v1908
      %2014 = vmatprep.subr.bf16.mxu0 0
      %2015 = vmatpush1.bf16.xpose.msra.mxu0 %v1905
      %2016 = vmatprep.subr.bf16.mxu0 0
      %2017 = vmatpush2.bf16.xpose.msra.mxu0 %v1950
      %2018 = vmatprep.subr.bf16.mxu0 0
      %2019 = vmatpush2.bf16.xpose.msra.mxu0 %v1947
      %2020 = vmatprep.subr.bf16.mxu0 0
      %2021 = vmatpush2.bf16.xpose.msra.mxu0 %v1944
      %2022 = vmatprep.subr.bf16.mxu0 0
      %2023 = vmatpush2.bf16.xpose.msra.mxu0 %v1941
      %2024 = vmatprep.subr.bf16.mxu0 0
      %2025 = vmatpush2.bf16.xpose.msra.mxu0 %v1938
      %2026 = vmatprep.subr.bf16.mxu0 0
      %2027 = vmatpush2.bf16.xpose.msra.mxu0 %v1935
      %2028 = vmatprep.subr.bf16.mxu0 0
      %2029 = vmatpush2.bf16.xpose.msra.mxu0 %v1932
      %2030 = vmatprep.subr.bf16.mxu0 0
      %2031 = vmatpush2.bf16.xpose.msra.mxu0 %v1929
      %2032 = vmatprep.mubr.bf16.mxu0 0
      %2033 = vmatmul.mubr.bf16.gmra.mxu0 %v1881
      %v2034 = vpop.f32.mrf.mxu0
      %v2035 = vadd.f32 0.0, %v2034
      %v2036 = vpop.f32.mrf.mxu0
      %v2037 = vadd.f32 0.0, %v2036
      %v2038 = vpop.f32.mrf.mxu0
      %v2039 = vadd.f32 0.0, %v2038
      %v2040 = vpop.f32.mrf.mxu0
      %v2041 = vadd.f32 0.0, %v2040
      %2042 = vmatprep.mubr.bf16.mxu0 0
      %2043 = vmatmul.mubr.bf16.gmra.mxu0 %v1884
      %v2044 = vpop.f32.mrf.mxu0
      %v2045 = vadd.f32 0.0, %v2044
      %v2046 = vpop.f32.mrf.mxu0
      %v2047 = vadd.f32 0.0, %v2046
      %v2048 = vpop.f32.mrf.mxu0
      %v2049 = vadd.f32 0.0, %v2048
      %v2050 = vpop.f32.mrf.mxu0
      %v2051 = vadd.f32 0.0, %v2050
      %2052 = vmatprep.mubr.bf16.mxu0 0
      %2053 = vmatmul.mubr.bf16.gmra.mxu0 %v1887
      %v2054 = vpop.f32.mrf.mxu0
      %v2055 = vadd.f32 0.0, %v2054
      %v2056 = vpop.f32.mrf.mxu0
      %v2057 = vadd.f32 0.0, %v2056
      %v2058 = vpop.f32.mrf.mxu0
      %v2059 = vadd.f32 0.0, %v2058
      %v2060 = vpop.f32.mrf.mxu0
      %v2061 = vadd.f32 0.0, %v2060
      %2062 = vmatprep.mubr.bf16.mxu0 0
      %2063 = vmatmul.mubr.bf16.gmra.mxu0 %v1890
      %v2064 = vpop.f32.mrf.mxu0
      %v2065 = vadd.f32 0.0, %v2064
      %v2066 = vpop.f32.mrf.mxu0
      %v2067 = vadd.f32 0.0, %v2066
      %v2068 = vpop.f32.mrf.mxu0
      %v2069 = vadd.f32 0.0, %v2068
      %v2070 = vpop.f32.mrf.mxu0
      %v2071 = vadd.f32 0.0, %v2070
      %2072 = vmatprep.mubr.bf16.mxu0 0
      %2073 = vmatmul.mubr.bf16.gmra.mxu0 %v1893
      %v2074 = vpop.f32.mrf.mxu0
      %v2075 = vadd.f32 0.0, %v2074
      %v2076 = vpop.f32.mrf.mxu0
      %v2077 = vadd.f32 0.0, %v2076
      %v2078 = vpop.f32.mrf.mxu0
      %v2079 = vadd.f32 0.0, %v2078
      %v2080 = vpop.f32.mrf.mxu0
      %v2081 = vadd.f32 0.0, %v2080
      %2082 = vmatprep.mubr.bf16.mxu0 0
      %2083 = vmatmul.mubr.bf16.gmra.mxu0 %v1896
      %v2084 = vpop.f32.mrf.mxu0
      %v2085 = vadd.f32 0.0, %v2084
      %v2086 = vpop.f32.mrf.mxu0
      %v2087 = vadd.f32 0.0, %v2086
      %v2088 = vpop.f32.mrf.mxu0
      %v2089 = vadd.f32 0.0, %v2088
      %v2090 = vpop.f32.mrf.mxu0
      %v2091 = vadd.f32 0.0, %v2090
      %2092 = vmatprep.mubr.bf16.mxu0 0
      %2093 = vmatmul.mubr.bf16.gmra.mxu0 %v1899
      %v2094 = vpop.f32.mrf.mxu0
      %v2095 = vadd.f32 0.0, %v2094
      %v2096 = vpop.f32.mrf.mxu0
      %v2097 = vadd.f32 0.0, %v2096
      %v2098 = vpop.f32.mrf.mxu0
      %v2099 = vadd.f32 0.0, %v2098
      %v2100 = vpop.f32.mrf.mxu0
      %v2101 = vadd.f32 0.0, %v2100
      %2102 = vmatprep.mubr.bf16.mxu0 0
      %2103 = vmatmul.mubr.bf16.gmra.mxu0 %v1902
      %v2104 = vpop.f32.mrf.mxu0
      %v2105 = vadd.f32 0.0, %v2104
      %v2106 = vpop.f32.mrf.mxu0
      %v2107 = vadd.f32 0.0, %v2106
      %v2108 = vpop.f32.mrf.mxu0
      %v2109 = vadd.f32 0.0, %v2108
      %v2110 = vpop.f32.mrf.mxu0
      %v2111 = vadd.f32 0.0, %v2110
      %2112 = vdwg.mxu0
      %2113 = vmatprep.subr.bf16.mxu0 0
      %2114 = vmatpush1.bf16.xpose.msra.mxu0 %v1974
      %2115 = vmatprep.subr.bf16.mxu0 0
      %2116 = vmatpush1.bf16.xpose.msra.mxu0 %v1971
      %2117 = vmatprep.subr.bf16.mxu0 0
      %2118 = vmatpush1.bf16.xpose.msra.mxu0 %v1968
      %2119 = vmatprep.subr.bf16.mxu0 0
      %2120 = vmatpush1.bf16.xpose.msra.mxu0 %v1965
      %2121 = vmatprep.subr.bf16.mxu0 0
      %2122 = vmatpush1.bf16.xpose.msra.mxu0 %v1962
      %2123 = vmatprep.subr.bf16.mxu0 0
      %2124 = vmatpush1.bf16.xpose.msra.mxu0 %v1959
      %2125 = vmatprep.subr.bf16.mxu0 0
      %2126 = vmatpush1.bf16.xpose.msra.mxu0 %v1956
      %2127 = vmatprep.subr.bf16.mxu0 0
      %2128 = vmatpush1.bf16.xpose.msra.mxu0 %v1953
      %2129 = vmatprep.subr.bf16.mxu0 0
      %2130 = vmatpush2.bf16.xpose.msra.mxu0 %v1998
      %2131 = vmatprep.subr.bf16.mxu0 0
      %2132 = vmatpush2.bf16.xpose.msra.mxu0 %v1995
      %2133 = vmatprep.subr.bf16.mxu0 0
      %2134 = vmatpush2.bf16.xpose.msra.mxu0 %v1992
      %2135 = vmatprep.subr.bf16.mxu0 0
      %2136 = vmatpush2.bf16.xpose.msra.mxu0 %v1989
      %2137 = vmatprep.subr.bf16.mxu0 0
      %2138 = vmatpush2.bf16.xpose.msra.mxu0 %v1986
      %2139 = vmatprep.subr.bf16.mxu0 0
      %2140 = vmatpush2.bf16.xpose.msra.mxu0 %v1983
      %2141 = vmatprep.subr.bf16.mxu0 0
      %2142 = vmatpush2.bf16.xpose.msra.mxu0 %v1980
      %2143 = vmatprep.subr.bf16.mxu0 0
      %2144 = vmatpush2.bf16.xpose.msra.mxu0 %v1977
      %2145 = vmatprep.mubr.bf16.mxu0 0
      %2146 = vmatmul.mubr.bf16.gmra.mxu0 %v1881
      %v2147 = vpop.f32.mrf.mxu0
      %v2148 = vadd.f32 0.0, %v2147
      %v2149 = vpop.f32.mrf.mxu0
      %v2150 = vadd.f32 0.0, %v2149
      %v2151 = vpop.f32.mrf.mxu0
      %v2152 = vadd.f32 0.0, %v2151
      %v2153 = vpop.f32.mrf.mxu0
      %v2154 = vadd.f32 0.0, %v2153
      %2155 = vmatprep.mubr.bf16.mxu0 0
      %2156 = vmatmul.mubr.bf16.gmra.mxu0 %v1884
      %v2157 = vpop.f32.mrf.mxu0
      %v2158 = vadd.f32 0.0, %v2157
      %v2159 = vpop.f32.mrf.mxu0
      %v2160 = vadd.f32 0.0, %v2159
      %v2161 = vpop.f32.mrf.mxu0
      %v2162 = vadd.f32 0.0, %v2161
      %v2163 = vpop.f32.mrf.mxu0
      %v2164 = vadd.f32 0.0, %v2163
      %2165 = vmatprep.mubr.bf16.mxu0 0
      %2166 = vmatmul.mubr.bf16.gmra.mxu0 %v1887
      %v2167 = vpop.f32.mrf.mxu0
      %v2168 = vadd.f32 0.0, %v2167
      %v2169 = vpop.f32.mrf.mxu0
      %v2170 = vadd.f32 0.0, %v2169
      %v2171 = vpop.f32.mrf.mxu0
      %v2172 = vadd.f32 0.0, %v2171
      %v2173 = vpop.f32.mrf.mxu0
      %v2174 = vadd.f32 0.0, %v2173
      %2175 = vmatprep.mubr.bf16.mxu0 0
      %2176 = vmatmul.mubr.bf16.gmra.mxu0 %v1890
      %v2177 = vpop.f32.mrf.mxu0
      %v2178 = vadd.f32 0.0, %v2177
      %v2179 = vpop.f32.mrf.mxu0
      %v2180 = vadd.f32 0.0, %v2179
      %v2181 = vpop.f32.mrf.mxu0
      %v2182 = vadd.f32 0.0, %v2181
      %v2183 = vpop.f32.mrf.mxu0
      %v2184 = vadd.f32 0.0, %v2183
      %2185 = vmatprep.mubr.bf16.mxu0 0
      %2186 = vmatmul.mubr.bf16.gmra.mxu0 %v1893
      %v2187 = vpop.f32.mrf.mxu0
      %v2188 = vadd.f32 0.0, %v2187
      %v2189 = vpop.f32.mrf.mxu0
      %v2190 = vadd.f32 0.0, %v2189
      %v2191 = vpop.f32.mrf.mxu0
      %v2192 = vadd.f32 0.0, %v2191
      %v2193 = vpop.f32.mrf.mxu0
      %v2194 = vadd.f32 0.0, %v2193
      %2195 = vmatprep.mubr.bf16.mxu0 0
      %2196 = vmatmul.mubr.bf16.gmra.mxu0 %v1896
      %v2197 = vpop.f32.mrf.mxu0
      %v2198 = vadd.f32 0.0, %v2197
      %v2199 = vpop.f32.mrf.mxu0
      %v2200 = vadd.f32 0.0, %v2199
      %v2201 = vpop.f32.mrf.mxu0
      %v2202 = vadd.f32 0.0, %v2201
      %v2203 = vpop.f32.mrf.mxu0
      %v2204 = vadd.f32 0.0, %v2203
      %2205 = vmatprep.mubr.bf16.mxu0 0
      %2206 = vmatmul.mubr.bf16.gmra.mxu0 %v1899
      %v2207 = vpop.f32.mrf.mxu0
      %v2208 = vadd.f32 0.0, %v2207
      %v2209 = vpop.f32.mrf.mxu0
      %v2210 = vadd.f32 0.0, %v2209
      %v2211 = vpop.f32.mrf.mxu0
      %v2212 = vadd.f32 0.0, %v2211
      %v2213 = vpop.f32.mrf.mxu0
      %v2214 = vadd.f32 0.0, %v2213
      %2215 = vmatprep.mubr.bf16.mxu0 0
      %2216 = vmatmul.mubr.bf16.gmra.mxu0 %v1902
      %v2217 = vpop.f32.mrf.mxu0
      %v2218 = vadd.f32 0.0, %v2217
      %v2219 = vpop.f32.mrf.mxu0
      %v2220 = vadd.f32 0.0, %v2219
      %v2221 = vpop.f32.mrf.mxu0
      %v2222 = vadd.f32 0.0, %v2221
      %v2223 = vpop.f32.mrf.mxu0
      %v2224 = vadd.f32 0.0, %v2223
      %2225 = vdwg.mxu0
      %v2226 = vmul.f32 %v2035, 0.125
      %v2227 = vmul.f32 %v2037, 0.125
      %v2228 = vmul.f32 %v2148, 0.125
      %v2229 = vmul.f32 %v2150, 0.125
      %v2230 = vmul.f32 %v2039, 0.125
      %v2231 = vmul.f32 %v2041, 0.125
      %v2232 = vmul.f32 %v2152, 0.125
      %v2233 = vmul.f32 %v2154, 0.125
      %v2234 = vmul.f32 %v2045, 0.125
      %v2235 = vmul.f32 %v2047, 0.125
      %v2236 = vmul.f32 %v2158, 0.125
      %v2237 = vmul.f32 %v2160, 0.125
      %v2238 = vmul.f32 %v2049, 0.125
      %v2239 = vmul.f32 %v2051, 0.125
      %v2240 = vmul.f32 %v2162, 0.125
      %v2241 = vmul.f32 %v2164, 0.125
      %v2242 = vmul.f32 %v2055, 0.125
      %v2243 = vmul.f32 %v2057, 0.125
      %v2244 = vmul.f32 %v2168, 0.125
      %v2245 = vmul.f32 %v2170, 0.125
      %v2246 = vmul.f32 %v2059, 0.125
      %v2247 = vmul.f32 %v2061, 0.125
      %v2248 = vmul.f32 %v2172, 0.125
      %v2249 = vmul.f32 %v2174, 0.125
      %v2250 = vmul.f32 %v2065, 0.125
      %v2251 = vmul.f32 %v2067, 0.125
      %v2252 = vmul.f32 %v2178, 0.125
      %v2253 = vmul.f32 %v2180, 0.125
      %v2254 = vmul.f32 %v2069, 0.125
      %v2255 = vmul.f32 %v2071, 0.125
      %v2256 = vmul.f32 %v2182, 0.125
      %v2257 = vmul.f32 %v2184, 0.125
      %v2258 = vmul.f32 %v2075, 0.125
      %v2259 = vmul.f32 %v2077, 0.125
      %v2260 = vmul.f32 %v2188, 0.125
      %v2261 = vmul.f32 %v2190, 0.125
      %v2262 = vmul.f32 %v2079, 0.125
      %v2263 = vmul.f32 %v2081, 0.125
      %v2264 = vmul.f32 %v2192, 0.125
      %v2265 = vmul.f32 %v2194, 0.125
      %v2266 = vmul.f32 %v2085, 0.125
      %v2267 = vmul.f32 %v2087, 0.125
      %v2268 = vmul.f32 %v2198, 0.125
      %v2269 = vmul.f32 %v2200, 0.125
      %v2270 = vmul.f32 %v2089, 0.125
      %v2271 = vmul.f32 %v2091, 0.125
      %v2272 = vmul.f32 %v2202, 0.125
      %v2273 = vmul.f32 %v2204, 0.125
      %v2274 = vmul.f32 %v2095, 0.125
      %v2275 = vmul.f32 %v2097, 0.125
      %v2276 = vmul.f32 %v2208, 0.125
      %v2277 = vmul.f32 %v2210, 0.125
      %v2278 = vmul.f32 %v2099, 0.125
      %v2279 = vmul.f32 %v2101, 0.125
      %v2280 = vmul.f32 %v2212, 0.125
      %v2281 = vmul.f32 %v2214, 0.125
      %v2282 = vmul.f32 %v2105, 0.125
      %v2283 = vmul.f32 %v2107, 0.125
      %v2284 = vmul.f32 %v2218, 0.125
      %v2285 = vmul.f32 %v2220, 0.125
      %v2286 = vmul.f32 %v2109, 0.125
      %v2287 = vmul.f32 %v2111, 0.125
      %v2288 = vmul.f32 %v2222, 0.125
      %v2289 = vmul.f32 %v2224, 0.125
      %v2290 = vsel %vm1720, %v2226, -2e+10
      %v2291 = vsel %vm1721, %v2227, -2e+10
      %v2292 = vsel %vm1722, %v2228, -2e+10
      %v2293 = vsel %vm1723, %v2229, -2e+10
      %v2294 = vsel %vm1724, %v2230, -2e+10
      %v2295 = vsel %vm1725, %v2231, -2e+10
      %v2296 = vsel %vm1726, %v2232, -2e+10
      %v2297 = vsel %vm1727, %v2233, -2e+10
      %v2298 = vsel %vm1728, %v2234, -2e+10
      %v2299 = vsel %vm1729, %v2235, -2e+10
      %v2300 = vsel %vm1730, %v2236, -2e+10
      %v2301 = vsel %vm1731, %v2237, -2e+10
      %v2302 = vsel %vm1732, %v2238, -2e+10
      %v2303 = vsel %vm1733, %v2239, -2e+10
      %v2304 = vsel %vm1734, %v2240, -2e+10
      %v2305 = vsel %vm1735, %v2241, -2e+10
      %v2306 = vsel %vm1736, %v2242, -2e+10
      %v2307 = vsel %vm1737, %v2243, -2e+10
      %v2308 = vsel %vm1738, %v2244, -2e+10
      %v2309 = vsel %vm1739, %v2245, -2e+10
      %v2310 = vsel %vm1740, %v2246, -2e+10
      %v2311 = vsel %vm1741, %v2247, -2e+10
      %v2312 = vsel %vm1742, %v2248, -2e+10
      %v2313 = vsel %vm1743, %v2249, -2e+10
      %v2314 = vsel %vm1744, %v2250, -2e+10
      %v2315 = vsel %vm1745, %v2251, -2e+10
      %v2316 = vsel %vm1746, %v2252, -2e+10
      %v2317 = vsel %vm1747, %v2253, -2e+10
      %v2318 = vsel %vm1748, %v2254, -2e+10
      %v2319 = vsel %vm1749, %v2255, -2e+10
      %v2320 = vsel %vm1750, %v2256, -2e+10
      %v2321 = vsel %vm1751, %v2257, -2e+10
      %v2322 = vsel %vm1752, %v2258, -2e+10
      %v2323 = vsel %vm1753, %v2259, -2e+10
      %v2324 = vsel %vm1754, %v2260, -2e+10
      %v2325 = vsel %vm1755, %v2261, -2e+10
      %v2326 = vsel %vm1756, %v2262, -2e+10
      %v2327 = vsel %vm1757, %v2263, -2e+10
      %v2328 = vsel %vm1758, %v2264, -2e+10
      %v2329 = vsel %vm1759, %v2265, -2e+10
      %v2330 = vsel %vm1760, %v2266, -2e+10
      %v2331 = vsel %vm1761, %v2267, -2e+10
      %v2332 = vsel %vm1762, %v2268, -2e+10
      %v2333 = vsel %vm1763, %v2269, -2e+10
      %v2334 = vsel %vm1764, %v2270, -2e+10
      %v2335 = vsel %vm1765, %v2271, -2e+10
      %v2336 = vsel %vm1766, %v2272, -2e+10
      %v2337 = vsel %vm1767, %v2273, -2e+10
      %v2338 = vsel %vm1768, %v2274, -2e+10
      %v2339 = vsel %vm1769, %v2275, -2e+10
      %v2340 = vsel %vm1770, %v2276, -2e+10
      %v2341 = vsel %vm1771, %v2277, -2e+10
      %v2342 = vsel %vm1772, %v2278, -2e+10
      %v2343 = vsel %vm1773, %v2279, -2e+10
      %v2344 = vsel %vm1774, %v2280, -2e+10
      %v2345 = vsel %vm1775, %v2281, -2e+10
      %v2346 = vsel %vm1776, %v2282, -2e+10
      %v2347 = vsel %vm1777, %v2283, -2e+10
      %v2348 = vsel %vm1778, %v2284, -2e+10
      %v2349 = vsel %vm1779, %v2285, -2e+10
      %v2350 = vsel %vm1780, %v2286, -2e+10
      %v2351 = vsel %vm1781, %v2287, -2e+10
      %v2352 = vsel %vm1782, %v2288, -2e+10
      %v2353 = vsel %vm1783, %v2289, -2e+10
      %v2355 = vlaneseq
      %v2356 = vshrl.u32 %v2355, 7
      %v2357 = vsub.s32 0, %v2356
      %v2358 = vrot.slane %v1521, %v2357
      %v2359 = vlaneseq
      %v2360 = vshrl.u32 %v2359, 7
      %v2361 = vsub.s32 2, %v2360
      %v2362 = vrot.slane %v1521, %v2361
      %v2363 = vlaneseq
      %v2364 = vshrl.u32 %v2363, 7
      %v2365 = vsub.s32 4, %v2364
      %v2366 = vrot.slane %v1521, %v2365
      %v2367 = vlaneseq
      %v2368 = vshrl.u32 %v2367, 7
      %v2369 = vsub.s32 6, %v2368
      %v2370 = vrot.slane %v1521, %v2369
      %v2375 = vlaneseq
      %v2376 = vshrl.u32 %v2375, 7
      %v2377 = vsub.s32 0, %v2376
      %v2378 = vrot.slane %v2358, %v2377
      %v2379 = vlaneseq
      %v2380 = vshrl.u32 %v2379, 7
      %v2381 = vsub.s32 0, %v2380
      %v2382 = vrot.slane %v2362, %v2381
      %v2383 = vlaneseq
      %v2384 = vshrl.u32 %v2383, 7
      %v2385 = vsub.s32 0, %v2384
      %v2386 = vrot.slane %v2366, %v2385
      %v2387 = vlaneseq
      %v2388 = vshrl.u32 %v2387, 7
      %v2389 = vsub.s32 0, %v2388
      %v2390 = vrot.slane %v2370, %v2389
      %v2391 = vadd.f32 %v2290, %v2378
      %v2392 = vadd.f32 %v2291, %v2382
      %v2393 = vadd.f32 %v2292, %v2386
      %v2394 = vadd.f32 %v2293, %v2390
      %v2395 = vadd.f32 %v2294, %v2378
      %v2396 = vadd.f32 %v2295, %v2382
      %v2397 = vadd.f32 %v2296, %v2386
      %v2398 = vadd.f32 %v2297, %v2390
      %v2399 = vadd.f32 %v2298, %v2378
      %v2400 = vadd.f32 %v2299, %v2382
      %v2401 = vadd.f32 %v2300, %v2386
      %v2402 = vadd.f32 %v2301, %v2390
      %v2403 = vadd.f32 %v2302, %v2378
      %v2404 = vadd.f32 %v2303, %v2382
      %v2405 = vadd.f32 %v2304, %v2386
      %v2406 = vadd.f32 %v2305, %v2390
      %v2407 = vadd.f32 %v2306, %v2378
      %v2408 = vadd.f32 %v2307, %v2382
      %v2409 = vadd.f32 %v2308, %v2386
      %v2410 = vadd.f32 %v2309, %v2390
      %v2411 = vadd.f32 %v2310, %v2378
      %v2412 = vadd.f32 %v2311, %v2382
      %v2413 = vadd.f32 %v2312, %v2386
      %v2414 = vadd.f32 %v2313, %v2390
      %v2415 = vadd.f32 %v2314, %v2378
      %v2416 = vadd.f32 %v2315, %v2382
      %v2417 = vadd.f32 %v2316, %v2386
      %v2418 = vadd.f32 %v2317, %v2390
      %v2419 = vadd.f32 %v2318, %v2378
      %v2420 = vadd.f32 %v2319, %v2382
      %v2421 = vadd.f32 %v2320, %v2386
      %v2422 = vadd.f32 %v2321, %v2390
      %v2423 = vadd.f32 %v2322, %v2378
      %v2424 = vadd.f32 %v2323, %v2382
      %v2425 = vadd.f32 %v2324, %v2386
      %v2426 = vadd.f32 %v2325, %v2390
      %v2427 = vadd.f32 %v2326, %v2378
      %v2428 = vadd.f32 %v2327, %v2382
      %v2429 = vadd.f32 %v2328, %v2386
      %v2430 = vadd.f32 %v2329, %v2390
      %v2431 = vadd.f32 %v2330, %v2378
      %v2432 = vadd.f32 %v2331, %v2382
      %v2433 = vadd.f32 %v2332, %v2386
      %v2434 = vadd.f32 %v2333, %v2390
      %v2435 = vadd.f32 %v2334, %v2378
      %v2436 = vadd.f32 %v2335, %v2382
      %v2437 = vadd.f32 %v2336, %v2386
      %v2438 = vadd.f32 %v2337, %v2390
      %v2439 = vadd.f32 %v2338, %v2378
      %v2440 = vadd.f32 %v2339, %v2382
      %v2441 = vadd.f32 %v2340, %v2386
      %v2442 = vadd.f32 %v2341, %v2390
      %v2443 = vadd.f32 %v2342, %v2378
      %v2444 = vadd.f32 %v2343, %v2382
      %v2445 = vadd.f32 %v2344, %v2386
      %v2446 = vadd.f32 %v2345, %v2390
      %v2447 = vadd.f32 %v2346, %v2378
      %v2448 = vadd.f32 %v2347, %v2382
      %v2449 = vadd.f32 %v2348, %v2386
      %v2450 = vadd.f32 %v2349, %v2390
      %v2451 = vadd.f32 %v2350, %v2378
      %v2452 = vadd.f32 %v2351, %v2382
      %v2453 = vadd.f32 %v2352, %v2386
      %v2454 = vadd.f32 %v2353, %v2390
      %v2455 = vmax.f32 %v2391, %v2392
      %v2456 = vmax.f32 %v2455, %v2393
      %v2457 = vmax.f32 %v2456, %v2394
      %2458 = vmax.xlane.f32.xlu0 %v2457
      %v2459 = vpop.xlane.xlu0 %2458
      %v2460 = vmax.f32 %v2395, %v2396
      %v2461 = vmax.f32 %v2460, %v2397
      %v2462 = vmax.f32 %v2461, %v2398
      %2463 = vmax.xlane.f32.xlu0 %v2462
      %v2464 = vpop.xlane.xlu0 %2463
      %v2465 = vmax.f32 %v2399, %v2400
      %v2466 = vmax.f32 %v2465, %v2401
      %v2467 = vmax.f32 %v2466, %v2402
      %2468 = vmax.xlane.f32.xlu0 %v2467
      %v2469 = vpop.xlane.xlu0 %2468
      %v2470 = vmax.f32 %v2403, %v2404
      %v2471 = vmax.f32 %v2470, %v2405
      %v2472 = vmax.f32 %v2471, %v2406
      %2473 = vmax.xlane.f32.xlu0 %v2472
      %v2474 = vpop.xlane.xlu0 %2473
      %v2475 = vmax.f32 %v2407, %v2408
      %v2476 = vmax.f32 %v2475, %v2409
      %v2477 = vmax.f32 %v2476, %v2410
      %2478 = vmax.xlane.f32.xlu0 %v2477
      %v2479 = vpop.xlane.xlu0 %2478
      %v2480 = vmax.f32 %v2411, %v2412
      %v2481 = vmax.f32 %v2480, %v2413
      %v2482 = vmax.f32 %v2481, %v2414
      %2483 = vmax.xlane.f32.xlu0 %v2482
      %v2484 = vpop.xlane.xlu0 %2483
      %v2485 = vmax.f32 %v2415, %v2416
      %v2486 = vmax.f32 %v2485, %v2417
      %v2487 = vmax.f32 %v2486, %v2418
      %2488 = vmax.xlane.f32.xlu0 %v2487
      %v2489 = vpop.xlane.xlu0 %2488
      %v2490 = vmax.f32 %v2419, %v2420
      %v2491 = vmax.f32 %v2490, %v2421
      %v2492 = vmax.f32 %v2491, %v2422
      %2493 = vmax.xlane.f32.xlu0 %v2492
      %v2494 = vpop.xlane.xlu0 %2493
      %v2495 = vmax.f32 %v2423, %v2424
      %v2496 = vmax.f32 %v2495, %v2425
      %v2497 = vmax.f32 %v2496, %v2426
      %2498 = vmax.xlane.f32.xlu0 %v2497
      %v2499 = vpop.xlane.xlu0 %2498
      %v2500 = vmax.f32 %v2427, %v2428
      %v2501 = vmax.f32 %v2500, %v2429
      %v2502 = vmax.f32 %v2501, %v2430
      %2503 = vmax.xlane.f32.xlu0 %v2502
      %v2504 = vpop.xlane.xlu0 %2503
      %v2505 = vmax.f32 %v2431, %v2432
      %v2506 = vmax.f32 %v2505, %v2433
      %v2507 = vmax.f32 %v2506, %v2434
      %2508 = vmax.xlane.f32.xlu0 %v2507
      %v2509 = vpop.xlane.xlu0 %2508
      %v2510 = vmax.f32 %v2435, %v2436
      %v2511 = vmax.f32 %v2510, %v2437
      %v2512 = vmax.f32 %v2511, %v2438
      %2513 = vmax.xlane.f32.xlu0 %v2512
      %v2514 = vpop.xlane.xlu0 %2513
      %v2515 = vmax.f32 %v2439, %v2440
      %v2516 = vmax.f32 %v2515, %v2441
      %v2517 = vmax.f32 %v2516, %v2442
      %2518 = vmax.xlane.f32.xlu0 %v2517
      %v2519 = vpop.xlane.xlu0 %2518
      %v2520 = vmax.f32 %v2443, %v2444
      %v2521 = vmax.f32 %v2520, %v2445
      %v2522 = vmax.f32 %v2521, %v2446
      %2523 = vmax.xlane.f32.xlu0 %v2522
      %v2524 = vpop.xlane.xlu0 %2523
      %v2525 = vmax.f32 %v2447, %v2448
      %v2526 = vmax.f32 %v2525, %v2449
      %v2527 = vmax.f32 %v2526, %v2450
      %2528 = vmax.xlane.f32.xlu0 %v2527
      %v2529 = vpop.xlane.xlu0 %2528
      %v2530 = vmax.f32 %v2451, %v2452
      %v2531 = vmax.f32 %v2530, %v2453
      %v2532 = vmax.f32 %v2531, %v2454
      %2533 = vmax.xlane.f32.xlu0 %v2532
      %v2534 = vpop.xlane.xlu0 %2533
      %v2535 = vsub.f32 %v2391, %v2459
      %v2536 = vsub.f32 %v2392, %v2459
      %v2537 = vsub.f32 %v2393, %v2459
      %v2538 = vsub.f32 %v2394, %v2459
      %v2539 = vsub.f32 %v2395, %v2464
      %v2540 = vsub.f32 %v2396, %v2464
      %v2541 = vsub.f32 %v2397, %v2464
      %v2542 = vsub.f32 %v2398, %v2464
      %v2543 = vsub.f32 %v2399, %v2469
      %v2544 = vsub.f32 %v2400, %v2469
      %v2545 = vsub.f32 %v2401, %v2469
      %v2546 = vsub.f32 %v2402, %v2469
      %v2547 = vsub.f32 %v2403, %v2474
      %v2548 = vsub.f32 %v2404, %v2474
      %v2549 = vsub.f32 %v2405, %v2474
      %v2550 = vsub.f32 %v2406, %v2474
      %v2551 = vsub.f32 %v2407, %v2479
      %v2552 = vsub.f32 %v2408, %v2479
      %v2553 = vsub.f32 %v2409, %v2479
      %v2554 = vsub.f32 %v2410, %v2479
      %v2555 = vsub.f32 %v2411, %v2484
      %v2556 = vsub.f32 %v2412, %v2484
      %v2557 = vsub.f32 %v2413, %v2484
      %v2558 = vsub.f32 %v2414, %v2484
      %v2559 = vsub.f32 %v2415, %v2489
      %v2560 = vsub.f32 %v2416, %v2489
      %v2561 = vsub.f32 %v2417, %v2489
      %v2562 = vsub.f32 %v2418, %v2489
      %v2563 = vsub.f32 %v2419, %v2494
      %v2564 = vsub.f32 %v2420, %v2494
      %v2565 = vsub.f32 %v2421, %v2494
      %v2566 = vsub.f32 %v2422, %v2494
      %v2567 = vsub.f32 %v2423, %v2499
      %v2568 = vsub.f32 %v2424, %v2499
      %v2569 = vsub.f32 %v2425, %v2499
      %v2570 = vsub.f32 %v2426, %v2499
      %v2571 = vsub.f32 %v2427, %v2504
      %v2572 = vsub.f32 %v2428, %v2504
      %v2573 = vsub.f32 %v2429, %v2504
      %v2574 = vsub.f32 %v2430, %v2504
      %v2575 = vsub.f32 %v2431, %v2509
      %v2576 = vsub.f32 %v2432, %v2509
      %v2577 = vsub.f32 %v2433, %v2509
      %v2578 = vsub.f32 %v2434, %v2509
      %v2579 = vsub.f32 %v2435, %v2514
      %v2580 = vsub.f32 %v2436, %v2514
      %v2581 = vsub.f32 %v2437, %v2514
      %v2582 = vsub.f32 %v2438, %v2514
      %v2583 = vsub.f32 %v2439, %v2519
      %v2584 = vsub.f32 %v2440, %v2519
      %v2585 = vsub.f32 %v2441, %v2519
      %v2586 = vsub.f32 %v2442, %v2519
      %v2587 = vsub.f32 %v2443, %v2524
      %v2588 = vsub.f32 %v2444, %v2524
      %v2589 = vsub.f32 %v2445, %v2524
      %v2590 = vsub.f32 %v2446, %v2524
      %v2591 = vsub.f32 %v2447, %v2529
      %v2592 = vsub.f32 %v2448, %v2529
      %v2593 = vsub.f32 %v2449, %v2529
      %v2594 = vsub.f32 %v2450, %v2529
      %v2595 = vsub.f32 %v2451, %v2534
      %v2596 = vsub.f32 %v2452, %v2534
      %v2597 = vsub.f32 %v2453, %v2534
      %v2598 = vsub.f32 %v2454, %v2534
      %v2599 = vmul.f32 %v2535, 1.442695
      %v2600 = vpow.pop %v2599
      %v2601 = vmul.f32 %v2536, 1.442695
      %v2602 = vpow.pop %v2601
      %v2603 = vmul.f32 %v2537, 1.442695
      %v2604 = vpow.pop %v2603
      %v2605 = vmul.f32 %v2538, 1.442695
      %v2606 = vpow.pop %v2605
      %v2607 = vmul.f32 %v2539, 1.442695
      %v2608 = vpow.pop %v2607
      %v2609 = vmul.f32 %v2540, 1.442695
      %v2610 = vpow.pop %v2609
      %v2611 = vmul.f32 %v2541, 1.442695
      %v2612 = vpow.pop %v2611
      %v2613 = vmul.f32 %v2542, 1.442695
      %v2614 = vpow.pop %v2613
      %v2615 = vmul.f32 %v2543, 1.442695
      %v2616 = vpow.pop %v2615
      %v2617 = vmul.f32 %v2544, 1.442695
      %v2618 = vpow.pop %v2617
      %v2619 = vmul.f32 %v2545, 1.442695
      %v2620 = vpow.pop %v2619
      %v2621 = vmul.f32 %v2546, 1.442695
      %v2622 = vpow.pop %v2621
      %v2623 = vmul.f32 %v2547, 1.442695
      %v2624 = vpow.pop %v2623
      %v2625 = vmul.f32 %v2548, 1.442695
      %v2626 = vpow.pop %v2625
      %v2627 = vmul.f32 %v2549, 1.442695
      %v2628 = vpow.pop %v2627
      %v2629 = vmul.f32 %v2550, 1.442695
      %v2630 = vpow.pop %v2629
      %v2631 = vmul.f32 %v2551, 1.442695
      %v2632 = vpow.pop %v2631
      %v2633 = vmul.f32 %v2552, 1.442695
      %v2634 = vpow.pop %v2633
      %v2635 = vmul.f32 %v2553, 1.442695
      %v2636 = vpow.pop %v2635
      %v2637 = vmul.f32 %v2554, 1.442695
      %v2638 = vpow.pop %v2637
      %v2639 = vmul.f32 %v2555, 1.442695
      %v2640 = vpow.pop %v2639
      %v2641 = vmul.f32 %v2556, 1.442695
      %v2642 = vpow.pop %v2641
      %v2643 = vmul.f32 %v2557, 1.442695
      %v2644 = vpow.pop %v2643
      %v2645 = vmul.f32 %v2558, 1.442695
      %v2646 = vpow.pop %v2645
      %v2647 = vmul.f32 %v2559, 1.442695
      %v2648 = vpow.pop %v2647
      %v2649 = vmul.f32 %v2560, 1.442695
      %v2650 = vpow.pop %v2649
      %v2651 = vmul.f32 %v2561, 1.442695
      %v2652 = vpow.pop %v2651
      %v2653 = vmul.f32 %v2562, 1.442695
      %v2654 = vpow.pop %v2653
      %v2655 = vmul.f32 %v2563, 1.442695
      %v2656 = vpow.pop %v2655
      %v2657 = vmul.f32 %v2564, 1.442695
      %v2658 = vpow.pop %v2657
      %v2659 = vmul.f32 %v2565, 1.442695
      %v2660 = vpow.pop %v2659
      %v2661 = vmul.f32 %v2566, 1.442695
      %v2662 = vpow.pop %v2661
      %v2663 = vmul.f32 %v2567, 1.442695
      %v2664 = vpow.pop %v2663
      %v2665 = vmul.f32 %v2568, 1.442695
      %v2666 = vpow.pop %v2665
      %v2667 = vmul.f32 %v2569, 1.442695
      %v2668 = vpow.pop %v2667
      %v2669 = vmul.f32 %v2570, 1.442695
      %v2670 = vpow.pop %v2669
      %v2671 = vmul.f32 %v2571, 1.442695
      %v2672 = vpow.pop %v2671
      %v2673 = vmul.f32 %v2572, 1.442695
      %v2674 = vpow.pop %v2673
      %v2675 = vmul.f32 %v2573, 1.442695
      %v2676 = vpow.pop %v2675
      %v2677 = vmul.f32 %v2574, 1.442695
      %v2678 = vpow.pop %v2677
      %v2679 = vmul.f32 %v2575, 1.442695
      %v2680 = vpow.pop %v2679
      %v2681 = vmul.f32 %v2576, 1.442695
      %v2682 = vpow.pop %v2681
      %v2683 = vmul.f32 %v2577, 1.442695
      %v2684 = vpow.pop %v2683
      %v2685 = vmul.f32 %v2578, 1.442695
      %v2686 = vpow.pop %v2685
      %v2687 = vmul.f32 %v2579, 1.442695
      %v2688 = vpow.pop %v2687
      %v2689 = vmul.f32 %v2580, 1.442695
      %v2690 = vpow.pop %v2689
      %v2691 = vmul.f32 %v2581, 1.442695
      %v2692 = vpow.pop %v2691
      %v2693 = vmul.f32 %v2582, 1.442695
      %v2694 = vpow.pop %v2693
      %v2695 = vmul.f32 %v2583, 1.442695
      %v2696 = vpow.pop %v2695
      %v2697 = vmul.f32 %v2584, 1.442695
      %v2698 = vpow.pop %v2697
      %v2699 = vmul.f32 %v2585, 1.442695
      %v2700 = vpow.pop %v2699
      %v2701 = vmul.f32 %v2586, 1.442695
      %v2702 = vpow.pop %v2701
      %v2703 = vmul.f32 %v2587, 1.442695
      %v2704 = vpow.pop %v2703
      %v2705 = vmul.f32 %v2588, 1.442695
      %v2706 = vpow.pop %v2705
      %v2707 = vmul.f32 %v2589, 1.442695
      %v2708 = vpow.pop %v2707
      %v2709 = vmul.f32 %v2590, 1.442695
      %v2710 = vpow.pop %v2709
      %v2711 = vmul.f32 %v2591, 1.442695
      %v2712 = vpow.pop %v2711
      %v2713 = vmul.f32 %v2592, 1.442695
      %v2714 = vpow.pop %v2713
      %v2715 = vmul.f32 %v2593, 1.442695
      %v2716 = vpow.pop %v2715
      %v2717 = vmul.f32 %v2594, 1.442695
      %v2718 = vpow.pop %v2717
      %v2719 = vmul.f32 %v2595, 1.442695
      %v2720 = vpow.pop %v2719
      %v2721 = vmul.f32 %v2596, 1.442695
      %v2722 = vpow.pop %v2721
      %v2723 = vmul.f32 %v2597, 1.442695
      %v2724 = vpow.pop %v2723
      %v2725 = vmul.f32 %v2598, 1.442695
      %v2726 = vpow.pop %v2725
      %v2727 = vadd.f32 %v2600, %v2602
      %v2728 = vadd.f32 %v2727, %v2604
      %v2729 = vadd.f32 %v2728, %v2606
      %2730 = vadd.xlane.f32.xlu0 %v2729
      %v2731 = vpop.xlane.xlu0 %2730
      %v2732 = vadd.f32 %v2608, %v2610
      %v2733 = vadd.f32 %v2732, %v2612
      %v2734 = vadd.f32 %v2733, %v2614
      %2735 = vadd.xlane.f32.xlu0 %v2734
      %v2736 = vpop.xlane.xlu0 %2735
      %v2737 = vadd.f32 %v2616, %v2618
      %v2738 = vadd.f32 %v2737, %v2620
      %v2739 = vadd.f32 %v2738, %v2622
      %2740 = vadd.xlane.f32.xlu0 %v2739
      %v2741 = vpop.xlane.xlu0 %2740
      %v2742 = vadd.f32 %v2624, %v2626
      %v2743 = vadd.f32 %v2742, %v2628
      %v2744 = vadd.f32 %v2743, %v2630
      %2745 = vadd.xlane.f32.xlu0 %v2744
      %v2746 = vpop.xlane.xlu0 %2745
      %v2747 = vadd.f32 %v2632, %v2634
      %v2748 = vadd.f32 %v2747, %v2636
      %v2749 = vadd.f32 %v2748, %v2638
      %2750 = vadd.xlane.f32.xlu0 %v2749
      %v2751 = vpop.xlane.xlu0 %2750
      %v2752 = vadd.f32 %v2640, %v2642
      %v2753 = vadd.f32 %v2752, %v2644
      %v2754 = vadd.f32 %v2753, %v2646
      %2755 = vadd.xlane.f32.xlu0 %v2754
      %v2756 = vpop.xlane.xlu0 %2755
      %v2757 = vadd.f32 %v2648, %v2650
      %v2758 = vadd.f32 %v2757, %v2652
      %v2759 = vadd.f32 %v2758, %v2654
      %2760 = vadd.xlane.f32.xlu0 %v2759
      %v2761 = vpop.xlane.xlu0 %2760
      %v2762 = vadd.f32 %v2656, %v2658
      %v2763 = vadd.f32 %v2762, %v2660
      %v2764 = vadd.f32 %v2763, %v2662
      %2765 = vadd.xlane.f32.xlu0 %v2764
      %v2766 = vpop.xlane.xlu0 %2765
      %v2767 = vadd.f32 %v2664, %v2666
      %v2768 = vadd.f32 %v2767, %v2668
      %v2769 = vadd.f32 %v2768, %v2670
      %2770 = vadd.xlane.f32.xlu0 %v2769
      %v2771 = vpop.xlane.xlu0 %2770
      %v2772 = vadd.f32 %v2672, %v2674
      %v2773 = vadd.f32 %v2772, %v2676
      %v2774 = vadd.f32 %v2773, %v2678
      %2775 = vadd.xlane.f32.xlu0 %v2774
      %v2776 = vpop.xlane.xlu0 %2775
      %v2777 = vadd.f32 %v2680, %v2682
      %v2778 = vadd.f32 %v2777, %v2684
      %v2779 = vadd.f32 %v2778, %v2686
      %2780 = vadd.xlane.f32.xlu0 %v2779
      %v2781 = vpop.xlane.xlu0 %2780
      %v2782 = vadd.f32 %v2688, %v2690
      %v2783 = vadd.f32 %v2782, %v2692
      %v2784 = vadd.f32 %v2783, %v2694
      %2785 = vadd.xlane.f32.xlu0 %v2784
      %v2786 = vpop.xlane.xlu0 %2785
      %v2787 = vadd.f32 %v2696, %v2698
      %v2788 = vadd.f32 %v2787, %v2700
      %v2789 = vadd.f32 %v2788, %v2702
      %2790 = vadd.xlane.f32.xlu0 %v2789
      %v2791 = vpop.xlane.xlu0 %2790
      %v2792 = vadd.f32 %v2704, %v2706
      %v2793 = vadd.f32 %v2792, %v2708
      %v2794 = vadd.f32 %v2793, %v2710
      %2795 = vadd.xlane.f32.xlu0 %v2794
      %v2796 = vpop.xlane.xlu0 %2795
      %v2797 = vadd.f32 %v2712, %v2714
      %v2798 = vadd.f32 %v2797, %v2716
      %v2799 = vadd.f32 %v2798, %v2718
      %2800 = vadd.xlane.f32.xlu0 %v2799
      %v2801 = vpop.xlane.xlu0 %2800
      %v2802 = vadd.f32 %v2720, %v2722
      %v2803 = vadd.f32 %v2802, %v2724
      %v2804 = vadd.f32 %v2803, %v2726
      %2805 = vadd.xlane.f32.xlu0 %v2804
      %v2806 = vpop.xlane.xlu0 %2805
      %v2807 = vrcp.pop %v2731
      %v2808 = vmul.f32 1.0, %v2807
      %v2809 = vrcp.pop %v2736
      %v2810 = vmul.f32 1.0, %v2809
      %v2811 = vrcp.pop %v2741
      %v2812 = vmul.f32 1.0, %v2811
      %v2813 = vrcp.pop %v2746
      %v2814 = vmul.f32 1.0, %v2813
      %v2815 = vrcp.pop %v2751
      %v2816 = vmul.f32 1.0, %v2815
      %v2817 = vrcp.pop %v2756
      %v2818 = vmul.f32 1.0, %v2817
      %v2819 = vrcp.pop %v2761
      %v2820 = vmul.f32 1.0, %v2819
      %v2821 = vrcp.pop %v2766
      %v2822 = vmul.f32 1.0, %v2821
      %v2823 = vrcp.pop %v2771
      %v2824 = vmul.f32 1.0, %v2823
      %v2825 = vrcp.pop %v2776
      %v2826 = vmul.f32 1.0, %v2825
      %v2827 = vrcp.pop %v2781
      %v2828 = vmul.f32 1.0, %v2827
      %v2829 = vrcp.pop %v2786
      %v2830 = vmul.f32 1.0, %v2829
      %v2831 = vrcp.pop %v2791
      %v2832 = vmul.f32 1.0, %v2831
      %v2833 = vrcp.pop %v2796
      %v2834 = vmul.f32 1.0, %v2833
      %v2835 = vrcp.pop %v2801
      %v2836 = vmul.f32 1.0, %v2835
      %v2837 = vrcp.pop %v2806
      %v2838 = vmul.f32 1.0, %v2837
      %v2839 = vmul.f32 %v2600, %v2808
      %v2840 = vmul.f32 %v2602, %v2808
      %v2841 = vmul.f32 %v2604, %v2808
      %v2842 = vmul.f32 %v2606, %v2808
      %v2843 = vmul.f32 %v2608, %v2810
      %v2844 = vmul.f32 %v2610, %v2810
      %v2845 = vmul.f32 %v2612, %v2810
      %v2846 = vmul.f32 %v2614, %v2810
      %v2847 = vmul.f32 %v2616, %v2812
      %v2848 = vmul.f32 %v2618, %v2812
      %v2849 = vmul.f32 %v2620, %v2812
      %v2850 = vmul.f32 %v2622, %v2812
      %v2851 = vmul.f32 %v2624, %v2814
      %v2852 = vmul.f32 %v2626, %v2814
      %v2853 = vmul.f32 %v2628, %v2814
      %v2854 = vmul.f32 %v2630, %v2814
      %v2855 = vmul.f32 %v2632, %v2816
      %v2856 = vmul.f32 %v2634, %v2816
      %v2857 = vmul.f32 %v2636, %v2816
      %v2858 = vmul.f32 %v2638, %v2816
      %v2859 = vmul.f32 %v2640, %v2818
      %v2860 = vmul.f32 %v2642, %v2818
      %v2861 = vmul.f32 %v2644, %v2818
      %v2862 = vmul.f32 %v2646, %v2818
      %v2863 = vmul.f32 %v2648, %v2820
      %v2864 = vmul.f32 %v2650, %v2820
      %v2865 = vmul.f32 %v2652, %v2820
      %v2866 = vmul.f32 %v2654, %v2820
      %v2867 = vmul.f32 %v2656, %v2822
      %v2868 = vmul.f32 %v2658, %v2822
      %v2869 = vmul.f32 %v2660, %v2822
      %v2870 = vmul.f32 %v2662, %v2822
      %v2871 = vmul.f32 %v2664, %v2824
      %v2872 = vmul.f32 %v2666, %v2824
      %v2873 = vmul.f32 %v2668, %v2824
      %v2874 = vmul.f32 %v2670, %v2824
      %v2875 = vmul.f32 %v2672, %v2826
      %v2876 = vmul.f32 %v2674, %v2826
      %v2877 = vmul.f32 %v2676, %v2826
      %v2878 = vmul.f32 %v2678, %v2826
      %v2879 = vmul.f32 %v2680, %v2828
      %v2880 = vmul.f32 %v2682, %v2828
      %v2881 = vmul.f32 %v2684, %v2828
      %v2882 = vmul.f32 %v2686, %v2828
      %v2883 = vmul.f32 %v2688, %v2830
      %v2884 = vmul.f32 %v2690, %v2830
      %v2885 = vmul.f32 %v2692, %v2830
      %v2886 = vmul.f32 %v2694, %v2830
      %v2887 = vmul.f32 %v2696, %v2832
      %v2888 = vmul.f32 %v2698, %v2832
      %v2889 = vmul.f32 %v2700, %v2832
      %v2890 = vmul.f32 %v2702, %v2832
      %v2891 = vmul.f32 %v2704, %v2834
      %v2892 = vmul.f32 %v2706, %v2834
      %v2893 = vmul.f32 %v2708, %v2834
      %v2894 = vmul.f32 %v2710, %v2834
      %v2895 = vmul.f32 %v2712, %v2836
      %v2896 = vmul.f32 %v2714, %v2836
      %v2897 = vmul.f32 %v2716, %v2836
      %v2898 = vmul.f32 %v2718, %v2836
      %v2899 = vmul.f32 %v2720, %v2838
      %v2900 = vmul.f32 %v2722, %v2838
      %v2901 = vmul.f32 %v2724, %v2838
      %v2902 = vmul.f32 %v2726, %v2838
      %v2903 = vpack.c.bf16 %v2843, %v2839
      %v2904 = vpack.c.bf16 %v2844, %v2840
      %v2905 = vpack.c.bf16 %v2845, %v2841
      %v2906 = vpack.c.bf16 %v2846, %v2842
      %v2907 = vpack.c.bf16 %v2851, %v2847
      %v2908 = vpack.c.bf16 %v2852, %v2848
      %v2909 = vpack.c.bf16 %v2853, %v2849
      %v2910 = vpack.c.bf16 %v2854, %v2850
      %v2911 = vpack.c.bf16 %v2859, %v2855
      %v2912 = vpack.c.bf16 %v2860, %v2856
      %v2913 = vpack.c.bf16 %v2861, %v2857
      %v2914 = vpack.c.bf16 %v2862, %v2858
      %v2915 = vpack.c.bf16 %v2867, %v2863
      %v2916 = vpack.c.bf16 %v2868, %v2864
      %v2917 = vpack.c.bf16 %v2869, %v2865
      %v2918 = vpack.c.bf16 %v2870, %v2866
      %v2919 = vpack.c.bf16 %v2875, %v2871
      %v2920 = vpack.c.bf16 %v2876, %v2872
      %v2921 = vpack.c.bf16 %v2877, %v2873
      %v2922 = vpack.c.bf16 %v2878, %v2874
      %v2923 = vpack.c.bf16 %v2883, %v2879
      %v2924 = vpack.c.bf16 %v2884, %v2880
      %v2925 = vpack.c.bf16 %v2885, %v2881
      %v2926 = vpack.c.bf16 %v2886, %v2882
      %v2927 = vpack.c.bf16 %v2891, %v2887
      %v2928 = vpack.c.bf16 %v2892, %v2888
      %v2929 = vpack.c.bf16 %v2893, %v2889
      %v2930 = vpack.c.bf16 %v2894, %v2890
      %v2931 = vpack.c.bf16 %v2899, %v2895
      %v2932 = vpack.c.bf16 %v2900, %v2896
      %v2933 = vpack.c.bf16 %v2901, %v2897
      %v2934 = vpack.c.bf16 %v2902, %v2898
      %v2935 = vld [vmem:[%s3] sm:$0xf]
      %v2936 = vld [vmem:[%s3 + $0x4] sm:$0xf]
      %v2937 = vld [vmem:[%s3 + $0x8] sm:$0xf]
      %v2938 = vld [vmem:[%s3 + $0xc] sm:$0xf]
      %v2939 = vld [vmem:[%s3 + $0x10] sm:$0xf]
      %v2940 = vld [vmem:[%s3 + $0x14] sm:$0xf]
      %v2941 = vld [vmem:[%s3 + $0x18] sm:$0xf]
      %v2942 = vld [vmem:[%s3 + $0x1c] sm:$0xf]
      %v2943 = vld [vmem:[%s3 + $0x20] sm:$0xf]
      %v2944 = vld [vmem:[%s3 + $0x24] sm:$0xf]
      %v2945 = vld [vmem:[%s3 + $0x28] sm:$0xf]
      %v2946 = vld [vmem:[%s3 + $0x2c] sm:$0xf]
      %v2947 = vld [vmem:[%s3 + $0x30] sm:$0xf]
      %v2948 = vld [vmem:[%s3 + $0x34] sm:$0xf]
      %v2949 = vld [vmem:[%s3 + $0x38] sm:$0xf]
      %v2950 = vld [vmem:[%s3 + $0x3c] sm:$0xf]
      %v2951 = vld [vmem:[%s3 + $0x40] sm:$0xf]
      %v2952 = vld [vmem:[%s3 + $0x44] sm:$0xf]
      %v2953 = vld [vmem:[%s3 + $0x48] sm:$0xf]
      %v2954 = vld [vmem:[%s3 + $0x4c] sm:$0xf]
      %v2955 = vld [vmem:[%s3 + $0x50] sm:$0xf]
      %v2956 = vld [vmem:[%s3 + $0x54] sm:$0xf]
      %v2957 = vld [vmem:[%s3 + $0x58] sm:$0xf]
      %v2958 = vld [vmem:[%s3 + $0x5c] sm:$0xf]
      %v2959 = vld [vmem:[%s3 + $0x60] sm:$0xf]
      %v2960 = vld [vmem:[%s3 + $0x64] sm:$0xf]
      %v2961 = vld [vmem:[%s3 + $0x68] sm:$0xf]
      %v2962 = vld [vmem:[%s3 + $0x6c] sm:$0xf]
      %v2963 = vld [vmem:[%s3 + $0x70] sm:$0xf]
      %v2964 = vld [vmem:[%s3 + $0x74] sm:$0xf]
      %v2965 = vld [vmem:[%s3 + $0x78] sm:$0xf]
      %v2966 = vld [vmem:[%s3 + $0x7c] sm:$0xf]
      %v2967 = vld [vmem:[%s3 + $0x80] sm:$0xf]
      %v2968 = vld [vmem:[%s3 + $0x84] sm:$0xf]
      %v2969 = vld [vmem:[%s3 + $0x88] sm:$0xf]
      %v2970 = vld [vmem:[%s3 + $0x8c] sm:$0xf]
      %v2971 = vld [vmem:[%s3 + $0x90] sm:$0xf]
      %v2972 = vld [vmem:[%s3 + $0x94] sm:$0xf]
      %v2973 = vld [vmem:[%s3 + $0x98] sm:$0xf]
      %v2974 = vld [vmem:[%s3 + $0x9c] sm:$0xf]
      %v2975 = vld [vmem:[%s3 + $0xa0] sm:$0xf]
      %v2976 = vld [vmem:[%s3 + $0xa4] sm:$0xf]
      %v2977 = vld [vmem:[%s3 + $0xa8] sm:$0xf]
      %v2978 = vld [vmem:[%s3 + $0xac] sm:$0xf]
      %v2979 = vld [vmem:[%s3 + $0xb0] sm:$0xf]
      %v2980 = vld [vmem:[%s3 + $0xb4] sm:$0xf]
      %v2981 = vld [vmem:[%s3 + $0xb8] sm:$0xf]
      %v2982 = vld [vmem:[%s3 + $0xbc] sm:$0xf]
      %v2983 = vld [vmem:[%s3 + $0xc0] sm:$0xf]
      %v2984 = vld [vmem:[%s3 + $0xc4] sm:$0xf]
      %v2985 = vld [vmem:[%s3 + $0xc8] sm:$0xf]
      %v2986 = vld [vmem:[%s3 + $0xcc] sm:$0xf]
      %v2987 = vld [vmem:[%s3 + $0xd0] sm:$0xf]
      %v2988 = vld [vmem:[%s3 + $0xd4] sm:$0xf]
      %v2989 = vld [vmem:[%s3 + $0xd8] sm:$0xf]
      %v2990 = vld [vmem:[%s3 + $0xdc] sm:$0xf]
      %v2991 = vld [vmem:[%s3 + $0xe0] sm:$0xf]
      %v2992 = vld [vmem:[%s3 + $0xe4] sm:$0xf]
      %v2993 = vld [vmem:[%s3 + $0xe8] sm:$0xf]
      %v2994 = vld [vmem:[%s3 + $0xec] sm:$0xf]
      %v2995 = vld [vmem:[%s3 + $0xf0] sm:$0xf]
      %v2996 = vld [vmem:[%s3 + $0xf4] sm:$0xf]
      %v2997 = vld [vmem:[%s3 + $0xf8] sm:$0xf]
      %v2998 = vld [vmem:[%s3 + $0xfc] sm:$0xf]
      %2999 = vmatprep.subr.bf16.mxu0 0
      %3000 = vmatpush1.bf16.msra.mxu0 %v1854
      %3001 = vmatprep.subr.bf16.mxu0 0
      %3002 = vmatpush1.bf16.msra.mxu0 %v1853
      %3003 = vmatprep.subr.bf16.mxu0 0
      %3004 = vmatpush1.bf16.msra.mxu0 %v1852
      %3005 = vmatprep.subr.bf16.mxu0 0
      %3006 = vmatpush1.bf16.msra.mxu0 %v1851
      %3007 = vmatprep.subr.bf16.mxu0 0
      %3008 = vmatpush1.bf16.msra.mxu0 %v1850
      %3009 = vmatprep.subr.bf16.mxu0 0
      %3010 = vmatpush1.bf16.msra.mxu0 %v1849
      %3011 = vmatprep.subr.bf16.mxu0 0
      %3012 = vmatpush1.bf16.msra.mxu0 %v1848
      %3013 = vmatprep.subr.bf16.mxu0 0
      %3014 = vmatpush1.bf16.msra.mxu0 %v1847
      %3015 = vmatprep.subr.bf16.mxu0 0
      %3016 = vmatpush2.bf16.msra.mxu0 %v1862
      %3017 = vmatprep.subr.bf16.mxu0 0
      %3018 = vmatpush2.bf16.msra.mxu0 %v1861
      %3019 = vmatprep.subr.bf16.mxu0 0
      %3020 = vmatpush2.bf16.msra.mxu0 %v1860
      %3021 = vmatprep.subr.bf16.mxu0 0
      %3022 = vmatpush2.bf16.msra.mxu0 %v1859
      %3023 = vmatprep.subr.bf16.mxu0 0
      %3024 = vmatpush2.bf16.msra.mxu0 %v1858
      %3025 = vmatprep.subr.bf16.mxu0 0
      %3026 = vmatpush2.bf16.msra.mxu0 %v1857
      %3027 = vmatprep.subr.bf16.mxu0 0
      %3028 = vmatpush2.bf16.msra.mxu0 %v1856
      %3029 = vmatprep.subr.bf16.mxu0 0
      %3030 = vmatpush2.bf16.msra.mxu0 %v1855
      %3031 = vmatprep.mubr.bf16.mxu0 %v2904
      %3032 = vmatmul.mubr.bf16.gmra.mxu0 %v2903
      %v3033 = vpop.f32.mrf.mxu0
      %v3034 = vadd.f32 0.0, %v3033
      %v3035 = vpop.f32.mrf.mxu0
      %v3036 = vpop.f32.mrf.mxu0
      %v3037 = vadd.f32 0.0, %v3036
      %v3038 = vpop.f32.mrf.mxu0
      %3039 = vmatprep.mubr.bf16.mxu0 %v2908
      %3040 = vmatmul.mubr.bf16.gmra.mxu0 %v2907
      %v3041 = vpop.f32.mrf.mxu0
      %v3042 = vadd.f32 0.0, %v3041
      %v3043 = vpop.f32.mrf.mxu0
      %v3044 = vpop.f32.mrf.mxu0
      %v3045 = vadd.f32 0.0, %v3044
      %v3046 = vpop.f32.mrf.mxu0
      %3047 = vmatprep.mubr.bf16.mxu0 %v2912
      %3048 = vmatmul.mubr.bf16.gmra.mxu0 %v2911
      %v3049 = vpop.f32.mrf.mxu0
      %v3050 = vadd.f32 0.0, %v3049
      %v3051 = vpop.f32.mrf.mxu0
      %v3052 = vpop.f32.mrf.mxu0
      %v3053 = vadd.f32 0.0, %v3052
      %v3054 = vpop.f32.mrf.mxu0
      %3055 = vmatprep.mubr.bf16.mxu0 %v2916
      %3056 = vmatmul.mubr.bf16.gmra.mxu0 %v2915
      %v3057 = vpop.f32.mrf.mxu0
      %v3058 = vadd.f32 0.0, %v3057
      %v3059 = vpop.f32.mrf.mxu0
      %v3060 = vpop.f32.mrf.mxu0
      %v3061 = vadd.f32 0.0, %v3060
      %v3062 = vpop.f32.mrf.mxu0
      %3063 = vmatprep.mubr.bf16.mxu0 %v2920
      %3064 = vmatmul.mubr.bf16.gmra.mxu0 %v2919
      %v3065 = vpop.f32.mrf.mxu0
      %v3066 = vadd.f32 0.0, %v3065
      %v3067 = vpop.f32.mrf.mxu0
      %v3068 = vpop.f32.mrf.mxu0
      %v3069 = vadd.f32 0.0, %v3068
      %v3070 = vpop.f32.mrf.mxu0
      %3071 = vmatprep.mubr.bf16.mxu0 %v2924
      %3072 = vmatmul.mubr.bf16.gmra.mxu0 %v2923
      %v3073 = vpop.f32.mrf.mxu0
      %v3074 = vadd.f32 0.0, %v3073
      %v3075 = vpop.f32.mrf.mxu0
      %v3076 = vpop.f32.mrf.mxu0
      %v3077 = vadd.f32 0.0, %v3076
      %v3078 = vpop.f32.mrf.mxu0
      %3079 = vmatprep.mubr.bf16.mxu0 %v2928
      %3080 = vmatmul.mubr.bf16.gmra.mxu0 %v2927
      %v3081 = vpop.f32.mrf.mxu0
      %v3082 = vadd.f32 0.0, %v3081
      %v3083 = vpop.f32.mrf.mxu0
      %v3084 = vpop.f32.mrf.mxu0
      %v3085 = vadd.f32 0.0, %v3084
      %v3086 = vpop.f32.mrf.mxu0
      %3087 = vmatprep.mubr.bf16.mxu0 %v2932
      %3088 = vmatmul.mubr.bf16.gmra.mxu0 %v2931
      %v3089 = vpop.f32.mrf.mxu0
      %v3090 = vadd.f32 0.0, %v3089
      %v3091 = vpop.f32.mrf.mxu0
      %v3092 = vpop.f32.mrf.mxu0
      %v3093 = vadd.f32 0.0, %v3092
      %v3094 = vpop.f32.mrf.mxu0
      %3095 = vdwg.mxu0
      %3096 = vmatprep.subr.bf16.mxu0 0
      %3097 = vmatpush1.bf16.msra.mxu0 %v1870
      %3098 = vmatprep.subr.bf16.mxu0 0
      %3099 = vmatpush1.bf16.msra.mxu0 %v1869
      %3100 = vmatprep.subr.bf16.mxu0 0
      %3101 = vmatpush1.bf16.msra.mxu0 %v1868
      %3102 = vmatprep.subr.bf16.mxu0 0
      %3103 = vmatpush1.bf16.msra.mxu0 %v1867
      %3104 = vmatprep.subr.bf16.mxu0 0
      %3105 = vmatpush1.bf16.msra.mxu0 %v1866
      %3106 = vmatprep.subr.bf16.mxu0 0
      %3107 = vmatpush1.bf16.msra.mxu0 %v1865
      %3108 = vmatprep.subr.bf16.mxu0 0
      %3109 = vmatpush1.bf16.msra.mxu0 %v1864
      %3110 = vmatprep.subr.bf16.mxu0 0
      %3111 = vmatpush1.bf16.msra.mxu0 %v1863
      %3112 = vmatprep.subr.bf16.mxu0 0
      %3113 = vmatpush2.bf16.msra.mxu0 %v1878
      %3114 = vmatprep.subr.bf16.mxu0 0
      %3115 = vmatpush2.bf16.msra.mxu0 %v1877
      %3116 = vmatprep.subr.bf16.mxu0 0
      %3117 = vmatpush2.bf16.msra.mxu0 %v1876
      %3118 = vmatprep.subr.bf16.mxu0 0
      %3119 = vmatpush2.bf16.msra.mxu0 %v1875
      %3120 = vmatprep.subr.bf16.mxu0 0
      %3121 = vmatpush2.bf16.msra.mxu0 %v1874
      %3122 = vmatprep.subr.bf16.mxu0 0
      %3123 = vmatpush2.bf16.msra.mxu0 %v1873
      %3124 = vmatprep.subr.bf16.mxu0 0
      %3125 = vmatpush2.bf16.msra.mxu0 %v1872
      %3126 = vmatprep.subr.bf16.mxu0 0
      %3127 = vmatpush2.bf16.msra.mxu0 %v1871
      %3128 = vmatprep.mubr.bf16.mxu0 %v2906
      %3129 = vmatmul.mubr.bf16.gmra.mxu0 %v2905
      %v3130 = vpop.f32.mrf.mxu0
      %v3131 = vadd.f32 %v3034, %v3130
      %v3132 = vpop.f32.mrf.mxu0
      %v3133 = vpop.f32.mrf.mxu0
      %v3134 = vadd.f32 %v3037, %v3133
      %v3135 = vpop.f32.mrf.mxu0
      %3136 = vmatprep.mubr.bf16.mxu0 %v2910
      %3137 = vmatmul.mubr.bf16.gmra.mxu0 %v2909
      %v3138 = vpop.f32.mrf.mxu0
      %v3139 = vadd.f32 %v3042, %v3138
      %v3140 = vpop.f32.mrf.mxu0
      %v3141 = vpop.f32.mrf.mxu0
      %v3142 = vadd.f32 %v3045, %v3141
      %v3143 = vpop.f32.mrf.mxu0
      %3144 = vmatprep.mubr.bf16.mxu0 %v2914
      %3145 = vmatmul.mubr.bf16.gmra.mxu0 %v2913
      %v3146 = vpop.f32.mrf.mxu0
      %v3147 = vadd.f32 %v3050, %v3146
      %v3148 = vpop.f32.mrf.mxu0
      %v3149 = vpop.f32.mrf.mxu0
      %v3150 = vadd.f32 %v3053, %v3149
      %v3151 = vpop.f32.mrf.mxu0
      %3152 = vmatprep.mubr.bf16.mxu0 %v2918
      %3153 = vmatmul.mubr.bf16.gmra.mxu0 %v2917
      %v3154 = vpop.f32.mrf.mxu0
      %v3155 = vadd.f32 %v3058, %v3154
      %v3156 = vpop.f32.mrf.mxu0
      %v3157 = vpop.f32.mrf.mxu0
      %v3158 = vadd.f32 %v3061, %v3157
      %v3159 = vpop.f32.mrf.mxu0
      %3160 = vmatprep.mubr.bf16.mxu0 %v2922
      %3161 = vmatmul.mubr.bf16.gmra.mxu0 %v2921
      %v3162 = vpop.f32.mrf.mxu0
      %v3163 = vadd.f32 %v3066, %v3162
      %v3164 = vpop.f32.mrf.mxu0
      %v3165 = vpop.f32.mrf.mxu0
      %v3166 = vadd.f32 %v3069, %v3165
      %v3167 = vpop.f32.mrf.mxu0
      %3168 = vmatprep.mubr.bf16.mxu0 %v2926
      %3169 = vmatmul.mubr.bf16.gmra.mxu0 %v2925
      %v3170 = vpop.f32.mrf.mxu0
      %v3171 = vadd.f32 %v3074, %v3170
      %v3172 = vpop.f32.mrf.mxu0
      %v3173 = vpop.f32.mrf.mxu0
      %v3174 = vadd.f32 %v3077, %v3173
      %v3175 = vpop.f32.mrf.mxu0
      %3176 = vmatprep.mubr.bf16.mxu0 %v2930
      %3177 = vmatmul.mubr.bf16.gmra.mxu0 %v2929
      %v3178 = vpop.f32.mrf.mxu0
      %v3179 = vadd.f32 %v3082, %v3178
      %v3180 = vpop.f32.mrf.mxu0
      %v3181 = vpop.f32.mrf.mxu0
      %v3182 = vadd.f32 %v3085, %v3181
      %v3183 = vpop.f32.mrf.mxu0
      %3184 = vmatprep.mubr.bf16.mxu0 %v2934
      %3185 = vmatmul.mubr.bf16.gmra.mxu0 %v2933
      %v3186 = vpop.f32.mrf.mxu0
      %v3187 = vadd.f32 %v3090, %v3186
      %v3188 = vpop.f32.mrf.mxu0
      %v3189 = vpop.f32.mrf.mxu0
      %v3190 = vadd.f32 %v3093, %v3189
      %v3191 = vpop.f32.mrf.mxu0
      %3192 = vdwg.mxu0
      %v3193 = vpack.c.bf16 %v3134, %v3131
      %v3194 = vpack.c.bf16 %v3142, %v3139
      %v3195 = vpack.c.bf16 %v3150, %v3147
      %v3196 = vpack.c.bf16 %v3158, %v3155
      %v3197 = vpack.c.bf16 %v3166, %v3163
      %v3198 = vpack.c.bf16 %v3174, %v3171
      %v3199 = vpack.c.bf16 %v3182, %v3179
      %v3200 = vpack.c.bf16 %v3190, %v3187
      %v3201 = vld [vmem:[%s7] sm:$0xf]
      %v3202 = vld [vmem:[%s7 + $0x4] sm:$0xf]
      %v3203 = vld [vmem:[%s7 + $0x8] sm:$0xf]
      %v3204 = vld [vmem:[%s7 + $0xc] sm:$0xf]
      %v3205 = vld [vmem:[%s7 + $0x10] sm:$0xf]
      %v3206 = vld [vmem:[%s7 + $0x14] sm:$0xf]
      %v3207 = vld [vmem:[%s7 + $0x18] sm:$0xf]
      %v3208 = vld [vmem:[%s7 + $0x1c] sm:$0xf]
      %v3217 = vunpack.c.l.b16 %v3201
      %v3218 = vunpack.c.l.b16 %v3202
      %v3219 = vunpack.c.l.b16 %v3203
      %v3220 = vunpack.c.l.b16 %v3204
      %v3221 = vunpack.c.l.b16 %v3205
      %v3222 = vunpack.c.l.b16 %v3206
      %v3223 = vunpack.c.l.b16 %v3207
      %v3224 = vunpack.c.l.b16 %v3208
      %v3225 = vpack.c.b16 %v3218, %v3217
      %v3226 = vpack.c.b16 %v3220, %v3219
      %v3227 = vpack.c.b16 %v3222, %v3221
      %v3228 = vpack.c.b16 %v3224, %v3223
      %v3234 = vsel %vm1879, %v3193, 0
      %v3237 = vsel %vm1879, %v3194, 0
      %v3240 = vsel %vm1879, %v3195, 0
      %v3243 = vsel %vm1879, %v3196, 0
      %v3246 = vsel %vm1879, %v3197, 0
      %v3249 = vsel %vm1879, %v3198, 0
      %v3252 = vsel %vm1879, %v3199, 0
      %v3255 = vsel %vm1879, %v3200, 0
      %3257 = vmatprep.subr.bf16.mxu0 0
      %3258 = vmatpush1.bf16.msra.mxu0 0
      %3259 = vmatprep.subr.bf16.mxu0 0
      %3260 = vmatpush1.bf16.msra.mxu0 0
      %3261 = vmatprep.subr.bf16.mxu0 0
      %3262 = vmatpush1.bf16.msra.mxu0 0
      %3263 = vmatprep.subr.bf16.mxu0 0
      %3264 = vmatpush1.bf16.msra.mxu0 0
      %3265 = vmatprep.subr.bf16.mxu0 0
      %3266 = vmatpush1.bf16.msra.mxu0 %v3228
      %3267 = vmatprep.subr.bf16.mxu0 0
      %3268 = vmatpush1.bf16.msra.mxu0 %v3227
      %3269 = vmatprep.subr.bf16.mxu0 0
      %3270 = vmatpush1.bf16.msra.mxu0 %v3226
      %3271 = vmatprep.subr.bf16.mxu0 0
      %3272 = vmatpush1.bf16.msra.mxu0 %v3225
      %3273 = vmatprep.subr.bf16.mxu0 0
      %3274 = vmatpush2.bf16.msra.mxu0 0
      %3275 = vmatprep.subr.bf16.mxu0 0
      %3276 = vmatpush2.bf16.msra.mxu0 0
      %3277 = vmatprep.subr.bf16.mxu0 0
      %3278 = vmatpush2.bf16.msra.mxu0 0
      %3279 = vmatprep.subr.bf16.mxu0 0
      %3280 = vmatpush2.bf16.msra.mxu0 0
      %3281 = vmatprep.subr.bf16.mxu0 0
      %3282 = vmatpush2.bf16.msra.mxu0 0
      %3283 = vmatprep.subr.bf16.mxu0 0
      %3284 = vmatpush2.bf16.msra.mxu0 0
      %3285 = vmatprep.subr.bf16.mxu0 0
      %3286 = vmatpush2.bf16.msra.mxu0 0
      %3287 = vmatprep.subr.bf16.mxu0 0
      %3288 = vmatpush2.bf16.msra.mxu0 0
      %3289 = vmatprep.mubr.bf16.mxu0 0
      %3290 = vmatmul.mubr.bf16.gmra.mxu0 %v3234
      %v3291 = vpop.f32.mrf.mxu0
      %v3292 = vadd.f32 0.0, %v3291
      %v3293 = vpop.f32.mrf.mxu0
      %v3294 = vpop.f32.mrf.mxu0
      %v3295 = vadd.f32 0.0, %v3294
      %v3296 = vpop.f32.mrf.mxu0
      %3297 = vmatprep.mubr.bf16.mxu0 0
      %3298 = vmatmul.mubr.bf16.gmra.mxu0 %v3237
      %v3299 = vpop.f32.mrf.mxu0
      %v3300 = vadd.f32 0.0, %v3299
      %v3301 = vpop.f32.mrf.mxu0
      %v3302 = vpop.f32.mrf.mxu0
      %v3303 = vadd.f32 0.0, %v3302
      %v3304 = vpop.f32.mrf.mxu0
      %3305 = vmatprep.mubr.bf16.mxu0 0
      %3306 = vmatmul.mubr.bf16.gmra.mxu0 %v3240
      %v3307 = vpop.f32.mrf.mxu0
      %v3308 = vadd.f32 0.0, %v3307
      %v3309 = vpop.f32.mrf.mxu0
      %v3310 = vpop.f32.mrf.mxu0
      %v3311 = vadd.f32 0.0, %v3310
      %v3312 = vpop.f32.mrf.mxu0
      %3313 = vmatprep.mubr.bf16.mxu0 0
      %3314 = vmatmul.mubr.bf16.gmra.mxu0 %v3243
      %v3315 = vpop.f32.mrf.mxu0
      %v3316 = vadd.f32 0.0, %v3315
      %v3317 = vpop.f32.mrf.mxu0
      %v3318 = vpop.f32.mrf.mxu0
      %v3319 = vadd.f32 0.0, %v3318
      %v3320 = vpop.f32.mrf.mxu0
      %3321 = vmatprep.mubr.bf16.mxu0 0
      %3322 = vmatmul.mubr.bf16.gmra.mxu0 %v3246
      %v3323 = vpop.f32.mrf.mxu0
      %v3324 = vadd.f32 0.0, %v3323
      %v3325 = vpop.f32.mrf.mxu0
      %v3326 = vpop.f32.mrf.mxu0
      %v3327 = vadd.f32 0.0, %v3326
      %v3328 = vpop.f32.mrf.mxu0
      %3329 = vmatprep.mubr.bf16.mxu0 0
      %3330 = vmatmul.mubr.bf16.gmra.mxu0 %v3249
      %v3331 = vpop.f32.mrf.mxu0
      %v3332 = vadd.f32 0.0, %v3331
      %v3333 = vpop.f32.mrf.mxu0
      %v3334 = vpop.f32.mrf.mxu0
      %v3335 = vadd.f32 0.0, %v3334
      %v3336 = vpop.f32.mrf.mxu0
      %3337 = vmatprep.mubr.bf16.mxu0 0
      %3338 = vmatmul.mubr.bf16.gmra.mxu0 %v3252
      %v3339 = vpop.f32.mrf.mxu0
      %v3340 = vadd.f32 0.0, %v3339
      %v3341 = vpop.f32.mrf.mxu0
      %v3342 = vpop.f32.mrf.mxu0
      %v3343 = vadd.f32 0.0, %v3342
      %v3344 = vpop.f32.mrf.mxu0
      %3345 = vmatprep.mubr.bf16.mxu0 0
      %3346 = vmatmul.mubr.bf16.gmra.mxu0 %v3255
      %v3347 = vpop.f32.mrf.mxu0
      %v3348 = vadd.f32 0.0, %v3347
      %v3349 = vpop.f32.mrf.mxu0
      %v3350 = vpop.f32.mrf.mxu0
      %v3351 = vadd.f32 0.0, %v3350
      %v3352 = vpop.f32.mrf.mxu0
      %3353 = vdwg.mxu0
      %v3354 = vadd.f32 %v1791, %v3292
      %v3355 = vadd.f32 %v1792, %v3295
      %v3356 = vadd.f32 %v1793, %v3300
      %v3357 = vadd.f32 %v1794, %v3303
      %v3358 = vadd.f32 %v1795, %v3308
      %v3359 = vadd.f32 %v1796, %v3311
      %v3360 = vadd.f32 %v1797, %v3316
      %v3361 = vadd.f32 %v1798, %v3319
      %v3362 = vadd.f32 %v1799, %v3324
      %v3363 = vadd.f32 %v1800, %v3327
      %v3364 = vadd.f32 %v1801, %v3332
      %v3365 = vadd.f32 %v1802, %v3335
      %v3366 = vadd.f32 %v1803, %v3340
      %v3367 = vadd.f32 %v1804, %v3343
      %v3368 = vadd.f32 %v1805, %v3348
      %v3369 = vadd.f32 %v1806, %v3351
      %3378 = vrot.lane.b32.xlu0 %v1807, 64
      %v3379 = vpop.permute.xlu0 %3378
      %3380 = vrot.lane.b32.xlu0 %v1808, 64
      %v3381 = vpop.permute.xlu0 %3380
      %3382 = vrot.lane.b32.xlu0 %v1809, 64
      %v3383 = vpop.permute.xlu0 %3382
      %3384 = vrot.lane.b32.xlu0 %v1810, 64
      %v3385 = vpop.permute.xlu0 %3384
      %3386 = vrot.lane.b32.xlu0 %v1811, 64
      %v3387 = vpop.permute.xlu0 %3386
      %3388 = vrot.lane.b32.xlu0 %v1812, 64
      %v3389 = vpop.permute.xlu0 %3388
      %3390 = vrot.lane.b32.xlu0 %v1813, 64
      %v3391 = vpop.permute.xlu0 %3390
      %3392 = vrot.lane.b32.xlu0 %v1814, 64
      %v3393 = vpop.permute.xlu0 %3392
      %3426 = vrot.lane.b32.xlu0 %v1815, 64
      %v3427 = vpop.permute.xlu0 %3426
      %3428 = vrot.lane.b32.xlu0 %v1816, 64
      %v3429 = vpop.permute.xlu0 %3428
      %3430 = vrot.lane.b32.xlu0 %v1817, 64
      %v3431 = vpop.permute.xlu0 %3430
      %3432 = vrot.lane.b32.xlu0 %v1818, 64
      %v3433 = vpop.permute.xlu0 %3432
      %3434 = vrot.lane.b32.xlu0 %v1819, 64
      %v3435 = vpop.permute.xlu0 %3434
      %3436 = vrot.lane.b32.xlu0 %v1820, 64
      %v3437 = vpop.permute.xlu0 %3436
      %3438 = vrot.lane.b32.xlu0 %v1821, 64
      %v3439 = vpop.permute.xlu0 %3438
      %3440 = vrot.lane.b32.xlu0 %v1822, 64
      %v3441 = vpop.permute.xlu0 %3440
      %3442 = vrot.lane.b32.xlu0 %v1823, 64
      %v3443 = vpop.permute.xlu0 %3442
      %3444 = vrot.lane.b32.xlu0 %v1824, 64
      %v3445 = vpop.permute.xlu0 %3444
      %3446 = vrot.lane.b32.xlu0 %v1825, 64
      %v3447 = vpop.permute.xlu0 %3446
      %3448 = vrot.lane.b32.xlu0 %v1826, 64
      %v3449 = vpop.permute.xlu0 %3448
      %3450 = vrot.lane.b32.xlu0 %v1827, 64
      %v3451 = vpop.permute.xlu0 %3450
      %3452 = vrot.lane.b32.xlu0 %v1828, 64
      %v3453 = vpop.permute.xlu0 %3452
      %3454 = vrot.lane.b32.xlu0 %v1829, 64
      %v3455 = vpop.permute.xlu0 %3454
      %3456 = vrot.lane.b32.xlu0 %v1830, 64
      %v3457 = vpop.permute.xlu0 %3456
      %3458 = vrot.lane.b32.xlu0 %v1831, 64
      %v3459 = vpop.permute.xlu0 %3458
      %3460 = vrot.lane.b32.xlu0 %v1832, 64
      %v3461 = vpop.permute.xlu0 %3460
      %3462 = vrot.lane.b32.xlu0 %v1833, 64
      %v3463 = vpop.permute.xlu0 %3462
      %3464 = vrot.lane.b32.xlu0 %v1834, 64
      %v3465 = vpop.permute.xlu0 %3464
      %3466 = vrot.lane.b32.xlu0 %v1835, 64
      %v3467 = vpop.permute.xlu0 %3466
      %3468 = vrot.lane.b32.xlu0 %v1836, 64
      %v3469 = vpop.permute.xlu0 %3468
      %3470 = vrot.lane.b32.xlu0 %v1837, 64
      %v3471 = vpop.permute.xlu0 %3470
      %3472 = vrot.lane.b32.xlu0 %v1838, 64
      %v3473 = vpop.permute.xlu0 %3472
      %3474 = vrot.lane.b32.xlu0 %v1839, 64
      %v3475 = vpop.permute.xlu0 %3474
      %3476 = vrot.lane.b32.xlu0 %v1840, 64
      %v3477 = vpop.permute.xlu0 %3476
      %3478 = vrot.lane.b32.xlu0 %v1841, 64
      %v3479 = vpop.permute.xlu0 %3478
      %3480 = vrot.lane.b32.xlu0 %v1842, 64
      %v3481 = vpop.permute.xlu0 %3480
      %3482 = vrot.lane.b32.xlu0 %v1843, 64
      %v3483 = vpop.permute.xlu0 %3482
      %3484 = vrot.lane.b32.xlu0 %v1844, 64
      %v3485 = vpop.permute.xlu0 %3484
      %3486 = vrot.lane.b32.xlu0 %v1845, 64
      %v3487 = vpop.permute.xlu0 %3486
      %3488 = vrot.lane.b32.xlu0 %v1846, 64
      %v3489 = vpop.permute.xlu0 %3488
      %v3491 = vsel %vm1879, %v3379, 0
      %v3494 = vsel %vm1879, %v3381, 0
      %v3497 = vsel %vm1879, %v3383, 0
      %v3500 = vsel %vm1879, %v3385, 0
      %v3503 = vsel %vm1879, %v3387, 0
      %v3506 = vsel %vm1879, %v3389, 0
      %v3509 = vsel %vm1879, %v3391, 0
      %v3512 = vsel %vm1879, %v3393, 0
      %v3515 = vsel %vm1879, %v3427, 0
      %v3518 = vsel %vm1879, %v3429, 0
      %v3521 = vsel %vm1879, %v3431, 0
      %v3524 = vsel %vm1879, %v3433, 0
      %v3527 = vsel %vm1879, %v3435, 0
      %v3530 = vsel %vm1879, %v3437, 0
      %v3533 = vsel %vm1879, %v3439, 0
      %v3536 = vsel %vm1879, %v3441, 0
      %v3539 = vsel %vm1879, %v3443, 0
      %v3542 = vsel %vm1879, %v3445, 0
      %v3545 = vsel %vm1879, %v3447, 0
      %v3548 = vsel %vm1879, %v3449, 0
      %v3551 = vsel %vm1879, %v3451, 0
      %v3554 = vsel %vm1879, %v3453, 0
      %v3557 = vsel %vm1879, %v3455, 0
      %v3560 = vsel %vm1879, %v3457, 0
      %v3563 = vsel %vm1879, %v3459, 0
      %v3566 = vsel %vm1879, %v3461, 0
      %v3569 = vsel %vm1879, %v3463, 0
      %v3572 = vsel %vm1879, %v3465, 0
      %v3575 = vsel %vm1879, %v3467, 0
      %v3578 = vsel %vm1879, %v3469, 0
      %v3581 = vsel %vm1879, %v3471, 0
      %v3584 = vsel %vm1879, %v3473, 0
      %v3587 = vsel %vm1879, %v3475, 0
      %v3590 = vsel %vm1879, %v3477, 0
      %v3593 = vsel %vm1879, %v3479, 0
      %v3596 = vsel %vm1879, %v3481, 0
      %v3599 = vsel %vm1879, %v3483, 0
      %v3602 = vsel %vm1879, %v3485, 0
      %v3605 = vsel %vm1879, %v3487, 0
      %v3608 = vsel %vm1879, %v3489, 0
      %3610 = vmatprep.subr.bf16.mxu0 0
      %3611 = vmatpush1.bf16.xpose.msra.mxu0 %v3536
      %3612 = vmatprep.subr.bf16.mxu0 0
      %3613 = vmatpush1.bf16.xpose.msra.mxu0 %v3533
      %3614 = vmatprep.subr.bf16.mxu0 0
      %3615 = vmatpush1.bf16.xpose.msra.mxu0 %v3530
      %3616 = vmatprep.subr.bf16.mxu0 0
      %3617 = vmatpush1.bf16.xpose.msra.mxu0 %v3527
      %3618 = vmatprep.subr.bf16.mxu0 0
      %3619 = vmatpush1.bf16.xpose.msra.mxu0 %v3524
      %3620 = vmatprep.subr.bf16.mxu0 0
      %3621 = vmatpush1.bf16.xpose.msra.mxu0 %v3521
      %3622 = vmatprep.subr.bf16.mxu0 0
      %3623 = vmatpush1.bf16.xpose.msra.mxu0 %v3518
      %3624 = vmatprep.subr.bf16.mxu0 0
      %3625 = vmatpush1.bf16.xpose.msra.mxu0 %v3515
      %3626 = vmatprep.subr.bf16.mxu0 0
      %3627 = vmatpush2.bf16.xpose.msra.mxu0 %v3560
      %3628 = vmatprep.subr.bf16.mxu0 0
      %3629 = vmatpush2.bf16.xpose.msra.mxu0 %v3557
      %3630 = vmatprep.subr.bf16.mxu0 0
      %3631 = vmatpush2.bf16.xpose.msra.mxu0 %v3554
      %3632 = vmatprep.subr.bf16.mxu0 0
      %3633 = vmatpush2.bf16.xpose.msra.mxu0 %v3551
      %3634 = vmatprep.subr.bf16.mxu0 0
      %3635 = vmatpush2.bf16.xpose.msra.mxu0 %v3548
      %3636 = vmatprep.subr.bf16.mxu0 0
      %3637 = vmatpush2.bf16.xpose.msra.mxu0 %v3545
      %3638 = vmatprep.subr.bf16.mxu0 0
      %3639 = vmatpush2.bf16.xpose.msra.mxu0 %v3542
      %3640 = vmatprep.subr.bf16.mxu0 0
      %3641 = vmatpush2.bf16.xpose.msra.mxu0 %v3539
      %3642 = vmatprep.mubr.bf16.mxu0 0
      %3643 = vmatmul.mubr.bf16.gmra.mxu0 %v3491
      %v3644 = vpop.f32.mrf.mxu0
      %v3645 = vadd.f32 0.0, %v3644
      %v3646 = vpop.f32.mrf.mxu0
      %v3647 = vadd.f32 0.0, %v3646
      %v3648 = vpop.f32.mrf.mxu0
      %v3649 = vadd.f32 0.0, %v3648
      %v3650 = vpop.f32.mrf.mxu0
      %v3651 = vadd.f32 0.0, %v3650
      %3652 = vmatprep.mubr.bf16.mxu0 0
      %3653 = vmatmul.mubr.bf16.gmra.mxu0 %v3494
      %v3654 = vpop.f32.mrf.mxu0
      %v3655 = vadd.f32 0.0, %v3654
      %v3656 = vpop.f32.mrf.mxu0
      %v3657 = vadd.f32 0.0, %v3656
      %v3658 = vpop.f32.mrf.mxu0
      %v3659 = vadd.f32 0.0, %v3658
      %v3660 = vpop.f32.mrf.mxu0
      %v3661 = vadd.f32 0.0, %v3660
      %3662 = vmatprep.mubr.bf16.mxu0 0
      %3663 = vmatmul.mubr.bf16.gmra.mxu0 %v3497
      %v3664 = vpop.f32.mrf.mxu0
      %v3665 = vadd.f32 0.0, %v3664
      %v3666 = vpop.f32.mrf.mxu0
      %v3667 = vadd.f32 0.0, %v3666
      %v3668 = vpop.f32.mrf.mxu0
      %v3669 = vadd.f32 0.0, %v3668
      %v3670 = vpop.f32.mrf.mxu0
      %v3671 = vadd.f32 0.0, %v3670
      %3672 = vmatprep.mubr.bf16.mxu0 0
      %3673 = vmatmul.mubr.bf16.gmra.mxu0 %v3500
      %v3674 = vpop.f32.mrf.mxu0
      %v3675 = vadd.f32 0.0, %v3674
      %v3676 = vpop.f32.mrf.mxu0
      %v3677 = vadd.f32 0.0, %v3676
      %v3678 = vpop.f32.mrf.mxu0
      %v3679 = vadd.f32 0.0, %v3678
      %v3680 = vpop.f32.mrf.mxu0
      %v3681 = vadd.f32 0.0, %v3680
      %3682 = vmatprep.mubr.bf16.mxu0 0
      %3683 = vmatmul.mubr.bf16.gmra.mxu0 %v3503
      %v3684 = vpop.f32.mrf.mxu0
      %v3685 = vadd.f32 0.0, %v3684
      %v3686 = vpop.f32.mrf.mxu0
      %v3687 = vadd.f32 0.0, %v3686
      %v3688 = vpop.f32.mrf.mxu0
      %v3689 = vadd.f32 0.0, %v3688
      %v3690 = vpop.f32.mrf.mxu0
      %v3691 = vadd.f32 0.0, %v3690
      %3692 = vmatprep.mubr.bf16.mxu0 0
      %3693 = vmatmul.mubr.bf16.gmra.mxu0 %v3506
      %v3694 = vpop.f32.mrf.mxu0
      %v3695 = vadd.f32 0.0, %v3694
      %v3696 = vpop.f32.mrf.mxu0
      %v3697 = vadd.f32 0.0, %v3696
      %v3698 = vpop.f32.mrf.mxu0
      %v3699 = vadd.f32 0.0, %v3698
      %v3700 = vpop.f32.mrf.mxu0
      %v3701 = vadd.f32 0.0, %v3700
      %3702 = vmatprep.mubr.bf16.mxu0 0
      %3703 = vmatmul.mubr.bf16.gmra.mxu0 %v3509
      %v3704 = vpop.f32.mrf.mxu0
      %v3705 = vadd.f32 0.0, %v3704
      %v3706 = vpop.f32.mrf.mxu0
      %v3707 = vadd.f32 0.0, %v3706
      %v3708 = vpop.f32.mrf.mxu0
      %v3709 = vadd.f32 0.0, %v3708
      %v3710 = vpop.f32.mrf.mxu0
      %v3711 = vadd.f32 0.0, %v3710
      %3712 = vmatprep.mubr.bf16.mxu0 0
      %3713 = vmatmul.mubr.bf16.gmra.mxu0 %v3512
      %v3714 = vpop.f32.mrf.mxu0
      %v3715 = vadd.f32 0.0, %v3714
      %v3716 = vpop.f32.mrf.mxu0
      %v3717 = vadd.f32 0.0, %v3716
      %v3718 = vpop.f32.mrf.mxu0
      %v3719 = vadd.f32 0.0, %v3718
      %v3720 = vpop.f32.mrf.mxu0
      %v3721 = vadd.f32 0.0, %v3720
      %3722 = vdwg.mxu0
      %3723 = vmatprep.subr.bf16.mxu0 0
      %3724 = vmatpush1.bf16.xpose.msra.mxu0 %v3584
      %3725 = vmatprep.subr.bf16.mxu0 0
      %3726 = vmatpush1.bf16.xpose.msra.mxu0 %v3581
      %3727 = vmatprep.subr.bf16.mxu0 0
      %3728 = vmatpush1.bf16.xpose.msra.mxu0 %v3578
      %3729 = vmatprep.subr.bf16.mxu0 0
      %3730 = vmatpush1.bf16.xpose.msra.mxu0 %v3575
      %3731 = vmatprep.subr.bf16.mxu0 0
      %3732 = vmatpush1.bf16.xpose.msra.mxu0 %v3572
      %3733 = vmatprep.subr.bf16.mxu0 0
      %3734 = vmatpush1.bf16.xpose.msra.mxu0 %v3569
      %3735 = vmatprep.subr.bf16.mxu0 0
      %3736 = vmatpush1.bf16.xpose.msra.mxu0 %v3566
      %3737 = vmatprep.subr.bf16.mxu0 0
      %3738 = vmatpush1.bf16.xpose.msra.mxu0 %v3563
      %3739 = vmatprep.subr.bf16.mxu0 0
      %3740 = vmatpush2.bf16.xpose.msra.mxu0 %v3608
      %3741 = vmatprep.subr.bf16.mxu0 0
      %3742 = vmatpush2.bf16.xpose.msra.mxu0 %v3605
      %3743 = vmatprep.subr.bf16.mxu0 0
      %3744 = vmatpush2.bf16.xpose.msra.mxu0 %v3602
      %3745 = vmatprep.subr.bf16.mxu0 0
      %3746 = vmatpush2.bf16.xpose.msra.mxu0 %v3599
      %3747 = vmatprep.subr.bf16.mxu0 0
      %3748 = vmatpush2.bf16.xpose.msra.mxu0 %v3596
      %3749 = vmatprep.subr.bf16.mxu0 0
      %3750 = vmatpush2.bf16.xpose.msra.mxu0 %v3593
      %3751 = vmatprep.subr.bf16.mxu0 0
      %3752 = vmatpush2.bf16.xpose.msra.mxu0 %v3590
      %3753 = vmatprep.subr.bf16.mxu0 0
      %3754 = vmatpush2.bf16.xpose.msra.mxu0 %v3587
      %3755 = vmatprep.mubr.bf16.mxu0 0
      %3756 = vmatmul.mubr.bf16.gmra.mxu0 %v3491
      %v3757 = vpop.f32.mrf.mxu0
      %v3758 = vadd.f32 0.0, %v3757
      %v3759 = vpop.f32.mrf.mxu0
      %v3760 = vadd.f32 0.0, %v3759
      %v3761 = vpop.f32.mrf.mxu0
      %v3762 = vadd.f32 0.0, %v3761
      %v3763 = vpop.f32.mrf.mxu0
      %v3764 = vadd.f32 0.0, %v3763
      %3765 = vmatprep.mubr.bf16.mxu0 0
      %3766 = vmatmul.mubr.bf16.gmra.mxu0 %v3494
      %v3767 = vpop.f32.mrf.mxu0
      %v3768 = vadd.f32 0.0, %v3767
      %v3769 = vpop.f32.mrf.mxu0
      %v3770 = vadd.f32 0.0, %v3769
      %v3771 = vpop.f32.mrf.mxu0
      %v3772 = vadd.f32 0.0, %v3771
      %v3773 = vpop.f32.mrf.mxu0
      %v3774 = vadd.f32 0.0, %v3773
      %3775 = vmatprep.mubr.bf16.mxu0 0
      %3776 = vmatmul.mubr.bf16.gmra.mxu0 %v3497
      %v3777 = vpop.f32.mrf.mxu0
      %v3778 = vadd.f32 0.0, %v3777
      %v3779 = vpop.f32.mrf.mxu0
      %v3780 = vadd.f32 0.0, %v3779
      %v3781 = vpop.f32.mrf.mxu0
      %v3782 = vadd.f32 0.0, %v3781
      %v3783 = vpop.f32.mrf.mxu0
      %v3784 = vadd.f32 0.0, %v3783
      %3785 = vmatprep.mubr.bf16.mxu0 0
      %3786 = vmatmul.mubr.bf16.gmra.mxu0 %v3500
      %v3787 = vpop.f32.mrf.mxu0
      %v3788 = vadd.f32 0.0, %v3787
      %v3789 = vpop.f32.mrf.mxu0
      %v3790 = vadd.f32 0.0, %v3789
      %v3791 = vpop.f32.mrf.mxu0
      %v3792 = vadd.f32 0.0, %v3791
      %v3793 = vpop.f32.mrf.mxu0
      %v3794 = vadd.f32 0.0, %v3793
      %3795 = vmatprep.mubr.bf16.mxu0 0
      %3796 = vmatmul.mubr.bf16.gmra.mxu0 %v3503
      %v3797 = vpop.f32.mrf.mxu0
      %v3798 = vadd.f32 0.0, %v3797
      %v3799 = vpop.f32.mrf.mxu0
      %v3800 = vadd.f32 0.0, %v3799
      %v3801 = vpop.f32.mrf.mxu0
      %v3802 = vadd.f32 0.0, %v3801
      %v3803 = vpop.f32.mrf.mxu0
      %v3804 = vadd.f32 0.0, %v3803
      %3805 = vmatprep.mubr.bf16.mxu0 0
      %3806 = vmatmul.mubr.bf16.gmra.mxu0 %v3506
      %v3807 = vpop.f32.mrf.mxu0
      %v3808 = vadd.f32 0.0, %v3807
      %v3809 = vpop.f32.mrf.mxu0
      %v3810 = vadd.f32 0.0, %v3809
      %v3811 = vpop.f32.mrf.mxu0
      %v3812 = vadd.f32 0.0, %v3811
      %v3813 = vpop.f32.mrf.mxu0
      %v3814 = vadd.f32 0.0, %v3813
      %3815 = vmatprep.mubr.bf16.mxu0 0
      %3816 = vmatmul.mubr.bf16.gmra.mxu0 %v3509
      %v3817 = vpop.f32.mrf.mxu0
      %v3818 = vadd.f32 0.0, %v3817
      %v3819 = vpop.f32.mrf.mxu0
      %v3820 = vadd.f32 0.0, %v3819
      %v3821 = vpop.f32.mrf.mxu0
      %v3822 = vadd.f32 0.0, %v3821
      %v3823 = vpop.f32.mrf.mxu0
      %v3824 = vadd.f32 0.0, %v3823
      %3825 = vmatprep.mubr.bf16.mxu0 0
      %3826 = vmatmul.mubr.bf16.gmra.mxu0 %v3512
      %v3827 = vpop.f32.mrf.mxu0
      %v3828 = vadd.f32 0.0, %v3827
      %v3829 = vpop.f32.mrf.mxu0
      %v3830 = vadd.f32 0.0, %v3829
      %v3831 = vpop.f32.mrf.mxu0
      %v3832 = vadd.f32 0.0, %v3831
      %v3833 = vpop.f32.mrf.mxu0
      %v3834 = vadd.f32 0.0, %v3833
      %3835 = vdwg.mxu0
      %v3836 = vmul.f32 %v3645, 0.125
      %v3837 = vmul.f32 %v3647, 0.125
      %v3838 = vmul.f32 %v3758, 0.125
      %v3839 = vmul.f32 %v3760, 0.125
      %v3840 = vmul.f32 %v3649, 0.125
      %v3841 = vmul.f32 %v3651, 0.125
      %v3842 = vmul.f32 %v3762, 0.125
      %v3843 = vmul.f32 %v3764, 0.125
      %v3844 = vmul.f32 %v3655, 0.125
      %v3845 = vmul.f32 %v3657, 0.125
      %v3846 = vmul.f32 %v3768, 0.125
      %v3847 = vmul.f32 %v3770, 0.125
      %v3848 = vmul.f32 %v3659, 0.125
      %v3849 = vmul.f32 %v3661, 0.125
      %v3850 = vmul.f32 %v3772, 0.125
      %v3851 = vmul.f32 %v3774, 0.125
      %v3852 = vmul.f32 %v3665, 0.125
      %v3853 = vmul.f32 %v3667, 0.125
      %v3854 = vmul.f32 %v3778, 0.125
      %v3855 = vmul.f32 %v3780, 0.125
      %v3856 = vmul.f32 %v3669, 0.125
      %v3857 = vmul.f32 %v3671, 0.125
      %v3858 = vmul.f32 %v3782, 0.125
      %v3859 = vmul.f32 %v3784, 0.125
      %v3860 = vmul.f32 %v3675, 0.125
      %v3861 = vmul.f32 %v3677, 0.125
      %v3862 = vmul.f32 %v3788, 0.125
      %v3863 = vmul.f32 %v3790, 0.125
      %v3864 = vmul.f32 %v3679, 0.125
      %v3865 = vmul.f32 %v3681, 0.125
      %v3866 = vmul.f32 %v3792, 0.125
      %v3867 = vmul.f32 %v3794, 0.125
      %v3868 = vmul.f32 %v3685, 0.125
      %v3869 = vmul.f32 %v3687, 0.125
      %v3870 = vmul.f32 %v3798, 0.125
      %v3871 = vmul.f32 %v3800, 0.125
      %v3872 = vmul.f32 %v3689, 0.125
      %v3873 = vmul.f32 %v3691, 0.125
      %v3874 = vmul.f32 %v3802, 0.125
      %v3875 = vmul.f32 %v3804, 0.125
      %v3876 = vmul.f32 %v3695, 0.125
      %v3877 = vmul.f32 %v3697, 0.125
      %v3878 = vmul.f32 %v3808, 0.125
      %v3879 = vmul.f32 %v3810, 0.125
      %v3880 = vmul.f32 %v3699, 0.125
      %v3881 = vmul.f32 %v3701, 0.125
      %v3882 = vmul.f32 %v3812, 0.125
      %v3883 = vmul.f32 %v3814, 0.125
      %v3884 = vmul.f32 %v3705, 0.125
      %v3885 = vmul.f32 %v3707, 0.125
      %v3886 = vmul.f32 %v3818, 0.125
      %v3887 = vmul.f32 %v3820, 0.125
      %v3888 = vmul.f32 %v3709, 0.125
      %v3889 = vmul.f32 %v3711, 0.125
      %v3890 = vmul.f32 %v3822, 0.125
      %v3891 = vmul.f32 %v3824, 0.125
      %v3892 = vmul.f32 %v3715, 0.125
      %v3893 = vmul.f32 %v3717, 0.125
      %v3894 = vmul.f32 %v3828, 0.125
      %v3895 = vmul.f32 %v3830, 0.125
      %v3896 = vmul.f32 %v3719, 0.125
      %v3897 = vmul.f32 %v3721, 0.125
      %v3898 = vmul.f32 %v3832, 0.125
      %v3899 = vmul.f32 %v3834, 0.125
      %v3900 = vsel %vm1720, %v3836, -2e+10
      %v3901 = vsel %vm1721, %v3837, -2e+10
      %v3902 = vsel %vm1722, %v3838, -2e+10
      %v3903 = vsel %vm1723, %v3839, -2e+10
      %v3904 = vsel %vm1724, %v3840, -2e+10
      %v3905 = vsel %vm1725, %v3841, -2e+10
      %v3906 = vsel %vm1726, %v3842, -2e+10
      %v3907 = vsel %vm1727, %v3843, -2e+10
      %v3908 = vsel %vm1728, %v3844, -2e+10
      %v3909 = vsel %vm1729, %v3845, -2e+10
      %v3910 = vsel %vm1730, %v3846, -2e+10
      %v3911 = vsel %vm1731, %v3847, -2e+10
      %v3912 = vsel %vm1732, %v3848, -2e+10
      %v3913 = vsel %vm1733, %v3849, -2e+10
      %v3914 = vsel %vm1734, %v3850, -2e+10
      %v3915 = vsel %vm1735, %v3851, -2e+10
      %v3916 = vsel %vm1736, %v3852, -2e+10
      %v3917 = vsel %vm1737, %v3853, -2e+10
      %v3918 = vsel %vm1738, %v3854, -2e+10
      %v3919 = vsel %vm1739, %v3855, -2e+10
      %v3920 = vsel %vm1740, %v3856, -2e+10
      %v3921 = vsel %vm1741, %v3857, -2e+10
      %v3922 = vsel %vm1742, %v3858, -2e+10
      %v3923 = vsel %vm1743, %v3859, -2e+10
      %v3924 = vsel %vm1744, %v3860, -2e+10
      %v3925 = vsel %vm1745, %v3861, -2e+10
      %v3926 = vsel %vm1746, %v3862, -2e+10
      %v3927 = vsel %vm1747, %v3863, -2e+10
      %v3928 = vsel %vm1748, %v3864, -2e+10
      %v3929 = vsel %vm1749, %v3865, -2e+10
      %v3930 = vsel %vm1750, %v3866, -2e+10
      %v3931 = vsel %vm1751, %v3867, -2e+10
      %v3932 = vsel %vm1752, %v3868, -2e+10
      %v3933 = vsel %vm1753, %v3869, -2e+10
      %v3934 = vsel %vm1754, %v3870, -2e+10
      %v3935 = vsel %vm1755, %v3871, -2e+10
      %v3936 = vsel %vm1756, %v3872, -2e+10
      %v3937 = vsel %vm1757, %v3873, -2e+10
      %v3938 = vsel %vm1758, %v3874, -2e+10
      %v3939 = vsel %vm1759, %v3875, -2e+10
      %v3940 = vsel %vm1760, %v3876, -2e+10
      %v3941 = vsel %vm1761, %v3877, -2e+10
      %v3942 = vsel %vm1762, %v3878, -2e+10
      %v3943 = vsel %vm1763, %v3879, -2e+10
      %v3944 = vsel %vm1764, %v3880, -2e+10
      %v3945 = vsel %vm1765, %v3881, -2e+10
      %v3946 = vsel %vm1766, %v3882, -2e+10
      %v3947 = vsel %vm1767, %v3883, -2e+10
      %v3948 = vsel %vm1768, %v3884, -2e+10
      %v3949 = vsel %vm1769, %v3885, -2e+10
      %v3950 = vsel %vm1770, %v3886, -2e+10
      %v3951 = vsel %vm1771, %v3887, -2e+10
      %v3952 = vsel %vm1772, %v3888, -2e+10
      %v3953 = vsel %vm1773, %v3889, -2e+10
      %v3954 = vsel %vm1774, %v3890, -2e+10
      %v3955 = vsel %vm1775, %v3891, -2e+10
      %v3956 = vsel %vm1776, %v3892, -2e+10
      %v3957 = vsel %vm1777, %v3893, -2e+10
      %v3958 = vsel %vm1778, %v3894, -2e+10
      %v3959 = vsel %vm1779, %v3895, -2e+10
      %v3960 = vsel %vm1780, %v3896, -2e+10
      %v3961 = vsel %vm1781, %v3897, -2e+10
      %v3962 = vsel %vm1782, %v3898, -2e+10
      %v3963 = vsel %vm1783, %v3899, -2e+10
      %v3964 = vlaneseq
      %v3965 = vshrl.u32 %v3964, 7
      %v3966 = vsub.s32 1, %v3965
      %v3967 = vrot.slane %v1521, %v3966
      %v3968 = vlaneseq
      %v3969 = vshrl.u32 %v3968, 7
      %v3970 = vsub.s32 3, %v3969
      %v3971 = vrot.slane %v1521, %v3970
      %v3972 = vlaneseq
      %v3973 = vshrl.u32 %v3972, 7
      %v3974 = vsub.s32 5, %v3973
      %v3975 = vrot.slane %v1521, %v3974
      %v3976 = vlaneseq
      %v3977 = vshrl.u32 %v3976, 7
      %v3978 = vsub.s32 7, %v3977
      %v3979 = vrot.slane %v1521, %v3978
      %v3984 = vlaneseq
      %v3985 = vshrl.u32 %v3984, 7
      %v3986 = vsub.s32 1, %v3985
      %v3987 = vrot.slane %v3967, %v3986
      %v3988 = vlaneseq
      %v3989 = vshrl.u32 %v3988, 7
      %v3990 = vsub.s32 1, %v3989
      %v3991 = vrot.slane %v3971, %v3990
      %v3992 = vlaneseq
      %v3993 = vshrl.u32 %v3992, 7
      %v3994 = vsub.s32 1, %v3993
      %v3995 = vrot.slane %v3975, %v3994
      %v3996 = vlaneseq
      %v3997 = vshrl.u32 %v3996, 7
      %v3998 = vsub.s32 1, %v3997
      %v3999 = vrot.slane %v3979, %v3998
      %v4000 = vadd.f32 %v3900, %v3987
      %v4001 = vadd.f32 %v3901, %v3991
      %v4002 = vadd.f32 %v3902, %v3995
      %v4003 = vadd.f32 %v3903, %v3999
      %v4004 = vadd.f32 %v3904, %v3987
      %v4005 = vadd.f32 %v3905, %v3991
      %v4006 = vadd.f32 %v3906, %v3995
      %v4007 = vadd.f32 %v3907, %v3999
      %v4008 = vadd.f32 %v3908, %v3987
      %v4009 = vadd.f32 %v3909, %v3991
      %v4010 = vadd.f32 %v3910, %v3995
      %v4011 = vadd.f32 %v3911, %v3999
      %v4012 = vadd.f32 %v3912, %v3987
      %v4013 = vadd.f32 %v3913, %v3991
      %v4014 = vadd.f32 %v3914, %v3995
      %v4015 = vadd.f32 %v3915, %v3999
      %v4016 = vadd.f32 %v3916, %v3987
      %v4017 = vadd.f32 %v3917, %v3991
      %v4018 = vadd.f32 %v3918, %v3995
      %v4019 = vadd.f32 %v3919, %v3999
      %v4020 = vadd.f32 %v3920, %v3987
      %v4021 = vadd.f32 %v3921, %v3991
      %v4022 = vadd.f32 %v3922, %v3995
      %v4023 = vadd.f32 %v3923, %v3999
      %v4024 = vadd.f32 %v3924, %v3987
      %v4025 = vadd.f32 %v3925, %v3991
      %v4026 = vadd.f32 %v3926, %v3995
      %v4027 = vadd.f32 %v3927, %v3999
      %v4028 = vadd.f32 %v3928, %v3987
      %v4029 = vadd.f32 %v3929, %v3991
      %v4030 = vadd.f32 %v3930, %v3995
      %v4031 = vadd.f32 %v3931, %v3999
      %v4032 = vadd.f32 %v3932, %v3987
      %v4033 = vadd.f32 %v3933, %v3991
      %v4034 = vadd.f32 %v3934, %v3995
      %v4035 = vadd.f32 %v3935, %v3999
      %v4036 = vadd.f32 %v3936, %v3987
      %v4037 = vadd.f32 %v3937, %v3991
      %v4038 = vadd.f32 %v3938, %v3995
      %v4039 = vadd.f32 %v3939, %v3999
      %v4040 = vadd.f32 %v3940, %v3987
      %v4041 = vadd.f32 %v3941, %v3991
      %v4042 = vadd.f32 %v3942, %v3995
      %v4043 = vadd.f32 %v3943, %v3999
      %v4044 = vadd.f32 %v3944, %v3987
      %v4045 = vadd.f32 %v3945, %v3991
      %v4046 = vadd.f32 %v3946, %v3995
      %v4047 = vadd.f32 %v3947, %v3999
      %v4048 = vadd.f32 %v3948, %v3987
      %v4049 = vadd.f32 %v3949, %v3991
      %v4050 = vadd.f32 %v3950, %v3995
      %v4051 = vadd.f32 %v3951, %v3999
      %v4052 = vadd.f32 %v3952, %v3987
      %v4053 = vadd.f32 %v3953, %v3991
      %v4054 = vadd.f32 %v3954, %v3995
      %v4055 = vadd.f32 %v3955, %v3999
      %v4056 = vadd.f32 %v3956, %v3987
      %v4057 = vadd.f32 %v3957, %v3991
      %v4058 = vadd.f32 %v3958, %v3995
      %v4059 = vadd.f32 %v3959, %v3999
      %v4060 = vadd.f32 %v3960, %v3987
      %v4061 = vadd.f32 %v3961, %v3991
      %v4062 = vadd.f32 %v3962, %v3995
      %v4063 = vadd.f32 %v3963, %v3999
      %v4064 = vmax.f32 %v4000, %v4001
      %v4065 = vmax.f32 %v4064, %v4002
      %v4066 = vmax.f32 %v4065, %v4003
      %4067 = vmax.xlane.f32.xlu0 %v4066
      %v4068 = vpop.xlane.xlu0 %4067
      %v4069 = vmax.f32 %v4004, %v4005
      %v4070 = vmax.f32 %v4069, %v4006
      %v4071 = vmax.f32 %v4070, %v4007
      %4072 = vmax.xlane.f32.xlu0 %v4071
      %v4073 = vpop.xlane.xlu0 %4072
      %v4074 = vmax.f32 %v4008, %v4009
      %v4075 = vmax.f32 %v4074, %v4010
      %v4076 = vmax.f32 %v4075, %v4011
      %4077 = vmax.xlane.f32.xlu0 %v4076
      %v4078 = vpop.xlane.xlu0 %4077
      %v4079 = vmax.f32 %v4012, %v4013
      %v4080 = vmax.f32 %v4079, %v4014
      %v4081 = vmax.f32 %v4080, %v4015
      %4082 = vmax.xlane.f32.xlu0 %v4081
      %v4083 = vpop.xlane.xlu0 %4082
      %v4084 = vmax.f32 %v4016, %v4017
      %v4085 = vmax.f32 %v4084, %v4018
      %v4086 = vmax.f32 %v4085, %v4019
      %4087 = vmax.xlane.f32.xlu0 %v4086
      %v4088 = vpop.xlane.xlu0 %4087
      %v4089 = vmax.f32 %v4020, %v4021
      %v4090 = vmax.f32 %v4089, %v4022
      %v4091 = vmax.f32 %v4090, %v4023
      %4092 = vmax.xlane.f32.xlu0 %v4091
      %v4093 = vpop.xlane.xlu0 %4092
      %v4094 = vmax.f32 %v4024, %v4025
      %v4095 = vmax.f32 %v4094, %v4026
      %v4096 = vmax.f32 %v4095, %v4027
      %4097 = vmax.xlane.f32.xlu0 %v4096
      %v4098 = vpop.xlane.xlu0 %4097
      %v4099 = vmax.f32 %v4028, %v4029
      %v4100 = vmax.f32 %v4099, %v4030
      %v4101 = vmax.f32 %v4100, %v4031
      %4102 = vmax.xlane.f32.xlu0 %v4101
      %v4103 = vpop.xlane.xlu0 %4102
      %v4104 = vmax.f32 %v4032, %v4033
      %v4105 = vmax.f32 %v4104, %v4034
      %v4106 = vmax.f32 %v4105, %v4035
      %4107 = vmax.xlane.f32.xlu0 %v4106
      %v4108 = vpop.xlane.xlu0 %4107
      %v4109 = vmax.f32 %v4036, %v4037
      %v4110 = vmax.f32 %v4109, %v4038
      %v4111 = vmax.f32 %v4110, %v4039
      %4112 = vmax.xlane.f32.xlu0 %v4111
      %v4113 = vpop.xlane.xlu0 %4112
      %v4114 = vmax.f32 %v4040, %v4041
      %v4115 = vmax.f32 %v4114, %v4042
      %v4116 = vmax.f32 %v4115, %v4043
      %4117 = vmax.xlane.f32.xlu0 %v4116
      %v4118 = vpop.xlane.xlu0 %4117
      %v4119 = vmax.f32 %v4044, %v4045
      %v4120 = vmax.f32 %v4119, %v4046
      %v4121 = vmax.f32 %v4120, %v4047
      %4122 = vmax.xlane.f32.xlu0 %v4121
      %v4123 = vpop.xlane.xlu0 %4122
      %v4124 = vmax.f32 %v4048, %v4049
      %v4125 = vmax.f32 %v4124, %v4050
      %v4126 = vmax.f32 %v4125, %v4051
      %4127 = vmax.xlane.f32.xlu0 %v4126
      %v4128 = vpop.xlane.xlu0 %4127
      %v4129 = vmax.f32 %v4052, %v4053
      %v4130 = vmax.f32 %v4129, %v4054
      %v4131 = vmax.f32 %v4130, %v4055
      %4132 = vmax.xlane.f32.xlu0 %v4131
      %v4133 = vpop.xlane.xlu0 %4132
      %v4134 = vmax.f32 %v4056, %v4057
      %v4135 = vmax.f32 %v4134, %v4058
      %v4136 = vmax.f32 %v4135, %v4059
      %4137 = vmax.xlane.f32.xlu0 %v4136
      %v4138 = vpop.xlane.xlu0 %4137
      %v4139 = vmax.f32 %v4060, %v4061
      %v4140 = vmax.f32 %v4139, %v4062
      %v4141 = vmax.f32 %v4140, %v4063
      %4142 = vmax.xlane.f32.xlu0 %v4141
      %v4143 = vpop.xlane.xlu0 %4142
      %v4144 = vsub.f32 %v4000, %v4068
      %v4145 = vsub.f32 %v4001, %v4068
      %v4146 = vsub.f32 %v4002, %v4068
      %v4147 = vsub.f32 %v4003, %v4068
      %v4148 = vsub.f32 %v4004, %v4073
      %v4149 = vsub.f32 %v4005, %v4073
      %v4150 = vsub.f32 %v4006, %v4073
      %v4151 = vsub.f32 %v4007, %v4073
      %v4152 = vsub.f32 %v4008, %v4078
      %v4153 = vsub.f32 %v4009, %v4078
      %v4154 = vsub.f32 %v4010, %v4078
      %v4155 = vsub.f32 %v4011, %v4078
      %v4156 = vsub.f32 %v4012, %v4083
      %v4157 = vsub.f32 %v4013, %v4083
      %v4158 = vsub.f32 %v4014, %v4083
      %v4159 = vsub.f32 %v4015, %v4083
      %v4160 = vsub.f32 %v4016, %v4088
      %v4161 = vsub.f32 %v4017, %v4088
      %v4162 = vsub.f32 %v4018, %v4088
      %v4163 = vsub.f32 %v4019, %v4088
      %v4164 = vsub.f32 %v4020, %v4093
      %v4165 = vsub.f32 %v4021, %v4093
      %v4166 = vsub.f32 %v4022, %v4093
      %v4167 = vsub.f32 %v4023, %v4093
      %v4168 = vsub.f32 %v4024, %v4098
      %v4169 = vsub.f32 %v4025, %v4098
      %v4170 = vsub.f32 %v4026, %v4098
      %v4171 = vsub.f32 %v4027, %v4098
      %v4172 = vsub.f32 %v4028, %v4103
      %v4173 = vsub.f32 %v4029, %v4103
      %v4174 = vsub.f32 %v4030, %v4103
      %v4175 = vsub.f32 %v4031, %v4103
      %v4176 = vsub.f32 %v4032, %v4108
      %v4177 = vsub.f32 %v4033, %v4108
      %v4178 = vsub.f32 %v4034, %v4108
      %v4179 = vsub.f32 %v4035, %v4108
      %v4180 = vsub.f32 %v4036, %v4113
      %v4181 = vsub.f32 %v4037, %v4113
      %v4182 = vsub.f32 %v4038, %v4113
      %v4183 = vsub.f32 %v4039, %v4113
      %v4184 = vsub.f32 %v4040, %v4118
      %v4185 = vsub.f32 %v4041, %v4118
      %v4186 = vsub.f32 %v4042, %v4118
      %v4187 = vsub.f32 %v4043, %v4118
      %v4188 = vsub.f32 %v4044, %v4123
      %v4189 = vsub.f32 %v4045, %v4123
      %v4190 = vsub.f32 %v4046, %v4123
      %v4191 = vsub.f32 %v4047, %v4123
      %v4192 = vsub.f32 %v4048, %v4128
      %v4193 = vsub.f32 %v4049, %v4128
      %v4194 = vsub.f32 %v4050, %v4128
      %v4195 = vsub.f32 %v4051, %v4128
      %v4196 = vsub.f32 %v4052, %v4133
      %v4197 = vsub.f32 %v4053, %v4133
      %v4198 = vsub.f32 %v4054, %v4133
      %v4199 = vsub.f32 %v4055, %v4133
      %v4200 = vsub.f32 %v4056, %v4138
      %v4201 = vsub.f32 %v4057, %v4138
      %v4202 = vsub.f32 %v4058, %v4138
      %v4203 = vsub.f32 %v4059, %v4138
      %v4204 = vsub.f32 %v4060, %v4143
      %v4205 = vsub.f32 %v4061, %v4143
      %v4206 = vsub.f32 %v4062, %v4143
      %v4207 = vsub.f32 %v4063, %v4143
      %v4208 = vmul.f32 %v4144, 1.442695
      %v4209 = vpow.pop %v4208
      %v4210 = vmul.f32 %v4145, 1.442695
      %v4211 = vpow.pop %v4210
      %v4212 = vmul.f32 %v4146, 1.442695
      %v4213 = vpow.pop %v4212
      %v4214 = vmul.f32 %v4147, 1.442695
      %v4215 = vpow.pop %v4214
      %v4216 = vmul.f32 %v4148, 1.442695
      %v4217 = vpow.pop %v4216
      %v4218 = vmul.f32 %v4149, 1.442695
      %v4219 = vpow.pop %v4218
      %v4220 = vmul.f32 %v4150, 1.442695
      %v4221 = vpow.pop %v4220
      %v4222 = vmul.f32 %v4151, 1.442695
      %v4223 = vpow.pop %v4222
      %v4224 = vmul.f32 %v4152, 1.442695
      %v4225 = vpow.pop %v4224
      %v4226 = vmul.f32 %v4153, 1.442695
      %v4227 = vpow.pop %v4226
      %v4228 = vmul.f32 %v4154, 1.442695
      %v4229 = vpow.pop %v4228
      %v4230 = vmul.f32 %v4155, 1.442695
      %v4231 = vpow.pop %v4230
      %v4232 = vmul.f32 %v4156, 1.442695
      %v4233 = vpow.pop %v4232
      %v4234 = vmul.f32 %v4157, 1.442695
      %v4235 = vpow.pop %v4234
      %v4236 = vmul.f32 %v4158, 1.442695
      %v4237 = vpow.pop %v4236
      %v4238 = vmul.f32 %v4159, 1.442695
      %v4239 = vpow.pop %v4238
      %v4240 = vmul.f32 %v4160, 1.442695
      %v4241 = vpow.pop %v4240
      %v4242 = vmul.f32 %v4161, 1.442695
      %v4243 = vpow.pop %v4242
      %v4244 = vmul.f32 %v4162, 1.442695
      %v4245 = vpow.pop %v4244
      %v4246 = vmul.f32 %v4163, 1.442695
      %v4247 = vpow.pop %v4246
      %v4248 = vmul.f32 %v4164, 1.442695
      %v4249 = vpow.pop %v4248
      %v4250 = vmul.f32 %v4165, 1.442695
      %v4251 = vpow.pop %v4250
      %v4252 = vmul.f32 %v4166, 1.442695
      %v4253 = vpow.pop %v4252
      %v4254 = vmul.f32 %v4167, 1.442695
      %v4255 = vpow.pop %v4254
      %v4256 = vmul.f32 %v4168, 1.442695
      %v4257 = vpow.pop %v4256
      %v4258 = vmul.f32 %v4169, 1.442695
      %v4259 = vpow.pop %v4258
      %v4260 = vmul.f32 %v4170, 1.442695
      %v4261 = vpow.pop %v4260
      %v4262 = vmul.f32 %v4171, 1.442695
      %v4263 = vpow.pop %v4262
      %v4264 = vmul.f32 %v4172, 1.442695
      %v4265 = vpow.pop %v4264
      %v4266 = vmul.f32 %v4173, 1.442695
      %v4267 = vpow.pop %v4266
      %v4268 = vmul.f32 %v4174, 1.442695
      %v4269 = vpow.pop %v4268
      %v4270 = vmul.f32 %v4175, 1.442695
      %v4271 = vpow.pop %v4270
      %v4272 = vmul.f32 %v4176, 1.442695
      %v4273 = vpow.pop %v4272
      %v4274 = vmul.f32 %v4177, 1.442695
      %v4275 = vpow.pop %v4274
      %v4276 = vmul.f32 %v4178, 1.442695
      %v4277 = vpow.pop %v4276
      %v4278 = vmul.f32 %v4179, 1.442695
      %v4279 = vpow.pop %v4278
      %v4280 = vmul.f32 %v4180, 1.442695
      %v4281 = vpow.pop %v4280
      %v4282 = vmul.f32 %v4181, 1.442695
      %v4283 = vpow.pop %v4282
      %v4284 = vmul.f32 %v4182, 1.442695
      %v4285 = vpow.pop %v4284
      %v4286 = vmul.f32 %v4183, 1.442695
      %v4287 = vpow.pop %v4286
      %v4288 = vmul.f32 %v4184, 1.442695
      %v4289 = vpow.pop %v4288
      %v4290 = vmul.f32 %v4185, 1.442695
      %v4291 = vpow.pop %v4290
      %v4292 = vmul.f32 %v4186, 1.442695
      %v4293 = vpow.pop %v4292
      %v4294 = vmul.f32 %v4187, 1.442695
      %v4295 = vpow.pop %v4294
      %v4296 = vmul.f32 %v4188, 1.442695
      %v4297 = vpow.pop %v4296
      %v4298 = vmul.f32 %v4189, 1.442695
      %v4299 = vpow.pop %v4298
      %v4300 = vmul.f32 %v4190, 1.442695
      %v4301 = vpow.pop %v4300
      %v4302 = vmul.f32 %v4191, 1.442695
      %v4303 = vpow.pop %v4302
      %v4304 = vmul.f32 %v4192, 1.442695
      %v4305 = vpow.pop %v4304
      %v4306 = vmul.f32 %v4193, 1.442695
      %v4307 = vpow.pop %v4306
      %v4308 = vmul.f32 %v4194, 1.442695
      %v4309 = vpow.pop %v4308
      %v4310 = vmul.f32 %v4195, 1.442695
      %v4311 = vpow.pop %v4310
      %v4312 = vmul.f32 %v4196, 1.442695
      %v4313 = vpow.pop %v4312
      %v4314 = vmul.f32 %v4197, 1.442695
      %v4315 = vpow.pop %v4314
      %v4316 = vmul.f32 %v4198, 1.442695
      %v4317 = vpow.pop %v4316
      %v4318 = vmul.f32 %v4199, 1.442695
      %v4319 = vpow.pop %v4318
      %v4320 = vmul.f32 %v4200, 1.442695
      %v4321 = vpow.pop %v4320
      %v4322 = vmul.f32 %v4201, 1.442695
      %v4323 = vpow.pop %v4322
      %v4324 = vmul.f32 %v4202, 1.442695
      %v4325 = vpow.pop %v4324
      %v4326 = vmul.f32 %v4203, 1.442695
      %v4327 = vpow.pop %v4326
      %v4328 = vmul.f32 %v4204, 1.442695
      %v4329 = vpow.pop %v4328
      %v4330 = vmul.f32 %v4205, 1.442695
      %v4331 = vpow.pop %v4330
      %v4332 = vmul.f32 %v4206, 1.442695
      %v4333 = vpow.pop %v4332
      %v4334 = vmul.f32 %v4207, 1.442695
      %v4335 = vpow.pop %v4334
      %v4336 = vadd.f32 %v4209, %v4211
      %v4337 = vadd.f32 %v4336, %v4213
      %v4338 = vadd.f32 %v4337, %v4215
      %4339 = vadd.xlane.f32.xlu0 %v4338
      %v4340 = vpop.xlane.xlu0 %4339
      %v4341 = vadd.f32 %v4217, %v4219
      %v4342 = vadd.f32 %v4341, %v4221
      %v4343 = vadd.f32 %v4342, %v4223
      %4344 = vadd.xlane.f32.xlu0 %v4343
      %v4345 = vpop.xlane.xlu0 %4344
      %v4346 = vadd.f32 %v4225, %v4227
      %v4347 = vadd.f32 %v4346, %v4229
      %v4348 = vadd.f32 %v4347, %v4231
      %4349 = vadd.xlane.f32.xlu0 %v4348
      %v4350 = vpop.xlane.xlu0 %4349
      %v4351 = vadd.f32 %v4233, %v4235
      %v4352 = vadd.f32 %v4351, %v4237
      %v4353 = vadd.f32 %v4352, %v4239
      %4354 = vadd.xlane.f32.xlu0 %v4353
      %v4355 = vpop.xlane.xlu0 %4354
      %v4356 = vadd.f32 %v4241, %v4243
      %v4357 = vadd.f32 %v4356, %v4245
      %v4358 = vadd.f32 %v4357, %v4247
      %4359 = vadd.xlane.f32.xlu0 %v4358
      %v4360 = vpop.xlane.xlu0 %4359
      %v4361 = vadd.f32 %v4249, %v4251
      %v4362 = vadd.f32 %v4361, %v4253
      %v4363 = vadd.f32 %v4362, %v4255
      %4364 = vadd.xlane.f32.xlu0 %v4363
      %v4365 = vpop.xlane.xlu0 %4364
      %v4366 = vadd.f32 %v4257, %v4259
      %v4367 = vadd.f32 %v4366, %v4261
      %v4368 = vadd.f32 %v4367, %v4263
      %4369 = vadd.xlane.f32.xlu0 %v4368
      %v4370 = vpop.xlane.xlu0 %4369
      %v4371 = vadd.f32 %v4265, %v4267
      %v4372 = vadd.f32 %v4371, %v4269
      %v4373 = vadd.f32 %v4372, %v4271
      %4374 = vadd.xlane.f32.xlu0 %v4373
      %v4375 = vpop.xlane.xlu0 %4374
      %v4376 = vadd.f32 %v4273, %v4275
      %v4377 = vadd.f32 %v4376, %v4277
      %v4378 = vadd.f32 %v4377, %v4279
      %4379 = vadd.xlane.f32.xlu0 %v4378
      %v4380 = vpop.xlane.xlu0 %4379
      %v4381 = vadd.f32 %v4281, %v4283
      %v4382 = vadd.f32 %v4381, %v4285
      %v4383 = vadd.f32 %v4382, %v4287
      %4384 = vadd.xlane.f32.xlu0 %v4383
      %v4385 = vpop.xlane.xlu0 %4384
      %v4386 = vadd.f32 %v4289, %v4291
      %v4387 = vadd.f32 %v4386, %v4293
      %v4388 = vadd.f32 %v4387, %v4295
      %4389 = vadd.xlane.f32.xlu0 %v4388
      %v4390 = vpop.xlane.xlu0 %4389
      %v4391 = vadd.f32 %v4297, %v4299
      %v4392 = vadd.f32 %v4391, %v4301
      %v4393 = vadd.f32 %v4392, %v4303
      %4394 = vadd.xlane.f32.xlu0 %v4393
      %v4395 = vpop.xlane.xlu0 %4394
      %v4396 = vadd.f32 %v4305, %v4307
      %v4397 = vadd.f32 %v4396, %v4309
      %v4398 = vadd.f32 %v4397, %v4311
      %4399 = vadd.xlane.f32.xlu0 %v4398
      %v4400 = vpop.xlane.xlu0 %4399
      %v4401 = vadd.f32 %v4313, %v4315
      %v4402 = vadd.f32 %v4401, %v4317
      %v4403 = vadd.f32 %v4402, %v4319
      %4404 = vadd.xlane.f32.xlu0 %v4403
      %v4405 = vpop.xlane.xlu0 %4404
      %v4406 = vadd.f32 %v4321, %v4323
      %v4407 = vadd.f32 %v4406, %v4325
      %v4408 = vadd.f32 %v4407, %v4327
      %4409 = vadd.xlane.f32.xlu0 %v4408
      %v4410 = vpop.xlane.xlu0 %4409
      %v4411 = vadd.f32 %v4329, %v4331
      %v4412 = vadd.f32 %v4411, %v4333
      %v4413 = vadd.f32 %v4412, %v4335
      %4414 = vadd.xlane.f32.xlu0 %v4413
      %v4415 = vpop.xlane.xlu0 %4414
      %v4416 = vrcp.pop %v4340
      %v4417 = vmul.f32 1.0, %v4416
      %v4418 = vrcp.pop %v4345
      %v4419 = vmul.f32 1.0, %v4418
      %v4420 = vrcp.pop %v4350
      %v4421 = vmul.f32 1.0, %v4420
      %v4422 = vrcp.pop %v4355
      %v4423 = vmul.f32 1.0, %v4422
      %v4424 = vrcp.pop %v4360
      %v4425 = vmul.f32 1.0, %v4424
      %v4426 = vrcp.pop %v4365
      %v4427 = vmul.f32 1.0, %v4426
      %v4428 = vrcp.pop %v4370
      %v4429 = vmul.f32 1.0, %v4428
      %v4430 = vrcp.pop %v4375
      %v4431 = vmul.f32 1.0, %v4430
      %v4432 = vrcp.pop %v4380
      %v4433 = vmul.f32 1.0, %v4432
      %v4434 = vrcp.pop %v4385
      %v4435 = vmul.f32 1.0, %v4434
      %v4436 = vrcp.pop %v4390
      %v4437 = vmul.f32 1.0, %v4436
      %v4438 = vrcp.pop %v4395
      %v4439 = vmul.f32 1.0, %v4438
      %v4440 = vrcp.pop %v4400
      %v4441 = vmul.f32 1.0, %v4440
      %v4442 = vrcp.pop %v4405
      %v4443 = vmul.f32 1.0, %v4442
      %v4444 = vrcp.pop %v4410
      %v4445 = vmul.f32 1.0, %v4444
      %v4446 = vrcp.pop %v4415
      %v4447 = vmul.f32 1.0, %v4446
      %v4448 = vmul.f32 %v4209, %v4417
      %v4449 = vmul.f32 %v4211, %v4417
      %v4450 = vmul.f32 %v4213, %v4417
      %v4451 = vmul.f32 %v4215, %v4417
      %v4452 = vmul.f32 %v4217, %v4419
      %v4453 = vmul.f32 %v4219, %v4419
      %v4454 = vmul.f32 %v4221, %v4419
      %v4455 = vmul.f32 %v4223, %v4419
      %v4456 = vmul.f32 %v4225, %v4421
      %v4457 = vmul.f32 %v4227, %v4421
      %v4458 = vmul.f32 %v4229, %v4421
      %v4459 = vmul.f32 %v4231, %v4421
      %v4460 = vmul.f32 %v4233, %v4423
      %v4461 = vmul.f32 %v4235, %v4423
      %v4462 = vmul.f32 %v4237, %v4423
      %v4463 = vmul.f32 %v4239, %v4423
      %v4464 = vmul.f32 %v4241, %v4425
      %v4465 = vmul.f32 %v4243, %v4425
      %v4466 = vmul.f32 %v4245, %v4425
      %v4467 = vmul.f32 %v4247, %v4425
      %v4468 = vmul.f32 %v4249, %v4427
      %v4469 = vmul.f32 %v4251, %v4427
      %v4470 = vmul.f32 %v4253, %v4427
      %v4471 = vmul.f32 %v4255, %v4427
      %v4472 = vmul.f32 %v4257, %v4429
      %v4473 = vmul.f32 %v4259, %v4429
      %v4474 = vmul.f32 %v4261, %v4429
      %v4475 = vmul.f32 %v4263, %v4429
      %v4476 = vmul.f32 %v4265, %v4431
      %v4477 = vmul.f32 %v4267, %v4431
      %v4478 = vmul.f32 %v4269, %v4431
      %v4479 = vmul.f32 %v4271, %v4431
      %v4480 = vmul.f32 %v4273, %v4433
      %v4481 = vmul.f32 %v4275, %v4433
      %v4482 = vmul.f32 %v4277, %v4433
      %v4483 = vmul.f32 %v4279, %v4433
      %v4484 = vmul.f32 %v4281, %v4435
      %v4485 = vmul.f32 %v4283, %v4435
      %v4486 = vmul.f32 %v4285, %v4435
      %v4487 = vmul.f32 %v4287, %v4435
      %v4488 = vmul.f32 %v4289, %v4437
      %v4489 = vmul.f32 %v4291, %v4437
      %v4490 = vmul.f32 %v4293, %v4437
      %v4491 = vmul.f32 %v4295, %v4437
      %v4492 = vmul.f32 %v4297, %v4439
      %v4493 = vmul.f32 %v4299, %v4439
      %v4494 = vmul.f32 %v4301, %v4439
      %v4495 = vmul.f32 %v4303, %v4439
      %v4496 = vmul.f32 %v4305, %v4441
      %v4497 = vmul.f32 %v4307, %v4441
      %v4498 = vmul.f32 %v4309, %v4441
      %v4499 = vmul.f32 %v4311, %v4441
      %v4500 = vmul.f32 %v4313, %v4443
      %v4501 = vmul.f32 %v4315, %v4443
      %v4502 = vmul.f32 %v4317, %v4443
      %v4503 = vmul.f32 %v4319, %v4443
      %v4504 = vmul.f32 %v4321, %v4445
      %v4505 = vmul.f32 %v4323, %v4445
      %v4506 = vmul.f32 %v4325, %v4445
      %v4507 = vmul.f32 %v4327, %v4445
      %v4508 = vmul.f32 %v4329, %v4447
      %v4509 = vmul.f32 %v4331, %v4447
      %v4510 = vmul.f32 %v4333, %v4447
      %v4511 = vmul.f32 %v4335, %v4447
      %v4512 = vpack.c.bf16 %v4452, %v4448
      %v4513 = vpack.c.bf16 %v4453, %v4449
      %v4514 = vpack.c.bf16 %v4454, %v4450
      %v4515 = vpack.c.bf16 %v4455, %v4451
      %v4516 = vpack.c.bf16 %v4460, %v4456
      %v4517 = vpack.c.bf16 %v4461, %v4457
      %v4518 = vpack.c.bf16 %v4462, %v4458
      %v4519 = vpack.c.bf16 %v4463, %v4459
      %v4520 = vpack.c.bf16 %v4468, %v4464
      %v4521 = vpack.c.bf16 %v4469, %v4465
      %v4522 = vpack.c.bf16 %v4470, %v4466
      %v4523 = vpack.c.bf16 %v4471, %v4467
      %v4524 = vpack.c.bf16 %v4476, %v4472
      %v4525 = vpack.c.bf16 %v4477, %v4473
      %v4526 = vpack.c.bf16 %v4478, %v4474
      %v4527 = vpack.c.bf16 %v4479, %v4475
      %v4528 = vpack.c.bf16 %v4484, %v4480
      %v4529 = vpack.c.bf16 %v4485, %v4481
      %v4530 = vpack.c.bf16 %v4486, %v4482
      %v4531 = vpack.c.bf16 %v4487, %v4483
      %v4532 = vpack.c.bf16 %v4492, %v4488
      %v4533 = vpack.c.bf16 %v4493, %v4489
      %v4534 = vpack.c.bf16 %v4494, %v4490
      %v4535 = vpack.c.bf16 %v4495, %v4491
      %v4536 = vpack.c.bf16 %v4500, %v4496
      %v4537 = vpack.c.bf16 %v4501, %v4497
      %v4538 = vpack.c.bf16 %v4502, %v4498
      %v4539 = vpack.c.bf16 %v4503, %v4499
      %v4540 = vpack.c.bf16 %v4508, %v4504
      %v4541 = vpack.c.bf16 %v4509, %v4505
      %v4542 = vpack.c.bf16 %v4510, %v4506
      %v4543 = vpack.c.bf16 %v4511, %v4507
      %s4544 = scalar_lea.vmem %s3, 256
      %v4545 = vld [vmem:[%s4544] sm:$0xf]
      %v4546 = vld [vmem:[%s4544 + $0x4] sm:$0xf]
      %v4547 = vld [vmem:[%s4544 + $0x8] sm:$0xf]
      %v4548 = vld [vmem:[%s4544 + $0xc] sm:$0xf]
      %v4549 = vld [vmem:[%s4544 + $0x10] sm:$0xf]
      %v4550 = vld [vmem:[%s4544 + $0x14] sm:$0xf]
      %v4551 = vld [vmem:[%s4544 + $0x18] sm:$0xf]
      %v4552 = vld [vmem:[%s4544 + $0x1c] sm:$0xf]
      %v4553 = vld [vmem:[%s4544 + $0x20] sm:$0xf]
      %v4554 = vld [vmem:[%s4544 + $0x24] sm:$0xf]
      %v4555 = vld [vmem:[%s4544 + $0x28] sm:$0xf]
      %v4556 = vld [vmem:[%s4544 + $0x2c] sm:$0xf]
      %v4557 = vld [vmem:[%s4544 + $0x30] sm:$0xf]
      %v4558 = vld [vmem:[%s4544 + $0x34] sm:$0xf]
      %v4559 = vld [vmem:[%s4544 + $0x38] sm:$0xf]
      %v4560 = vld [vmem:[%s4544 + $0x3c] sm:$0xf]
      %v4561 = vld [vmem:[%s4544 + $0x40] sm:$0xf]
      %v4562 = vld [vmem:[%s4544 + $0x44] sm:$0xf]
      %v4563 = vld [vmem:[%s4544 + $0x48] sm:$0xf]
      %v4564 = vld [vmem:[%s4544 + $0x4c] sm:$0xf]
      %v4565 = vld [vmem:[%s4544 + $0x50] sm:$0xf]
      %v4566 = vld [vmem:[%s4544 + $0x54] sm:$0xf]
      %v4567 = vld [vmem:[%s4544 + $0x58] sm:$0xf]
      %v4568 = vld [vmem:[%s4544 + $0x5c] sm:$0xf]
      %v4569 = vld [vmem:[%s4544 + $0x60] sm:$0xf]
      %v4570 = vld [vmem:[%s4544 + $0x64] sm:$0xf]
      %v4571 = vld [vmem:[%s4544 + $0x68] sm:$0xf]
      %v4572 = vld [vmem:[%s4544 + $0x6c] sm:$0xf]
      %v4573 = vld [vmem:[%s4544 + $0x70] sm:$0xf]
      %v4574 = vld [vmem:[%s4544 + $0x74] sm:$0xf]
      %v4575 = vld [vmem:[%s4544 + $0x78] sm:$0xf]
      %v4576 = vld [vmem:[%s4544 + $0x7c] sm:$0xf]
      %v4577 = vld [vmem:[%s4544 + $0x80] sm:$0xf]
      %v4578 = vld [vmem:[%s4544 + $0x84] sm:$0xf]
      %v4579 = vld [vmem:[%s4544 + $0x88] sm:$0xf]
      %v4580 = vld [vmem:[%s4544 + $0x8c] sm:$0xf]
      %v4581 = vld [vmem:[%s4544 + $0x90] sm:$0xf]
      %v4582 = vld [vmem:[%s4544 + $0x94] sm:$0xf]
      %v4583 = vld [vmem:[%s4544 + $0x98] sm:$0xf]
      %v4584 = vld [vmem:[%s4544 + $0x9c] sm:$0xf]
      %v4585 = vld [vmem:[%s4544 + $0xa0] sm:$0xf]
      %v4586 = vld [vmem:[%s4544 + $0xa4] sm:$0xf]
      %v4587 = vld [vmem:[%s4544 + $0xa8] sm:$0xf]
      %v4588 = vld [vmem:[%s4544 + $0xac] sm:$0xf]
      %v4589 = vld [vmem:[%s4544 + $0xb0] sm:$0xf]
      %v4590 = vld [vmem:[%s4544 + $0xb4] sm:$0xf]
      %v4591 = vld [vmem:[%s4544 + $0xb8] sm:$0xf]
      %v4592 = vld [vmem:[%s4544 + $0xbc] sm:$0xf]
      %v4593 = vld [vmem:[%s4544 + $0xc0] sm:$0xf]
      %v4594 = vld [vmem:[%s4544 + $0xc4] sm:$0xf]
      %v4595 = vld [vmem:[%s4544 + $0xc8] sm:$0xf]
      %v4596 = vld [vmem:[%s4544 + $0xcc] sm:$0xf]
      %v4597 = vld [vmem:[%s4544 + $0xd0] sm:$0xf]
      %v4598 = vld [vmem:[%s4544 + $0xd4] sm:$0xf]
      %v4599 = vld [vmem:[%s4544 + $0xd8] sm:$0xf]
      %v4600 = vld [vmem:[%s4544 + $0xdc] sm:$0xf]
      %v4601 = vld [vmem:[%s4544 + $0xe0] sm:$0xf]
      %v4602 = vld [vmem:[%s4544 + $0xe4] sm:$0xf]
      %v4603 = vld [vmem:[%s4544 + $0xe8] sm:$0xf]
      %v4604 = vld [vmem:[%s4544 + $0xec] sm:$0xf]
      %v4605 = vld [vmem:[%s4544 + $0xf0] sm:$0xf]
      %v4606 = vld [vmem:[%s4544 + $0xf4] sm:$0xf]
      %v4607 = vld [vmem:[%s4544 + $0xf8] sm:$0xf]
      %v4608 = vld [vmem:[%s4544 + $0xfc] sm:$0xf]
      %v4673 = vunpack.c.l.b16 %v4545
      %v4674 = vunpack.c.l.b16 %v4546
      %v4675 = vunpack.c.l.b16 %v4547
      %v4676 = vunpack.c.l.b16 %v4548
      %v4677 = vunpack.c.l.b16 %v4549
      %v4678 = vunpack.c.l.b16 %v4550
      %v4679 = vunpack.c.l.b16 %v4551
      %v4680 = vunpack.c.l.b16 %v4552
      %v4681 = vunpack.c.l.b16 %v4553
      %v4682 = vunpack.c.l.b16 %v4554
      %v4683 = vunpack.c.l.b16 %v4555
      %v4684 = vunpack.c.l.b16 %v4556
      %v4685 = vunpack.c.l.b16 %v4557
      %v4686 = vunpack.c.l.b16 %v4558
      %v4687 = vunpack.c.l.b16 %v4559
      %v4688 = vunpack.c.l.b16 %v4560
      %v4689 = vunpack.c.l.b16 %v4561
      %v4690 = vunpack.c.l.b16 %v4562
      %v4691 = vunpack.c.l.b16 %v4563
      %v4692 = vunpack.c.l.b16 %v4564
      %v4693 = vunpack.c.l.b16 %v4565
      %v4694 = vunpack.c.l.b16 %v4566
      %v4695 = vunpack.c.l.b16 %v4567
      %v4696 = vunpack.c.l.b16 %v4568
      %v4697 = vunpack.c.l.b16 %v4569
      %v4698 = vunpack.c.l.b16 %v4570
      %v4699 = vunpack.c.l.b16 %v4571
      %v4700 = vunpack.c.l.b16 %v4572
      %v4701 = vunpack.c.l.b16 %v4573
      %v4702 = vunpack.c.l.b16 %v4574
      %v4703 = vunpack.c.l.b16 %v4575
      %v4704 = vunpack.c.l.b16 %v4576
      %v4705 = vunpack.c.l.b16 %v4577
      %v4706 = vunpack.c.l.b16 %v4578
      %v4707 = vunpack.c.l.b16 %v4579
      %v4708 = vunpack.c.l.b16 %v4580
      %v4709 = vunpack.c.l.b16 %v4581
      %v4710 = vunpack.c.l.b16 %v4582
      %v4711 = vunpack.c.l.b16 %v4583
      %v4712 = vunpack.c.l.b16 %v4584
      %v4713 = vunpack.c.l.b16 %v4585
      %v4714 = vunpack.c.l.b16 %v4586
      %v4715 = vunpack.c.l.b16 %v4587
      %v4716 = vunpack.c.l.b16 %v4588
      %v4717 = vunpack.c.l.b16 %v4589
      %v4718 = vunpack.c.l.b16 %v4590
      %v4719 = vunpack.c.l.b16 %v4591
      %v4720 = vunpack.c.l.b16 %v4592
      %v4721 = vunpack.c.l.b16 %v4593
      %v4722 = vunpack.c.l.b16 %v4594
      %v4723 = vunpack.c.l.b16 %v4595
      %v4724 = vunpack.c.l.b16 %v4596
      %v4725 = vunpack.c.l.b16 %v4597
      %v4726 = vunpack.c.l.b16 %v4598
      %v4727 = vunpack.c.l.b16 %v4599
      %v4728 = vunpack.c.l.b16 %v4600
      %v4729 = vunpack.c.l.b16 %v4601
      %v4730 = vunpack.c.l.b16 %v4602
      %v4731 = vunpack.c.l.b16 %v4603
      %v4732 = vunpack.c.l.b16 %v4604
      %v4733 = vunpack.c.l.b16 %v4605
      %v4734 = vunpack.c.l.b16 %v4606
      %v4735 = vunpack.c.l.b16 %v4607
      %v4736 = vunpack.c.l.b16 %v4608
      %v4737 = vpack.c.b16 %v4674, %v4673
      %v4738 = vpack.c.b16 %v4676, %v4675
      %v4739 = vpack.c.b16 %v4678, %v4677
      %v4740 = vpack.c.b16 %v4680, %v4679
      %v4741 = vpack.c.b16 %v4682, %v4681
      %v4742 = vpack.c.b16 %v4684, %v4683
      %v4743 = vpack.c.b16 %v4686, %v4685
      %v4744 = vpack.c.b16 %v4688, %v4687
      %v4745 = vpack.c.b16 %v4690, %v4689
      %v4746 = vpack.c.b16 %v4692, %v4691
      %v4747 = vpack.c.b16 %v4694, %v4693
      %v4748 = vpack.c.b16 %v4696, %v4695
      %v4749 = vpack.c.b16 %v4698, %v4697
      %v4750 = vpack.c.b16 %v4700, %v4699
      %v4751 = vpack.c.b16 %v4702, %v4701
      %v4752 = vpack.c.b16 %v4704, %v4703
      %v4753 = vpack.c.b16 %v4706, %v4705
      %v4754 = vpack.c.b16 %v4708, %v4707
      %v4755 = vpack.c.b16 %v4710, %v4709
      %v4756 = vpack.c.b16 %v4712, %v4711
      %v4757 = vpack.c.b16 %v4714, %v4713
      %v4758 = vpack.c.b16 %v4716, %v4715
      %v4759 = vpack.c.b16 %v4718, %v4717
      %v4760 = vpack.c.b16 %v4720, %v4719
      %v4761 = vpack.c.b16 %v4722, %v4721
      %v4762 = vpack.c.b16 %v4724, %v4723
      %v4763 = vpack.c.b16 %v4726, %v4725
      %v4764 = vpack.c.b16 %v4728, %v4727
      %v4765 = vpack.c.b16 %v4730, %v4729
      %v4766 = vpack.c.b16 %v4732, %v4731
      %v4767 = vpack.c.b16 %v4734, %v4733
      %v4768 = vpack.c.b16 %v4736, %v4735
      %4801 = vmatprep.subr.bf16.mxu0 0
      %4802 = vmatpush1.bf16.msra.mxu0 %v4744
      %4803 = vmatprep.subr.bf16.mxu0 0
      %4804 = vmatpush1.bf16.msra.mxu0 %v4743
      %4805 = vmatprep.subr.bf16.mxu0 0
      %4806 = vmatpush1.bf16.msra.mxu0 %v4742
      %4807 = vmatprep.subr.bf16.mxu0 0
      %4808 = vmatpush1.bf16.msra.mxu0 %v4741
      %4809 = vmatprep.subr.bf16.mxu0 0
      %4810 = vmatpush1.bf16.msra.mxu0 %v4740
      %4811 = vmatprep.subr.bf16.mxu0 0
      %4812 = vmatpush1.bf16.msra.mxu0 %v4739
      %4813 = vmatprep.subr.bf16.mxu0 0
      %4814 = vmatpush1.bf16.msra.mxu0 %v4738
      %4815 = vmatprep.subr.bf16.mxu0 0
      %4816 = vmatpush1.bf16.msra.mxu0 %v4737
      %4817 = vmatprep.subr.bf16.mxu0 0
      %4818 = vmatpush2.bf16.msra.mxu0 %v4752
      %4819 = vmatprep.subr.bf16.mxu0 0
      %4820 = vmatpush2.bf16.msra.mxu0 %v4751
      %4821 = vmatprep.subr.bf16.mxu0 0
      %4822 = vmatpush2.bf16.msra.mxu0 %v4750
      %4823 = vmatprep.subr.bf16.mxu0 0
      %4824 = vmatpush2.bf16.msra.mxu0 %v4749
      %4825 = vmatprep.subr.bf16.mxu0 0
      %4826 = vmatpush2.bf16.msra.mxu0 %v4748
      %4827 = vmatprep.subr.bf16.mxu0 0
      %4828 = vmatpush2.bf16.msra.mxu0 %v4747
      %4829 = vmatprep.subr.bf16.mxu0 0
      %4830 = vmatpush2.bf16.msra.mxu0 %v4746
      %4831 = vmatprep.subr.bf16.mxu0 0
      %4832 = vmatpush2.bf16.msra.mxu0 %v4745
      %4833 = vmatprep.mubr.bf16.mxu0 %v4513
      %4834 = vmatmul.mubr.bf16.gmra.mxu0 %v4512
      %v4835 = vpop.f32.mrf.mxu0
      %v4836 = vadd.f32 0.0, %v4835
      %v4837 = vpop.f32.mrf.mxu0
      %v4838 = vpop.f32.mrf.mxu0
      %v4839 = vadd.f32 0.0, %v4838
      %v4840 = vpop.f32.mrf.mxu0
      %4841 = vmatprep.mubr.bf16.mxu0 %v4517
      %4842 = vmatmul.mubr.bf16.gmra.mxu0 %v4516
      %v4843 = vpop.f32.mrf.mxu0
      %v4844 = vadd.f32 0.0, %v4843
      %v4845 = vpop.f32.mrf.mxu0
      %v4846 = vpop.f32.mrf.mxu0
      %v4847 = vadd.f32 0.0, %v4846
      %v4848 = vpop.f32.mrf.mxu0
      %4849 = vmatprep.mubr.bf16.mxu0 %v4521
      %4850 = vmatmul.mubr.bf16.gmra.mxu0 %v4520
      %v4851 = vpop.f32.mrf.mxu0
      %v4852 = vadd.f32 0.0, %v4851
      %v4853 = vpop.f32.mrf.mxu0
      %v4854 = vpop.f32.mrf.mxu0
      %v4855 = vadd.f32 0.0, %v4854
      %v4856 = vpop.f32.mrf.mxu0
      %4857 = vmatprep.mubr.bf16.mxu0 %v4525
      %4858 = vmatmul.mubr.bf16.gmra.mxu0 %v4524
      %v4859 = vpop.f32.mrf.mxu0
      %v4860 = vadd.f32 0.0, %v4859
      %v4861 = vpop.f32.mrf.mxu0
      %v4862 = vpop.f32.mrf.mxu0
      %v4863 = vadd.f32 0.0, %v4862
      %v4864 = vpop.f32.mrf.mxu0
      %4865 = vmatprep.mubr.bf16.mxu0 %v4529
      %4866 = vmatmul.mubr.bf16.gmra.mxu0 %v4528
      %v4867 = vpop.f32.mrf.mxu0
      %v4868 = vadd.f32 0.0, %v4867
      %v4869 = vpop.f32.mrf.mxu0
      %v4870 = vpop.f32.mrf.mxu0
      %v4871 = vadd.f32 0.0, %v4870
      %v4872 = vpop.f32.mrf.mxu0
      %4873 = vmatprep.mubr.bf16.mxu0 %v4533
      %4874 = vmatmul.mubr.bf16.gmra.mxu0 %v4532
      %v4875 = vpop.f32.mrf.mxu0
      %v4876 = vadd.f32 0.0, %v4875
      %v4877 = vpop.f32.mrf.mxu0
      %v4878 = vpop.f32.mrf.mxu0
      %v4879 = vadd.f32 0.0, %v4878
      %v4880 = vpop.f32.mrf.mxu0
      %4881 = vmatprep.mubr.bf16.mxu0 %v4537
      %4882 = vmatmul.mubr.bf16.gmra.mxu0 %v4536
      %v4883 = vpop.f32.mrf.mxu0
      %v4884 = vadd.f32 0.0, %v4883
      %v4885 = vpop.f32.mrf.mxu0
      %v4886 = vpop.f32.mrf.mxu0
      %v4887 = vadd.f32 0.0, %v4886
      %v4888 = vpop.f32.mrf.mxu0
      %4889 = vmatprep.mubr.bf16.mxu0 %v4541
      %4890 = vmatmul.mubr.bf16.gmra.mxu0 %v4540
      %v4891 = vpop.f32.mrf.mxu0
      %v4892 = vadd.f32 0.0, %v4891
      %v4893 = vpop.f32.mrf.mxu0
      %v4894 = vpop.f32.mrf.mxu0
      %v4895 = vadd.f32 0.0, %v4894
      %v4896 = vpop.f32.mrf.mxu0
      %4897 = vdwg.mxu0
      %4898 = vmatprep.subr.bf16.mxu0 0
      %4899 = vmatpush1.bf16.msra.mxu0 %v4760
      %4900 = vmatprep.subr.bf16.mxu0 0
      %4901 = vmatpush1.bf16.msra.mxu0 %v4759
      %4902 = vmatprep.subr.bf16.mxu0 0
      %4903 = vmatpush1.bf16.msra.mxu0 %v4758
      %4904 = vmatprep.subr.bf16.mxu0 0
      %4905 = vmatpush1.bf16.msra.mxu0 %v4757
      %4906 = vmatprep.subr.bf16.mxu0 0
      %4907 = vmatpush1.bf16.msra.mxu0 %v4756
      %4908 = vmatprep.subr.bf16.mxu0 0
      %4909 = vmatpush1.bf16.msra.mxu0 %v4755
      %4910 = vmatprep.subr.bf16.mxu0 0
      %4911 = vmatpush1.bf16.msra.mxu0 %v4754
      %4912 = vmatprep.subr.bf16.mxu0 0
      %4913 = vmatpush1.bf16.msra.mxu0 %v4753
      %4914 = vmatprep.subr.bf16.mxu0 0
      %4915 = vmatpush2.bf16.msra.mxu0 %v4768
      %4916 = vmatprep.subr.bf16.mxu0 0
      %4917 = vmatpush2.bf16.msra.mxu0 %v4767
      %4918 = vmatprep.subr.bf16.mxu0 0
      %4919 = vmatpush2.bf16.msra.mxu0 %v4766
      %4920 = vmatprep.subr.bf16.mxu0 0
      %4921 = vmatpush2.bf16.msra.mxu0 %v4765
      %4922 = vmatprep.subr.bf16.mxu0 0
      %4923 = vmatpush2.bf16.msra.mxu0 %v4764
      %4924 = vmatprep.subr.bf16.mxu0 0
      %4925 = vmatpush2.bf16.msra.mxu0 %v4763
      %4926 = vmatprep.subr.bf16.mxu0 0
      %4927 = vmatpush2.bf16.msra.mxu0 %v4762
      %4928 = vmatprep.subr.bf16.mxu0 0
      %4929 = vmatpush2.bf16.msra.mxu0 %v4761
      %4930 = vmatprep.mubr.bf16.mxu0 %v4515
      %4931 = vmatmul.mubr.bf16.gmra.mxu0 %v4514
      %v4932 = vpop.f32.mrf.mxu0
      %v4933 = vadd.f32 %v4836, %v4932
      %v4934 = vpop.f32.mrf.mxu0
      %v4935 = vpop.f32.mrf.mxu0
      %v4936 = vadd.f32 %v4839, %v4935
      %v4937 = vpop.f32.mrf.mxu0
      %4938 = vmatprep.mubr.bf16.mxu0 %v4519
      %4939 = vmatmul.mubr.bf16.gmra.mxu0 %v4518
      %v4940 = vpop.f32.mrf.mxu0
      %v4941 = vadd.f32 %v4844, %v4940
      %v4942 = vpop.f32.mrf.mxu0
      %v4943 = vpop.f32.mrf.mxu0
      %v4944 = vadd.f32 %v4847, %v4943
      %v4945 = vpop.f32.mrf.mxu0
      %4946 = vmatprep.mubr.bf16.mxu0 %v4523
      %4947 = vmatmul.mubr.bf16.gmra.mxu0 %v4522
      %v4948 = vpop.f32.mrf.mxu0
      %v4949 = vadd.f32 %v4852, %v4948
      %v4950 = vpop.f32.mrf.mxu0
      %v4951 = vpop.f32.mrf.mxu0
      %v4952 = vadd.f32 %v4855, %v4951
      %v4953 = vpop.f32.mrf.mxu0
      %4954 = vmatprep.mubr.bf16.mxu0 %v4527
      %4955 = vmatmul.mubr.bf16.gmra.mxu0 %v4526
      %v4956 = vpop.f32.mrf.mxu0
      %v4957 = vadd.f32 %v4860, %v4956
      %v4958 = vpop.f32.mrf.mxu0
      %v4959 = vpop.f32.mrf.mxu0
      %v4960 = vadd.f32 %v4863, %v4959
      %v4961 = vpop.f32.mrf.mxu0
      %4962 = vmatprep.mubr.bf16.mxu0 %v4531
      %4963 = vmatmul.mubr.bf16.gmra.mxu0 %v4530
      %v4964 = vpop.f32.mrf.mxu0
      %v4965 = vadd.f32 %v4868, %v4964
      %v4966 = vpop.f32.mrf.mxu0
      %v4967 = vpop.f32.mrf.mxu0
      %v4968 = vadd.f32 %v4871, %v4967
      %v4969 = vpop.f32.mrf.mxu0
      %4970 = vmatprep.mubr.bf16.mxu0 %v4535
      %4971 = vmatmul.mubr.bf16.gmra.mxu0 %v4534
      %v4972 = vpop.f32.mrf.mxu0
      %v4973 = vadd.f32 %v4876, %v4972
      %v4974 = vpop.f32.mrf.mxu0
      %v4975 = vpop.f32.mrf.mxu0
      %v4976 = vadd.f32 %v4879, %v4975
      %v4977 = vpop.f32.mrf.mxu0
      %4978 = vmatprep.mubr.bf16.mxu0 %v4539
      %4979 = vmatmul.mubr.bf16.gmra.mxu0 %v4538
      %v4980 = vpop.f32.mrf.mxu0
      %v4981 = vadd.f32 %v4884, %v4980
      %v4982 = vpop.f32.mrf.mxu0
      %v4983 = vpop.f32.mrf.mxu0
      %v4984 = vadd.f32 %v4887, %v4983
      %v4985 = vpop.f32.mrf.mxu0
      %4986 = vmatprep.mubr.bf16.mxu0 %v4543
      %4987 = vmatmul.mubr.bf16.gmra.mxu0 %v4542
      %v4988 = vpop.f32.mrf.mxu0
      %v4989 = vadd.f32 %v4892, %v4988
      %v4990 = vpop.f32.mrf.mxu0
      %v4991 = vpop.f32.mrf.mxu0
      %v4992 = vadd.f32 %v4895, %v4991
      %v4993 = vpop.f32.mrf.mxu0
      %4994 = vdwg.mxu0
      %v5059 = vunpack.c.l.b16 %v2935
      %v5060 = vunpack.c.l.b16 %v2936
      %v5061 = vunpack.c.l.b16 %v2937
      %v5062 = vunpack.c.l.b16 %v2938
      %v5063 = vunpack.c.l.b16 %v2939
      %v5064 = vunpack.c.l.b16 %v2940
      %v5065 = vunpack.c.l.b16 %v2941
      %v5066 = vunpack.c.l.b16 %v2942
      %v5067 = vunpack.c.l.b16 %v2943
      %v5068 = vunpack.c.l.b16 %v2944
      %v5069 = vunpack.c.l.b16 %v2945
      %v5070 = vunpack.c.l.b16 %v2946
      %v5071 = vunpack.c.l.b16 %v2947
      %v5072 = vunpack.c.l.b16 %v2948
      %v5073 = vunpack.c.l.b16 %v2949
      %v5074 = vunpack.c.l.b16 %v2950
      %v5075 = vunpack.c.l.b16 %v2951
      %v5076 = vunpack.c.l.b16 %v2952
      %v5077 = vunpack.c.l.b16 %v2953
      %v5078 = vunpack.c.l.b16 %v2954
      %v5079 = vunpack.c.l.b16 %v2955
      %v5080 = vunpack.c.l.b16 %v2956
      %v5081 = vunpack.c.l.b16 %v2957
      %v5082 = vunpack.c.l.b16 %v2958
      %v5083 = vunpack.c.l.b16 %v2959
      %v5084 = vunpack.c.l.b16 %v2960
      %v5085 = vunpack.c.l.b16 %v2961
      %v5086 = vunpack.c.l.b16 %v2962
      %v5087 = vunpack.c.l.b16 %v2963
      %v5088 = vunpack.c.l.b16 %v2964
      %v5089 = vunpack.c.l.b16 %v2965
      %v5090 = vunpack.c.l.b16 %v2966
      %v5091 = vunpack.c.l.b16 %v2967
      %v5092 = vunpack.c.l.b16 %v2968
      %v5093 = vunpack.c.l.b16 %v2969
      %v5094 = vunpack.c.l.b16 %v2970
      %v5095 = vunpack.c.l.b16 %v2971
      %v5096 = vunpack.c.l.b16 %v2972
      %v5097 = vunpack.c.l.b16 %v2973
      %v5098 = vunpack.c.l.b16 %v2974
      %v5099 = vunpack.c.l.b16 %v2975
      %v5100 = vunpack.c.l.b16 %v2976
      %v5101 = vunpack.c.l.b16 %v2977
      %v5102 = vunpack.c.l.b16 %v2978
      %v5103 = vunpack.c.l.b16 %v2979
      %v5104 = vunpack.c.l.b16 %v2980
      %v5105 = vunpack.c.l.b16 %v2981
      %v5106 = vunpack.c.l.b16 %v2982
      %v5107 = vunpack.c.l.b16 %v2983
      %v5108 = vunpack.c.l.b16 %v2984
      %v5109 = vunpack.c.l.b16 %v2985
      %v5110 = vunpack.c.l.b16 %v2986
      %v5111 = vunpack.c.l.b16 %v2987
      %v5112 = vunpack.c.l.b16 %v2988
      %v5113 = vunpack.c.l.b16 %v2989
      %v5114 = vunpack.c.l.b16 %v2990
      %v5115 = vunpack.c.l.b16 %v2991
      %v5116 = vunpack.c.l.b16 %v2992
      %v5117 = vunpack.c.l.b16 %v2993
      %v5118 = vunpack.c.l.b16 %v2994
      %v5119 = vunpack.c.l.b16 %v2995
      %v5120 = vunpack.c.l.b16 %v2996
      %v5121 = vunpack.c.l.b16 %v2997
      %v5122 = vunpack.c.l.b16 %v2998
      %v5123 = vpack.c.b16 %v5060, %v5059
      %v5124 = vpack.c.b16 %v5062, %v5061
      %v5125 = vpack.c.b16 %v5064, %v5063
      %v5126 = vpack.c.b16 %v5066, %v5065
      %v5127 = vpack.c.b16 %v5068, %v5067
      %v5128 = vpack.c.b16 %v5070, %v5069
      %v5129 = vpack.c.b16 %v5072, %v5071
      %v5130 = vpack.c.b16 %v5074, %v5073
      %v5131 = vpack.c.b16 %v5076, %v5075
      %v5132 = vpack.c.b16 %v5078, %v5077
      %v5133 = vpack.c.b16 %v5080, %v5079
      %v5134 = vpack.c.b16 %v5082, %v5081
      %v5135 = vpack.c.b16 %v5084, %v5083
      %v5136 = vpack.c.b16 %v5086, %v5085
      %v5137 = vpack.c.b16 %v5088, %v5087
      %v5138 = vpack.c.b16 %v5090, %v5089
      %v5139 = vpack.c.b16 %v5092, %v5091
      %v5140 = vpack.c.b16 %v5094, %v5093
      %v5141 = vpack.c.b16 %v5096, %v5095
      %v5142 = vpack.c.b16 %v5098, %v5097
      %v5143 = vpack.c.b16 %v5100, %v5099
      %v5144 = vpack.c.b16 %v5102, %v5101
      %v5145 = vpack.c.b16 %v5104, %v5103
      %v5146 = vpack.c.b16 %v5106, %v5105
      %v5147 = vpack.c.b16 %v5108, %v5107
      %v5148 = vpack.c.b16 %v5110, %v5109
      %v5149 = vpack.c.b16 %v5112, %v5111
      %v5150 = vpack.c.b16 %v5114, %v5113
      %v5151 = vpack.c.b16 %v5116, %v5115
      %v5152 = vpack.c.b16 %v5118, %v5117
      %v5153 = vpack.c.b16 %v5120, %v5119
      %v5154 = vpack.c.b16 %v5122, %v5121
      %5187 = vmatprep.subr.bf16.mxu0 0
      %5188 = vmatpush1.bf16.msra.mxu0 %v5130
      %5189 = vmatprep.subr.bf16.mxu0 0
      %5190 = vmatpush1.bf16.msra.mxu0 %v5129
      %5191 = vmatprep.subr.bf16.mxu0 0
      %5192 = vmatpush1.bf16.msra.mxu0 %v5128
      %5193 = vmatprep.subr.bf16.mxu0 0
      %5194 = vmatpush1.bf16.msra.mxu0 %v5127
      %5195 = vmatprep.subr.bf16.mxu0 0
      %5196 = vmatpush1.bf16.msra.mxu0 %v5126
      %5197 = vmatprep.subr.bf16.mxu0 0
      %5198 = vmatpush1.bf16.msra.mxu0 %v5125
      %5199 = vmatprep.subr.bf16.mxu0 0
      %5200 = vmatpush1.bf16.msra.mxu0 %v5124
      %5201 = vmatprep.subr.bf16.mxu0 0
      %5202 = vmatpush1.bf16.msra.mxu0 %v5123
      %5203 = vmatprep.subr.bf16.mxu0 0
      %5204 = vmatpush2.bf16.msra.mxu0 %v5138
      %5205 = vmatprep.subr.bf16.mxu0 0
      %5206 = vmatpush2.bf16.msra.mxu0 %v5137
      %5207 = vmatprep.subr.bf16.mxu0 0
      %5208 = vmatpush2.bf16.msra.mxu0 %v5136
      %5209 = vmatprep.subr.bf16.mxu0 0
      %5210 = vmatpush2.bf16.msra.mxu0 %v5135
      %5211 = vmatprep.subr.bf16.mxu0 0
      %5212 = vmatpush2.bf16.msra.mxu0 %v5134
      %5213 = vmatprep.subr.bf16.mxu0 0
      %5214 = vmatpush2.bf16.msra.mxu0 %v5133
      %5215 = vmatprep.subr.bf16.mxu0 0
      %5216 = vmatpush2.bf16.msra.mxu0 %v5132
      %5217 = vmatprep.subr.bf16.mxu0 0
      %5218 = vmatpush2.bf16.msra.mxu0 %v5131
      %5219 = vmatprep.mubr.bf16.mxu0 %v2904
      %5220 = vmatmul.mubr.bf16.gmra.mxu0 %v2903
      %v5221 = vpop.f32.mrf.mxu0
      %v5222 = vadd.f32 %v4933, %v5221
      %v5223 = vpop.f32.mrf.mxu0
      %v5224 = vpop.f32.mrf.mxu0
      %v5225 = vadd.f32 %v4936, %v5224
      %v5226 = vpop.f32.mrf.mxu0
      %5227 = vmatprep.mubr.bf16.mxu0 %v2908
      %5228 = vmatmul.mubr.bf16.gmra.mxu0 %v2907
      %v5229 = vpop.f32.mrf.mxu0
      %v5230 = vadd.f32 %v4941, %v5229
      %v5231 = vpop.f32.mrf.mxu0
      %v5232 = vpop.f32.mrf.mxu0
      %v5233 = vadd.f32 %v4944, %v5232
      %v5234 = vpop.f32.mrf.mxu0
      %5235 = vmatprep.mubr.bf16.mxu0 %v2912
      %5236 = vmatmul.mubr.bf16.gmra.mxu0 %v2911
      %v5237 = vpop.f32.mrf.mxu0
      %v5238 = vadd.f32 %v4949, %v5237
      %v5239 = vpop.f32.mrf.mxu0
      %v5240 = vpop.f32.mrf.mxu0
      %v5241 = vadd.f32 %v4952, %v5240
      %v5242 = vpop.f32.mrf.mxu0
      %5243 = vmatprep.mubr.bf16.mxu0 %v2916
      %5244 = vmatmul.mubr.bf16.gmra.mxu0 %v2915
      %v5245 = vpop.f32.mrf.mxu0
      %v5246 = vadd.f32 %v4957, %v5245
      %v5247 = vpop.f32.mrf.mxu0
      %v5248 = vpop.f32.mrf.mxu0
      %v5249 = vadd.f32 %v4960, %v5248
      %v5250 = vpop.f32.mrf.mxu0
      %5251 = vmatprep.mubr.bf16.mxu0 %v2920
      %5252 = vmatmul.mubr.bf16.gmra.mxu0 %v2919
      %v5253 = vpop.f32.mrf.mxu0
      %v5254 = vadd.f32 %v4965, %v5253
      %v5255 = vpop.f32.mrf.mxu0
      %v5256 = vpop.f32.mrf.mxu0
      %v5257 = vadd.f32 %v4968, %v5256
      %v5258 = vpop.f32.mrf.mxu0
      %5259 = vmatprep.mubr.bf16.mxu0 %v2924
      %5260 = vmatmul.mubr.bf16.gmra.mxu0 %v2923
      %v5261 = vpop.f32.mrf.mxu0
      %v5262 = vadd.f32 %v4973, %v5261
      %v5263 = vpop.f32.mrf.mxu0
      %v5264 = vpop.f32.mrf.mxu0
      %v5265 = vadd.f32 %v4976, %v5264
      %v5266 = vpop.f32.mrf.mxu0
      %5267 = vmatprep.mubr.bf16.mxu0 %v2928
      %5268 = vmatmul.mubr.bf16.gmra.mxu0 %v2927
      %v5269 = vpop.f32.mrf.mxu0
      %v5270 = vadd.f32 %v4981, %v5269
      %v5271 = vpop.f32.mrf.mxu0
      %v5272 = vpop.f32.mrf.mxu0
      %v5273 = vadd.f32 %v4984, %v5272
      %v5274 = vpop.f32.mrf.mxu0
      %5275 = vmatprep.mubr.bf16.mxu0 %v2932
      %5276 = vmatmul.mubr.bf16.gmra.mxu0 %v2931
      %v5277 = vpop.f32.mrf.mxu0
      %v5278 = vadd.f32 %v4989, %v5277
      %v5279 = vpop.f32.mrf.mxu0
      %v5280 = vpop.f32.mrf.mxu0
      %v5281 = vadd.f32 %v4992, %v5280
      %v5282 = vpop.f32.mrf.mxu0
      %5283 = vdwg.mxu0
      %5284 = vmatprep.subr.bf16.mxu0 0
      %5285 = vmatpush1.bf16.msra.mxu0 %v5146
      %5286 = vmatprep.subr.bf16.mxu0 0
      %5287 = vmatpush1.bf16.msra.mxu0 %v5145
      %5288 = vmatprep.subr.bf16.mxu0 0
      %5289 = vmatpush1.bf16.msra.mxu0 %v5144
      %5290 = vmatprep.subr.bf16.mxu0 0
      %5291 = vmatpush1.bf16.msra.mxu0 %v5143
      %5292 = vmatprep.subr.bf16.mxu0 0
      %5293 = vmatpush1.bf16.msra.mxu0 %v5142
      %5294 = vmatprep.subr.bf16.mxu0 0
      %5295 = vmatpush1.bf16.msra.mxu0 %v5141
      %5296 = vmatprep.subr.bf16.mxu0 0
      %5297 = vmatpush1.bf16.msra.mxu0 %v5140
      %5298 = vmatprep.subr.bf16.mxu0 0
      %5299 = vmatpush1.bf16.msra.mxu0 %v5139
      %5300 = vmatprep.subr.bf16.mxu0 0
      %5301 = vmatpush2.bf16.msra.mxu0 %v5154
      %5302 = vmatprep.subr.bf16.mxu0 0
      %5303 = vmatpush2.bf16.msra.mxu0 %v5153
      %5304 = vmatprep.subr.bf16.mxu0 0
      %5305 = vmatpush2.bf16.msra.mxu0 %v5152
      %5306 = vmatprep.subr.bf16.mxu0 0
      %5307 = vmatpush2.bf16.msra.mxu0 %v5151
      %5308 = vmatprep.subr.bf16.mxu0 0
      %5309 = vmatpush2.bf16.msra.mxu0 %v5150
      %5310 = vmatprep.subr.bf16.mxu0 0
      %5311 = vmatpush2.bf16.msra.mxu0 %v5149
      %5312 = vmatprep.subr.bf16.mxu0 0
      %5313 = vmatpush2.bf16.msra.mxu0 %v5148
      %5314 = vmatprep.subr.bf16.mxu0 0
      %5315 = vmatpush2.bf16.msra.mxu0 %v5147
      %5316 = vmatprep.mubr.bf16.mxu0 %v2906
      %5317 = vmatmul.mubr.bf16.gmra.mxu0 %v2905
      %v5318 = vpop.f32.mrf.mxu0
      %v5319 = vadd.f32 %v5222, %v5318
      %v5320 = vpop.f32.mrf.mxu0
      %v5321 = vpop.f32.mrf.mxu0
      %v5322 = vadd.f32 %v5225, %v5321
      %v5323 = vpop.f32.mrf.mxu0
      %5324 = vmatprep.mubr.bf16.mxu0 %v2910
      %5325 = vmatmul.mubr.bf16.gmra.mxu0 %v2909
      %v5326 = vpop.f32.mrf.mxu0
      %v5327 = vadd.f32 %v5230, %v5326
      %v5328 = vpop.f32.mrf.mxu0
      %v5329 = vpop.f32.mrf.mxu0
      %v5330 = vadd.f32 %v5233, %v5329
      %v5331 = vpop.f32.mrf.mxu0
      %5332 = vmatprep.mubr.bf16.mxu0 %v2914
      %5333 = vmatmul.mubr.bf16.gmra.mxu0 %v2913
      %v5334 = vpop.f32.mrf.mxu0
      %v5335 = vadd.f32 %v5238, %v5334
      %v5336 = vpop.f32.mrf.mxu0
      %v5337 = vpop.f32.mrf.mxu0
      %v5338 = vadd.f32 %v5241, %v5337
      %v5339 = vpop.f32.mrf.mxu0
      %5340 = vmatprep.mubr.bf16.mxu0 %v2918
      %5341 = vmatmul.mubr.bf16.gmra.mxu0 %v2917
      %v5342 = vpop.f32.mrf.mxu0
      %v5343 = vadd.f32 %v5246, %v5342
      %v5344 = vpop.f32.mrf.mxu0
      %v5345 = vpop.f32.mrf.mxu0
      %v5346 = vadd.f32 %v5249, %v5345
      %v5347 = vpop.f32.mrf.mxu0
      %5348 = vmatprep.mubr.bf16.mxu0 %v2922
      %5349 = vmatmul.mubr.bf16.gmra.mxu0 %v2921
      %v5350 = vpop.f32.mrf.mxu0
      %v5351 = vadd.f32 %v5254, %v5350
      %v5352 = vpop.f32.mrf.mxu0
      %v5353 = vpop.f32.mrf.mxu0
      %v5354 = vadd.f32 %v5257, %v5353
      %v5355 = vpop.f32.mrf.mxu0
      %5356 = vmatprep.mubr.bf16.mxu0 %v2926
      %5357 = vmatmul.mubr.bf16.gmra.mxu0 %v2925
      %v5358 = vpop.f32.mrf.mxu0
      %v5359 = vadd.f32 %v5262, %v5358
      %v5360 = vpop.f32.mrf.mxu0
      %v5361 = vpop.f32.mrf.mxu0
      %v5362 = vadd.f32 %v5265, %v5361
      %v5363 = vpop.f32.mrf.mxu0
      %5364 = vmatprep.mubr.bf16.mxu0 %v2930
      %5365 = vmatmul.mubr.bf16.gmra.mxu0 %v2929
      %v5366 = vpop.f32.mrf.mxu0
      %v5367 = vadd.f32 %v5270, %v5366
      %v5368 = vpop.f32.mrf.mxu0
      %v5369 = vpop.f32.mrf.mxu0
      %v5370 = vadd.f32 %v5273, %v5369
      %v5371 = vpop.f32.mrf.mxu0
      %5372 = vmatprep.mubr.bf16.mxu0 %v2934
      %5373 = vmatmul.mubr.bf16.gmra.mxu0 %v2933
      %v5374 = vpop.f32.mrf.mxu0
      %v5375 = vadd.f32 %v5278, %v5374
      %v5376 = vpop.f32.mrf.mxu0
      %v5377 = vpop.f32.mrf.mxu0
      %v5378 = vadd.f32 %v5281, %v5377
      %v5379 = vpop.f32.mrf.mxu0
      %5380 = vdwg.mxu0
      %5413 = vrot.lane.b32.xlu0 %v1847, 64
      %v5414 = vpop.permute.xlu0 %5413
      %5415 = vrot.lane.b32.xlu0 %v1848, 64
      %v5416 = vpop.permute.xlu0 %5415
      %5417 = vrot.lane.b32.xlu0 %v1849, 64
      %v5418 = vpop.permute.xlu0 %5417
      %5419 = vrot.lane.b32.xlu0 %v1850, 64
      %v5420 = vpop.permute.xlu0 %5419
      %5421 = vrot.lane.b32.xlu0 %v1851, 64
      %v5422 = vpop.permute.xlu0 %5421
      %5423 = vrot.lane.b32.xlu0 %v1852, 64
      %v5424 = vpop.permute.xlu0 %5423
      %5425 = vrot.lane.b32.xlu0 %v1853, 64
      %v5426 = vpop.permute.xlu0 %5425
      %5427 = vrot.lane.b32.xlu0 %v1854, 64
      %v5428 = vpop.permute.xlu0 %5427
      %5429 = vrot.lane.b32.xlu0 %v1855, 64
      %v5430 = vpop.permute.xlu0 %5429
      %5431 = vrot.lane.b32.xlu0 %v1856, 64
      %v5432 = vpop.permute.xlu0 %5431
      %5433 = vrot.lane.b32.xlu0 %v1857, 64
      %v5434 = vpop.permute.xlu0 %5433
      %5435 = vrot.lane.b32.xlu0 %v1858, 64
      %v5436 = vpop.permute.xlu0 %5435
      %5437 = vrot.lane.b32.xlu0 %v1859, 64
      %v5438 = vpop.permute.xlu0 %5437
      %5439 = vrot.lane.b32.xlu0 %v1860, 64
      %v5440 = vpop.permute.xlu0 %5439
      %5441 = vrot.lane.b32.xlu0 %v1861, 64
      %v5442 = vpop.permute.xlu0 %5441
      %5443 = vrot.lane.b32.xlu0 %v1862, 64
      %v5444 = vpop.permute.xlu0 %5443
      %5445 = vrot.lane.b32.xlu0 %v1863, 64
      %v5446 = vpop.permute.xlu0 %5445
      %5447 = vrot.lane.b32.xlu0 %v1864, 64
      %v5448 = vpop.permute.xlu0 %5447
      %5449 = vrot.lane.b32.xlu0 %v1865, 64
      %v5450 = vpop.permute.xlu0 %5449
      %5451 = vrot.lane.b32.xlu0 %v1866, 64
      %v5452 = vpop.permute.xlu0 %5451
      %5453 = vrot.lane.b32.xlu0 %v1867, 64
      %v5454 = vpop.permute.xlu0 %5453
      %5455 = vrot.lane.b32.xlu0 %v1868, 64
      %v5456 = vpop.permute.xlu0 %5455
      %5457 = vrot.lane.b32.xlu0 %v1869, 64
      %v5458 = vpop.permute.xlu0 %5457
      %5459 = vrot.lane.b32.xlu0 %v1870, 64
      %v5460 = vpop.permute.xlu0 %5459
      %5461 = vrot.lane.b32.xlu0 %v1871, 64
      %v5462 = vpop.permute.xlu0 %5461
      %5463 = vrot.lane.b32.xlu0 %v1872, 64
      %v5464 = vpop.permute.xlu0 %5463
      %5465 = vrot.lane.b32.xlu0 %v1873, 64
      %v5466 = vpop.permute.xlu0 %5465
      %5467 = vrot.lane.b32.xlu0 %v1874, 64
      %v5468 = vpop.permute.xlu0 %5467
      %5469 = vrot.lane.b32.xlu0 %v1875, 64
      %v5470 = vpop.permute.xlu0 %5469
      %5471 = vrot.lane.b32.xlu0 %v1876, 64
      %v5472 = vpop.permute.xlu0 %5471
      %5473 = vrot.lane.b32.xlu0 %v1877, 64
      %v5474 = vpop.permute.xlu0 %5473
      %5475 = vrot.lane.b32.xlu0 %v1878, 64
      %v5476 = vpop.permute.xlu0 %5475
      %5509 = vmatprep.subr.bf16.mxu0 0
      %5510 = vmatpush1.bf16.msra.mxu0 %v5428
      %5511 = vmatprep.subr.bf16.mxu0 0
      %5512 = vmatpush1.bf16.msra.mxu0 %v5426
      %5513 = vmatprep.subr.bf16.mxu0 0
      %5514 = vmatpush1.bf16.msra.mxu0 %v5424
      %5515 = vmatprep.subr.bf16.mxu0 0
      %5516 = vmatpush1.bf16.msra.mxu0 %v5422
      %5517 = vmatprep.subr.bf16.mxu0 0
      %5518 = vmatpush1.bf16.msra.mxu0 %v5420
      %5519 = vmatprep.subr.bf16.mxu0 0
      %5520 = vmatpush1.bf16.msra.mxu0 %v5418
      %5521 = vmatprep.subr.bf16.mxu0 0
      %5522 = vmatpush1.bf16.msra.mxu0 %v5416
      %5523 = vmatprep.subr.bf16.mxu0 0
      %5524 = vmatpush1.bf16.msra.mxu0 %v5414
      %5525 = vmatprep.subr.bf16.mxu0 0
      %5526 = vmatpush2.bf16.msra.mxu0 %v5444
      %5527 = vmatprep.subr.bf16.mxu0 0
      %5528 = vmatpush2.bf16.msra.mxu0 %v5442
      %5529 = vmatprep.subr.bf16.mxu0 0
      %5530 = vmatpush2.bf16.msra.mxu0 %v5440
      %5531 = vmatprep.subr.bf16.mxu0 0
      %5532 = vmatpush2.bf16.msra.mxu0 %v5438
      %5533 = vmatprep.subr.bf16.mxu0 0
      %5534 = vmatpush2.bf16.msra.mxu0 %v5436
      %5535 = vmatprep.subr.bf16.mxu0 0
      %5536 = vmatpush2.bf16.msra.mxu0 %v5434
      %5537 = vmatprep.subr.bf16.mxu0 0
      %5538 = vmatpush2.bf16.msra.mxu0 %v5432
      %5539 = vmatprep.subr.bf16.mxu0 0
      %5540 = vmatpush2.bf16.msra.mxu0 %v5430
      %5541 = vmatprep.mubr.bf16.mxu0 %v4513
      %5542 = vmatmul.mubr.bf16.gmra.mxu0 %v4512
      %v5543 = vpop.f32.mrf.mxu0
      %v5544 = vadd.f32 0.0, %v5543
      %v5545 = vpop.f32.mrf.mxu0
      %v5546 = vpop.f32.mrf.mxu0
      %v5547 = vadd.f32 0.0, %v5546
      %v5548 = vpop.f32.mrf.mxu0
      %5549 = vmatprep.mubr.bf16.mxu0 %v4517
      %5550 = vmatmul.mubr.bf16.gmra.mxu0 %v4516
      %v5551 = vpop.f32.mrf.mxu0
      %v5552 = vadd.f32 0.0, %v5551
      %v5553 = vpop.f32.mrf.mxu0
      %v5554 = vpop.f32.mrf.mxu0
      %v5555 = vadd.f32 0.0, %v5554
      %v5556 = vpop.f32.mrf.mxu0
      %5557 = vmatprep.mubr.bf16.mxu0 %v4521
      %5558 = vmatmul.mubr.bf16.gmra.mxu0 %v4520
      %v5559 = vpop.f32.mrf.mxu0
      %v5560 = vadd.f32 0.0, %v5559
      %v5561 = vpop.f32.mrf.mxu0
      %v5562 = vpop.f32.mrf.mxu0
      %v5563 = vadd.f32 0.0, %v5562
      %v5564 = vpop.f32.mrf.mxu0
      %5565 = vmatprep.mubr.bf16.mxu0 %v4525
      %5566 = vmatmul.mubr.bf16.gmra.mxu0 %v4524
      %v5567 = vpop.f32.mrf.mxu0
      %v5568 = vadd.f32 0.0, %v5567
      %v5569 = vpop.f32.mrf.mxu0
      %v5570 = vpop.f32.mrf.mxu0
      %v5571 = vadd.f32 0.0, %v5570
      %v5572 = vpop.f32.mrf.mxu0
      %5573 = vmatprep.mubr.bf16.mxu0 %v4529
      %5574 = vmatmul.mubr.bf16.gmra.mxu0 %v4528
      %v5575 = vpop.f32.mrf.mxu0
      %v5576 = vadd.f32 0.0, %v5575
      %v5577 = vpop.f32.mrf.mxu0
      %v5578 = vpop.f32.mrf.mxu0
      %v5579 = vadd.f32 0.0, %v5578
      %v5580 = vpop.f32.mrf.mxu0
      %5581 = vmatprep.mubr.bf16.mxu0 %v4533
      %5582 = vmatmul.mubr.bf16.gmra.mxu0 %v4532
      %v5583 = vpop.f32.mrf.mxu0
      %v5584 = vadd.f32 0.0, %v5583
      %v5585 = vpop.f32.mrf.mxu0
      %v5586 = vpop.f32.mrf.mxu0
      %v5587 = vadd.f32 0.0, %v5586
      %v5588 = vpop.f32.mrf.mxu0
      %5589 = vmatprep.mubr.bf16.mxu0 %v4537
      %5590 = vmatmul.mubr.bf16.gmra.mxu0 %v4536
      %v5591 = vpop.f32.mrf.mxu0
      %v5592 = vadd.f32 0.0, %v5591
      %v5593 = vpop.f32.mrf.mxu0
      %v5594 = vpop.f32.mrf.mxu0
      %v5595 = vadd.f32 0.0, %v5594
      %v5596 = vpop.f32.mrf.mxu0
      %5597 = vmatprep.mubr.bf16.mxu0 %v4541
      %5598 = vmatmul.mubr.bf16.gmra.mxu0 %v4540
      %v5599 = vpop.f32.mrf.mxu0
      %v5600 = vadd.f32 0.0, %v5599
      %v5601 = vpop.f32.mrf.mxu0
      %v5602 = vpop.f32.mrf.mxu0
      %v5603 = vadd.f32 0.0, %v5602
      %v5604 = vpop.f32.mrf.mxu0
      %5605 = vdwg.mxu0
      %5606 = vmatprep.subr.bf16.mxu0 0
      %5607 = vmatpush1.bf16.msra.mxu0 %v5460
      %5608 = vmatprep.subr.bf16.mxu0 0
      %5609 = vmatpush1.bf16.msra.mxu0 %v5458
      %5610 = vmatprep.subr.bf16.mxu0 0
      %5611 = vmatpush1.bf16.msra.mxu0 %v5456
      %5612 = vmatprep.subr.bf16.mxu0 0
      %5613 = vmatpush1.bf16.msra.mxu0 %v5454
      %5614 = vmatprep.subr.bf16.mxu0 0
      %5615 = vmatpush1.bf16.msra.mxu0 %v5452
      %5616 = vmatprep.subr.bf16.mxu0 0
      %5617 = vmatpush1.bf16.msra.mxu0 %v5450
      %5618 = vmatprep.subr.bf16.mxu0 0
      %5619 = vmatpush1.bf16.msra.mxu0 %v5448
      %5620 = vmatprep.subr.bf16.mxu0 0
      %5621 = vmatpush1.bf16.msra.mxu0 %v5446
      %5622 = vmatprep.subr.bf16.mxu0 0
      %5623 = vmatpush2.bf16.msra.mxu0 %v5476
      %5624 = vmatprep.subr.bf16.mxu0 0
      %5625 = vmatpush2.bf16.msra.mxu0 %v5474
      %5626 = vmatprep.subr.bf16.mxu0 0
      %5627 = vmatpush2.bf16.msra.mxu0 %v5472
      %5628 = vmatprep.subr.bf16.mxu0 0
      %5629 = vmatpush2.bf16.msra.mxu0 %v5470
      %5630 = vmatprep.subr.bf16.mxu0 0
      %5631 = vmatpush2.bf16.msra.mxu0 %v5468
      %5632 = vmatprep.subr.bf16.mxu0 0
      %5633 = vmatpush2.bf16.msra.mxu0 %v5466
      %5634 = vmatprep.subr.bf16.mxu0 0
      %5635 = vmatpush2.bf16.msra.mxu0 %v5464
      %5636 = vmatprep.subr.bf16.mxu0 0
      %5637 = vmatpush2.bf16.msra.mxu0 %v5462
      %5638 = vmatprep.mubr.bf16.mxu0 %v4515
      %5639 = vmatmul.mubr.bf16.gmra.mxu0 %v4514
      %v5640 = vpop.f32.mrf.mxu0
      %v5641 = vadd.f32 %v5544, %v5640
      %v5642 = vpop.f32.mrf.mxu0
      %v5643 = vpop.f32.mrf.mxu0
      %v5644 = vadd.f32 %v5547, %v5643
      %v5645 = vpop.f32.mrf.mxu0
      %5646 = vmatprep.mubr.bf16.mxu0 %v4519
      %5647 = vmatmul.mubr.bf16.gmra.mxu0 %v4518
      %v5648 = vpop.f32.mrf.mxu0
      %v5649 = vadd.f32 %v5552, %v5648
      %v5650 = vpop.f32.mrf.mxu0
      %v5651 = vpop.f32.mrf.mxu0
      %v5652 = vadd.f32 %v5555, %v5651
      %v5653 = vpop.f32.mrf.mxu0
      %5654 = vmatprep.mubr.bf16.mxu0 %v4523
      %5655 = vmatmul.mubr.bf16.gmra.mxu0 %v4522
      %v5656 = vpop.f32.mrf.mxu0
      %v5657 = vadd.f32 %v5560, %v5656
      %v5658 = vpop.f32.mrf.mxu0
      %v5659 = vpop.f32.mrf.mxu0
      %v5660 = vadd.f32 %v5563, %v5659
      %v5661 = vpop.f32.mrf.mxu0
      %5662 = vmatprep.mubr.bf16.mxu0 %v4527
      %5663 = vmatmul.mubr.bf16.gmra.mxu0 %v4526
      %v5664 = vpop.f32.mrf.mxu0
      %v5665 = vadd.f32 %v5568, %v5664
      %v5666 = vpop.f32.mrf.mxu0
      %v5667 = vpop.f32.mrf.mxu0
      %v5668 = vadd.f32 %v5571, %v5667
      %v5669 = vpop.f32.mrf.mxu0
      %5670 = vmatprep.mubr.bf16.mxu0 %v4531
      %5671 = vmatmul.mubr.bf16.gmra.mxu0 %v4530
      %v5672 = vpop.f32.mrf.mxu0
      %v5673 = vadd.f32 %v5576, %v5672
      %v5674 = vpop.f32.mrf.mxu0
      %v5675 = vpop.f32.mrf.mxu0
      %v5676 = vadd.f32 %v5579, %v5675
      %v5677 = vpop.f32.mrf.mxu0
      %5678 = vmatprep.mubr.bf16.mxu0 %v4535
      %5679 = vmatmul.mubr.bf16.gmra.mxu0 %v4534
      %v5680 = vpop.f32.mrf.mxu0
      %v5681 = vadd.f32 %v5584, %v5680
      %v5682 = vpop.f32.mrf.mxu0
      %v5683 = vpop.f32.mrf.mxu0
      %v5684 = vadd.f32 %v5587, %v5683
      %v5685 = vpop.f32.mrf.mxu0
      %5686 = vmatprep.mubr.bf16.mxu0 %v4539
      %5687 = vmatmul.mubr.bf16.gmra.mxu0 %v4538
      %v5688 = vpop.f32.mrf.mxu0
      %v5689 = vadd.f32 %v5592, %v5688
      %v5690 = vpop.f32.mrf.mxu0
      %v5691 = vpop.f32.mrf.mxu0
      %v5692 = vadd.f32 %v5595, %v5691
      %v5693 = vpop.f32.mrf.mxu0
      %5694 = vmatprep.mubr.bf16.mxu0 %v4543
      %5695 = vmatmul.mubr.bf16.gmra.mxu0 %v4542
      %v5696 = vpop.f32.mrf.mxu0
      %v5697 = vadd.f32 %v5600, %v5696
      %v5698 = vpop.f32.mrf.mxu0
      %v5699 = vpop.f32.mrf.mxu0
      %v5700 = vadd.f32 %v5603, %v5699
      %v5701 = vpop.f32.mrf.mxu0
      %5702 = vdwg.mxu0
      %v5703 = vpack.c.bf16 %v5644, %v5641
      %v5704 = vpack.c.bf16 %v5652, %v5649
      %v5705 = vpack.c.bf16 %v5660, %v5657
      %v5706 = vpack.c.bf16 %v5668, %v5665
      %v5707 = vpack.c.bf16 %v5676, %v5673
      %v5708 = vpack.c.bf16 %v5684, %v5681
      %v5709 = vpack.c.bf16 %v5692, %v5689
      %v5710 = vpack.c.bf16 %v5700, %v5697
      %v5711 = vld [vmem:[%s7 + $0x20] sm:$0xf]
      %v5712 = vld [vmem:[%s7 + $0x24] sm:$0xf]
      %v5713 = vld [vmem:[%s7 + $0x28] sm:$0xf]
      %v5714 = vld [vmem:[%s7 + $0x2c] sm:$0xf]
      %v5715 = vld [vmem:[%s7 + $0x30] sm:$0xf]
      %v5716 = vld [vmem:[%s7 + $0x34] sm:$0xf]
      %v5717 = vld [vmem:[%s7 + $0x38] sm:$0xf]
      %v5718 = vld [vmem:[%s7 + $0x3c] sm:$0xf]
      %v5727 = vunpack.c.l.b16 %v5711
      %v5728 = vunpack.c.l.b16 %v5712
      %v5729 = vunpack.c.l.b16 %v5713
      %v5730 = vunpack.c.l.b16 %v5714
      %v5731 = vunpack.c.l.b16 %v5715
      %v5732 = vunpack.c.l.b16 %v5716
      %v5733 = vunpack.c.l.b16 %v5717
      %v5734 = vunpack.c.l.b16 %v5718
      %v5735 = vpack.c.b16 %v5728, %v5727
      %v5736 = vpack.c.b16 %v5730, %v5729
      %v5737 = vpack.c.b16 %v5732, %v5731
      %v5738 = vpack.c.b16 %v5734, %v5733
      %v5744 = vsel %vm1879, %v5703, 0
      %v5747 = vsel %vm1879, %v5704, 0
      %v5750 = vsel %vm1879, %v5705, 0
      %v5753 = vsel %vm1879, %v5706, 0
      %v5756 = vsel %vm1879, %v5707, 0
      %v5759 = vsel %vm1879, %v5708, 0
      %v5762 = vsel %vm1879, %v5709, 0
      %v5765 = vsel %vm1879, %v5710, 0
      %5767 = vmatprep.subr.bf16.mxu0 0
      %5768 = vmatpush1.bf16.msra.mxu0 0
      %5769 = vmatprep.subr.bf16.mxu0 0
      %5770 = vmatpush1.bf16.msra.mxu0 0
      %5771 = vmatprep.subr.bf16.mxu0 0
      %5772 = vmatpush1.bf16.msra.mxu0 0
      %5773 = vmatprep.subr.bf16.mxu0 0
      %5774 = vmatpush1.bf16.msra.mxu0 0
      %5775 = vmatprep.subr.bf16.mxu0 0
      %5776 = vmatpush1.bf16.msra.mxu0 %v5738
      %5777 = vmatprep.subr.bf16.mxu0 0
      %5778 = vmatpush1.bf16.msra.mxu0 %v5737
      %5779 = vmatprep.subr.bf16.mxu0 0
      %5780 = vmatpush1.bf16.msra.mxu0 %v5736
      %5781 = vmatprep.subr.bf16.mxu0 0
      %5782 = vmatpush1.bf16.msra.mxu0 %v5735
      %5783 = vmatprep.subr.bf16.mxu0 0
      %5784 = vmatpush2.bf16.msra.mxu0 0
      %5785 = vmatprep.subr.bf16.mxu0 0
      %5786 = vmatpush2.bf16.msra.mxu0 0
      %5787 = vmatprep.subr.bf16.mxu0 0
      %5788 = vmatpush2.bf16.msra.mxu0 0
      %5789 = vmatprep.subr.bf16.mxu0 0
      %5790 = vmatpush2.bf16.msra.mxu0 0
      %5791 = vmatprep.subr.bf16.mxu0 0
      %5792 = vmatpush2.bf16.msra.mxu0 0
      %5793 = vmatprep.subr.bf16.mxu0 0
      %5794 = vmatpush2.bf16.msra.mxu0 0
      %5795 = vmatprep.subr.bf16.mxu0 0
      %5796 = vmatpush2.bf16.msra.mxu0 0
      %5797 = vmatprep.subr.bf16.mxu0 0
      %5798 = vmatpush2.bf16.msra.mxu0 0
      %5799 = vmatprep.mubr.bf16.mxu0 0
      %5800 = vmatmul.mubr.bf16.gmra.mxu0 %v5744
      %v5801 = vpop.f32.mrf.mxu0
      %v5802 = vadd.f32 0.0, %v5801
      %v5803 = vpop.f32.mrf.mxu0
      %v5804 = vpop.f32.mrf.mxu0
      %v5805 = vadd.f32 0.0, %v5804
      %v5806 = vpop.f32.mrf.mxu0
      %5807 = vmatprep.mubr.bf16.mxu0 0
      %5808 = vmatmul.mubr.bf16.gmra.mxu0 %v5747
      %v5809 = vpop.f32.mrf.mxu0
      %v5810 = vadd.f32 0.0, %v5809
      %v5811 = vpop.f32.mrf.mxu0
      %v5812 = vpop.f32.mrf.mxu0
      %v5813 = vadd.f32 0.0, %v5812
      %v5814 = vpop.f32.mrf.mxu0
      %5815 = vmatprep.mubr.bf16.mxu0 0
      %5816 = vmatmul.mubr.bf16.gmra.mxu0 %v5750
      %v5817 = vpop.f32.mrf.mxu0
      %v5818 = vadd.f32 0.0, %v5817
      %v5819 = vpop.f32.mrf.mxu0
      %v5820 = vpop.f32.mrf.mxu0
      %v5821 = vadd.f32 0.0, %v5820
      %v5822 = vpop.f32.mrf.mxu0
      %5823 = vmatprep.mubr.bf16.mxu0 0
      %5824 = vmatmul.mubr.bf16.gmra.mxu0 %v5753
      %v5825 = vpop.f32.mrf.mxu0
      %v5826 = vadd.f32 0.0, %v5825
      %v5827 = vpop.f32.mrf.mxu0
      %v5828 = vpop.f32.mrf.mxu0
      %v5829 = vadd.f32 0.0, %v5828
      %v5830 = vpop.f32.mrf.mxu0
      %5831 = vmatprep.mubr.bf16.mxu0 0
      %5832 = vmatmul.mubr.bf16.gmra.mxu0 %v5756
      %v5833 = vpop.f32.mrf.mxu0
      %v5834 = vadd.f32 0.0, %v5833
      %v5835 = vpop.f32.mrf.mxu0
      %v5836 = vpop.f32.mrf.mxu0
      %v5837 = vadd.f32 0.0, %v5836
      %v5838 = vpop.f32.mrf.mxu0
      %5839 = vmatprep.mubr.bf16.mxu0 0
      %5840 = vmatmul.mubr.bf16.gmra.mxu0 %v5759
      %v5841 = vpop.f32.mrf.mxu0
      %v5842 = vadd.f32 0.0, %v5841
      %v5843 = vpop.f32.mrf.mxu0
      %v5844 = vpop.f32.mrf.mxu0
      %v5845 = vadd.f32 0.0, %v5844
      %v5846 = vpop.f32.mrf.mxu0
      %5847 = vmatprep.mubr.bf16.mxu0 0
      %5848 = vmatmul.mubr.bf16.gmra.mxu0 %v5762
      %v5849 = vpop.f32.mrf.mxu0
      %v5850 = vadd.f32 0.0, %v5849
      %v5851 = vpop.f32.mrf.mxu0
      %v5852 = vpop.f32.mrf.mxu0
      %v5853 = vadd.f32 0.0, %v5852
      %v5854 = vpop.f32.mrf.mxu0
      %5855 = vmatprep.mubr.bf16.mxu0 0
      %5856 = vmatmul.mubr.bf16.gmra.mxu0 %v5765
      %v5857 = vpop.f32.mrf.mxu0
      %v5858 = vadd.f32 0.0, %v5857
      %v5859 = vpop.f32.mrf.mxu0
      %v5860 = vpop.f32.mrf.mxu0
      %v5861 = vadd.f32 0.0, %v5860
      %v5862 = vpop.f32.mrf.mxu0
      %5863 = vdwg.mxu0
      %v5864 = vadd.f32 %v3354, %v5802
      %v5865 = vadd.f32 %v3355, %v5805
      %v5866 = vadd.f32 %v3356, %v5810
      %v5867 = vadd.f32 %v3357, %v5813
      %v5868 = vadd.f32 %v3358, %v5818
      %v5869 = vadd.f32 %v3359, %v5821
      %v5870 = vadd.f32 %v3360, %v5826
      %v5871 = vadd.f32 %v3361, %v5829
      %v5872 = vadd.f32 %v3362, %v5834
      %v5873 = vadd.f32 %v3363, %v5837
      %v5874 = vadd.f32 %v3364, %v5842
      %v5875 = vadd.f32 %v3365, %v5845
      %v5876 = vadd.f32 %v3366, %v5850
      %v5877 = vadd.f32 %v3367, %v5853
      %v5878 = vadd.f32 %v3368, %v5858
      %v5879 = vadd.f32 %v3369, %v5861
      %5880 = vst [vmem:[%s628] sm:$0xff] %v5319
      %5881 = vst [vmem:[%s628 + $0x8] sm:$0xff] %v5322
      %5882 = vst [vmem:[%s628 + $0x10] sm:$0xff] %v5327
      %5883 = vst [vmem:[%s628 + $0x18] sm:$0xff] %v5330
      %5884 = vst [vmem:[%s628 + $0x20] sm:$0xff] %v5335
      %5885 = vst [vmem:[%s628 + $0x28] sm:$0xff] %v5338
      %5886 = vst [vmem:[%s628 + $0x30] sm:$0xff] %v5343
      %5887 = vst [vmem:[%s628 + $0x38] sm:$0xff] %v5346
      %5888 = vst [vmem:[%s628 + $0x40] sm:$0xff] %v5351
      %5889 = vst [vmem:[%s628 + $0x48] sm:$0xff] %v5354
      %5890 = vst [vmem:[%s628 + $0x50] sm:$0xff] %v5359
      %5891 = vst [vmem:[%s628 + $0x58] sm:$0xff] %v5362
      %5892 = vst [vmem:[%s628 + $0x60] sm:$0xff] %v5367
      %5893 = vst [vmem:[%s628 + $0x68] sm:$0xff] %v5370
      %5894 = vst [vmem:[%s628 + $0x70] sm:$0xff] %v5375
      %5895 = vst [vmem:[%s628 + $0x78] sm:$0xff] %v5378
      %5896 = vadd.xlane.f32.xlu0 %v5864
      %v5897 = vpop.xlane.xlu0 %5896
      %5898 = vadd.xlane.f32.xlu0 %v5865
      %v5899 = vpop.xlane.xlu0 %5898
      %5900 = vadd.xlane.f32.xlu0 %v5866
      %v5901 = vpop.xlane.xlu0 %5900
      %5902 = vadd.xlane.f32.xlu0 %v5867
      %v5903 = vpop.xlane.xlu0 %5902
      %5904 = vadd.xlane.f32.xlu0 %v5868
      %v5905 = vpop.xlane.xlu0 %5904
      %5906 = vadd.xlane.f32.xlu0 %v5869
      %v5907 = vpop.xlane.xlu0 %5906
      %5908 = vadd.xlane.f32.xlu0 %v5870
      %v5909 = vpop.xlane.xlu0 %5908
      %5910 = vadd.xlane.f32.xlu0 %v5871
      %v5911 = vpop.xlane.xlu0 %5910
      %5912 = vadd.xlane.f32.xlu0 %v5872
      %v5913 = vpop.xlane.xlu0 %5912
      %5914 = vadd.xlane.f32.xlu0 %v5873
      %v5915 = vpop.xlane.xlu0 %5914
      %5916 = vadd.xlane.f32.xlu0 %v5874
      %v5917 = vpop.xlane.xlu0 %5916
      %5918 = vadd.xlane.f32.xlu0 %v5875
      %v5919 = vpop.xlane.xlu0 %5918
      %5920 = vadd.xlane.f32.xlu0 %v5876
      %v5921 = vpop.xlane.xlu0 %5920
      %5922 = vadd.xlane.f32.xlu0 %v5877
      %v5923 = vpop.xlane.xlu0 %5922
      %5924 = vadd.xlane.f32.xlu0 %v5878
      %v5925 = vpop.xlane.xlu0 %5924
      %5926 = vadd.xlane.f32.xlu0 %v5879
      %v5927 = vpop.xlane.xlu0 %5926
      %v5928 = vrcp.pop 128.0
      %v5929 = vmul.f32 %v5897, %v5928
      %v5930 = vmul.f32 %v5899, %v5928
      %v5931 = vmul.f32 %v5901, %v5928
      %v5932 = vmul.f32 %v5903, %v5928
      %v5933 = vmul.f32 %v5905, %v5928
      %v5934 = vmul.f32 %v5907, %v5928
      %v5935 = vmul.f32 %v5909, %v5928
      %v5936 = vmul.f32 %v5911, %v5928
      %v5937 = vmul.f32 %v5913, %v5928
      %v5938 = vmul.f32 %v5915, %v5928
      %v5939 = vmul.f32 %v5917, %v5928
      %v5940 = vmul.f32 %v5919, %v5928
      %v5941 = vmul.f32 %v5921, %v5928
      %v5942 = vmul.f32 %v5923, %v5928
      %v5943 = vmul.f32 %v5925, %v5928
      %v5944 = vmul.f32 %v5927, %v5928
      %v5945 = vsub.f32 %v5864, %v5929
      %v5946 = vsub.f32 %v5865, %v5930
      %v5947 = vsub.f32 %v5866, %v5931
      %v5948 = vsub.f32 %v5867, %v5932
      %v5949 = vsub.f32 %v5868, %v5933
      %v5950 = vsub.f32 %v5869, %v5934
      %v5951 = vsub.f32 %v5870, %v5935
      %v5952 = vsub.f32 %v5871, %v5936
      %v5953 = vsub.f32 %v5872, %v5937
      %v5954 = vsub.f32 %v5873, %v5938
      %v5955 = vsub.f32 %v5874, %v5939
      %v5956 = vsub.f32 %v5875, %v5940
      %v5957 = vsub.f32 %v5876, %v5941
      %v5958 = vsub.f32 %v5877, %v5942
      %v5959 = vsub.f32 %v5878, %v5943
      %v5960 = vsub.f32 %v5879, %v5944
      %v5961 = vmul.f32 %v5945, %v5945
      %v5962 = vmul.f32 %v5946, %v5946
      %v5963 = vmul.f32 %v5947, %v5947
      %v5964 = vmul.f32 %v5948, %v5948
      %v5965 = vmul.f32 %v5949, %v5949
      %v5966 = vmul.f32 %v5950, %v5950
      %v5967 = vmul.f32 %v5951, %v5951
      %v5968 = vmul.f32 %v5952, %v5952
      %v5969 = vmul.f32 %v5953, %v5953
      %v5970 = vmul.f32 %v5954, %v5954
      %v5971 = vmul.f32 %v5955, %v5955
      %v5972 = vmul.f32 %v5956, %v5956
      %v5973 = vmul.f32 %v5957, %v5957
      %v5974 = vmul.f32 %v5958, %v5958
      %v5975 = vmul.f32 %v5959, %v5959
      %v5976 = vmul.f32 %v5960, %v5960
      %5977 = vadd.xlane.f32.xlu0 %v5961
      %v5978 = vpop.xlane.xlu0 %5977
      %5979 = vadd.xlane.f32.xlu0 %v5962
      %v5980 = vpop.xlane.xlu0 %5979
      %5981 = vadd.xlane.f32.xlu0 %v5963
      %v5982 = vpop.xlane.xlu0 %5981
      %5983 = vadd.xlane.f32.xlu0 %v5964
      %v5984 = vpop.xlane.xlu0 %5983
      %5985 = vadd.xlane.f32.xlu0 %v5965
      %v5986 = vpop.xlane.xlu0 %5985
      %5987 = vadd.xlane.f32.xlu0 %v5966
      %v5988 = vpop.xlane.xlu0 %5987
      %5989 = vadd.xlane.f32.xlu0 %v5967
      %v5990 = vpop.xlane.xlu0 %5989
      %5991 = vadd.xlane.f32.xlu0 %v5968
      %v5992 = vpop.xlane.xlu0 %5991
      %5993 = vadd.xlane.f32.xlu0 %v5969
      %v5994 = vpop.xlane.xlu0 %5993
      %5995 = vadd.xlane.f32.xlu0 %v5970
      %v5996 = vpop.xlane.xlu0 %5995
      %5997 = vadd.xlane.f32.xlu0 %v5971
      %v5998 = vpop.xlane.xlu0 %5997
      %5999 = vadd.xlane.f32.xlu0 %v5972
      %v6000 = vpop.xlane.xlu0 %5999
      %6001 = vadd.xlane.f32.xlu0 %v5973
      %v6002 = vpop.xlane.xlu0 %6001
      %6003 = vadd.xlane.f32.xlu0 %v5974
      %v6004 = vpop.xlane.xlu0 %6003
      %6005 = vadd.xlane.f32.xlu0 %v5975
      %v6006 = vpop.xlane.xlu0 %6005
      %6007 = vadd.xlane.f32.xlu0 %v5976
      %v6008 = vpop.xlane.xlu0 %6007
      %v6009 = vmul.f32 %v5978, %v5928
      %v6010 = vmul.f32 %v5980, %v5928
      %v6011 = vmul.f32 %v5982, %v5928
      %v6012 = vmul.f32 %v5984, %v5928
      %v6013 = vmul.f32 %v5986, %v5928
      %v6014 = vmul.f32 %v5988, %v5928
      %v6015 = vmul.f32 %v5990, %v5928
      %v6016 = vmul.f32 %v5992, %v5928
      %v6017 = vmul.f32 %v5994, %v5928
      %v6018 = vmul.f32 %v5996, %v5928
      %v6019 = vmul.f32 %v5998, %v5928
      %v6020 = vmul.f32 %v6000, %v5928
      %v6021 = vmul.f32 %v6002, %v5928
      %v6022 = vmul.f32 %v6004, %v5928
      %v6023 = vmul.f32 %v6006, %v5928
      %v6024 = vmul.f32 %v6008, %v5928
      %v6025 = vadd.f32 %v6009, 1e-05
      %v6026 = vadd.f32 %v6010, 1e-05
      %v6027 = vadd.f32 %v6011, 1e-05
      %v6028 = vadd.f32 %v6012, 1e-05
      %v6029 = vadd.f32 %v6013, 1e-05
      %v6030 = vadd.f32 %v6014, 1e-05
      %v6031 = vadd.f32 %v6015, 1e-05
      %v6032 = vadd.f32 %v6016, 1e-05
      %v6033 = vadd.f32 %v6017, 1e-05
      %v6034 = vadd.f32 %v6018, 1e-05
      %v6035 = vadd.f32 %v6019, 1e-05
      %v6036 = vadd.f32 %v6020, 1e-05
      %v6037 = vadd.f32 %v6021, 1e-05
      %v6038 = vadd.f32 %v6022, 1e-05
      %v6039 = vadd.f32 %v6023, 1e-05
      %v6040 = vadd.f32 %v6024, 1e-05
      %v6041 = vrsqrt.pop %v6025
      %v6042 = vrsqrt.pop %v6026
      %v6043 = vrsqrt.pop %v6027
      %v6044 = vrsqrt.pop %v6028
      %v6045 = vrsqrt.pop %v6029
      %v6046 = vrsqrt.pop %v6030
      %v6047 = vrsqrt.pop %v6031
      %v6048 = vrsqrt.pop %v6032
      %v6049 = vrsqrt.pop %v6033
      %v6050 = vrsqrt.pop %v6034
      %v6051 = vrsqrt.pop %v6035
      %v6052 = vrsqrt.pop %v6036
      %v6053 = vrsqrt.pop %v6037
      %v6054 = vrsqrt.pop %v6038
      %v6055 = vrsqrt.pop %v6039
      %v6056 = vrsqrt.pop %v6040
      %v6057 = vmul.f32 %v5945, %v6041
      %v6058 = vmul.f32 %v5946, %v6042
      %v6059 = vmul.f32 %v5947, %v6043
      %v6060 = vmul.f32 %v5948, %v6044
      %v6061 = vmul.f32 %v5949, %v6045
      %v6062 = vmul.f32 %v5950, %v6046
      %v6063 = vmul.f32 %v5951, %v6047
      %v6064 = vmul.f32 %v5952, %v6048
      %v6065 = vmul.f32 %v5953, %v6049
      %v6066 = vmul.f32 %v5954, %v6050
      %v6067 = vmul.f32 %v5955, %v6051
      %v6068 = vmul.f32 %v5956, %v6052
      %v6069 = vmul.f32 %v5957, %v6053
      %v6070 = vmul.f32 %v5958, %v6054
      %v6071 = vmul.f32 %v5959, %v6055
      %v6072 = vmul.f32 %v5960, %v6056
      %v6073 = vld [vmem:[%s9] sm:$0x1]
      %v6075 = vlaneseq
      %v6076 = vshrl.u32 %v6075, 7
      %v6077 = vsub.s32 0, %v6076
      %v6078 = vrot.slane %v6073, %v6077
      %v6080 = vmul.f32 %v6057, %v6078
      %v6081 = vmul.f32 %v6058, %v6078
      %v6082 = vmul.f32 %v6059, %v6078
      %v6083 = vmul.f32 %v6060, %v6078
      %v6084 = vmul.f32 %v6061, %v6078
      %v6085 = vmul.f32 %v6062, %v6078
      %v6086 = vmul.f32 %v6063, %v6078
      %v6087 = vmul.f32 %v6064, %v6078
      %v6088 = vmul.f32 %v6065, %v6078
      %v6089 = vmul.f32 %v6066, %v6078
      %v6090 = vmul.f32 %v6067, %v6078
      %v6091 = vmul.f32 %v6068, %v6078
      %v6092 = vmul.f32 %v6069, %v6078
      %v6093 = vmul.f32 %v6070, %v6078
      %v6094 = vmul.f32 %v6071, %v6078
      %v6095 = vmul.f32 %v6072, %v6078
      %v6096 = vld [vmem:[%s10] sm:$0x1]
      %v6098 = vlaneseq
      %v6099 = vshrl.u32 %v6098, 7
      %v6100 = vsub.s32 0, %v6099
      %v6101 = vrot.slane %v6096, %v6100
      %v6103 = vadd.f32 %v6080, %v6101
      %v6104 = vadd.f32 %v6081, %v6101
      %v6105 = vadd.f32 %v6082, %v6101
      %v6106 = vadd.f32 %v6083, %v6101
      %v6107 = vadd.f32 %v6084, %v6101
      %v6108 = vadd.f32 %v6085, %v6101
      %v6109 = vadd.f32 %v6086, %v6101
      %v6110 = vadd.f32 %v6087, %v6101
      %v6111 = vadd.f32 %v6088, %v6101
      %v6112 = vadd.f32 %v6089, %v6101
      %v6113 = vadd.f32 %v6090, %v6101
      %v6114 = vadd.f32 %v6091, %v6101
      %v6115 = vadd.f32 %v6092, %v6101
      %v6116 = vadd.f32 %v6093, %v6101
      %v6117 = vadd.f32 %v6094, %v6101
      %v6118 = vadd.f32 %v6095, %v6101
      %v6119 = vpack.c.bf16 %v6104, %v6103
      %v6120 = vpack.c.bf16 %v6106, %v6105
      %v6121 = vpack.c.bf16 %v6108, %v6107
      %v6122 = vpack.c.bf16 %v6110, %v6109
      %v6123 = vpack.c.bf16 %v6112, %v6111
      %v6124 = vpack.c.bf16 %v6114, %v6113
      %v6125 = vpack.c.bf16 %v6116, %v6115
      %v6126 = vpack.c.bf16 %v6118, %v6117
      %v6127 = vld [vmem:[%s11] sm:$0xf]
      %v6128 = vld [vmem:[%s11 + $0x4] sm:$0xf]
      %v6129 = vld [vmem:[%s11 + $0x8] sm:$0xf]
      %v6130 = vld [vmem:[%s11 + $0xc] sm:$0xf]
      %v6131 = vld [vmem:[%s11 + $0x10] sm:$0xf]
      %v6132 = vld [vmem:[%s11 + $0x14] sm:$0xf]
      %v6133 = vld [vmem:[%s11 + $0x18] sm:$0xf]
      %v6134 = vld [vmem:[%s11 + $0x1c] sm:$0xf]
      %v6135 = vld [vmem:[%s11 + $0x20] sm:$0xf]
      %v6136 = vld [vmem:[%s11 + $0x24] sm:$0xf]
      %v6137 = vld [vmem:[%s11 + $0x28] sm:$0xf]
      %v6138 = vld [vmem:[%s11 + $0x2c] sm:$0xf]
      %v6139 = vld [vmem:[%s11 + $0x30] sm:$0xf]
      %v6140 = vld [vmem:[%s11 + $0x34] sm:$0xf]
      %v6141 = vld [vmem:[%s11 + $0x38] sm:$0xf]
      %v6142 = vld [vmem:[%s11 + $0x3c] sm:$0xf]
      %v6143 = vld [vmem:[%s616] sm:$0xf]
      %v6144 = vld [vmem:[%s616 + $0x4] sm:$0xf]
      %v6145 = vld [vmem:[%s616 + $0x8] sm:$0xf]
      %v6146 = vld [vmem:[%s616 + $0xc] sm:$0xf]
      %v6147 = vld [vmem:[%s616 + $0x10] sm:$0xf]
      %v6148 = vld [vmem:[%s616 + $0x14] sm:$0xf]
      %v6149 = vld [vmem:[%s616 + $0x18] sm:$0xf]
      %v6150 = vld [vmem:[%s616 + $0x1c] sm:$0xf]
      %v6151 = vld [vmem:[%s616 + $0x20] sm:$0xf]
      %v6152 = vld [vmem:[%s616 + $0x24] sm:$0xf]
      %v6153 = vld [vmem:[%s616 + $0x28] sm:$0xf]
      %v6154 = vld [vmem:[%s616 + $0x2c] sm:$0xf]
      %v6155 = vld [vmem:[%s616 + $0x30] sm:$0xf]
      %v6156 = vld [vmem:[%s616 + $0x34] sm:$0xf]
      %v6157 = vld [vmem:[%s616 + $0x38] sm:$0xf]
      %v6158 = vld [vmem:[%s616 + $0x3c] sm:$0xf]
      %v6159 = vld [vmem:[%s12] sm:$0xf]
      %v6160 = vld [vmem:[%s12 + $0x4] sm:$0xf]
      %v6161 = vld [vmem:[%s12 + $0x8] sm:$0xf]
      %v6162 = vld [vmem:[%s12 + $0xc] sm:$0xf]
      %v6179 = vunpack.c.l.b16 %v6143
      %v6180 = vunpack.c.l.b16 %v6144
      %v6181 = vunpack.c.l.b16 %v6145
      %v6182 = vunpack.c.l.b16 %v6146
      %v6183 = vunpack.c.l.b16 %v6147
      %v6184 = vunpack.c.l.b16 %v6148
      %v6185 = vunpack.c.l.b16 %v6149
      %v6186 = vunpack.c.l.b16 %v6150
      %v6187 = vunpack.c.l.b16 %v6151
      %v6188 = vunpack.c.l.b16 %v6152
      %v6189 = vunpack.c.l.b16 %v6153
      %v6190 = vunpack.c.l.b16 %v6154
      %v6191 = vunpack.c.l.b16 %v6155
      %v6192 = vunpack.c.l.b16 %v6156
      %v6193 = vunpack.c.l.b16 %v6157
      %v6194 = vunpack.c.l.b16 %v6158
      %v6195 = vpack.c.b16 %v6180, %v6179
      %v6196 = vpack.c.b16 %v6182, %v6181
      %v6197 = vpack.c.b16 %v6184, %v6183
      %v6198 = vpack.c.b16 %v6186, %v6185
      %v6199 = vpack.c.b16 %v6188, %v6187
      %v6200 = vpack.c.b16 %v6190, %v6189
      %v6201 = vpack.c.b16 %v6192, %v6191
      %v6202 = vpack.c.b16 %v6194, %v6193
      %v6207 = vunpack.c.l.b16 %v6159
      %v6208 = vunpack.c.l.b16 %v6160
      %v6209 = vunpack.c.l.b16 %v6161
      %v6210 = vunpack.c.l.b16 %v6162
      %v6211 = vpack.c.b16 %v6208, %v6207
      %v6212 = vpack.c.b16 %v6210, %v6209
      %vm6215 = vcmask 261120
      %v6217 = vsel %vm6215, %v6195, 0
      %v6220 = vsel %vm6215, %v6196, 0
      %v6223 = vsel %vm6215, %v6197, 0
      %v6226 = vsel %vm6215, %v6198, 0
      %v6229 = vsel %vm6215, %v6199, 0
      %v6232 = vsel %vm6215, %v6200, 0
      %v6235 = vsel %vm6215, %v6201, 0
      %v6238 = vsel %vm6215, %v6202, 0
      %6240 = vmatprep.subr.bf16.mxu0 0
      %6241 = vmatpush1.bf16.msra.mxu0 0
      %6242 = vmatprep.subr.bf16.mxu0 0
      %6243 = vmatpush1.bf16.msra.mxu0 0
      %6244 = vmatprep.subr.bf16.mxu0 0
      %6245 = vmatpush1.bf16.msra.mxu0 0
      %6246 = vmatprep.subr.bf16.mxu0 0
      %6247 = vmatpush1.bf16.msra.mxu0 0
      %6248 = vmatprep.subr.bf16.mxu0 0
      %6249 = vmatpush1.bf16.msra.mxu0 0
      %6250 = vmatprep.subr.bf16.mxu0 0
      %6251 = vmatpush1.bf16.msra.mxu0 0
      %6252 = vmatprep.subr.bf16.mxu0 0
      %6253 = vmatpush1.bf16.msra.mxu0 %v6212
      %6254 = vmatprep.subr.bf16.mxu0 0
      %6255 = vmatpush1.bf16.msra.mxu0 %v6211
      %6256 = vmatprep.subr.bf16.mxu0 0
      %6257 = vmatpush2.bf16.msra.mxu0 0
      %6258 = vmatprep.subr.bf16.mxu0 0
      %6259 = vmatpush2.bf16.msra.mxu0 0
      %6260 = vmatprep.subr.bf16.mxu0 0
      %6261 = vmatpush2.bf16.msra.mxu0 0
      %6262 = vmatprep.subr.bf16.mxu0 0
      %6263 = vmatpush2.bf16.msra.mxu0 0
      %6264 = vmatprep.subr.bf16.mxu0 0
      %6265 = vmatpush2.bf16.msra.mxu0 0
      %6266 = vmatprep.subr.bf16.mxu0 0
      %6267 = vmatpush2.bf16.msra.mxu0 0
      %6268 = vmatprep.subr.bf16.mxu0 0
      %6269 = vmatpush2.bf16.msra.mxu0 0
      %6270 = vmatprep.subr.bf16.mxu0 0
      %6271 = vmatpush2.bf16.msra.mxu0 0
      %6272 = vmatprep.mubr.bf16.mxu0 0
      %6273 = vmatmul.mubr.bf16.gmra.mxu0 %v6217
      %v6274 = vpop.f32.mrf.mxu0
      %v6275 = vadd.f32 0.0, %v6274
      %v6276 = vpop.f32.mrf.mxu0
      %v6277 = vpop.f32.mrf.mxu0
      %v6278 = vadd.f32 0.0, %v6277
      %v6279 = vpop.f32.mrf.mxu0
      %6280 = vmatprep.mubr.bf16.mxu0 0
      %6281 = vmatmul.mubr.bf16.gmra.mxu0 %v6220
      %v6282 = vpop.f32.mrf.mxu0
      %v6283 = vadd.f32 0.0, %v6282
      %v6284 = vpop.f32.mrf.mxu0
      %v6285 = vpop.f32.mrf.mxu0
      %v6286 = vadd.f32 0.0, %v6285
      %v6287 = vpop.f32.mrf.mxu0
      %6288 = vmatprep.mubr.bf16.mxu0 0
      %6289 = vmatmul.mubr.bf16.gmra.mxu0 %v6223
      %v6290 = vpop.f32.mrf.mxu0
      %v6291 = vadd.f32 0.0, %v6290
      %v6292 = vpop.f32.mrf.mxu0
      %v6293 = vpop.f32.mrf.mxu0
      %v6294 = vadd.f32 0.0, %v6293
      %v6295 = vpop.f32.mrf.mxu0
      %6296 = vmatprep.mubr.bf16.mxu0 0
      %6297 = vmatmul.mubr.bf16.gmra.mxu0 %v6226
      %v6298 = vpop.f32.mrf.mxu0
      %v6299 = vadd.f32 0.0, %v6298
      %v6300 = vpop.f32.mrf.mxu0
      %v6301 = vpop.f32.mrf.mxu0
      %v6302 = vadd.f32 0.0, %v6301
      %v6303 = vpop.f32.mrf.mxu0
      %6304 = vmatprep.mubr.bf16.mxu0 0
      %6305 = vmatmul.mubr.bf16.gmra.mxu0 %v6229
      %v6306 = vpop.f32.mrf.mxu0
      %v6307 = vadd.f32 0.0, %v6306
      %v6308 = vpop.f32.mrf.mxu0
      %v6309 = vpop.f32.mrf.mxu0
      %v6310 = vadd.f32 0.0, %v6309
      %v6311 = vpop.f32.mrf.mxu0
      %6312 = vmatprep.mubr.bf16.mxu0 0
      %6313 = vmatmul.mubr.bf16.gmra.mxu0 %v6232
      %v6314 = vpop.f32.mrf.mxu0
      %v6315 = vadd.f32 0.0, %v6314
      %v6316 = vpop.f32.mrf.mxu0
      %v6317 = vpop.f32.mrf.mxu0
      %v6318 = vadd.f32 0.0, %v6317
      %v6319 = vpop.f32.mrf.mxu0
      %6320 = vmatprep.mubr.bf16.mxu0 0
      %6321 = vmatmul.mubr.bf16.gmra.mxu0 %v6235
      %v6322 = vpop.f32.mrf.mxu0
      %v6323 = vadd.f32 0.0, %v6322
      %v6324 = vpop.f32.mrf.mxu0
      %v6325 = vpop.f32.mrf.mxu0
      %v6326 = vadd.f32 0.0, %v6325
      %v6327 = vpop.f32.mrf.mxu0
      %6328 = vmatprep.mubr.bf16.mxu0 0
      %6329 = vmatmul.mubr.bf16.gmra.mxu0 %v6238
      %v6330 = vpop.f32.mrf.mxu0
      %v6331 = vadd.f32 0.0, %v6330
      %v6332 = vpop.f32.mrf.mxu0
      %v6333 = vpop.f32.mrf.mxu0
      %v6334 = vadd.f32 0.0, %v6333
      %v6335 = vpop.f32.mrf.mxu0
      %6336 = vdwg.mxu0
      %v6353 = vunpack.c.l.b16 %v6127
      %v6354 = vunpack.c.l.b16 %v6128
      %v6355 = vunpack.c.l.b16 %v6129
      %v6356 = vunpack.c.l.b16 %v6130
      %v6357 = vunpack.c.l.b16 %v6131
      %v6358 = vunpack.c.l.b16 %v6132
      %v6359 = vunpack.c.l.b16 %v6133
      %v6360 = vunpack.c.l.b16 %v6134
      %v6361 = vunpack.c.l.b16 %v6135
      %v6362 = vunpack.c.l.b16 %v6136
      %v6363 = vunpack.c.l.b16 %v6137
      %v6364 = vunpack.c.l.b16 %v6138
      %v6365 = vunpack.c.l.b16 %v6139
      %v6366 = vunpack.c.l.b16 %v6140
      %v6367 = vunpack.c.l.b16 %v6141
      %v6368 = vunpack.c.l.b16 %v6142
      %v6369 = vpack.c.b16 %v6354, %v6353
      %v6370 = vpack.c.b16 %v6356, %v6355
      %v6371 = vpack.c.b16 %v6358, %v6357
      %v6372 = vpack.c.b16 %v6360, %v6359
      %v6373 = vpack.c.b16 %v6362, %v6361
      %v6374 = vpack.c.b16 %v6364, %v6363
      %v6375 = vpack.c.b16 %v6366, %v6365
      %v6376 = vpack.c.b16 %v6368, %v6367
      %6385 = vmatprep.subr.bf16.mxu0 0
      %6386 = vmatpush1.bf16.msra.mxu0 %v6376
      %6387 = vmatprep.subr.bf16.mxu0 0
      %6388 = vmatpush1.bf16.msra.mxu0 %v6375
      %6389 = vmatprep.subr.bf16.mxu0 0
      %6390 = vmatpush1.bf16.msra.mxu0 %v6374
      %6391 = vmatprep.subr.bf16.mxu0 0
      %6392 = vmatpush1.bf16.msra.mxu0 %v6373
      %6393 = vmatprep.subr.bf16.mxu0 0
      %6394 = vmatpush1.bf16.msra.mxu0 %v6372
      %6395 = vmatprep.subr.bf16.mxu0 0
      %6396 = vmatpush1.bf16.msra.mxu0 %v6371
      %6397 = vmatprep.subr.bf16.mxu0 0
      %6398 = vmatpush1.bf16.msra.mxu0 %v6370
      %6399 = vmatprep.subr.bf16.mxu0 0
      %6400 = vmatpush1.bf16.msra.mxu0 %v6369
      %6401 = vmatprep.subr.bf16.mxu0 0
      %6402 = vmatpush2.bf16.msra.mxu0 0
      %6403 = vmatprep.subr.bf16.mxu0 0
      %6404 = vmatpush2.bf16.msra.mxu0 0
      %6405 = vmatprep.subr.bf16.mxu0 0
      %6406 = vmatpush2.bf16.msra.mxu0 0
      %6407 = vmatprep.subr.bf16.mxu0 0
      %6408 = vmatpush2.bf16.msra.mxu0 0
      %6409 = vmatprep.subr.bf16.mxu0 0
      %6410 = vmatpush2.bf16.msra.mxu0 0
      %6411 = vmatprep.subr.bf16.mxu0 0
      %6412 = vmatpush2.bf16.msra.mxu0 0
      %6413 = vmatprep.subr.bf16.mxu0 0
      %6414 = vmatpush2.bf16.msra.mxu0 0
      %6415 = vmatprep.subr.bf16.mxu0 0
      %6416 = vmatpush2.bf16.msra.mxu0 0
      %6417 = vmatprep.mubr.bf16.mxu0 0
      %6418 = vmatmul.mubr.bf16.gmra.mxu0 %v6119
      %v6419 = vpop.f32.mrf.mxu0
      %v6420 = vadd.f32 %v6275, %v6419
      %v6421 = vpop.f32.mrf.mxu0
      %v6422 = vpop.f32.mrf.mxu0
      %v6423 = vadd.f32 %v6278, %v6422
      %v6424 = vpop.f32.mrf.mxu0
      %6425 = vmatprep.mubr.bf16.mxu0 0
      %6426 = vmatmul.mubr.bf16.gmra.mxu0 %v6120
      %v6427 = vpop.f32.mrf.mxu0
      %v6428 = vadd.f32 %v6283, %v6427
      %v6429 = vpop.f32.mrf.mxu0
      %v6430 = vpop.f32.mrf.mxu0
      %v6431 = vadd.f32 %v6286, %v6430
      %v6432 = vpop.f32.mrf.mxu0
      %6433 = vmatprep.mubr.bf16.mxu0 0
      %6434 = vmatmul.mubr.bf16.gmra.mxu0 %v6121
      %v6435 = vpop.f32.mrf.mxu0
      %v6436 = vadd.f32 %v6291, %v6435
      %v6437 = vpop.f32.mrf.mxu0
      %v6438 = vpop.f32.mrf.mxu0
      %v6439 = vadd.f32 %v6294, %v6438
      %v6440 = vpop.f32.mrf.mxu0
      %6441 = vmatprep.mubr.bf16.mxu0 0
      %6442 = vmatmul.mubr.bf16.gmra.mxu0 %v6122
      %v6443 = vpop.f32.mrf.mxu0
      %v6444 = vadd.f32 %v6299, %v6443
      %v6445 = vpop.f32.mrf.mxu0
      %v6446 = vpop.f32.mrf.mxu0
      %v6447 = vadd.f32 %v6302, %v6446
      %v6448 = vpop.f32.mrf.mxu0
      %6449 = vmatprep.mubr.bf16.mxu0 0
      %6450 = vmatmul.mubr.bf16.gmra.mxu0 %v6123
      %v6451 = vpop.f32.mrf.mxu0
      %v6452 = vadd.f32 %v6307, %v6451
      %v6453 = vpop.f32.mrf.mxu0
      %v6454 = vpop.f32.mrf.mxu0
      %v6455 = vadd.f32 %v6310, %v6454
      %v6456 = vpop.f32.mrf.mxu0
      %6457 = vmatprep.mubr.bf16.mxu0 0
      %6458 = vmatmul.mubr.bf16.gmra.mxu0 %v6124
      %v6459 = vpop.f32.mrf.mxu0
      %v6460 = vadd.f32 %v6315, %v6459
      %v6461 = vpop.f32.mrf.mxu0
      %v6462 = vpop.f32.mrf.mxu0
      %v6463 = vadd.f32 %v6318, %v6462
      %v6464 = vpop.f32.mrf.mxu0
      %6465 = vmatprep.mubr.bf16.mxu0 0
      %6466 = vmatmul.mubr.bf16.gmra.mxu0 %v6125
      %v6467 = vpop.f32.mrf.mxu0
      %v6468 = vadd.f32 %v6323, %v6467
      %v6469 = vpop.f32.mrf.mxu0
      %v6470 = vpop.f32.mrf.mxu0
      %v6471 = vadd.f32 %v6326, %v6470
      %v6472 = vpop.f32.mrf.mxu0
      %6473 = vmatprep.mubr.bf16.mxu0 0
      %6474 = vmatmul.mubr.bf16.gmra.mxu0 %v6126
      %v6475 = vpop.f32.mrf.mxu0
      %v6476 = vadd.f32 %v6331, %v6475
      %v6477 = vpop.f32.mrf.mxu0
      %v6478 = vpop.f32.mrf.mxu0
      %v6479 = vadd.f32 %v6334, %v6478
      %v6480 = vpop.f32.mrf.mxu0
      %6481 = vdwg.mxu0
      %v6482 = vld [vmem:[%s13] sm:$0x1]
      %v6484 = vlaneseq
      %v6485 = vshrl.u32 %v6484, 7
      %v6486 = vsub.s32 0, %v6485
      %v6487 = vrot.slane %v6482, %v6486
      %v6489 = vadd.f32 %v6420, %v6487
      %v6490 = vadd.f32 %v6423, %v6487
      %v6491 = vadd.f32 %v6428, %v6487
      %v6492 = vadd.f32 %v6431, %v6487
      %v6493 = vadd.f32 %v6436, %v6487
      %v6494 = vadd.f32 %v6439, %v6487
      %v6495 = vadd.f32 %v6444, %v6487
      %v6496 = vadd.f32 %v6447, %v6487
      %v6497 = vadd.f32 %v6452, %v6487
      %v6498 = vadd.f32 %v6455, %v6487
      %v6499 = vadd.f32 %v6460, %v6487
      %v6500 = vadd.f32 %v6463, %v6487
      %v6501 = vadd.f32 %v6468, %v6487
      %v6502 = vadd.f32 %v6471, %v6487
      %v6503 = vadd.f32 %v6476, %v6487
      %v6504 = vadd.f32 %v6479, %v6487
      %v6505 = vmax.f32 %v6489, 0.0
      %v6506 = vmax.f32 %v6490, 0.0
      %v6507 = vmax.f32 %v6491, 0.0
      %v6508 = vmax.f32 %v6492, 0.0
      %v6509 = vmax.f32 %v6493, 0.0
      %v6510 = vmax.f32 %v6494, 0.0
      %v6511 = vmax.f32 %v6495, 0.0
      %v6512 = vmax.f32 %v6496, 0.0
      %v6513 = vmax.f32 %v6497, 0.0
      %v6514 = vmax.f32 %v6498, 0.0
      %v6515 = vmax.f32 %v6499, 0.0
      %v6516 = vmax.f32 %v6500, 0.0
      %v6517 = vmax.f32 %v6501, 0.0
      %v6518 = vmax.f32 %v6502, 0.0
      %v6519 = vmax.f32 %v6503, 0.0
      %v6520 = vmax.f32 %v6504, 0.0
      %v6521 = vpack.c.bf16 %v6506, %v6505
      %v6522 = vpack.c.bf16 %v6508, %v6507
      %v6523 = vpack.c.bf16 %v6510, %v6509
      %v6524 = vpack.c.bf16 %v6512, %v6511
      %v6525 = vpack.c.bf16 %v6514, %v6513
      %v6526 = vpack.c.bf16 %v6516, %v6515
      %v6527 = vpack.c.bf16 %v6518, %v6517
      %v6528 = vpack.c.bf16 %v6520, %v6519
      %v6529 = vld [vmem:[%s14] sm:$0xf]
      %v6530 = vld [vmem:[%s14 + $0x4] sm:$0xf]
      %v6531 = vld [vmem:[%s14 + $0x8] sm:$0xf]
      %v6532 = vld [vmem:[%s14 + $0xc] sm:$0xf]
      %v6533 = vld [vmem:[%s15] sm:$0x1]
      %v6535 = vlaneseq
      %v6536 = vshrl.u32 %v6535, 7
      %v6537 = vsub.s32 0, %v6536
      %v6538 = vrot.slane %v6533, %v6537
      %v6544 = vunpack.c.l.b16 %v6529
      %v6545 = vunpack.c.l.b16 %v6530
      %v6546 = vunpack.c.l.b16 %v6531
      %v6547 = vunpack.c.l.b16 %v6532
      %v6548 = vpack.c.b16 %v6545, %v6544
      %v6549 = vpack.c.b16 %v6547, %v6546
      %v6553 = vsel %vm6215, %v6521, 0
      %v6556 = vsel %vm6215, %v6522, 0
      %v6559 = vsel %vm6215, %v6523, 0
      %v6562 = vsel %vm6215, %v6524, 0
      %v6565 = vsel %vm6215, %v6525, 0
      %v6568 = vsel %vm6215, %v6526, 0
      %v6571 = vsel %vm6215, %v6527, 0
      %v6574 = vsel %vm6215, %v6528, 0
      %6576 = vmatprep.subr.bf16.mxu0 0
      %6577 = vmatpush1.bf16.msra.mxu0 0
      %6578 = vmatprep.subr.bf16.mxu0 0
      %6579 = vmatpush1.bf16.msra.mxu0 0
      %6580 = vmatprep.subr.bf16.mxu0 0
      %6581 = vmatpush1.bf16.msra.mxu0 0
      %6582 = vmatprep.subr.bf16.mxu0 0
      %6583 = vmatpush1.bf16.msra.mxu0 0
      %6584 = vmatprep.subr.bf16.mxu0 0
      %6585 = vmatpush1.bf16.msra.mxu0 0
      %6586 = vmatprep.subr.bf16.mxu0 0
      %6587 = vmatpush1.bf16.msra.mxu0 0
      %6588 = vmatprep.subr.bf16.mxu0 0
      %6589 = vmatpush1.bf16.msra.mxu0 %v6549
      %6590 = vmatprep.subr.bf16.mxu0 0
      %6591 = vmatpush1.bf16.msra.mxu0 %v6548
      %6592 = vmatprep.subr.bf16.mxu0 0
      %6593 = vmatpush2.bf16.msra.mxu0 0
      %6594 = vmatprep.subr.bf16.mxu0 0
      %6595 = vmatpush2.bf16.msra.mxu0 0
      %6596 = vmatprep.subr.bf16.mxu0 0
      %6597 = vmatpush2.bf16.msra.mxu0 0
      %6598 = vmatprep.subr.bf16.mxu0 0
      %6599 = vmatpush2.bf16.msra.mxu0 0
      %6600 = vmatprep.subr.bf16.mxu0 0
      %6601 = vmatpush2.bf16.msra.mxu0 0
      %6602 = vmatprep.subr.bf16.mxu0 0
      %6603 = vmatpush2.bf16.msra.mxu0 0
      %6604 = vmatprep.subr.bf16.mxu0 0
      %6605 = vmatpush2.bf16.msra.mxu0 0
      %6606 = vmatprep.subr.bf16.mxu0 0
      %6607 = vmatpush2.bf16.msra.mxu0 0
      %6608 = vmatprep.mubr.bf16.mxu0 0
      %6609 = vmatmul.mubr.bf16.gmra.mxu0 %v6553
      %v6610 = vpop.f32.mrf.mxu0
      %v6611 = vadd.f32 %v6538, %v6610
      %v6612 = vpop.f32.mrf.mxu0
      %v6613 = vpop.f32.mrf.mxu0
      %v6614 = vadd.f32 %v6538, %v6613
      %v6615 = vpop.f32.mrf.mxu0
      %6616 = vmatprep.mubr.bf16.mxu0 0
      %6617 = vmatmul.mubr.bf16.gmra.mxu0 %v6556
      %v6618 = vpop.f32.mrf.mxu0
      %v6619 = vadd.f32 %v6538, %v6618
      %v6620 = vpop.f32.mrf.mxu0
      %v6621 = vpop.f32.mrf.mxu0
      %v6622 = vadd.f32 %v6538, %v6621
      %v6623 = vpop.f32.mrf.mxu0
      %6624 = vmatprep.mubr.bf16.mxu0 0
      %6625 = vmatmul.mubr.bf16.gmra.mxu0 %v6559
      %v6626 = vpop.f32.mrf.mxu0
      %v6627 = vadd.f32 %v6538, %v6626
      %v6628 = vpop.f32.mrf.mxu0
      %v6629 = vpop.f32.mrf.mxu0
      %v6630 = vadd.f32 %v6538, %v6629
      %v6631 = vpop.f32.mrf.mxu0
      %6632 = vmatprep.mubr.bf16.mxu0 0
      %6633 = vmatmul.mubr.bf16.gmra.mxu0 %v6562
      %v6634 = vpop.f32.mrf.mxu0
      %v6635 = vadd.f32 %v6538, %v6634
      %v6636 = vpop.f32.mrf.mxu0
      %v6637 = vpop.f32.mrf.mxu0
      %v6638 = vadd.f32 %v6538, %v6637
      %v6639 = vpop.f32.mrf.mxu0
      %6640 = vmatprep.mubr.bf16.mxu0 0
      %6641 = vmatmul.mubr.bf16.gmra.mxu0 %v6565
      %v6642 = vpop.f32.mrf.mxu0
      %v6643 = vadd.f32 %v6538, %v6642
      %v6644 = vpop.f32.mrf.mxu0
      %v6645 = vpop.f32.mrf.mxu0
      %v6646 = vadd.f32 %v6538, %v6645
      %v6647 = vpop.f32.mrf.mxu0
      %6648 = vmatprep.mubr.bf16.mxu0 0
      %6649 = vmatmul.mubr.bf16.gmra.mxu0 %v6568
      %v6650 = vpop.f32.mrf.mxu0
      %v6651 = vadd.f32 %v6538, %v6650
      %v6652 = vpop.f32.mrf.mxu0
      %v6653 = vpop.f32.mrf.mxu0
      %v6654 = vadd.f32 %v6538, %v6653
      %v6655 = vpop.f32.mrf.mxu0
      %6656 = vmatprep.mubr.bf16.mxu0 0
      %6657 = vmatmul.mubr.bf16.gmra.mxu0 %v6571
      %v6658 = vpop.f32.mrf.mxu0
      %v6659 = vadd.f32 %v6538, %v6658
      %v6660 = vpop.f32.mrf.mxu0
      %v6661 = vpop.f32.mrf.mxu0
      %v6662 = vadd.f32 %v6538, %v6661
      %v6663 = vpop.f32.mrf.mxu0
      %6664 = vmatprep.mubr.bf16.mxu0 0
      %6665 = vmatmul.mubr.bf16.gmra.mxu0 %v6574
      %v6666 = vpop.f32.mrf.mxu0
      %v6667 = vadd.f32 %v6538, %v6666
      %v6668 = vpop.f32.mrf.mxu0
      %v6669 = vpop.f32.mrf.mxu0
      %v6670 = vadd.f32 %v6538, %v6669
      %v6671 = vpop.f32.mrf.mxu0
      %6672 = vdwg.mxu0
      %6673 = vst [vmem:[%s622] sm:$0xff] %v6611
      %6674 = vst [vmem:[%s622 + $0x8] sm:$0xff] %v6614
      %6675 = vst [vmem:[%s622 + $0x10] sm:$0xff] %v6619
      %6676 = vst [vmem:[%s622 + $0x18] sm:$0xff] %v6622
      %6677 = vst [vmem:[%s622 + $0x20] sm:$0xff] %v6627
      %6678 = vst [vmem:[%s622 + $0x28] sm:$0xff] %v6630
      %6679 = vst [vmem:[%s622 + $0x30] sm:$0xff] %v6635
      %6680 = vst [vmem:[%s622 + $0x38] sm:$0xff] %v6638
      %6681 = vst [vmem:[%s622 + $0x40] sm:$0xff] %v6643
      %6682 = vst [vmem:[%s622 + $0x48] sm:$0xff] %v6646
      %6683 = vst [vmem:[%s622 + $0x50] sm:$0xff] %v6651
      %6684 = vst [vmem:[%s622 + $0x58] sm:$0xff] %v6654
      %6685 = vst [vmem:[%s622 + $0x60] sm:$0xff] %v6659
      %6686 = vst [vmem:[%s622 + $0x68] sm:$0xff] %v6662
      %6687 = vst [vmem:[%s622 + $0x70] sm:$0xff] %v6667
      %6688 = vst [vmem:[%s622 + $0x78] sm:$0xff] %v6670
      %s6689 = smul.u32 16, %s29
      %p6690 = scmp.lt.s32.totalorder %s6689, 31
      %s6691 = scalar_select %p6690, %s6689, 31
      %s6692 = smul.addr %s6691, 8
      %s6693 = scalar_lea.vmem %s16, %s6692
      %s6694 = smul.u32 16, %s29
      %p6695 = scmp.lt.s32.totalorder %s6694, 31
      %s6696 = scalar_select %p6695, %s6694, 31
      %s6697 = smul.addr %s6696, 8
      %s6698 = scalar_lea.vmem %s17, %s6697
      // Predicated region
      $region85: #{attn_model_forward.1} parent=83 // pred_check
        %p6699 = pneg %p403
      $region86: #{attn_model_forward.1} parent=83 // pred_check_branch
        %6701 = sbr.rel (%p6699) target = $region88
      $region87: #{attn_model_forward.1} parent=83 // pred_region
        %s6702 = smul.u32 16, %s29
      $region88: #{attn_model_forward.1} parent=83 // pred_fallthru
        _
      // Predicated region
      $region89: #{attn_model_forward.1} parent=83 // pred_check
        %p6703 = pneg %p429
      $region90: #{attn_model_forward.1} parent=83 // pred_check_branch
        %6705 = sbr.rel (%p6703) target = $region92
      $region91: #{attn_model_forward.1} parent=83 // pred_region
        %s6706 = smul.u32 16, %s29
      $region92: #{attn_model_forward.1} parent=83 // pred_fallthru
        _
    $region84: #{attn_model_forward.1} parent=5 // pred_fallthru
      _
    %p6707 = scmp.le.s32.totalorder 2, %s24
    // Predicated region
    $region93: #{attn_model_forward.1} parent=5 // pred_check
      %p6708 = pneg %p6707
    $region94: #{attn_model_forward.1} parent=5 // pred_check_branch
      %6710 = sbr.rel (%p6708) target = $region96
    $region95: #{attn_model_forward.1} parent=5 // pred_region
      %s6711 = ssub.s32 %s24, 2
      // Predicated region
      $region97: #{attn_model_forward.1} parent=95 // pred_check
        %p6712 = pneg %p409
      $region98: #{attn_model_forward.1} parent=95 // pred_check_branch
        %6714 = sbr.rel (%p6712) target = $region100
      $region99: #{attn_model_forward.1} parent=95 // pred_region
        %s6715 = smul.u32 16, %s30
        %p6716 = scmp.lt.s32.totalorder %s6715, 31
        %s6717 = scalar_select %p6716, %s6715, 31
        %s6718 = smul.addr %s6717, 8
        %s6719 = scalar_lea.vmem %s16, %s6718
      $region100: #{attn_model_forward.1} parent=95 // pred_fallthru
        _
      // Predicated region
      $region101: #{attn_model_forward.1} parent=95 // pred_check
        %p6720 = pneg %p435
      $region102: #{attn_model_forward.1} parent=95 // pred_check_branch
        %6722 = sbr.rel (%p6720) target = $region104
      $region103: #{attn_model_forward.1} parent=95 // pred_region
        %s6723 = smul.u32 16, %s30
        %p6724 = scmp.lt.s32.totalorder %s6723, 31
        %s6725 = scalar_select %p6724, %s6723, 31
        %s6726 = smul.addr %s6725, 8
        %s6727 = scalar_lea.vmem %s17, %s6726
      $region104: #{attn_model_forward.1} parent=95 // pred_fallthru
        _
    $region96: #{attn_model_forward.1} parent=5 // pred_fallthru
      _
  $region6: #{attn_model_forward.1} parent=0 // loop_footer
    %s28 = sadd.s32 1, %s24
  $region7: #{attn_model_forward.1} parent=0 // loop_footer_branch
    %23 = sbr.rel target = $region3
  $region8: #{attn_model_forward.1} parent=0 // loop_exit
    _

</llo_original>
